<compile_context>
chip_gen: v6e
topology: v6e:2x2x1
jax: 0.10.0
libtpu: 0.0.40
codegen_flags: <defaults>
</compile_context>

<pallas_src>
import functools

import jax
import jax.numpy as jnp
from jax import lax
from jax.experimental import pallas as pl
from jax.experimental.pallas import tpu as pltpu

_LANE = 128
_HIGH = lax.Precision.HIGHEST


def _round_up(n, m):
    return ((n + m - 1) // m) * m


def _small_deep_set_kernel(
    x_ref, pd_ref,
    w1_ref, w234_ref, b_enc_ref, wd1h_ref, wd2_ref, bd2_ref,
    out_ref,
    *, bt, s,
):
    f32 = jnp.float32

    # ---- encoder on a (bt*s, inp_dim) row slab: Linear/ReLU x3 + final Linear ----
    h = jnp.dot(x_ref[...], w1_ref[...], preferred_element_type=f32) + b_enc_ref[0:1, :]
    h = jnp.maximum(h, 0.0)
    h = jnp.dot(h, w234_ref[0], preferred_element_type=f32) + b_enc_ref[1:2, :]
    h = jnp.maximum(h, 0.0)
    h = jnp.dot(h, w234_ref[1], preferred_element_type=f32) + b_enc_ref[2:3, :]
    h = jnp.maximum(h, 0.0)
    h = jnp.dot(h, w234_ref[2], preferred_element_type=f32) + b_enc_ref[3:4, :]
    # (bt*s, h_dim); no ReLU after the last encoder layer.

    # ---- pool: x.max(dim=1)[0] per row, grouped per set -> (bt, s) MXU LHS ----
    pooled = jnp.max(h.reshape(bt, s, h.shape[-1]), axis=2)

    # ---- decoder: pooled half in-kernel, data half precomputed (pd_ref, lane-dense) ----
    part_h = jnp.dot(pooled, wd1h_ref[...], preferred_element_type=f32)      # (bt, 128)
    z = jnp.maximum(part_h + pd_ref[...], 0.0)                               # (bt, 128)
    out_ref[...] = (jnp.dot(z, wd2_ref[...], preferred_element_type=f32)
                    + bd2_ref[...])                                          # (bt, 128)


def pack_params(params, lane=_LANE):
    """One-time repack of the 12 PyTorch-style tensors into 8 kernel/wrapper operands."""
    (w1, b1, w2, b2, w3, b3, w4, b4, wd1, bd1, wd2, bd2) = params
    f32 = jnp.float32
    h_dim = w1.shape[1]
    out_dim = wd2.shape[1]
    out_pad = _round_up(out_dim, lane)
    cpad = out_pad - out_dim

    w1p = jnp.asarray(w1, f32)                                         # (inp, h)
    w234 = jnp.stack([w2, w3, w4], axis=0).astype(f32)                 # (3, h, h)
    b_enc = jnp.stack([b1, b2, b3, b4], axis=0).astype(f32)            # (4, h)
    wd1h = jnp.pad(jnp.asarray(wd1[:h_dim, :], f32), ((0, 0), (0, cpad)))   # (h, 128)
    wd1d = jnp.pad(jnp.asarray(wd1[h_dim:, :], f32), ((0, 0), (0, cpad)))   # (data, 128)
    bd1p = jnp.pad(jnp.asarray(bd1, f32).reshape(1, -1), ((0, 0), (0, cpad)))
    wd2p = jnp.pad(jnp.asarray(wd2, f32), ((0, cpad), (0, cpad)))            # (128, 128)
    bd2p = jnp.pad(jnp.asarray(bd2, f32).reshape(1, -1), ((0, 0), (0, cpad)))
    return (w1p, w234, b_enc, wd1h, wd1d, bd1p, wd2p, bd2p, out_dim)


def small_deep_set_forward_batched(x, data, packed, *, sets_per_step=32):
    """x: (B, S, inp_dim) with S == h_dim; data: (B, data_dim). Returns (B, output_dim)."""
    (w1, w234, b_enc, wd1h, wd1d, bd1, wd2p, bd2p, out_dim) = packed
    B, S, inp_dim = x.shape
    h_dim = w1.shape[1]
    data_dim = wd1d.shape[0]
    out_pad = wd2p.shape[1]
    if S != h_dim:
        raise ValueError("SmallDeepSet requires set size == h_dim (inherited from the "
                         "PyTorch cat([x.max(dim=1)[0], data], dim=0) shape constraint).")
    if data.shape != (B, data_dim):
        raise ValueError(f"data must be (B, {data_dim}), got {data.shape}")

    # sets per grid step: multiple of 8, no larger than the padded batch.
    bt = min(_round_up(max(sets_per_step, 1), 8), _round_up(B, 8))
    Bp = _round_up(B, bt)

    x = x.astype(jnp.float32)
    data = data.astype(jnp.float32)

    # Data half of dec's first Linear as ONE well-shaped XLA GEMM, lane-dense (B, 128).
    part_d = jnp.dot(data, wd1d, precision=_HIGH,
                     preferred_element_type=jnp.float32) + bd1

    if Bp != B:
        x = jnp.pad(x, ((0, Bp - B), (0, 0), (0, 0)))
        part_d = jnp.pad(part_d, ((0, Bp - B), (0, 0)))
    x_flat = x.reshape(Bp * S, inp_dim)

    grid = (Bp // bt,)
    flops = (2 * Bp * S * (inp_dim * h_dim + 3 * h_dim * h_dim)
             + 2 * Bp * (h_dim * out_pad + out_pad * out_pad))
    bytes_accessed = 4 * (x_flat.size + part_d.size + Bp * out_pad
                          + w1.size + w234.size + b_enc.size
                          + wd1h.size + wd2p.size + bd2p.size)

    comp = {"dimension_semantics": ("parallel",)}
    # Per-step working set (double-buffered x / part_d / out tiles + activations).
    step_bytes = 4 * (2 * (bt * S * inp_dim + 2 * bt * out_pad) + bt * S * h_dim)
    if step_bytes > (24 << 20):
        comp["vmem_limit_bytes"] = min(2 * step_bytes, 64 << 20)

    kernel = functools.partial(_small_deep_set_kernel, bt=bt, s=S)

    out = pl.pallas_call(
        kernel,
        out_shape=jax.ShapeDtypeStruct((Bp, out_pad), jnp.float32),
        grid_spec=pltpu.PrefetchScalarGridSpec(
            num_scalar_prefetch=0,
            grid=grid,
            in_specs=[
                # per-step operands
                pl.BlockSpec((bt * S, inp_dim), lambda i: (i, 0)),
                pl.BlockSpec((bt, out_pad), lambda i: (i, 0)),
                # weights: constant block index -> VMEM-resident across the whole grid
                pl.BlockSpec(w1.shape, lambda i: (0, 0)),
                pl.BlockSpec(w234.shape, lambda i: (0, 0, 0)),
                pl.BlockSpec(b_enc.shape, lambda i: (0, 0)),
                pl.BlockSpec(wd1h.shape, lambda i: (0, 0)),
                pl.BlockSpec(wd2p.shape, lambda i: (0, 0)),
                pl.BlockSpec(bd2p.shape, lambda i: (0, 0)),
            ],
            out_specs=pl.BlockSpec((bt, out_pad), lambda i: (i, 0)),
        ),
        compiler_params=pltpu.CompilerParams(**comp),
        cost_estimate=pl.CostEstimate(flops=flops, transcendentals=0,
                                      bytes_accessed=bytes_accessed),
    )(x_flat, part_d, w1, w234, b_enc, wd1h, wd2p, bd2p)

    return out[:B, :out_dim]


def small_deep_set_forward(x, data, packed, **kwargs):
    """Exact module semantics: x (S, inp_dim), data (data_dim,) -> (output_dim,)."""
    return small_deep_set_forward_batched(x[None], data[None], packed, **kwargs)[0]


def reference_forward(x, data, params):
    """Pure-JAX mirror of the PyTorch forward (high-precision, for correctness checks)."""
    (w1, b1, w2, b2, w3, b3, w4, b4, wd1, bd1, wd2, bd2) = params
    mm = lambda a, b: jnp.dot(a, b, precision=_HIGH)
    h = jnp.maximum(mm(x, w1) + b1, 0.0)
    h = jnp.maximum(mm(h, w2) + b2, 0.0)
    h = jnp.maximum(mm(h, w3) + b3, 0.0)
    h = mm(h, w4) + b4
    pooled = jnp.max(h, axis=1)                       # x.max(dim=1)[0]
    cat = jnp.concatenate([pooled, data], axis=0)     # torch.cat([x, data], dim=0)
    z = jnp.maximum(mm(cat, wd1) + bd1, 0.0)
    return mm(z, wd2) + bd2


def init_params(key, inp_dim, h_dim, data_dim, output_dim):
    def linear(k, fan_in, fan_out):
        kw, kb = jax.random.split(k)
        scale = 1.0 / jnp.sqrt(fan_in)
        w = jax.random.uniform(kw, (fan_in, fan_out), jnp.float32, -scale, scale)
        b = jax.random.uniform(kb, (fan_out,), jnp.float32, -scale, scale)
        return w, b

    ks = jax.random.split(key, 6)
    w1, b1 = linear(ks[0], inp_dim, h_dim)
    w2, b2 = linear(ks[1], h_dim, h_dim)
    w3, b3 = linear(ks[2], h_dim, h_dim)
    w4, b4 = linear(ks[3], h_dim, h_dim)
    wd1, bd1 = linear(ks[4], h_dim + data_dim, output_dim)
    wd2, bd2 = linear(ks[5], output_dim, output_dim)
    return (w1, b1, w2, b2, w3, b3, w4, b4, wd1, bd1, wd2, bd2)


if __name__ == "__main__":
    # small shapes consistent with the module (defaults are 16 / 64 / 2048 / 10)
    inp_dim, h_dim, data_dim, output_dim = 16, 64, 256, 10
    set_size = h_dim   # required so cat([pooled, data]) has h_dim + data_dim elements
    batch = 64         # with sets_per_step=32 -> grid of 2 (both TensorCores on v7x)

    key = jax.random.PRNGKey(0)
    kx, kd, kp = jax.random.split(key, 3)
    x = jax.random.normal(kx, (batch, set_size, inp_dim), jnp.float32)
    data = jax.random.normal(kd, (batch, data_dim), jnp.float32)
    params = init_params(kp, inp_dim, h_dim, data_dim, output_dim)
    packed = pack_params(params)

    out = jax.block_until_ready(
        small_deep_set_forward_batched(x, data, packed, sets_per_step=32))
    ref = jax.block_until_ready(
        jax.vmap(lambda xb, db: reference_forward(xb, db, params))(x, data))

    assert out.shape == (batch, output_dim), out.shape
    assert jnp.allclose(out, ref, atol=1e-3, rtol=1e-3), (out, ref)

    # single-set path (exact PyTorch-module call signature)
    out1 = jax.block_until_ready(small_deep_set_forward(x[0], data[0], packed))
    assert out1.shape == (output_dim,), out1.shape
    assert jnp.allclose(out1, ref[0], atol=1e-3, rtol=1e-3), (out1, ref[0])

    print("KERNEL_OK")
</pallas_src>

<mosaic_0001>
module attributes {stable_mosaic.version = 11 : i64} {
  func.func @_small_deep_set_kernel(%arg0: i32, %arg1: memref<2048x16xf32, #tpu.memory_space<vmem>>, %arg2: memref<32x128xf32, #tpu.memory_space<vmem>>, %arg3: memref<16x64xf32, #tpu.memory_space<vmem>>, %arg4: memref<3x64x64xf32, #tpu.memory_space<vmem>>, %arg5: memref<4x64xf32, #tpu.memory_space<vmem>>, %arg6: memref<64x128xf32, #tpu.memory_space<vmem>>, %arg7: memref<128x128xf32, #tpu.memory_space<vmem>>, %arg8: memref<1x128xf32, #tpu.memory_space<vmem>>, %arg9: memref<32x128xf32, #tpu.memory_space<vmem>>) attributes {dimension_semantics = [#tpu.dimension_semantics<parallel>], iteration_bounds = array<i64: 2>, scalar_prefetch = 0 : i64, scratch_operands = 0 : i64, tpu.core_type = #tpu.core_type<tc>, window_params = [{transform_indices = @transform_0, window_bounds = array<i64: 2048, 16>}, {transform_indices = @transform_1, window_bounds = array<i64: 32, 128>}, {pipeline_mode = #tpu.pipeline_mode<synchronous>, transform_indices = @transform_2, window_bounds = array<i64: 16, 64>}, {pipeline_mode = #tpu.pipeline_mode<synchronous>, transform_indices = @transform_3, window_bounds = array<i64: 3, 64, 64>}, {pipeline_mode = #tpu.pipeline_mode<synchronous>, transform_indices = @transform_4, window_bounds = array<i64: 4, 64>}, {pipeline_mode = #tpu.pipeline_mode<synchronous>, transform_indices = @transform_5, window_bounds = array<i64: 64, 128>}, {pipeline_mode = #tpu.pipeline_mode<synchronous>, transform_indices = @transform_6, window_bounds = array<i64: 128, 128>}, {pipeline_mode = #tpu.pipeline_mode<synchronous>, transform_indices = @transform_7, window_bounds = array<i64: 1, 128>}, {transform_indices = @transform_8, window_bounds = array<i64: 32, 128>}]} {
    %c0 = arith.constant 0 : index
    %c0_0 = arith.constant 0 : index
    %0 = vector.load %arg1[%c0, %c0_0] : memref<2048x16xf32, #tpu.memory_space<vmem>>, vector<2048x16xf32>
    %c0_1 = arith.constant 0 : index
    %c0_2 = arith.constant 0 : index
    %1 = vector.load %arg3[%c0_1, %c0_2] : memref<16x64xf32, #tpu.memory_space<vmem>>, vector<16x64xf32>
    %cst = arith.constant dense<0.000000e+00> : vector<2048x64xf32>
    %2 = tpu.matmul %0, %1, %cst {dimension_numbers = #tpu.dot_dimension_numbers<[1], [0], [0], [1], [0, 0, 1, 1], [], []>} : vector<2048x16xf32>, vector<16x64xf32>, vector<2048x64xf32> -> vector<2048x64xf32>
    %c0_3 = arith.constant 0 : index
    %c0_4 = arith.constant 0 : index
    %3 = vector.load %arg5[%c0_3, %c0_4] : memref<4x64xf32, #tpu.memory_space<vmem>>, vector<1x64xf32>
    %4 = vector.broadcast %3 : vector<1x64xf32> to vector<2048x64xf32>
    %5 = arith.addf %2, %4 : vector<2048x64xf32>
    %cst_5 = arith.constant 0.000000e+00 : f32
    %6 = vector.broadcast %cst_5 : f32 to vector<2048x64xf32>
    %7 = arith.maximumf %5, %6 : vector<2048x64xf32>
    %c0_6 = arith.constant 0 : index
    %c0_7 = arith.constant 0 : index
    %c0_8 = arith.constant 0 : index
    %8 = vector.load %arg4[%c0_6, %c0_7, %c0_8] : memref<3x64x64xf32, #tpu.memory_space<vmem>>, vector<1x64x64xf32>
    %9 = vector.shape_cast %8 : vector<1x64x64xf32> to vector<64x64xf32>
    %cst_9 = arith.constant dense<0.000000e+00> : vector<2048x64xf32>
    %10 = tpu.matmul %7, %9, %cst_9 {dimension_numbers = #tpu.dot_dimension_numbers<[1], [0], [0], [1], [0, 0, 1, 1], [], []>} : vector<2048x64xf32>, vector<64x64xf32>, vector<2048x64xf32> -> vector<2048x64xf32>
    %c1 = arith.constant 1 : index
    %c0_10 = arith.constant 0 : index
    %11 = vector.load %arg5[%c1, %c0_10] : memref<4x64xf32, #tpu.memory_space<vmem>>, vector<1x64xf32>
    %12 = vector.broadcast %11 : vector<1x64xf32> to vector<2048x64xf32>
    %13 = arith.addf %10, %12 : vector<2048x64xf32>
    %cst_11 = arith.constant 0.000000e+00 : f32
    %14 = vector.broadcast %cst_11 : f32 to vector<2048x64xf32>
    %15 = arith.maximumf %13, %14 : vector<2048x64xf32>
    %c1_12 = arith.constant 1 : index
    %c0_13 = arith.constant 0 : index
    %c0_14 = arith.constant 0 : index
    %16 = vector.load %arg4[%c1_12, %c0_13, %c0_14] : memref<3x64x64xf32, #tpu.memory_space<vmem>>, vector<1x64x64xf32>
    %17 = vector.shape_cast %16 : vector<1x64x64xf32> to vector<64x64xf32>
    %cst_15 = arith.constant dense<0.000000e+00> : vector<2048x64xf32>
    %18 = tpu.matmul %15, %17, %cst_15 {dimension_numbers = #tpu.dot_dimension_numbers<[1], [0], [0], [1], [0, 0, 1, 1], [], []>} : vector<2048x64xf32>, vector<64x64xf32>, vector<2048x64xf32> -> vector<2048x64xf32>
    %c2 = arith.constant 2 : index
    %c0_16 = arith.constant 0 : index
    %19 = vector.load %arg5[%c2, %c0_16] : memref<4x64xf32, #tpu.memory_space<vmem>>, vector<1x64xf32>
    %20 = vector.broadcast %19 : vector<1x64xf32> to vector<2048x64xf32>
    %21 = arith.addf %18, %20 : vector<2048x64xf32>
    %cst_17 = arith.constant 0.000000e+00 : f32
    %22 = vector.broadcast %cst_17 : f32 to vector<2048x64xf32>
    %23 = arith.maximumf %21, %22 : vector<2048x64xf32>
    %c2_18 = arith.constant 2 : index
    %c0_19 = arith.constant 0 : index
    %c0_20 = arith.constant 0 : index
    %24 = vector.load %arg4[%c2_18, %c0_19, %c0_20] : memref<3x64x64xf32, #tpu.memory_space<vmem>>, vector<1x64x64xf32>
    %25 = vector.shape_cast %24 : vector<1x64x64xf32> to vector<64x64xf32>
    %cst_21 = arith.constant dense<0.000000e+00> : vector<2048x64xf32>
    %26 = tpu.matmul %23, %25, %cst_21 {dimension_numbers = #tpu.dot_dimension_numbers<[1], [0], [0], [1], [0, 0, 1, 1], [], []>} : vector<2048x64xf32>, vector<64x64xf32>, vector<2048x64xf32> -> vector<2048x64xf32>
    %c3 = arith.constant 3 : index
    %c0_22 = arith.constant 0 : index
    %27 = vector.load %arg5[%c3, %c0_22] : memref<4x64xf32, #tpu.memory_space<vmem>>, vector<1x64xf32>
    %28 = vector.broadcast %27 : vector<1x64xf32> to vector<2048x64xf32>
    %29 = arith.addf %26, %28 : vector<2048x64xf32>
    %30 = vector.shape_cast %29 : vector<2048x64xf32> to vector<32x64x64xf32>
    %cst_23 = arith.constant dense<0xFF800000> : vector<32x64xf32>
    %31 = vector.multi_reduction <maximumf>, %30, %cst_23 [2] : vector<32x64x64xf32> to vector<32x64xf32>
    %c0_24 = arith.constant 0 : index
    %c0_25 = arith.constant 0 : index
    %32 = vector.load %arg6[%c0_24, %c0_25] : memref<64x128xf32, #tpu.memory_space<vmem>>, vector<64x128xf32>
    %cst_26 = arith.constant dense<0.000000e+00> : vector<32x128xf32>
    %33 = tpu.matmul %31, %32, %cst_26 {dimension_numbers = #tpu.dot_dimension_numbers<[1], [0], [0], [1], [0, 0, 1, 1], [], []>} : vector<32x64xf32>, vector<64x128xf32>, vector<32x128xf32> -> vector<32x128xf32>
    %c0_27 = arith.constant 0 : index
    %c0_28 = arith.constant 0 : index
    %34 = vector.load %arg2[%c0_27, %c0_28] : memref<32x128xf32, #tpu.memory_space<vmem>>, vector<32x128xf32>
    %35 = arith.addf %33, %34 : vector<32x128xf32>
    %cst_29 = arith.constant 0.000000e+00 : f32
    %36 = vector.broadcast %cst_29 : f32 to vector<32x128xf32>
    %37 = arith.maximumf %35, %36 : vector<32x128xf32>
    %c0_30 = arith.constant 0 : index
    %c0_31 = arith.constant 0 : index
    %38 = vector.load %arg7[%c0_30, %c0_31] : memref<128x128xf32, #tpu.memory_space<vmem>>, vector<128x128xf32>
    %cst_32 = arith.constant dense<0.000000e+00> : vector<32x128xf32>
    %39 = tpu.matmul %37, %38, %cst_32 {dimension_numbers = #tpu.dot_dimension_numbers<[1], [0], [0], [1], [0, 0, 1, 1], [], []>} : vector<32x128xf32>, vector<128x128xf32>, vector<32x128xf32> -> vector<32x128xf32>
    %c0_33 = arith.constant 0 : index
    %c0_34 = arith.constant 0 : index
    %40 = vector.load %arg8[%c0_33, %c0_34] : memref<1x128xf32, #tpu.memory_space<vmem>>, vector<1x128xf32>
    %41 = vector.broadcast %40 : vector<1x128xf32> to vector<32x128xf32>
    %42 = arith.addf %39, %41 : vector<32x128xf32>
    %c0_35 = arith.constant 0 : index
    %c0_36 = arith.constant 0 : index
    %43 = vector.load %arg9[%c0_35, %c0_36] : memref<32x128xf32, #tpu.memory_space<vmem>>, vector<32x128xf32>
    tpu.vector_store %arg9[%c0_35, %c0_36], %42 {strides = array<i32>} : memref<32x128xf32, #tpu.memory_space<vmem>>, vector<32x128xf32>,
    return
  }
  func.func @transform_0(%arg0: i32) -> (i32, i32) {
    %c0_i32 = arith.constant 0 : i32
    %c0_i32_0 = arith.constant 0 : i32
    return %arg0, %c0_i32 : i32, i32
  }
  func.func @transform_1(%arg0: i32) -> (i32, i32) {
    %c0_i32 = arith.constant 0 : i32
    %c0_i32_0 = arith.constant 0 : i32
    return %arg0, %c0_i32 : i32, i32
  }
  func.func @transform_2(%arg0: i32) -> (i32, i32) {
    %c0_i32 = arith.constant 0 : i32
    %c0_i32_0 = arith.constant 0 : i32
    %c0_i32_1 = arith.constant 0 : i32
    return %c0_i32, %c0_i32_0 : i32, i32
  }
  func.func @transform_3(%arg0: i32) -> (i32, i32, i32) {
    %c0_i32 = arith.constant 0 : i32
    %c0_i32_0 = arith.constant 0 : i32
    %c0_i32_1 = arith.constant 0 : i32
    %c0_i32_2 = arith.constant 0 : i32
    return %c0_i32, %c0_i32_0, %c0_i32_1 : i32, i32, i32
  }
  func.func @transform_4(%arg0: i32) -> (i32, i32) {
    %c0_i32 = arith.constant 0 : i32
    %c0_i32_0 = arith.constant 0 : i32
    %c0_i32_1 = arith.constant 0 : i32
    return %c0_i32, %c0_i32_0 : i32, i32
  }
  func.func @transform_5(%arg0: i32) -> (i32, i32) {
    %c0_i32 = arith.constant 0 : i32
    %c0_i32_0 = arith.constant 0 : i32
    %c0_i32_1 = arith.constant 0 : i32
    return %c0_i32, %c0_i32_0 : i32, i32
  }
  func.func @transform_6(%arg0: i32) -> (i32, i32) {
    %c0_i32 = arith.constant 0 : i32
    %c0_i32_0 = arith.constant 0 : i32
    %c0_i32_1 = arith.constant 0 : i32
    return %c0_i32, %c0_i32_0 : i32, i32
  }
  func.func @transform_7(%arg0: i32) -> (i32, i32) {
    %c0_i32 = arith.constant 0 : i32
    %c0_i32_0 = arith.constant 0 : i32
    %c0_i32_1 = arith.constant 0 : i32
    return %c0_i32, %c0_i32_0 : i32, i32
  }
  func.func @transform_8(%arg0: i32) -> (i32, i32) {
    %c0_i32 = arith.constant 0 : i32
    %c0_i32_0 = arith.constant 0 : i32
    return %arg0, %c0_i32 : i32, i32
  }
}

</mosaic_0001>

<llo_original>
// kernel: tpu_custom_call.1
$region0: #{tpu_custom_call.1}
  #allocation0 [shape = 'u32[]', space=smem, size = 0x4, offset = 0x4, fixed_abs, tag = 'smem constant byte address 0x4 - core index']
  #allocation1 [shape = 'u32[144,128]{1,0:T(1,128)}', space=vmem, size = 0x12000, scoped, tag = 'internal scratch']
  %s0 = inlined_call_operand.vmem [shape: f32[4096,16], index: 0, kind: input, shape index: {}]
  %s1 = inlined_call_operand.vmem [shape: f32[64,128], index: 1, kind: input, shape index: {}]
  %s2 = inlined_call_operand.vmem [shape: f32[16,64], index: 2, kind: input, shape index: {}]
  %s3 = inlined_call_operand.vmem [shape: f32[3,64,64], index: 3, kind: input, shape index: {}]
  %s4 = inlined_call_operand.vmem [shape: f32[4,64], index: 4, kind: input, shape index: {}]
  %s5 = inlined_call_operand.vmem [shape: f32[64,128], index: 5, kind: input, shape index: {}]
  %s6 = inlined_call_operand.vmem [shape: f32[128,128], index: 6, kind: input, shape index: {}]
  %s7 = inlined_call_operand.vmem [shape: f32[1,128], index: 7, kind: input, shape index: {}]
  %s8 = inlined_call_operand.hbm [shape: f32[64,128], index: 8, kind: output, shape index: {}]
  %s9 = sld [smem:[#allocation0]]
  $region65: #{tpu_custom_call.1} parent=0
    _
  %s11 = ssub.s32 1, %s9
  %s12 = scalar_select 0, %s11, %s9
  $region1: #{tpu_custom_call.1} parent=0
    #allocation2 [shape = 'u8[32768]{0}', space=vmem, size = 0x8000, scoped, tag = 'output window, operand 0']
    #allocation3 [shape = 's32[2]{0}', space=sflag, size = 0x8, scoped, tag = 'scoped memory for tpu_custom_call.1']
    %13 = vsyncpa [#allocation3], 0
    %s14 = scalar_lea.sflag [#allocation3], 1
    %15 = vsyncpa %s14, 0
    loop: start=0, step=1, limit=4
    $region2: #{tpu_custom_call.1} parent=1 // loop_pre_header
      _
    $region3: #{tpu_custom_call.1} parent=1 // loop_header
      %s17 = sphi 0, %s21
      %p18 = scmp.ge.s32.totalorder %s17, 4
      %s27 = sphi 0, %s29
      %s30 = sphi 0, %s27
      %s31 = sphi 0, %s30
      %s47 = sphi 0, %s31
      %s53 = sphi 0, %s55
      %s56 = sphi 0, %s53
      %s57 = sphi 0, %s56
      %s73 = sphi 0, %s57
      %s77 = sphi 0, %s77
      %s79 = sphi 0, %s77
      %s80 = sphi 0, %s79
      %s94 = sphi 0, %s80
      %s98 = sphi 0, %s98
      %s100 = sphi 0, %s98
      %s101 = sphi 0, %s100
      %s115 = sphi 0, %s101
      %s119 = sphi 0, %s119
      %s121 = sphi 0, %s119
      %s122 = sphi 0, %s121
      %s136 = sphi 0, %s122
      %s140 = sphi 0, %s140
      %s142 = sphi 0, %s140
      %s143 = sphi 0, %s142
      %s157 = sphi 0, %s143
      %s161 = sphi 0, %s161
      %s163 = sphi 0, %s161
      %s164 = sphi 0, %s163
      %s178 = sphi 0, %s164
      %s182 = sphi 0, %s182
      %s184 = sphi 0, %s182
      %s185 = sphi 0, %s184
      %s199 = sphi 0, %s185
      %s205 = sphi 0, %s207
      %s208 = sphi 0, %s205
      %s209 = sphi 0, %s208
      %s225 = sphi 0, %s209
    $region4: #{tpu_custom_call.1} parent=1 // loop_header_branch
      %20 = sbr.rel (%p18) target = $region8
    $region5: #{tpu_custom_call.1} parent=1 // loop_body
      %s22 = ssub.s32 %s17, 1
      %s23 = ssub.s32 %s17, 2
      %s24 = sadd.s32 %s17, 1
      %s25 = ssub.s32 %s17, %s24
      %p26 = scmp.eq.s32.totalorder %s25, 0
      %s28 = sadd.s32 %s27, 1
      %s29 = scalar_select %p26, %s27, %s28
      %p32 = pneg %p26
      %p33 = scmp.eq.s32.totalorder %s17, 1
      %p34 = por %p32, %p33
      %p35 = scmp.ne.s32.totalorder %s27, %s30
      %p36 = scmp.eq.s32.totalorder %s17, 0
      %p37 = por %p35, %p36
      %p38 = scmp.ne.s32.totalorder %s27, %s30
      %p39 = scmp.eq.s32.totalorder %s22, 1
      %p40 = por %p38, %p39
      %p41 = scmp.ne.s32.totalorder %s30, %s31
      %p42 = scmp.eq.s32.totalorder %s22, 0
      %p43 = por %p41, %p42
      %p44 = scmp.ne.s32.totalorder %s30, %s31
      %p45 = scmp.eq.s32.totalorder %s23, 1
      %p46 = por %p44, %p45
      %p48 = scmp.ne.s32.totalorder %s31, %s47
      %p49 = scmp.eq.s32.totalorder %s23, 0
      %p50 = por %p48, %p49
      %s51 = ssub.s32 %s17, %s24
      %p52 = scmp.eq.s32.totalorder %s51, 0
      %s54 = sadd.s32 %s53, 1
      %s55 = scalar_select %p52, %s53, %s54
      %p58 = pneg %p52
      %p59 = scmp.eq.s32.totalorder %s17, 1
      %p60 = por %p58, %p59
      %p61 = scmp.ne.s32.totalorder %s53, %s56
      %p62 = scmp.eq.s32.totalorder %s17, 0
      %p63 = por %p61, %p62
      %p64 = scmp.ne.s32.totalorder %s53, %s56
      %p65 = scmp.eq.s32.totalorder %s22, 1
      %p66 = por %p64, %p65
      %p67 = scmp.ne.s32.totalorder %s56, %s57
      %p68 = scmp.eq.s32.totalorder %s22, 0
      %p69 = por %p67, %p68
      %p70 = scmp.ne.s32.totalorder %s56, %s57
      %p71 = scmp.eq.s32.totalorder %s23, 1
      %p72 = por %p70, %p71
      %p74 = scmp.ne.s32.totalorder %s57, %s73
      %p75 = scmp.eq.s32.totalorder %s23, 0
      %p76 = por %p74, %p75
      %s78 = sadd.s32 %s77, 1
      %p81 = scmp.eq.s32.totalorder %s17, 1
      %p82 = scmp.ne.s32.totalorder %s77, %s79
      %p83 = scmp.eq.s32.totalorder %s17, 0
      %p84 = por %p82, %p83
      %p85 = scmp.ne.s32.totalorder %s77, %s79
      %p86 = scmp.eq.s32.totalorder %s22, 1
      %p87 = por %p85, %p86
      %p88 = scmp.ne.s32.totalorder %s79, %s80
      %p89 = scmp.eq.s32.totalorder %s22, 0
      %p90 = por %p88, %p89
      %p91 = scmp.ne.s32.totalorder %s79, %s80
      %p92 = scmp.eq.s32.totalorder %s23, 1
      %p93 = por %p91, %p92
      %p95 = scmp.ne.s32.totalorder %s80, %s94
      %p96 = scmp.eq.s32.totalorder %s23, 0
      %p97 = por %p95, %p96
      %s99 = sadd.s32 %s98, 1
      %p102 = scmp.eq.s32.totalorder %s17, 1
      %p103 = scmp.ne.s32.totalorder %s98, %s100
      %p104 = scmp.eq.s32.totalorder %s17, 0
      %p105 = por %p103, %p104
      %p106 = scmp.ne.s32.totalorder %s98, %s100
      %p107 = scmp.eq.s32.totalorder %s22, 1
      %p108 = por %p106, %p107
      %p109 = scmp.ne.s32.totalorder %s100, %s101
      %p110 = scmp.eq.s32.totalorder %s22, 0
      %p111 = por %p109, %p110
      %p112 = scmp.ne.s32.totalorder %s100, %s101
      %p113 = scmp.eq.s32.totalorder %s23, 1
      %p114 = por %p112, %p113
      %p116 = scmp.ne.s32.totalorder %s101, %s115
      %p117 = scmp.eq.s32.totalorder %s23, 0
      %p118 = por %p116, %p117
      %s120 = sadd.s32 %s119, 1
      %p123 = scmp.eq.s32.totalorder %s17, 1
      %p124 = scmp.ne.s32.totalorder %s119, %s121
      %p125 = scmp.eq.s32.totalorder %s17, 0
      %p126 = por %p124, %p125
      %p127 = scmp.ne.s32.totalorder %s119, %s121
      %p128 = scmp.eq.s32.totalorder %s22, 1
      %p129 = por %p127, %p128
      %p130 = scmp.ne.s32.totalorder %s121, %s122
      %p131 = scmp.eq.s32.totalorder %s22, 0
      %p132 = por %p130, %p131
      %p133 = scmp.ne.s32.totalorder %s121, %s122
      %p134 = scmp.eq.s32.totalorder %s23, 1
      %p135 = por %p133, %p134
      %p137 = scmp.ne.s32.totalorder %s122, %s136
      %p138 = scmp.eq.s32.totalorder %s23, 0
      %p139 = por %p137, %p138
      %s141 = sadd.s32 %s140, 1
      %p144 = scmp.eq.s32.totalorder %s17, 1
      %p145 = scmp.ne.s32.totalorder %s140, %s142
      %p146 = scmp.eq.s32.totalorder %s17, 0
      %p147 = por %p145, %p146
      %p148 = scmp.ne.s32.totalorder %s140, %s142
      %p149 = scmp.eq.s32.totalorder %s22, 1
      %p150 = por %p148, %p149
      %p151 = scmp.ne.s32.totalorder %s142, %s143
      %p152 = scmp.eq.s32.totalorder %s22, 0
      %p153 = por %p151, %p152
      %p154 = scmp.ne.s32.totalorder %s142, %s143
      %p155 = scmp.eq.s32.totalorder %s23, 1
      %p156 = por %p154, %p155
      %p158 = scmp.ne.s32.totalorder %s143, %s157
      %p159 = scmp.eq.s32.totalorder %s23, 0
      %p160 = por %p158, %p159
      %s162 = sadd.s32 %s161, 1
      %p165 = scmp.eq.s32.totalorder %s17, 1
      %p166 = scmp.ne.s32.totalorder %s161, %s163
      %p167 = scmp.eq.s32.totalorder %s17, 0
      %p168 = por %p166, %p167
      %p169 = scmp.ne.s32.totalorder %s161, %s163
      %p170 = scmp.eq.s32.totalorder %s22, 1
      %p171 = por %p169, %p170
      %p172 = scmp.ne.s32.totalorder %s163, %s164
      %p173 = scmp.eq.s32.totalorder %s22, 0
      %p174 = por %p172, %p173
      %p175 = scmp.ne.s32.totalorder %s163, %s164
      %p176 = scmp.eq.s32.totalorder %s23, 1
      %p177 = por %p175, %p176
      %p179 = scmp.ne.s32.totalorder %s164, %s178
      %p180 = scmp.eq.s32.totalorder %s23, 0
      %p181 = por %p179, %p180
      %s183 = sadd.s32 %s182, 1
      %p186 = scmp.eq.s32.totalorder %s17, 1
      %p187 = scmp.ne.s32.totalorder %s182, %s184
      %p188 = scmp.eq.s32.totalorder %s17, 0
      %p189 = por %p187, %p188
      %p190 = scmp.ne.s32.totalorder %s182, %s184
      %p191 = scmp.eq.s32.totalorder %s22, 1
      %p192 = por %p190, %p191
      %p193 = scmp.ne.s32.totalorder %s184, %s185
      %p194 = scmp.eq.s32.totalorder %s22, 0
      %p195 = por %p193, %p194
      %p196 = scmp.ne.s32.totalorder %s184, %s185
      %p197 = scmp.eq.s32.totalorder %s23, 1
      %p198 = por %p196, %p197
      %p200 = scmp.ne.s32.totalorder %s185, %s199
      %p201 = scmp.eq.s32.totalorder %s23, 0
      %p202 = por %p200, %p201
      %s203 = ssub.s32 %s17, %s24
      %p204 = scmp.eq.s32.totalorder %s203, 0
      %s206 = sadd.s32 %s205, 1
      %s207 = scalar_select %p204, %s205, %s206
      %p210 = pneg %p204
      %p211 = scmp.eq.s32.totalorder %s17, 1
      %p212 = por %p210, %p211
      %p213 = scmp.ne.s32.totalorder %s205, %s208
      %p214 = scmp.eq.s32.totalorder %s17, 0
      %p215 = por %p213, %p214
      %p216 = scmp.ne.s32.totalorder %s205, %s208
      %p217 = scmp.eq.s32.totalorder %s22, 1
      %p218 = por %p216, %p217
      %p219 = scmp.ne.s32.totalorder %s208, %s209
      %p220 = scmp.eq.s32.totalorder %s22, 0
      %p221 = por %p219, %p220
      %p222 = scmp.ne.s32.totalorder %s208, %s209
      %p223 = scmp.eq.s32.totalorder %s23, 1
      %p224 = por %p222, %p223
      %p226 = scmp.ne.s32.totalorder %s209, %s225
      %p227 = scmp.eq.s32.totalorder %s23, 0
      %p228 = por %p226, %p227
      %p229 = scmp.le.s32.totalorder 1, %s17
      %p230 = scmp.lt.s32.totalorder %s17, 3
      %p231 = pnand %p229, %p230
      %p232 = pneg %p231
      // Predicated region
      $region9: #{tpu_custom_call.1} parent=5 // pred_check
        _
      $region10: #{tpu_custom_call.1} parent=5 // pred_check_branch
        %234 = sbr.rel (%p231) target = $region12
      $region11: #{tpu_custom_call.1} parent=5 // pred_region
        %s235 = ssub.s32 %s17, 1
        // Predicated region
        $region13: #{tpu_custom_call.1} parent=11 // pred_check
          %p236 = pneg %p90
        $region14: #{tpu_custom_call.1} parent=11 // pred_check_branch
          %238 = sbr.rel (%p236) target = $region16
        $region15: #{tpu_custom_call.1} parent=11 // pred_region
          _
        $region16: #{tpu_custom_call.1} parent=11 // pred_fallthru
          _
        // Predicated region
        $region17: #{tpu_custom_call.1} parent=11 // pred_check
          %p239 = pneg %p111
        $region18: #{tpu_custom_call.1} parent=11 // pred_check_branch
          %241 = sbr.rel (%p239) target = $region20
        $region19: #{tpu_custom_call.1} parent=11 // pred_region
          _
        $region20: #{tpu_custom_call.1} parent=11 // pred_fallthru
          _
        // Predicated region
        $region21: #{tpu_custom_call.1} parent=11 // pred_check
          %p242 = pneg %p132
        $region22: #{tpu_custom_call.1} parent=11 // pred_check_branch
          %244 = sbr.rel (%p242) target = $region24
        $region23: #{tpu_custom_call.1} parent=11 // pred_region
          _
        $region24: #{tpu_custom_call.1} parent=11 // pred_fallthru
          _
        // Predicated region
        $region25: #{tpu_custom_call.1} parent=11 // pred_check
          %p245 = pneg %p153
        $region26: #{tpu_custom_call.1} parent=11 // pred_check_branch
          %247 = sbr.rel (%p245) target = $region28
        $region27: #{tpu_custom_call.1} parent=11 // pred_region
          _
        $region28: #{tpu_custom_call.1} parent=11 // pred_fallthru
          _
        // Predicated region
        $region29: #{tpu_custom_call.1} parent=11 // pred_check
          %p248 = pneg %p174
        $region30: #{tpu_custom_call.1} parent=11 // pred_check_branch
          %250 = sbr.rel (%p248) target = $region32
        $region31: #{tpu_custom_call.1} parent=11 // pred_region
          _
        $region32: #{tpu_custom_call.1} parent=11 // pred_fallthru
          _
        // Predicated region
        $region33: #{tpu_custom_call.1} parent=11 // pred_check
          %p251 = pneg %p195
        $region34: #{tpu_custom_call.1} parent=11 // pred_check_branch
          %253 = sbr.rel (%p251) target = $region36
        $region35: #{tpu_custom_call.1} parent=11 // pred_region
          _
        $region36: #{tpu_custom_call.1} parent=11 // pred_fallthru
          _
      $region12: #{tpu_custom_call.1} parent=5 // pred_fallthru
        _
      %p254 = scmp.lt.s32.totalorder %s17, 2
      // Predicated region
      $region37: #{tpu_custom_call.1} parent=5 // pred_check
        %p255 = pneg %p254
      $region38: #{tpu_custom_call.1} parent=5 // pred_check_branch
        %257 = sbr.rel (%p255) target = $region40
      $region39: #{tpu_custom_call.1} parent=5 // pred_region
        // Predicated region
        $region41: #{tpu_custom_call.1} parent=39 // pred_check
          %p258 = pneg %p37
        $region42: #{tpu_custom_call.1} parent=39 // pred_check_branch
          %260 = sbr.rel (%p258) target = $region44
        $region43: #{tpu_custom_call.1} parent=39 // pred_region
          %s261 = smul.u32 256, %s17
          %p262 = scmp.lt.s32.totalorder %s261, 511
          %s263 = scalar_select %p262, %s261, 511
          %s264 = smul.addr %s263, 8
          %s265 = scalar_lea.vmem %s0, %s264
          %s266 = smul.u32 256, %s17
        $region44: #{tpu_custom_call.1} parent=39 // pred_fallthru
          _
        // Predicated region
        $region45: #{tpu_custom_call.1} parent=39 // pred_check
          %p267 = pneg %p63
        $region46: #{tpu_custom_call.1} parent=39 // pred_check_branch
          %269 = sbr.rel (%p267) target = $region48
        $region47: #{tpu_custom_call.1} parent=39 // pred_region
          %s270 = smul.u32 4, %s17
          %p271 = scmp.lt.s32.totalorder %s270, 7
          %s272 = scalar_select %p271, %s270, 7
          %s273 = smul.addr %s272, 8
          %s274 = scalar_lea.vmem %s1, %s273
          %s275 = smul.u32 4, %s17
        $region48: #{tpu_custom_call.1} parent=39 // pred_fallthru
          _
      $region40: #{tpu_custom_call.1} parent=5 // pred_fallthru
        _
      %p276 = scmp.le.s32.totalorder 1, %s17
      %p277 = scmp.lt.s32.totalorder %s17, 3
      %p278 = pnand %p276, %p277
      %p279 = pneg %p278
      // Predicated region
      $region49: #{tpu_custom_call.1} parent=5 // pred_check
        _
      $region50: #{tpu_custom_call.1} parent=5 // pred_check_branch
        %281 = sbr.rel (%p278) target = $region52
      $region51: #{tpu_custom_call.1} parent=5 // pred_region
        %s282 = ssub.s32 %s17, 1
        %s283 = smul.u32 256, %s22
        %p284 = scmp.lt.s32.totalorder %s283, 511
        %s285 = scalar_select %p284, %s283, 511
        %s286 = smul.addr %s285, 8
        %s287 = scalar_lea.vmem %s0, %s286
        %p288 = pneg %p43
        %p289 = pneg %p40
        %s290 = smul.u32 4, %s22
        %p291 = scmp.lt.s32.totalorder %s290, 7
        %s292 = scalar_select %p291, %s290, 7
        %s293 = smul.addr %s292, 8
        %s294 = scalar_lea.vmem %s1, %s293
        %p295 = pneg %p69
        %p296 = pneg %p66
        %p297 = pneg %p90
        %p298 = pneg %p87
        %p299 = pneg %p111
        %p300 = pneg %p108
        %p301 = pneg %p132
        %p302 = pneg %p129
        %p303 = pneg %p153
        %p304 = pneg %p150
        %p305 = pneg %p174
        %p306 = pneg %p171
        %p307 = pneg %p195
        %p308 = pneg %p192
        %p309 = pneg %p221
        %p310 = pneg %p218
        %s311 = sand.u32 %s208, 1
        %s312 = scalar_lea.sflag [#allocation3], %s311
        %s313 = sand.u32 %s208, 1
        %s314 = smul.addr %s313, 32
        %s315 = scalar_lea.vmem [#allocation2], %s314
        %s316 = smul.u32 256, %s22
        %p317 = scmp.lt.s32.totalorder %s316, 511
        %s318 = scalar_select %p317, %s316, 511
        %s319 = smul.addr %s318, 8
        %s320 = scalar_lea.vmem %s0, %s319
        %s321 = smul.u32 256, %s22
        %s322 = smul.u32 4, %s22
        %p323 = scmp.lt.s32.totalorder %s322, 7
        %s324 = scalar_select %p323, %s322, 7
        %s325 = smul.addr %s324, 8
        %s326 = scalar_lea.vmem %s1, %s325
        %s327 = smul.u32 4, %s22
        %s328 = smul.u32 4, %s22
        %v329 = vld [vmem:[%s320] sm:$0xff]
        %v330 = vld [vmem:[%s320 + $0x8] sm:$0xff]
        %v331 = vld [vmem:[%s320 + $0x10] sm:$0xff]
        %v332 = vld [vmem:[%s320 + $0x18] sm:$0xff]
        %v333 = vld [vmem:[%s320 + $0x20] sm:$0xff]
        %v334 = vld [vmem:[%s320 + $0x28] sm:$0xff]
        %v335 = vld [vmem:[%s320 + $0x30] sm:$0xff]
        %v336 = vld [vmem:[%s320 + $0x38] sm:$0xff]
        %v337 = vld [vmem:[%s320 + $0x40] sm:$0xff]
        %v338 = vld [vmem:[%s320 + $0x48] sm:$0xff]
        %v339 = vld [vmem:[%s320 + $0x50] sm:$0xff]
        %v340 = vld [vmem:[%s320 + $0x58] sm:$0xff]
        %v341 = vld [vmem:[%s320 + $0x60] sm:$0xff]
        %v342 = vld [vmem:[%s320 + $0x68] sm:$0xff]
        %v343 = vld [vmem:[%s320 + $0x70] sm:$0xff]
        %v344 = vld [vmem:[%s320 + $0x78] sm:$0xff]
        %v345 = vld [vmem:[%s320 + $0x80] sm:$0xff]
        %v346 = vld [vmem:[%s320 + $0x88] sm:$0xff]
        %v347 = vld [vmem:[%s320 + $0x90] sm:$0xff]
        %v348 = vld [vmem:[%s320 + $0x98] sm:$0xff]
        %v349 = vld [vmem:[%s320 + $0xa0] sm:$0xff]
        %v350 = vld [vmem:[%s320 + $0xa8] sm:$0xff]
        %v351 = vld [vmem:[%s320 + $0xb0] sm:$0xff]
        %v352 = vld [vmem:[%s320 + $0xb8] sm:$0xff]
        %v353 = vld [vmem:[%s320 + $0xc0] sm:$0xff]
        %v354 = vld [vmem:[%s320 + $0xc8] sm:$0xff]
        %v355 = vld [vmem:[%s320 + $0xd0] sm:$0xff]
        %v356 = vld [vmem:[%s320 + $0xd8] sm:$0xff]
        %v357 = vld [vmem:[%s320 + $0xe0] sm:$0xff]
        %v358 = vld [vmem:[%s320 + $0xe8] sm:$0xff]
        %v359 = vld [vmem:[%s320 + $0xf0] sm:$0xff]
        %v360 = vld [vmem:[%s320 + $0xf8] sm:$0xff]
        %v361 = vld [vmem:[%s320 + $0x100] sm:$0xff]
        %v362 = vld [vmem:[%s320 + $0x108] sm:$0xff]
        %v363 = vld [vmem:[%s320 + $0x110] sm:$0xff]
        %v364 = vld [vmem:[%s320 + $0x118] sm:$0xff]
        %v365 = vld [vmem:[%s320 + $0x120] sm:$0xff]
        %v366 = vld [vmem:[%s320 + $0x128] sm:$0xff]
        %v367 = vld [vmem:[%s320 + $0x130] sm:$0xff]
        %v368 = vld [vmem:[%s320 + $0x138] sm:$0xff]
        %v369 = vld [vmem:[%s320 + $0x140] sm:$0xff]
        %v370 = vld [vmem:[%s320 + $0x148] sm:$0xff]
        %v371 = vld [vmem:[%s320 + $0x150] sm:$0xff]
        %v372 = vld [vmem:[%s320 + $0x158] sm:$0xff]
        %v373 = vld [vmem:[%s320 + $0x160] sm:$0xff]
        %v374 = vld [vmem:[%s320 + $0x168] sm:$0xff]
        %v375 = vld [vmem:[%s320 + $0x170] sm:$0xff]
        %v376 = vld [vmem:[%s320 + $0x178] sm:$0xff]
        %v377 = vld [vmem:[%s320 + $0x180] sm:$0xff]
        %v378 = vld [vmem:[%s320 + $0x188] sm:$0xff]
        %v379 = vld [vmem:[%s320 + $0x190] sm:$0xff]
        %v380 = vld [vmem:[%s320 + $0x198] sm:$0xff]
        %v381 = vld [vmem:[%s320 + $0x1a0] sm:$0xff]
        %v382 = vld [vmem:[%s320 + $0x1a8] sm:$0xff]
        %v383 = vld [vmem:[%s320 + $0x1b0] sm:$0xff]
        %v384 = vld [vmem:[%s320 + $0x1b8] sm:$0xff]
        %v385 = vld [vmem:[%s320 + $0x1c0] sm:$0xff]
        %v386 = vld [vmem:[%s320 + $0x1c8] sm:$0xff]
        %v387 = vld [vmem:[%s320 + $0x1d0] sm:$0xff]
        %v388 = vld [vmem:[%s320 + $0x1d8] sm:$0xff]
        %v389 = vld [vmem:[%s320 + $0x1e0] sm:$0xff]
        %v390 = vld [vmem:[%s320 + $0x1e8] sm:$0xff]
        %v391 = vld [vmem:[%s320 + $0x1f0] sm:$0xff]
        %v392 = vld [vmem:[%s320 + $0x1f8] sm:$0xff]
        %v393 = vld [vmem:[%s320 + $0x200] sm:$0xff]
        %v394 = vld [vmem:[%s320 + $0x208] sm:$0xff]
        %v395 = vld [vmem:[%s320 + $0x210] sm:$0xff]
        %v396 = vld [vmem:[%s320 + $0x218] sm:$0xff]
        %v397 = vld [vmem:[%s320 + $0x220] sm:$0xff]
        %v398 = vld [vmem:[%s320 + $0x228] sm:$0xff]
        %v399 = vld [vmem:[%s320 + $0x230] sm:$0xff]
        %v400 = vld [vmem:[%s320 + $0x238] sm:$0xff]
        %v401 = vld [vmem:[%s320 + $0x240] sm:$0xff]
        %v402 = vld [vmem:[%s320 + $0x248] sm:$0xff]
        %v403 = vld [vmem:[%s320 + $0x250] sm:$0xff]
        %v404 = vld [vmem:[%s320 + $0x258] sm:$0xff]
        %v405 = vld [vmem:[%s320 + $0x260] sm:$0xff]
        %v406 = vld [vmem:[%s320 + $0x268] sm:$0xff]
        %v407 = vld [vmem:[%s320 + $0x270] sm:$0xff]
        %v408 = vld [vmem:[%s320 + $0x278] sm:$0xff]
        %v409 = vld [vmem:[%s320 + $0x280] sm:$0xff]
        %v410 = vld [vmem:[%s320 + $0x288] sm:$0xff]
        %v411 = vld [vmem:[%s320 + $0x290] sm:$0xff]
        %v412 = vld [vmem:[%s320 + $0x298] sm:$0xff]
        %v413 = vld [vmem:[%s320 + $0x2a0] sm:$0xff]
        %v414 = vld [vmem:[%s320 + $0x2a8] sm:$0xff]
        %v415 = vld [vmem:[%s320 + $0x2b0] sm:$0xff]
        %v416 = vld [vmem:[%s320 + $0x2b8] sm:$0xff]
        %v417 = vld [vmem:[%s320 + $0x2c0] sm:$0xff]
        %v418 = vld [vmem:[%s320 + $0x2c8] sm:$0xff]
        %v419 = vld [vmem:[%s320 + $0x2d0] sm:$0xff]
        %v420 = vld [vmem:[%s320 + $0x2d8] sm:$0xff]
        %v421 = vld [vmem:[%s320 + $0x2e0] sm:$0xff]
        %v422 = vld [vmem:[%s320 + $0x2e8] sm:$0xff]
        %v423 = vld [vmem:[%s320 + $0x2f0] sm:$0xff]
        %v424 = vld [vmem:[%s320 + $0x2f8] sm:$0xff]
        %v425 = vld [vmem:[%s320 + $0x300] sm:$0xff]
        %v426 = vld [vmem:[%s320 + $0x308] sm:$0xff]
        %v427 = vld [vmem:[%s320 + $0x310] sm:$0xff]
        %v428 = vld [vmem:[%s320 + $0x318] sm:$0xff]
        %v429 = vld [vmem:[%s320 + $0x320] sm:$0xff]
        %v430 = vld [vmem:[%s320 + $0x328] sm:$0xff]
        %v431 = vld [vmem:[%s320 + $0x330] sm:$0xff]
        %v432 = vld [vmem:[%s320 + $0x338] sm:$0xff]
        %v433 = vld [vmem:[%s320 + $0x340] sm:$0xff]
        %v434 = vld [vmem:[%s320 + $0x348] sm:$0xff]
        %v435 = vld [vmem:[%s320 + $0x350] sm:$0xff]
        %v436 = vld [vmem:[%s320 + $0x358] sm:$0xff]
        %v437 = vld [vmem:[%s320 + $0x360] sm:$0xff]
        %v438 = vld [vmem:[%s320 + $0x368] sm:$0xff]
        %v439 = vld [vmem:[%s320 + $0x370] sm:$0xff]
        %v440 = vld [vmem:[%s320 + $0x378] sm:$0xff]
        %v441 = vld [vmem:[%s320 + $0x380] sm:$0xff]
        %v442 = vld [vmem:[%s320 + $0x388] sm:$0xff]
        %v443 = vld [vmem:[%s320 + $0x390] sm:$0xff]
        %v444 = vld [vmem:[%s320 + $0x398] sm:$0xff]
        %v445 = vld [vmem:[%s320 + $0x3a0] sm:$0xff]
        %v446 = vld [vmem:[%s320 + $0x3a8] sm:$0xff]
        %v447 = vld [vmem:[%s320 + $0x3b0] sm:$0xff]
        %v448 = vld [vmem:[%s320 + $0x3b8] sm:$0xff]
        %v449 = vld [vmem:[%s320 + $0x3c0] sm:$0xff]
        %v450 = vld [vmem:[%s320 + $0x3c8] sm:$0xff]
        %v451 = vld [vmem:[%s320 + $0x3d0] sm:$0xff]
        %v452 = vld [vmem:[%s320 + $0x3d8] sm:$0xff]
        %v453 = vld [vmem:[%s320 + $0x3e0] sm:$0xff]
        %v454 = vld [vmem:[%s320 + $0x3e8] sm:$0xff]
        %v455 = vld [vmem:[%s320 + $0x3f0] sm:$0xff]
        %v456 = vld [vmem:[%s320 + $0x3f8] sm:$0xff]
        %v457 = vld [vmem:[%s320 + $0x400] sm:$0xff]
        %v458 = vld [vmem:[%s320 + $0x408] sm:$0xff]
        %v459 = vld [vmem:[%s320 + $0x410] sm:$0xff]
        %v460 = vld [vmem:[%s320 + $0x418] sm:$0xff]
        %v461 = vld [vmem:[%s320 + $0x420] sm:$0xff]
        %v462 = vld [vmem:[%s320 + $0x428] sm:$0xff]
        %v463 = vld [vmem:[%s320 + $0x430] sm:$0xff]
        %v464 = vld [vmem:[%s320 + $0x438] sm:$0xff]
        %v465 = vld [vmem:[%s320 + $0x440] sm:$0xff]
        %v466 = vld [vmem:[%s320 + $0x448] sm:$0xff]
        %v467 = vld [vmem:[%s320 + $0x450] sm:$0xff]
        %v468 = vld [vmem:[%s320 + $0x458] sm:$0xff]
        %v469 = vld [vmem:[%s320 + $0x460] sm:$0xff]
        %v470 = vld [vmem:[%s320 + $0x468] sm:$0xff]
        %v471 = vld [vmem:[%s320 + $0x470] sm:$0xff]
        %v472 = vld [vmem:[%s320 + $0x478] sm:$0xff]
        %v473 = vld [vmem:[%s320 + $0x480] sm:$0xff]
        %v474 = vld [vmem:[%s320 + $0x488] sm:$0xff]
        %v475 = vld [vmem:[%s320 + $0x490] sm:$0xff]
        %v476 = vld [vmem:[%s320 + $0x498] sm:$0xff]
        %v477 = vld [vmem:[%s320 + $0x4a0] sm:$0xff]
        %v478 = vld [vmem:[%s320 + $0x4a8] sm:$0xff]
        %v479 = vld [vmem:[%s320 + $0x4b0] sm:$0xff]
        %v480 = vld [vmem:[%s320 + $0x4b8] sm:$0xff]
        %v481 = vld [vmem:[%s320 + $0x4c0] sm:$0xff]
        %v482 = vld [vmem:[%s320 + $0x4c8] sm:$0xff]
        %v483 = vld [vmem:[%s320 + $0x4d0] sm:$0xff]
        %v484 = vld [vmem:[%s320 + $0x4d8] sm:$0xff]
        %v485 = vld [vmem:[%s320 + $0x4e0] sm:$0xff]
        %v486 = vld [vmem:[%s320 + $0x4e8] sm:$0xff]
        %v487 = vld [vmem:[%s320 + $0x4f0] sm:$0xff]
        %v488 = vld [vmem:[%s320 + $0x4f8] sm:$0xff]
        %v489 = vld [vmem:[%s320 + $0x500] sm:$0xff]
        %v490 = vld [vmem:[%s320 + $0x508] sm:$0xff]
        %v491 = vld [vmem:[%s320 + $0x510] sm:$0xff]
        %v492 = vld [vmem:[%s320 + $0x518] sm:$0xff]
        %v493 = vld [vmem:[%s320 + $0x520] sm:$0xff]
        %v494 = vld [vmem:[%s320 + $0x528] sm:$0xff]
        %v495 = vld [vmem:[%s320 + $0x530] sm:$0xff]
        %v496 = vld [vmem:[%s320 + $0x538] sm:$0xff]
        %v497 = vld [vmem:[%s320 + $0x540] sm:$0xff]
        %v498 = vld [vmem:[%s320 + $0x548] sm:$0xff]
        %v499 = vld [vmem:[%s320 + $0x550] sm:$0xff]
        %v500 = vld [vmem:[%s320 + $0x558] sm:$0xff]
        %v501 = vld [vmem:[%s320 + $0x560] sm:$0xff]
        %v502 = vld [vmem:[%s320 + $0x568] sm:$0xff]
        %v503 = vld [vmem:[%s320 + $0x570] sm:$0xff]
        %v504 = vld [vmem:[%s320 + $0x578] sm:$0xff]
        %v505 = vld [vmem:[%s320 + $0x580] sm:$0xff]
        %v506 = vld [vmem:[%s320 + $0x588] sm:$0xff]
        %v507 = vld [vmem:[%s320 + $0x590] sm:$0xff]
        %v508 = vld [vmem:[%s320 + $0x598] sm:$0xff]
        %v509 = vld [vmem:[%s320 + $0x5a0] sm:$0xff]
        %v510 = vld [vmem:[%s320 + $0x5a8] sm:$0xff]
        %v511 = vld [vmem:[%s320 + $0x5b0] sm:$0xff]
        %v512 = vld [vmem:[%s320 + $0x5b8] sm:$0xff]
        %v513 = vld [vmem:[%s320 + $0x5c0] sm:$0xff]
        %v514 = vld [vmem:[%s320 + $0x5c8] sm:$0xff]
        %v515 = vld [vmem:[%s320 + $0x5d0] sm:$0xff]
        %v516 = vld [vmem:[%s320 + $0x5d8] sm:$0xff]
        %v517 = vld [vmem:[%s320 + $0x5e0] sm:$0xff]
        %v518 = vld [vmem:[%s320 + $0x5e8] sm:$0xff]
        %v519 = vld [vmem:[%s320 + $0x5f0] sm:$0xff]
        %v520 = vld [vmem:[%s320 + $0x5f8] sm:$0xff]
        %v521 = vld [vmem:[%s320 + $0x600] sm:$0xff]
        %v522 = vld [vmem:[%s320 + $0x608] sm:$0xff]
        %v523 = vld [vmem:[%s320 + $0x610] sm:$0xff]
        %v524 = vld [vmem:[%s320 + $0x618] sm:$0xff]
        %v525 = vld [vmem:[%s320 + $0x620] sm:$0xff]
        %v526 = vld [vmem:[%s320 + $0x628] sm:$0xff]
        %v527 = vld [vmem:[%s320 + $0x630] sm:$0xff]
        %v528 = vld [vmem:[%s320 + $0x638] sm:$0xff]
        %v529 = vld [vmem:[%s320 + $0x640] sm:$0xff]
        %v530 = vld [vmem:[%s320 + $0x648] sm:$0xff]
        %v531 = vld [vmem:[%s320 + $0x650] sm:$0xff]
        %v532 = vld [vmem:[%s320 + $0x658] sm:$0xff]
        %v533 = vld [vmem:[%s320 + $0x660] sm:$0xff]
        %v534 = vld [vmem:[%s320 + $0x668] sm:$0xff]
        %v535 = vld [vmem:[%s320 + $0x670] sm:$0xff]
        %v536 = vld [vmem:[%s320 + $0x678] sm:$0xff]
        %v537 = vld [vmem:[%s320 + $0x680] sm:$0xff]
        %v538 = vld [vmem:[%s320 + $0x688] sm:$0xff]
        %v539 = vld [vmem:[%s320 + $0x690] sm:$0xff]
        %v540 = vld [vmem:[%s320 + $0x698] sm:$0xff]
        %v541 = vld [vmem:[%s320 + $0x6a0] sm:$0xff]
        %v542 = vld [vmem:[%s320 + $0x6a8] sm:$0xff]
        %v543 = vld [vmem:[%s320 + $0x6b0] sm:$0xff]
        %v544 = vld [vmem:[%s320 + $0x6b8] sm:$0xff]
        %v545 = vld [vmem:[%s320 + $0x6c0] sm:$0xff]
        %v546 = vld [vmem:[%s320 + $0x6c8] sm:$0xff]
        %v547 = vld [vmem:[%s320 + $0x6d0] sm:$0xff]
        %v548 = vld [vmem:[%s320 + $0x6d8] sm:$0xff]
        %v549 = vld [vmem:[%s320 + $0x6e0] sm:$0xff]
        %v550 = vld [vmem:[%s320 + $0x6e8] sm:$0xff]
        %v551 = vld [vmem:[%s320 + $0x6f0] sm:$0xff]
        %v552 = vld [vmem:[%s320 + $0x6f8] sm:$0xff]
        %v553 = vld [vmem:[%s320 + $0x700] sm:$0xff]
        %v554 = vld [vmem:[%s320 + $0x708] sm:$0xff]
        %v555 = vld [vmem:[%s320 + $0x710] sm:$0xff]
        %v556 = vld [vmem:[%s320 + $0x718] sm:$0xff]
        %v557 = vld [vmem:[%s320 + $0x720] sm:$0xff]
        %v558 = vld [vmem:[%s320 + $0x728] sm:$0xff]
        %v559 = vld [vmem:[%s320 + $0x730] sm:$0xff]
        %v560 = vld [vmem:[%s320 + $0x738] sm:$0xff]
        %v561 = vld [vmem:[%s320 + $0x740] sm:$0xff]
        %v562 = vld [vmem:[%s320 + $0x748] sm:$0xff]
        %v563 = vld [vmem:[%s320 + $0x750] sm:$0xff]
        %v564 = vld [vmem:[%s320 + $0x758] sm:$0xff]
        %v565 = vld [vmem:[%s320 + $0x760] sm:$0xff]
        %v566 = vld [vmem:[%s320 + $0x768] sm:$0xff]
        %v567 = vld [vmem:[%s320 + $0x770] sm:$0xff]
        %v568 = vld [vmem:[%s320 + $0x778] sm:$0xff]
        %v569 = vld [vmem:[%s320 + $0x780] sm:$0xff]
        %v570 = vld [vmem:[%s320 + $0x788] sm:$0xff]
        %v571 = vld [vmem:[%s320 + $0x790] sm:$0xff]
        %v572 = vld [vmem:[%s320 + $0x798] sm:$0xff]
        %v573 = vld [vmem:[%s320 + $0x7a0] sm:$0xff]
        %v574 = vld [vmem:[%s320 + $0x7a8] sm:$0xff]
        %v575 = vld [vmem:[%s320 + $0x7b0] sm:$0xff]
        %v576 = vld [vmem:[%s320 + $0x7b8] sm:$0xff]
        %v577 = vld [vmem:[%s320 + $0x7c0] sm:$0xff]
        %v578 = vld [vmem:[%s320 + $0x7c8] sm:$0xff]
        %v579 = vld [vmem:[%s320 + $0x7d0] sm:$0xff]
        %v580 = vld [vmem:[%s320 + $0x7d8] sm:$0xff]
        %v581 = vld [vmem:[%s320 + $0x7e0] sm:$0xff]
        %v582 = vld [vmem:[%s320 + $0x7e8] sm:$0xff]
        %v583 = vld [vmem:[%s320 + $0x7f0] sm:$0xff]
        %v584 = vld [vmem:[%s320 + $0x7f8] sm:$0xff]
        %v585 = vld [vmem:[%s2] sm:$0xff]
        %v586 = vld [vmem:[%s2 + $0x8] sm:$0xff]
        %v587 = vld [vmem:[%s4] sm:$0x1]
        %v588 = vlaneseq
        %v589 = vshrl.u32 %v588, 7
        %v590 = vsub.s32 0, %v589
        %v591 = vrot.slane %v587, %v590
        %vm592 = vcmask 130048
        %v594 = vsel %vm592, %v329, 0
        %v597 = vsel %vm592, %v330, 0
        %v600 = vsel %vm592, %v331, 0
        %v603 = vsel %vm592, %v332, 0
        %v606 = vsel %vm592, %v333, 0
        %v609 = vsel %vm592, %v334, 0
        %v612 = vsel %vm592, %v335, 0
        %v615 = vsel %vm592, %v336, 0
        %v618 = vsel %vm592, %v337, 0
        %v621 = vsel %vm592, %v338, 0
        %v624 = vsel %vm592, %v339, 0
        %v627 = vsel %vm592, %v340, 0
        %v630 = vsel %vm592, %v341, 0
        %v633 = vsel %vm592, %v342, 0
        %v636 = vsel %vm592, %v343, 0
        %v639 = vsel %vm592, %v344, 0
        %v642 = vsel %vm592, %v345, 0
        %v645 = vsel %vm592, %v346, 0
        %v648 = vsel %vm592, %v347, 0
        %v651 = vsel %vm592, %v348, 0
        %v654 = vsel %vm592, %v349, 0
        %v657 = vsel %vm592, %v350, 0
        %v660 = vsel %vm592, %v351, 0
        %v663 = vsel %vm592, %v352, 0
        %v666 = vsel %vm592, %v353, 0
        %v669 = vsel %vm592, %v354, 0
        %v672 = vsel %vm592, %v355, 0
        %v675 = vsel %vm592, %v356, 0
        %v678 = vsel %vm592, %v357, 0
        %v681 = vsel %vm592, %v358, 0
        %v684 = vsel %vm592, %v359, 0
        %v687 = vsel %vm592, %v360, 0
        %v690 = vsel %vm592, %v361, 0
        %v693 = vsel %vm592, %v362, 0
        %v696 = vsel %vm592, %v363, 0
        %v699 = vsel %vm592, %v364, 0
        %v702 = vsel %vm592, %v365, 0
        %v705 = vsel %vm592, %v366, 0
        %v708 = vsel %vm592, %v367, 0
        %v711 = vsel %vm592, %v368, 0
        %v714 = vsel %vm592, %v369, 0
        %v717 = vsel %vm592, %v370, 0
        %v720 = vsel %vm592, %v371, 0
        %v723 = vsel %vm592, %v372, 0
        %v726 = vsel %vm592, %v373, 0
        %v729 = vsel %vm592, %v374, 0
        %v732 = vsel %vm592, %v375, 0
        %v735 = vsel %vm592, %v376, 0
        %v738 = vsel %vm592, %v377, 0
        %v741 = vsel %vm592, %v378, 0
        %v744 = vsel %vm592, %v379, 0
        %v747 = vsel %vm592, %v380, 0
        %v750 = vsel %vm592, %v381, 0
        %v753 = vsel %vm592, %v382, 0
        %v756 = vsel %vm592, %v383, 0
        %v759 = vsel %vm592, %v384, 0
        %v762 = vsel %vm592, %v385, 0
        %v765 = vsel %vm592, %v386, 0
        %v768 = vsel %vm592, %v387, 0
        %v771 = vsel %vm592, %v388, 0
        %v774 = vsel %vm592, %v389, 0
        %v777 = vsel %vm592, %v390, 0
        %v780 = vsel %vm592, %v391, 0
        %v783 = vsel %vm592, %v392, 0
        %v786 = vsel %vm592, %v393, 0
        %v789 = vsel %vm592, %v394, 0
        %v792 = vsel %vm592, %v395, 0
        %v795 = vsel %vm592, %v396, 0
        %v798 = vsel %vm592, %v397, 0
        %v801 = vsel %vm592, %v398, 0
        %v804 = vsel %vm592, %v399, 0
        %v807 = vsel %vm592, %v400, 0
        %v810 = vsel %vm592, %v401, 0
        %v813 = vsel %vm592, %v402, 0
        %v816 = vsel %vm592, %v403, 0
        %v819 = vsel %vm592, %v404, 0
        %v822 = vsel %vm592, %v405, 0
        %v825 = vsel %vm592, %v406, 0
        %v828 = vsel %vm592, %v407, 0
        %v831 = vsel %vm592, %v408, 0
        %v834 = vsel %vm592, %v409, 0
        %v837 = vsel %vm592, %v410, 0
        %v840 = vsel %vm592, %v411, 0
        %v843 = vsel %vm592, %v412, 0
        %v846 = vsel %vm592, %v413, 0
        %v849 = vsel %vm592, %v414, 0
        %v852 = vsel %vm592, %v415, 0
        %v855 = vsel %vm592, %v416, 0
        %v858 = vsel %vm592, %v417, 0
        %v861 = vsel %vm592, %v418, 0
        %v864 = vsel %vm592, %v419, 0
        %v867 = vsel %vm592, %v420, 0
        %v870 = vsel %vm592, %v421, 0
        %v873 = vsel %vm592, %v422, 0
        %v876 = vsel %vm592, %v423, 0
        %v879 = vsel %vm592, %v424, 0
        %v882 = vsel %vm592, %v425, 0
        %v885 = vsel %vm592, %v426, 0
        %v888 = vsel %vm592, %v427, 0
        %v891 = vsel %vm592, %v428, 0
        %v894 = vsel %vm592, %v429, 0
        %v897 = vsel %vm592, %v430, 0
        %v900 = vsel %vm592, %v431, 0
        %v903 = vsel %vm592, %v432, 0
        %v906 = vsel %vm592, %v433, 0
        %v909 = vsel %vm592, %v434, 0
        %v912 = vsel %vm592, %v435, 0
        %v915 = vsel %vm592, %v436, 0
        %v918 = vsel %vm592, %v437, 0
        %v921 = vsel %vm592, %v438, 0
        %v924 = vsel %vm592, %v439, 0
        %v927 = vsel %vm592, %v440, 0
        %v930 = vsel %vm592, %v441, 0
        %v933 = vsel %vm592, %v442, 0
        %v936 = vsel %vm592, %v443, 0
        %v939 = vsel %vm592, %v444, 0
        %v942 = vsel %vm592, %v445, 0
        %v945 = vsel %vm592, %v446, 0
        %v948 = vsel %vm592, %v447, 0
        %v951 = vsel %vm592, %v448, 0
        %v954 = vsel %vm592, %v449, 0
        %v957 = vsel %vm592, %v450, 0
        %v960 = vsel %vm592, %v451, 0
        %v963 = vsel %vm592, %v452, 0
        %v966 = vsel %vm592, %v453, 0
        %v969 = vsel %vm592, %v454, 0
        %v972 = vsel %vm592, %v455, 0
        %v975 = vsel %vm592, %v456, 0
        %v978 = vsel %vm592, %v457, 0
        %v981 = vsel %vm592, %v458, 0
        %v984 = vsel %vm592, %v459, 0
        %v987 = vsel %vm592, %v460, 0
        %v990 = vsel %vm592, %v461, 0
        %v993 = vsel %vm592, %v462, 0
        %v996 = vsel %vm592, %v463, 0
        %v999 = vsel %vm592, %v464, 0
        %v1002 = vsel %vm592, %v465, 0
        %v1005 = vsel %vm592, %v466, 0
        %v1008 = vsel %vm592, %v467, 0
        %v1011 = vsel %vm592, %v468, 0
        %v1014 = vsel %vm592, %v469, 0
        %v1017 = vsel %vm592, %v470, 0
        %v1020 = vsel %vm592, %v471, 0
        %v1023 = vsel %vm592, %v472, 0
        %v1026 = vsel %vm592, %v473, 0
        %v1029 = vsel %vm592, %v474, 0
        %v1032 = vsel %vm592, %v475, 0
        %v1035 = vsel %vm592, %v476, 0
        %v1038 = vsel %vm592, %v477, 0
        %v1041 = vsel %vm592, %v478, 0
        %v1044 = vsel %vm592, %v479, 0
        %v1047 = vsel %vm592, %v480, 0
        %v1050 = vsel %vm592, %v481, 0
        %v1053 = vsel %vm592, %v482, 0
        %v1056 = vsel %vm592, %v483, 0
        %v1059 = vsel %vm592, %v484, 0
        %v1062 = vsel %vm592, %v485, 0
        %v1065 = vsel %vm592, %v486, 0
        %v1068 = vsel %vm592, %v487, 0
        %v1071 = vsel %vm592, %v488, 0
        %v1074 = vsel %vm592, %v489, 0
        %v1077 = vsel %vm592, %v490, 0
        %v1080 = vsel %vm592, %v491, 0
        %v1083 = vsel %vm592, %v492, 0
        %v1086 = vsel %vm592, %v493, 0
        %v1089 = vsel %vm592, %v494, 0
        %v1092 = vsel %vm592, %v495, 0
        %v1095 = vsel %vm592, %v496, 0
        %v1098 = vsel %vm592, %v497, 0
        %v1101 = vsel %vm592, %v498, 0
        %v1104 = vsel %vm592, %v499, 0
        %v1107 = vsel %vm592, %v500, 0
        %v1110 = vsel %vm592, %v501, 0
        %v1113 = vsel %vm592, %v502, 0
        %v1116 = vsel %vm592, %v503, 0
        %v1119 = vsel %vm592, %v504, 0
        %v1122 = vsel %vm592, %v505, 0
        %v1125 = vsel %vm592, %v506, 0
        %v1128 = vsel %vm592, %v507, 0
        %v1131 = vsel %vm592, %v508, 0
        %v1134 = vsel %vm592, %v509, 0
        %v1137 = vsel %vm592, %v510, 0
        %v1140 = vsel %vm592, %v511, 0
        %v1143 = vsel %vm592, %v512, 0
        %v1146 = vsel %vm592, %v513, 0
        %v1149 = vsel %vm592, %v514, 0
        %v1152 = vsel %vm592, %v515, 0
        %v1155 = vsel %vm592, %v516, 0
        %v1158 = vsel %vm592, %v517, 0
        %v1161 = vsel %vm592, %v518, 0
        %v1164 = vsel %vm592, %v519, 0
        %v1167 = vsel %vm592, %v520, 0
        %v1170 = vsel %vm592, %v521, 0
        %v1173 = vsel %vm592, %v522, 0
        %v1176 = vsel %vm592, %v523, 0
        %v1179 = vsel %vm592, %v524, 0
        %v1182 = vsel %vm592, %v525, 0
        %v1185 = vsel %vm592, %v526, 0
        %v1188 = vsel %vm592, %v527, 0
        %v1191 = vsel %vm592, %v528, 0
        %v1194 = vsel %vm592, %v529, 0
        %v1197 = vsel %vm592, %v530, 0
        %v1200 = vsel %vm592, %v531, 0
        %v1203 = vsel %vm592, %v532, 0
        %v1206 = vsel %vm592, %v533, 0
        %v1209 = vsel %vm592, %v534, 0
        %v1212 = vsel %vm592, %v535, 0
        %v1215 = vsel %vm592, %v536, 0
        %v1218 = vsel %vm592, %v537, 0
        %v1221 = vsel %vm592, %v538, 0
        %v1224 = vsel %vm592, %v539, 0
        %v1227 = vsel %vm592, %v540, 0
        %v1230 = vsel %vm592, %v541, 0
        %v1233 = vsel %vm592, %v542, 0
        %v1236 = vsel %vm592, %v543, 0
        %v1239 = vsel %vm592, %v544, 0
        %v1242 = vsel %vm592, %v545, 0
        %v1245 = vsel %vm592, %v546, 0
        %v1248 = vsel %vm592, %v547, 0
        %v1251 = vsel %vm592, %v548, 0
        %v1254 = vsel %vm592, %v549, 0
        %v1257 = vsel %vm592, %v550, 0
        %v1260 = vsel %vm592, %v551, 0
        %v1263 = vsel %vm592, %v552, 0
        %v1266 = vsel %vm592, %v553, 0
        %v1269 = vsel %vm592, %v554, 0
        %v1272 = vsel %vm592, %v555, 0
        %v1275 = vsel %vm592, %v556, 0
        %v1278 = vsel %vm592, %v557, 0
        %v1281 = vsel %vm592, %v558, 0
        %v1284 = vsel %vm592, %v559, 0
        %v1287 = vsel %vm592, %v560, 0
        %v1290 = vsel %vm592, %v561, 0
        %v1293 = vsel %vm592, %v562, 0
        %v1296 = vsel %vm592, %v563, 0
        %v1299 = vsel %vm592, %v564, 0
        %v1302 = vsel %vm592, %v565, 0
        %v1305 = vsel %vm592, %v566, 0
        %v1308 = vsel %vm592, %v567, 0
        %v1311 = vsel %vm592, %v568, 0
        %v1314 = vsel %vm592, %v569, 0
        %v1317 = vsel %vm592, %v570, 0
        %v1320 = vsel %vm592, %v571, 0
        %v1323 = vsel %vm592, %v572, 0
        %v1326 = vsel %vm592, %v573, 0
        %v1329 = vsel %vm592, %v574, 0
        %v1332 = vsel %vm592, %v575, 0
        %v1335 = vsel %vm592, %v576, 0
        %v1338 = vsel %vm592, %v577, 0
        %v1341 = vsel %vm592, %v578, 0
        %v1344 = vsel %vm592, %v579, 0
        %v1347 = vsel %vm592, %v580, 0
        %v1350 = vsel %vm592, %v581, 0
        %v1353 = vsel %vm592, %v582, 0
        %v1356 = vsel %vm592, %v583, 0
        %v1359 = vsel %vm592, %v584, 0
        %1361 = vmatprep.subr.mxu0 0.0
        %1362 = vmatpush1.msra.mxu0 0.0
        %1363 = vmatprep.subr.mxu0 0.0
        %1364 = vmatpush1.msra.mxu0 0.0
        %1365 = vmatprep.subr.mxu0 0.0
        %1366 = vmatpush1.msra.mxu0 0.0
        %1367 = vmatprep.subr.mxu0 0.0
        %1368 = vmatpush1.msra.mxu0 0.0
        %1369 = vmatprep.subr.mxu0 0.0
        %1370 = vmatpush1.msra.mxu0 0.0
        %1371 = vmatprep.subr.mxu0 0.0
        %1372 = vmatpush1.msra.mxu0 0.0
        %1373 = vmatprep.subr.mxu0 0.0
        %1374 = vmatpush1.msra.mxu0 0.0
        %1375 = vmatprep.subr.mxu0 0.0
        %1376 = vmatpush1.msra.mxu0 0.0
        %1377 = vmatprep.subr.mxu0 0.0
        %1378 = vmatpush1.msra.mxu0 0.0
        %1379 = vmatprep.subr.mxu0 0.0
        %1380 = vmatpush1.msra.mxu0 0.0
        %1381 = vmatprep.subr.mxu0 0.0
        %1382 = vmatpush1.msra.mxu0 0.0
        %1383 = vmatprep.subr.mxu0 0.0
        %1384 = vmatpush1.msra.mxu0 0.0
        %1385 = vmatprep.subr.mxu0 0.0
        %1386 = vmatpush1.msra.mxu0 0.0
        %1387 = vmatprep.subr.mxu0 0.0
        %1388 = vmatpush1.msra.mxu0 0.0
        %1389 = vmatprep.subr.mxu0 0.0
        %1390 = vmatpush1.msra.mxu0 %v586
        %1391 = vmatprep.subr.mxu0 0.0
        %1392 = vmatpush1.msra.mxu0 %v585
        %1393 = vmatprep.subr.mxu0 0.0
        %1394 = vmatpush2.msra.mxu0 0.0
        %1395 = vmatprep.subr.mxu0 0.0
        %1396 = vmatpush2.msra.mxu0 0.0
        %1397 = vmatprep.subr.mxu0 0.0
        %1398 = vmatpush2.msra.mxu0 0.0
        %1399 = vmatprep.subr.mxu0 0.0
        %1400 = vmatpush2.msra.mxu0 0.0
        %1401 = vmatprep.subr.mxu0 0.0
        %1402 = vmatpush2.msra.mxu0 0.0
        %1403 = vmatprep.subr.mxu0 0.0
        %1404 = vmatpush2.msra.mxu0 0.0
        %1405 = vmatprep.subr.mxu0 0.0
        %1406 = vmatpush2.msra.mxu0 0.0
        %1407 = vmatprep.subr.mxu0 0.0
        %1408 = vmatpush2.msra.mxu0 0.0
        %1409 = vmatprep.subr.mxu0 0.0
        %1410 = vmatpush2.msra.mxu0 0.0
        %1411 = vmatprep.subr.mxu0 0.0
        %1412 = vmatpush2.msra.mxu0 0.0
        %1413 = vmatprep.subr.mxu0 0.0
        %1414 = vmatpush2.msra.mxu0 0.0
        %1415 = vmatprep.subr.mxu0 0.0
        %1416 = vmatpush2.msra.mxu0 0.0
        %1417 = vmatprep.subr.mxu0 0.0
        %1418 = vmatpush2.msra.mxu0 0.0
        %1419 = vmatprep.subr.mxu0 0.0
        %1420 = vmatpush2.msra.mxu0 0.0
        %1421 = vmatprep.subr.mxu0 0.0
        %1422 = vmatpush2.msra.mxu0 0.0
        %1423 = vmatprep.subr.mxu0 0.0
        %1424 = vmatpush2.msra.mxu0 0.0
        %1425 = vmatprep.mubr.f32.mxu0 0.0
        %1426 = vmatmul.mubr.f32.gmra.mxu0 %v594
        %v1427 = vpop.f32.mrf.mxu0
        %v1428 = vadd.f32 %v591, %v1427
        %v1429 = vpop.f32.mrf.mxu0
        %1430 = vmatprep.mubr.f32.mxu0 0.0
        %1431 = vmatmul.mubr.f32.gmra.mxu0 %v597
        %v1432 = vpop.f32.mrf.mxu0
        %v1433 = vadd.f32 %v591, %v1432
        %v1434 = vpop.f32.mrf.mxu0
        %1435 = vmatprep.mubr.f32.mxu0 0.0
        %1436 = vmatmul.mubr.f32.gmra.mxu0 %v600
        %v1437 = vpop.f32.mrf.mxu0
        %v1438 = vadd.f32 %v591, %v1437
        %v1439 = vpop.f32.mrf.mxu0
        %1440 = vmatprep.mubr.f32.mxu0 0.0
        %1441 = vmatmul.mubr.f32.gmra.mxu0 %v603
        %v1442 = vpop.f32.mrf.mxu0
        %v1443 = vadd.f32 %v591, %v1442
        %v1444 = vpop.f32.mrf.mxu0
        %1445 = vmatprep.mubr.f32.mxu0 0.0
        %1446 = vmatmul.mubr.f32.gmra.mxu0 %v606
        %v1447 = vpop.f32.mrf.mxu0
        %v1448 = vadd.f32 %v591, %v1447
        %v1449 = vpop.f32.mrf.mxu0
        %1450 = vmatprep.mubr.f32.mxu0 0.0
        %1451 = vmatmul.mubr.f32.gmra.mxu0 %v609
        %v1452 = vpop.f32.mrf.mxu0
        %v1453 = vadd.f32 %v591, %v1452
        %v1454 = vpop.f32.mrf.mxu0
        %1455 = vmatprep.mubr.f32.mxu0 0.0
        %1456 = vmatmul.mubr.f32.gmra.mxu0 %v612
        %v1457 = vpop.f32.mrf.mxu0
        %v1458 = vadd.f32 %v591, %v1457
        %v1459 = vpop.f32.mrf.mxu0
        %1460 = vmatprep.mubr.f32.mxu0 0.0
        %1461 = vmatmul.mubr.f32.gmra.mxu0 %v615
        %v1462 = vpop.f32.mrf.mxu0
        %v1463 = vadd.f32 %v591, %v1462
        %v1464 = vpop.f32.mrf.mxu0
        %1465 = vmatprep.mubr.f32.mxu0 0.0
        %1466 = vmatmul.mubr.f32.gmra.mxu0 %v618
        %v1467 = vpop.f32.mrf.mxu0
        %v1468 = vadd.f32 %v591, %v1467
        %v1469 = vpop.f32.mrf.mxu0
        %1470 = vmatprep.mubr.f32.mxu0 0.0
        %1471 = vmatmul.mubr.f32.gmra.mxu0 %v621
        %v1472 = vpop.f32.mrf.mxu0
        %v1473 = vadd.f32 %v591, %v1472
        %v1474 = vpop.f32.mrf.mxu0
        %1475 = vmatprep.mubr.f32.mxu0 0.0
        %1476 = vmatmul.mubr.f32.gmra.mxu0 %v624
        %v1477 = vpop.f32.mrf.mxu0
        %v1478 = vadd.f32 %v591, %v1477
        %v1479 = vpop.f32.mrf.mxu0
        %1480 = vmatprep.mubr.f32.mxu0 0.0
        %1481 = vmatmul.mubr.f32.gmra.mxu0 %v627
        %v1482 = vpop.f32.mrf.mxu0
        %v1483 = vadd.f32 %v591, %v1482
        %v1484 = vpop.f32.mrf.mxu0
        %1485 = vmatprep.mubr.f32.mxu0 0.0
        %1486 = vmatmul.mubr.f32.gmra.mxu0 %v630
        %v1487 = vpop.f32.mrf.mxu0
        %v1488 = vadd.f32 %v591, %v1487
        %v1489 = vpop.f32.mrf.mxu0
        %1490 = vmatprep.mubr.f32.mxu0 0.0
        %1491 = vmatmul.mubr.f32.gmra.mxu0 %v633
        %v1492 = vpop.f32.mrf.mxu0
        %v1493 = vadd.f32 %v591, %v1492
        %v1494 = vpop.f32.mrf.mxu0
        %1495 = vmatprep.mubr.f32.mxu0 0.0
        %1496 = vmatmul.mubr.f32.gmra.mxu0 %v636
        %v1497 = vpop.f32.mrf.mxu0
        %v1498 = vadd.f32 %v591, %v1497
        %v1499 = vpop.f32.mrf.mxu0
        %1500 = vmatprep.mubr.f32.mxu0 0.0
        %1501 = vmatmul.mubr.f32.gmra.mxu0 %v639
        %v1502 = vpop.f32.mrf.mxu0
        %v1503 = vadd.f32 %v591, %v1502
        %v1504 = vpop.f32.mrf.mxu0
        %1505 = vmatprep.mubr.f32.mxu0 0.0
        %1506 = vmatmul.mubr.f32.gmra.mxu0 %v642
        %v1507 = vpop.f32.mrf.mxu0
        %v1508 = vadd.f32 %v591, %v1507
        %v1509 = vpop.f32.mrf.mxu0
        %1510 = vmatprep.mubr.f32.mxu0 0.0
        %1511 = vmatmul.mubr.f32.gmra.mxu0 %v645
        %v1512 = vpop.f32.mrf.mxu0
        %v1513 = vadd.f32 %v591, %v1512
        %v1514 = vpop.f32.mrf.mxu0
        %1515 = vmatprep.mubr.f32.mxu0 0.0
        %1516 = vmatmul.mubr.f32.gmra.mxu0 %v648
        %v1517 = vpop.f32.mrf.mxu0
        %v1518 = vadd.f32 %v591, %v1517
        %v1519 = vpop.f32.mrf.mxu0
        %1520 = vmatprep.mubr.f32.mxu0 0.0
        %1521 = vmatmul.mubr.f32.gmra.mxu0 %v651
        %v1522 = vpop.f32.mrf.mxu0
        %v1523 = vadd.f32 %v591, %v1522
        %v1524 = vpop.f32.mrf.mxu0
        %1525 = vmatprep.mubr.f32.mxu0 0.0
        %1526 = vmatmul.mubr.f32.gmra.mxu0 %v654
        %v1527 = vpop.f32.mrf.mxu0
        %v1528 = vadd.f32 %v591, %v1527
        %v1529 = vpop.f32.mrf.mxu0
        %1530 = vmatprep.mubr.f32.mxu0 0.0
        %1531 = vmatmul.mubr.f32.gmra.mxu0 %v657
        %v1532 = vpop.f32.mrf.mxu0
        %v1533 = vadd.f32 %v591, %v1532
        %v1534 = vpop.f32.mrf.mxu0
        %1535 = vmatprep.mubr.f32.mxu0 0.0
        %1536 = vmatmul.mubr.f32.gmra.mxu0 %v660
        %v1537 = vpop.f32.mrf.mxu0
        %v1538 = vadd.f32 %v591, %v1537
        %v1539 = vpop.f32.mrf.mxu0
        %1540 = vmatprep.mubr.f32.mxu0 0.0
        %1541 = vmatmul.mubr.f32.gmra.mxu0 %v663
        %v1542 = vpop.f32.mrf.mxu0
        %v1543 = vadd.f32 %v591, %v1542
        %v1544 = vpop.f32.mrf.mxu0
        %1545 = vmatprep.mubr.f32.mxu0 0.0
        %1546 = vmatmul.mubr.f32.gmra.mxu0 %v666
        %v1547 = vpop.f32.mrf.mxu0
        %v1548 = vadd.f32 %v591, %v1547
        %v1549 = vpop.f32.mrf.mxu0
        %1550 = vmatprep.mubr.f32.mxu0 0.0
        %1551 = vmatmul.mubr.f32.gmra.mxu0 %v669
        %v1552 = vpop.f32.mrf.mxu0
        %v1553 = vadd.f32 %v591, %v1552
        %v1554 = vpop.f32.mrf.mxu0
        %1555 = vmatprep.mubr.f32.mxu0 0.0
        %1556 = vmatmul.mubr.f32.gmra.mxu0 %v672
        %v1557 = vpop.f32.mrf.mxu0
        %v1558 = vadd.f32 %v591, %v1557
        %v1559 = vpop.f32.mrf.mxu0
        %1560 = vmatprep.mubr.f32.mxu0 0.0
        %1561 = vmatmul.mubr.f32.gmra.mxu0 %v675
        %v1562 = vpop.f32.mrf.mxu0
        %v1563 = vadd.f32 %v591, %v1562
        %v1564 = vpop.f32.mrf.mxu0
        %1565 = vmatprep.mubr.f32.mxu0 0.0
        %1566 = vmatmul.mubr.f32.gmra.mxu0 %v678
        %v1567 = vpop.f32.mrf.mxu0
        %v1568 = vadd.f32 %v591, %v1567
        %v1569 = vpop.f32.mrf.mxu0
        %1570 = vmatprep.mubr.f32.mxu0 0.0
        %1571 = vmatmul.mubr.f32.gmra.mxu0 %v681
        %v1572 = vpop.f32.mrf.mxu0
        %v1573 = vadd.f32 %v591, %v1572
        %v1574 = vpop.f32.mrf.mxu0
        %1575 = vmatprep.mubr.f32.mxu0 0.0
        %1576 = vmatmul.mubr.f32.gmra.mxu0 %v684
        %v1577 = vpop.f32.mrf.mxu0
        %v1578 = vadd.f32 %v591, %v1577
        %v1579 = vpop.f32.mrf.mxu0
        %1580 = vmatprep.mubr.f32.mxu0 0.0
        %1581 = vmatmul.mubr.f32.gmra.mxu0 %v687
        %v1582 = vpop.f32.mrf.mxu0
        %v1583 = vadd.f32 %v591, %v1582
        %v1584 = vpop.f32.mrf.mxu0
        %1585 = vmatprep.mubr.f32.mxu0 0.0
        %1586 = vmatmul.mubr.f32.gmra.mxu0 %v690
        %v1587 = vpop.f32.mrf.mxu0
        %v1588 = vadd.f32 %v591, %v1587
        %v1589 = vpop.f32.mrf.mxu0
        %1590 = vmatprep.mubr.f32.mxu0 0.0
        %1591 = vmatmul.mubr.f32.gmra.mxu0 %v693
        %v1592 = vpop.f32.mrf.mxu0
        %v1593 = vadd.f32 %v591, %v1592
        %v1594 = vpop.f32.mrf.mxu0
        %1595 = vmatprep.mubr.f32.mxu0 0.0
        %1596 = vmatmul.mubr.f32.gmra.mxu0 %v696
        %v1597 = vpop.f32.mrf.mxu0
        %v1598 = vadd.f32 %v591, %v1597
        %v1599 = vpop.f32.mrf.mxu0
        %1600 = vmatprep.mubr.f32.mxu0 0.0
        %1601 = vmatmul.mubr.f32.gmra.mxu0 %v699
        %v1602 = vpop.f32.mrf.mxu0
        %v1603 = vadd.f32 %v591, %v1602
        %v1604 = vpop.f32.mrf.mxu0
        %1605 = vmatprep.mubr.f32.mxu0 0.0
        %1606 = vmatmul.mubr.f32.gmra.mxu0 %v702
        %v1607 = vpop.f32.mrf.mxu0
        %v1608 = vadd.f32 %v591, %v1607
        %v1609 = vpop.f32.mrf.mxu0
        %1610 = vmatprep.mubr.f32.mxu0 0.0
        %1611 = vmatmul.mubr.f32.gmra.mxu0 %v705
        %v1612 = vpop.f32.mrf.mxu0
        %v1613 = vadd.f32 %v591, %v1612
        %v1614 = vpop.f32.mrf.mxu0
        %1615 = vmatprep.mubr.f32.mxu0 0.0
        %1616 = vmatmul.mubr.f32.gmra.mxu0 %v708
        %v1617 = vpop.f32.mrf.mxu0
        %v1618 = vadd.f32 %v591, %v1617
        %v1619 = vpop.f32.mrf.mxu0
        %1620 = vmatprep.mubr.f32.mxu0 0.0
        %1621 = vmatmul.mubr.f32.gmra.mxu0 %v711
        %v1622 = vpop.f32.mrf.mxu0
        %v1623 = vadd.f32 %v591, %v1622
        %v1624 = vpop.f32.mrf.mxu0
        %1625 = vmatprep.mubr.f32.mxu0 0.0
        %1626 = vmatmul.mubr.f32.gmra.mxu0 %v714
        %v1627 = vpop.f32.mrf.mxu0
        %v1628 = vadd.f32 %v591, %v1627
        %v1629 = vpop.f32.mrf.mxu0
        %1630 = vmatprep.mubr.f32.mxu0 0.0
        %1631 = vmatmul.mubr.f32.gmra.mxu0 %v717
        %v1632 = vpop.f32.mrf.mxu0
        %v1633 = vadd.f32 %v591, %v1632
        %v1634 = vpop.f32.mrf.mxu0
        %1635 = vmatprep.mubr.f32.mxu0 0.0
        %1636 = vmatmul.mubr.f32.gmra.mxu0 %v720
        %v1637 = vpop.f32.mrf.mxu0
        %v1638 = vadd.f32 %v591, %v1637
        %v1639 = vpop.f32.mrf.mxu0
        %1640 = vmatprep.mubr.f32.mxu0 0.0
        %1641 = vmatmul.mubr.f32.gmra.mxu0 %v723
        %v1642 = vpop.f32.mrf.mxu0
        %v1643 = vadd.f32 %v591, %v1642
        %v1644 = vpop.f32.mrf.mxu0
        %1645 = vmatprep.mubr.f32.mxu0 0.0
        %1646 = vmatmul.mubr.f32.gmra.mxu0 %v726
        %v1647 = vpop.f32.mrf.mxu0
        %v1648 = vadd.f32 %v591, %v1647
        %v1649 = vpop.f32.mrf.mxu0
        %1650 = vmatprep.mubr.f32.mxu0 0.0
        %1651 = vmatmul.mubr.f32.gmra.mxu0 %v729
        %v1652 = vpop.f32.mrf.mxu0
        %v1653 = vadd.f32 %v591, %v1652
        %v1654 = vpop.f32.mrf.mxu0
        %1655 = vmatprep.mubr.f32.mxu0 0.0
        %1656 = vmatmul.mubr.f32.gmra.mxu0 %v732
        %v1657 = vpop.f32.mrf.mxu0
        %v1658 = vadd.f32 %v591, %v1657
        %v1659 = vpop.f32.mrf.mxu0
        %1660 = vmatprep.mubr.f32.mxu0 0.0
        %1661 = vmatmul.mubr.f32.gmra.mxu0 %v735
        %v1662 = vpop.f32.mrf.mxu0
        %v1663 = vadd.f32 %v591, %v1662
        %v1664 = vpop.f32.mrf.mxu0
        %1665 = vmatprep.mubr.f32.mxu0 0.0
        %1666 = vmatmul.mubr.f32.gmra.mxu0 %v738
        %v1667 = vpop.f32.mrf.mxu0
        %v1668 = vadd.f32 %v591, %v1667
        %v1669 = vpop.f32.mrf.mxu0
        %1670 = vmatprep.mubr.f32.mxu0 0.0
        %1671 = vmatmul.mubr.f32.gmra.mxu0 %v741
        %v1672 = vpop.f32.mrf.mxu0
        %v1673 = vadd.f32 %v591, %v1672
        %v1674 = vpop.f32.mrf.mxu0
        %1675 = vmatprep.mubr.f32.mxu0 0.0
        %1676 = vmatmul.mubr.f32.gmra.mxu0 %v744
        %v1677 = vpop.f32.mrf.mxu0
        %v1678 = vadd.f32 %v591, %v1677
        %v1679 = vpop.f32.mrf.mxu0
        %1680 = vmatprep.mubr.f32.mxu0 0.0
        %1681 = vmatmul.mubr.f32.gmra.mxu0 %v747
        %v1682 = vpop.f32.mrf.mxu0
        %v1683 = vadd.f32 %v591, %v1682
        %v1684 = vpop.f32.mrf.mxu0
        %1685 = vmatprep.mubr.f32.mxu0 0.0
        %1686 = vmatmul.mubr.f32.gmra.mxu0 %v750
        %v1687 = vpop.f32.mrf.mxu0
        %v1688 = vadd.f32 %v591, %v1687
        %v1689 = vpop.f32.mrf.mxu0
        %1690 = vmatprep.mubr.f32.mxu0 0.0
        %1691 = vmatmul.mubr.f32.gmra.mxu0 %v753
        %v1692 = vpop.f32.mrf.mxu0
        %v1693 = vadd.f32 %v591, %v1692
        %v1694 = vpop.f32.mrf.mxu0
        %1695 = vmatprep.mubr.f32.mxu0 0.0
        %1696 = vmatmul.mubr.f32.gmra.mxu0 %v756
        %v1697 = vpop.f32.mrf.mxu0
        %v1698 = vadd.f32 %v591, %v1697
        %v1699 = vpop.f32.mrf.mxu0
        %1700 = vmatprep.mubr.f32.mxu0 0.0
        %1701 = vmatmul.mubr.f32.gmra.mxu0 %v759
        %v1702 = vpop.f32.mrf.mxu0
        %v1703 = vadd.f32 %v591, %v1702
        %v1704 = vpop.f32.mrf.mxu0
        %1705 = vmatprep.mubr.f32.mxu0 0.0
        %1706 = vmatmul.mubr.f32.gmra.mxu0 %v762
        %v1707 = vpop.f32.mrf.mxu0
        %v1708 = vadd.f32 %v591, %v1707
        %v1709 = vpop.f32.mrf.mxu0
        %1710 = vmatprep.mubr.f32.mxu0 0.0
        %1711 = vmatmul.mubr.f32.gmra.mxu0 %v765
        %v1712 = vpop.f32.mrf.mxu0
        %v1713 = vadd.f32 %v591, %v1712
        %v1714 = vpop.f32.mrf.mxu0
        %1715 = vmatprep.mubr.f32.mxu0 0.0
        %1716 = vmatmul.mubr.f32.gmra.mxu0 %v768
        %v1717 = vpop.f32.mrf.mxu0
        %v1718 = vadd.f32 %v591, %v1717
        %v1719 = vpop.f32.mrf.mxu0
        %1720 = vmatprep.mubr.f32.mxu0 0.0
        %1721 = vmatmul.mubr.f32.gmra.mxu0 %v771
        %v1722 = vpop.f32.mrf.mxu0
        %v1723 = vadd.f32 %v591, %v1722
        %v1724 = vpop.f32.mrf.mxu0
        %1725 = vmatprep.mubr.f32.mxu0 0.0
        %1726 = vmatmul.mubr.f32.gmra.mxu0 %v774
        %v1727 = vpop.f32.mrf.mxu0
        %v1728 = vadd.f32 %v591, %v1727
        %v1729 = vpop.f32.mrf.mxu0
        %1730 = vmatprep.mubr.f32.mxu0 0.0
        %1731 = vmatmul.mubr.f32.gmra.mxu0 %v777
        %v1732 = vpop.f32.mrf.mxu0
        %v1733 = vadd.f32 %v591, %v1732
        %v1734 = vpop.f32.mrf.mxu0
        %1735 = vmatprep.mubr.f32.mxu0 0.0
        %1736 = vmatmul.mubr.f32.gmra.mxu0 %v780
        %v1737 = vpop.f32.mrf.mxu0
        %v1738 = vadd.f32 %v591, %v1737
        %v1739 = vpop.f32.mrf.mxu0
        %1740 = vmatprep.mubr.f32.mxu0 0.0
        %1741 = vmatmul.mubr.f32.gmra.mxu0 %v783
        %v1742 = vpop.f32.mrf.mxu0
        %v1743 = vadd.f32 %v591, %v1742
        %v1744 = vpop.f32.mrf.mxu0
        %1745 = vmatprep.mubr.f32.mxu0 0.0
        %1746 = vmatmul.mubr.f32.gmra.mxu0 %v786
        %v1747 = vpop.f32.mrf.mxu0
        %v1748 = vadd.f32 %v591, %v1747
        %v1749 = vpop.f32.mrf.mxu0
        %1750 = vmatprep.mubr.f32.mxu0 0.0
        %1751 = vmatmul.mubr.f32.gmra.mxu0 %v789
        %v1752 = vpop.f32.mrf.mxu0
        %v1753 = vadd.f32 %v591, %v1752
        %v1754 = vpop.f32.mrf.mxu0
        %1755 = vmatprep.mubr.f32.mxu0 0.0
        %1756 = vmatmul.mubr.f32.gmra.mxu0 %v792
        %v1757 = vpop.f32.mrf.mxu0
        %v1758 = vadd.f32 %v591, %v1757
        %v1759 = vpop.f32.mrf.mxu0
        %1760 = vmatprep.mubr.f32.mxu0 0.0
        %1761 = vmatmul.mubr.f32.gmra.mxu0 %v795
        %v1762 = vpop.f32.mrf.mxu0
        %v1763 = vadd.f32 %v591, %v1762
        %v1764 = vpop.f32.mrf.mxu0
        %1765 = vmatprep.mubr.f32.mxu0 0.0
        %1766 = vmatmul.mubr.f32.gmra.mxu0 %v798
        %v1767 = vpop.f32.mrf.mxu0
        %v1768 = vadd.f32 %v591, %v1767
        %v1769 = vpop.f32.mrf.mxu0
        %1770 = vmatprep.mubr.f32.mxu0 0.0
        %1771 = vmatmul.mubr.f32.gmra.mxu0 %v801
        %v1772 = vpop.f32.mrf.mxu0
        %v1773 = vadd.f32 %v591, %v1772
        %v1774 = vpop.f32.mrf.mxu0
        %1775 = vmatprep.mubr.f32.mxu0 0.0
        %1776 = vmatmul.mubr.f32.gmra.mxu0 %v804
        %v1777 = vpop.f32.mrf.mxu0
        %v1778 = vadd.f32 %v591, %v1777
        %v1779 = vpop.f32.mrf.mxu0
        %1780 = vmatprep.mubr.f32.mxu0 0.0
        %1781 = vmatmul.mubr.f32.gmra.mxu0 %v807
        %v1782 = vpop.f32.mrf.mxu0
        %v1783 = vadd.f32 %v591, %v1782
        %v1784 = vpop.f32.mrf.mxu0
        %1785 = vmatprep.mubr.f32.mxu0 0.0
        %1786 = vmatmul.mubr.f32.gmra.mxu0 %v810
        %v1787 = vpop.f32.mrf.mxu0
        %v1788 = vadd.f32 %v591, %v1787
        %v1789 = vpop.f32.mrf.mxu0
        %1790 = vmatprep.mubr.f32.mxu0 0.0
        %1791 = vmatmul.mubr.f32.gmra.mxu0 %v813
        %v1792 = vpop.f32.mrf.mxu0
        %v1793 = vadd.f32 %v591, %v1792
        %v1794 = vpop.f32.mrf.mxu0
        %1795 = vmatprep.mubr.f32.mxu0 0.0
        %1796 = vmatmul.mubr.f32.gmra.mxu0 %v816
        %v1797 = vpop.f32.mrf.mxu0
        %v1798 = vadd.f32 %v591, %v1797
        %v1799 = vpop.f32.mrf.mxu0
        %1800 = vmatprep.mubr.f32.mxu0 0.0
        %1801 = vmatmul.mubr.f32.gmra.mxu0 %v819
        %v1802 = vpop.f32.mrf.mxu0
        %v1803 = vadd.f32 %v591, %v1802
        %v1804 = vpop.f32.mrf.mxu0
        %1805 = vmatprep.mubr.f32.mxu0 0.0
        %1806 = vmatmul.mubr.f32.gmra.mxu0 %v822
        %v1807 = vpop.f32.mrf.mxu0
        %v1808 = vadd.f32 %v591, %v1807
        %v1809 = vpop.f32.mrf.mxu0
        %1810 = vmatprep.mubr.f32.mxu0 0.0
        %1811 = vmatmul.mubr.f32.gmra.mxu0 %v825
        %v1812 = vpop.f32.mrf.mxu0
        %v1813 = vadd.f32 %v591, %v1812
        %v1814 = vpop.f32.mrf.mxu0
        %1815 = vmatprep.mubr.f32.mxu0 0.0
        %1816 = vmatmul.mubr.f32.gmra.mxu0 %v828
        %v1817 = vpop.f32.mrf.mxu0
        %v1818 = vadd.f32 %v591, %v1817
        %v1819 = vpop.f32.mrf.mxu0
        %1820 = vmatprep.mubr.f32.mxu0 0.0
        %1821 = vmatmul.mubr.f32.gmra.mxu0 %v831
        %v1822 = vpop.f32.mrf.mxu0
        %v1823 = vadd.f32 %v591, %v1822
        %v1824 = vpop.f32.mrf.mxu0
        %1825 = vmatprep.mubr.f32.mxu0 0.0
        %1826 = vmatmul.mubr.f32.gmra.mxu0 %v834
        %v1827 = vpop.f32.mrf.mxu0
        %v1828 = vadd.f32 %v591, %v1827
        %v1829 = vpop.f32.mrf.mxu0
        %1830 = vmatprep.mubr.f32.mxu0 0.0
        %1831 = vmatmul.mubr.f32.gmra.mxu0 %v837
        %v1832 = vpop.f32.mrf.mxu0
        %v1833 = vadd.f32 %v591, %v1832
        %v1834 = vpop.f32.mrf.mxu0
        %1835 = vmatprep.mubr.f32.mxu0 0.0
        %1836 = vmatmul.mubr.f32.gmra.mxu0 %v840
        %v1837 = vpop.f32.mrf.mxu0
        %v1838 = vadd.f32 %v591, %v1837
        %v1839 = vpop.f32.mrf.mxu0
        %1840 = vmatprep.mubr.f32.mxu0 0.0
        %1841 = vmatmul.mubr.f32.gmra.mxu0 %v843
        %v1842 = vpop.f32.mrf.mxu0
        %v1843 = vadd.f32 %v591, %v1842
        %v1844 = vpop.f32.mrf.mxu0
        %1845 = vmatprep.mubr.f32.mxu0 0.0
        %1846 = vmatmul.mubr.f32.gmra.mxu0 %v846
        %v1847 = vpop.f32.mrf.mxu0
        %v1848 = vadd.f32 %v591, %v1847
        %v1849 = vpop.f32.mrf.mxu0
        %1850 = vmatprep.mubr.f32.mxu0 0.0
        %1851 = vmatmul.mubr.f32.gmra.mxu0 %v849
        %v1852 = vpop.f32.mrf.mxu0
        %v1853 = vadd.f32 %v591, %v1852
        %v1854 = vpop.f32.mrf.mxu0
        %1855 = vmatprep.mubr.f32.mxu0 0.0
        %1856 = vmatmul.mubr.f32.gmra.mxu0 %v852
        %v1857 = vpop.f32.mrf.mxu0
        %v1858 = vadd.f32 %v591, %v1857
        %v1859 = vpop.f32.mrf.mxu0
        %1860 = vmatprep.mubr.f32.mxu0 0.0
        %1861 = vmatmul.mubr.f32.gmra.mxu0 %v855
        %v1862 = vpop.f32.mrf.mxu0
        %v1863 = vadd.f32 %v591, %v1862
        %v1864 = vpop.f32.mrf.mxu0
        %1865 = vmatprep.mubr.f32.mxu0 0.0
        %1866 = vmatmul.mubr.f32.gmra.mxu0 %v858
        %v1867 = vpop.f32.mrf.mxu0
        %v1868 = vadd.f32 %v591, %v1867
        %v1869 = vpop.f32.mrf.mxu0
        %1870 = vmatprep.mubr.f32.mxu0 0.0
        %1871 = vmatmul.mubr.f32.gmra.mxu0 %v861
        %v1872 = vpop.f32.mrf.mxu0
        %v1873 = vadd.f32 %v591, %v1872
        %v1874 = vpop.f32.mrf.mxu0
        %1875 = vmatprep.mubr.f32.mxu0 0.0
        %1876 = vmatmul.mubr.f32.gmra.mxu0 %v864
        %v1877 = vpop.f32.mrf.mxu0
        %v1878 = vadd.f32 %v591, %v1877
        %v1879 = vpop.f32.mrf.mxu0
        %1880 = vmatprep.mubr.f32.mxu0 0.0
        %1881 = vmatmul.mubr.f32.gmra.mxu0 %v867
        %v1882 = vpop.f32.mrf.mxu0
        %v1883 = vadd.f32 %v591, %v1882
        %v1884 = vpop.f32.mrf.mxu0
        %1885 = vmatprep.mubr.f32.mxu0 0.0
        %1886 = vmatmul.mubr.f32.gmra.mxu0 %v870
        %v1887 = vpop.f32.mrf.mxu0
        %v1888 = vadd.f32 %v591, %v1887
        %v1889 = vpop.f32.mrf.mxu0
        %1890 = vmatprep.mubr.f32.mxu0 0.0
        %1891 = vmatmul.mubr.f32.gmra.mxu0 %v873
        %v1892 = vpop.f32.mrf.mxu0
        %v1893 = vadd.f32 %v591, %v1892
        %v1894 = vpop.f32.mrf.mxu0
        %1895 = vmatprep.mubr.f32.mxu0 0.0
        %1896 = vmatmul.mubr.f32.gmra.mxu0 %v876
        %v1897 = vpop.f32.mrf.mxu0
        %v1898 = vadd.f32 %v591, %v1897
        %v1899 = vpop.f32.mrf.mxu0
        %1900 = vmatprep.mubr.f32.mxu0 0.0
        %1901 = vmatmul.mubr.f32.gmra.mxu0 %v879
        %v1902 = vpop.f32.mrf.mxu0
        %v1903 = vadd.f32 %v591, %v1902
        %v1904 = vpop.f32.mrf.mxu0
        %1905 = vmatprep.mubr.f32.mxu0 0.0
        %1906 = vmatmul.mubr.f32.gmra.mxu0 %v882
        %v1907 = vpop.f32.mrf.mxu0
        %v1908 = vadd.f32 %v591, %v1907
        %v1909 = vpop.f32.mrf.mxu0
        %1910 = vmatprep.mubr.f32.mxu0 0.0
        %1911 = vmatmul.mubr.f32.gmra.mxu0 %v885
        %v1912 = vpop.f32.mrf.mxu0
        %v1913 = vadd.f32 %v591, %v1912
        %v1914 = vpop.f32.mrf.mxu0
        %1915 = vmatprep.mubr.f32.mxu0 0.0
        %1916 = vmatmul.mubr.f32.gmra.mxu0 %v888
        %v1917 = vpop.f32.mrf.mxu0
        %v1918 = vadd.f32 %v591, %v1917
        %v1919 = vpop.f32.mrf.mxu0
        %1920 = vmatprep.mubr.f32.mxu0 0.0
        %1921 = vmatmul.mubr.f32.gmra.mxu0 %v891
        %v1922 = vpop.f32.mrf.mxu0
        %v1923 = vadd.f32 %v591, %v1922
        %v1924 = vpop.f32.mrf.mxu0
        %1925 = vmatprep.mubr.f32.mxu0 0.0
        %1926 = vmatmul.mubr.f32.gmra.mxu0 %v894
        %v1927 = vpop.f32.mrf.mxu0
        %v1928 = vadd.f32 %v591, %v1927
        %v1929 = vpop.f32.mrf.mxu0
        %1930 = vmatprep.mubr.f32.mxu0 0.0
        %1931 = vmatmul.mubr.f32.gmra.mxu0 %v897
        %v1932 = vpop.f32.mrf.mxu0
        %v1933 = vadd.f32 %v591, %v1932
        %v1934 = vpop.f32.mrf.mxu0
        %1935 = vmatprep.mubr.f32.mxu0 0.0
        %1936 = vmatmul.mubr.f32.gmra.mxu0 %v900
        %v1937 = vpop.f32.mrf.mxu0
        %v1938 = vadd.f32 %v591, %v1937
        %v1939 = vpop.f32.mrf.mxu0
        %1940 = vmatprep.mubr.f32.mxu0 0.0
        %1941 = vmatmul.mubr.f32.gmra.mxu0 %v903
        %v1942 = vpop.f32.mrf.mxu0
        %v1943 = vadd.f32 %v591, %v1942
        %v1944 = vpop.f32.mrf.mxu0
        %1945 = vmatprep.mubr.f32.mxu0 0.0
        %1946 = vmatmul.mubr.f32.gmra.mxu0 %v906
        %v1947 = vpop.f32.mrf.mxu0
        %v1948 = vadd.f32 %v591, %v1947
        %v1949 = vpop.f32.mrf.mxu0
        %1950 = vmatprep.mubr.f32.mxu0 0.0
        %1951 = vmatmul.mubr.f32.gmra.mxu0 %v909
        %v1952 = vpop.f32.mrf.mxu0
        %v1953 = vadd.f32 %v591, %v1952
        %v1954 = vpop.f32.mrf.mxu0
        %1955 = vmatprep.mubr.f32.mxu0 0.0
        %1956 = vmatmul.mubr.f32.gmra.mxu0 %v912
        %v1957 = vpop.f32.mrf.mxu0
        %v1958 = vadd.f32 %v591, %v1957
        %v1959 = vpop.f32.mrf.mxu0
        %1960 = vmatprep.mubr.f32.mxu0 0.0
        %1961 = vmatmul.mubr.f32.gmra.mxu0 %v915
        %v1962 = vpop.f32.mrf.mxu0
        %v1963 = vadd.f32 %v591, %v1962
        %v1964 = vpop.f32.mrf.mxu0
        %1965 = vmatprep.mubr.f32.mxu0 0.0
        %1966 = vmatmul.mubr.f32.gmra.mxu0 %v918
        %v1967 = vpop.f32.mrf.mxu0
        %v1968 = vadd.f32 %v591, %v1967
        %v1969 = vpop.f32.mrf.mxu0
        %1970 = vmatprep.mubr.f32.mxu0 0.0
        %1971 = vmatmul.mubr.f32.gmra.mxu0 %v921
        %v1972 = vpop.f32.mrf.mxu0
        %v1973 = vadd.f32 %v591, %v1972
        %v1974 = vpop.f32.mrf.mxu0
        %1975 = vmatprep.mubr.f32.mxu0 0.0
        %1976 = vmatmul.mubr.f32.gmra.mxu0 %v924
        %v1977 = vpop.f32.mrf.mxu0
        %v1978 = vadd.f32 %v591, %v1977
        %v1979 = vpop.f32.mrf.mxu0
        %1980 = vmatprep.mubr.f32.mxu0 0.0
        %1981 = vmatmul.mubr.f32.gmra.mxu0 %v927
        %v1982 = vpop.f32.mrf.mxu0
        %v1983 = vadd.f32 %v591, %v1982
        %v1984 = vpop.f32.mrf.mxu0
        %1985 = vmatprep.mubr.f32.mxu0 0.0
        %1986 = vmatmul.mubr.f32.gmra.mxu0 %v930
        %v1987 = vpop.f32.mrf.mxu0
        %v1988 = vadd.f32 %v591, %v1987
        %v1989 = vpop.f32.mrf.mxu0
        %1990 = vmatprep.mubr.f32.mxu0 0.0
        %1991 = vmatmul.mubr.f32.gmra.mxu0 %v933
        %v1992 = vpop.f32.mrf.mxu0
        %v1993 = vadd.f32 %v591, %v1992
        %v1994 = vpop.f32.mrf.mxu0
        %1995 = vmatprep.mubr.f32.mxu0 0.0
        %1996 = vmatmul.mubr.f32.gmra.mxu0 %v936
        %v1997 = vpop.f32.mrf.mxu0
        %v1998 = vadd.f32 %v591, %v1997
        %v1999 = vpop.f32.mrf.mxu0
        %2000 = vmatprep.mubr.f32.mxu0 0.0
        %2001 = vmatmul.mubr.f32.gmra.mxu0 %v939
        %v2002 = vpop.f32.mrf.mxu0
        %v2003 = vadd.f32 %v591, %v2002
        %v2004 = vpop.f32.mrf.mxu0
        %2005 = vmatprep.mubr.f32.mxu0 0.0
        %2006 = vmatmul.mubr.f32.gmra.mxu0 %v942
        %v2007 = vpop.f32.mrf.mxu0
        %v2008 = vadd.f32 %v591, %v2007
        %v2009 = vpop.f32.mrf.mxu0
        %2010 = vmatprep.mubr.f32.mxu0 0.0
        %2011 = vmatmul.mubr.f32.gmra.mxu0 %v945
        %v2012 = vpop.f32.mrf.mxu0
        %v2013 = vadd.f32 %v591, %v2012
        %v2014 = vpop.f32.mrf.mxu0
        %2015 = vmatprep.mubr.f32.mxu0 0.0
        %2016 = vmatmul.mubr.f32.gmra.mxu0 %v948
        %v2017 = vpop.f32.mrf.mxu0
        %v2018 = vadd.f32 %v591, %v2017
        %v2019 = vpop.f32.mrf.mxu0
        %2020 = vmatprep.mubr.f32.mxu0 0.0
        %2021 = vmatmul.mubr.f32.gmra.mxu0 %v951
        %v2022 = vpop.f32.mrf.mxu0
        %v2023 = vadd.f32 %v591, %v2022
        %v2024 = vpop.f32.mrf.mxu0
        %2025 = vmatprep.mubr.f32.mxu0 0.0
        %2026 = vmatmul.mubr.f32.gmra.mxu0 %v954
        %v2027 = vpop.f32.mrf.mxu0
        %v2028 = vadd.f32 %v591, %v2027
        %v2029 = vpop.f32.mrf.mxu0
        %2030 = vmatprep.mubr.f32.mxu0 0.0
        %2031 = vmatmul.mubr.f32.gmra.mxu0 %v957
        %v2032 = vpop.f32.mrf.mxu0
        %v2033 = vadd.f32 %v591, %v2032
        %v2034 = vpop.f32.mrf.mxu0
        %2035 = vmatprep.mubr.f32.mxu0 0.0
        %2036 = vmatmul.mubr.f32.gmra.mxu0 %v960
        %v2037 = vpop.f32.mrf.mxu0
        %v2038 = vadd.f32 %v591, %v2037
        %v2039 = vpop.f32.mrf.mxu0
        %2040 = vmatprep.mubr.f32.mxu0 0.0
        %2041 = vmatmul.mubr.f32.gmra.mxu0 %v963
        %v2042 = vpop.f32.mrf.mxu0
        %v2043 = vadd.f32 %v591, %v2042
        %v2044 = vpop.f32.mrf.mxu0
        %2045 = vmatprep.mubr.f32.mxu0 0.0
        %2046 = vmatmul.mubr.f32.gmra.mxu0 %v966
        %v2047 = vpop.f32.mrf.mxu0
        %v2048 = vadd.f32 %v591, %v2047
        %v2049 = vpop.f32.mrf.mxu0
        %2050 = vmatprep.mubr.f32.mxu0 0.0
        %2051 = vmatmul.mubr.f32.gmra.mxu0 %v969
        %v2052 = vpop.f32.mrf.mxu0
        %v2053 = vadd.f32 %v591, %v2052
        %v2054 = vpop.f32.mrf.mxu0
        %2055 = vmatprep.mubr.f32.mxu0 0.0
        %2056 = vmatmul.mubr.f32.gmra.mxu0 %v972
        %v2057 = vpop.f32.mrf.mxu0
        %v2058 = vadd.f32 %v591, %v2057
        %v2059 = vpop.f32.mrf.mxu0
        %2060 = vmatprep.mubr.f32.mxu0 0.0
        %2061 = vmatmul.mubr.f32.gmra.mxu0 %v975
        %v2062 = vpop.f32.mrf.mxu0
        %v2063 = vadd.f32 %v591, %v2062
        %v2064 = vpop.f32.mrf.mxu0
        %2065 = vmatprep.mubr.f32.mxu0 0.0
        %2066 = vmatmul.mubr.f32.gmra.mxu0 %v978
        %v2067 = vpop.f32.mrf.mxu0
        %v2068 = vadd.f32 %v591, %v2067
        %v2069 = vpop.f32.mrf.mxu0
        %2070 = vmatprep.mubr.f32.mxu0 0.0
        %2071 = vmatmul.mubr.f32.gmra.mxu0 %v981
        %v2072 = vpop.f32.mrf.mxu0
        %v2073 = vadd.f32 %v591, %v2072
        %v2074 = vpop.f32.mrf.mxu0
        %2075 = vmatprep.mubr.f32.mxu0 0.0
        %2076 = vmatmul.mubr.f32.gmra.mxu0 %v984
        %v2077 = vpop.f32.mrf.mxu0
        %v2078 = vadd.f32 %v591, %v2077
        %v2079 = vpop.f32.mrf.mxu0
        %2080 = vmatprep.mubr.f32.mxu0 0.0
        %2081 = vmatmul.mubr.f32.gmra.mxu0 %v987
        %v2082 = vpop.f32.mrf.mxu0
        %v2083 = vadd.f32 %v591, %v2082
        %v2084 = vpop.f32.mrf.mxu0
        %2085 = vmatprep.mubr.f32.mxu0 0.0
        %2086 = vmatmul.mubr.f32.gmra.mxu0 %v990
        %v2087 = vpop.f32.mrf.mxu0
        %v2088 = vadd.f32 %v591, %v2087
        %v2089 = vpop.f32.mrf.mxu0
        %2090 = vmatprep.mubr.f32.mxu0 0.0
        %2091 = vmatmul.mubr.f32.gmra.mxu0 %v993
        %v2092 = vpop.f32.mrf.mxu0
        %v2093 = vadd.f32 %v591, %v2092
        %v2094 = vpop.f32.mrf.mxu0
        %2095 = vmatprep.mubr.f32.mxu0 0.0
        %2096 = vmatmul.mubr.f32.gmra.mxu0 %v996
        %v2097 = vpop.f32.mrf.mxu0
        %v2098 = vadd.f32 %v591, %v2097
        %v2099 = vpop.f32.mrf.mxu0
        %2100 = vmatprep.mubr.f32.mxu0 0.0
        %2101 = vmatmul.mubr.f32.gmra.mxu0 %v999
        %v2102 = vpop.f32.mrf.mxu0
        %v2103 = vadd.f32 %v591, %v2102
        %v2104 = vpop.f32.mrf.mxu0
        %2105 = vmatprep.mubr.f32.mxu0 0.0
        %2106 = vmatmul.mubr.f32.gmra.mxu0 %v1002
        %v2107 = vpop.f32.mrf.mxu0
        %v2108 = vadd.f32 %v591, %v2107
        %v2109 = vpop.f32.mrf.mxu0
        %2110 = vmatprep.mubr.f32.mxu0 0.0
        %2111 = vmatmul.mubr.f32.gmra.mxu0 %v1005
        %v2112 = vpop.f32.mrf.mxu0
        %v2113 = vadd.f32 %v591, %v2112
        %v2114 = vpop.f32.mrf.mxu0
        %2115 = vmatprep.mubr.f32.mxu0 0.0
        %2116 = vmatmul.mubr.f32.gmra.mxu0 %v1008
        %v2117 = vpop.f32.mrf.mxu0
        %v2118 = vadd.f32 %v591, %v2117
        %v2119 = vpop.f32.mrf.mxu0
        %2120 = vmatprep.mubr.f32.mxu0 0.0
        %2121 = vmatmul.mubr.f32.gmra.mxu0 %v1011
        %v2122 = vpop.f32.mrf.mxu0
        %v2123 = vadd.f32 %v591, %v2122
        %v2124 = vpop.f32.mrf.mxu0
        %2125 = vmatprep.mubr.f32.mxu0 0.0
        %2126 = vmatmul.mubr.f32.gmra.mxu0 %v1014
        %v2127 = vpop.f32.mrf.mxu0
        %v2128 = vadd.f32 %v591, %v2127
        %v2129 = vpop.f32.mrf.mxu0
        %2130 = vmatprep.mubr.f32.mxu0 0.0
        %2131 = vmatmul.mubr.f32.gmra.mxu0 %v1017
        %v2132 = vpop.f32.mrf.mxu0
        %v2133 = vadd.f32 %v591, %v2132
        %v2134 = vpop.f32.mrf.mxu0
        %2135 = vmatprep.mubr.f32.mxu0 0.0
        %2136 = vmatmul.mubr.f32.gmra.mxu0 %v1020
        %v2137 = vpop.f32.mrf.mxu0
        %v2138 = vadd.f32 %v591, %v2137
        %v2139 = vpop.f32.mrf.mxu0
        %2140 = vmatprep.mubr.f32.mxu0 0.0
        %2141 = vmatmul.mubr.f32.gmra.mxu0 %v1023
        %v2142 = vpop.f32.mrf.mxu0
        %v2143 = vadd.f32 %v591, %v2142
        %v2144 = vpop.f32.mrf.mxu0
        %2145 = vmatprep.mubr.f32.mxu0 0.0
        %2146 = vmatmul.mubr.f32.gmra.mxu0 %v1026
        %v2147 = vpop.f32.mrf.mxu0
        %v2148 = vadd.f32 %v591, %v2147
        %v2149 = vpop.f32.mrf.mxu0
        %2150 = vmatprep.mubr.f32.mxu0 0.0
        %2151 = vmatmul.mubr.f32.gmra.mxu0 %v1029
        %v2152 = vpop.f32.mrf.mxu0
        %v2153 = vadd.f32 %v591, %v2152
        %v2154 = vpop.f32.mrf.mxu0
        %2155 = vmatprep.mubr.f32.mxu0 0.0
        %2156 = vmatmul.mubr.f32.gmra.mxu0 %v1032
        %v2157 = vpop.f32.mrf.mxu0
        %v2158 = vadd.f32 %v591, %v2157
        %v2159 = vpop.f32.mrf.mxu0
        %2160 = vmatprep.mubr.f32.mxu0 0.0
        %2161 = vmatmul.mubr.f32.gmra.mxu0 %v1035
        %v2162 = vpop.f32.mrf.mxu0
        %v2163 = vadd.f32 %v591, %v2162
        %v2164 = vpop.f32.mrf.mxu0
        %2165 = vmatprep.mubr.f32.mxu0 0.0
        %2166 = vmatmul.mubr.f32.gmra.mxu0 %v1038
        %v2167 = vpop.f32.mrf.mxu0
        %v2168 = vadd.f32 %v591, %v2167
        %v2169 = vpop.f32.mrf.mxu0
        %2170 = vmatprep.mubr.f32.mxu0 0.0
        %2171 = vmatmul.mubr.f32.gmra.mxu0 %v1041
        %v2172 = vpop.f32.mrf.mxu0
        %v2173 = vadd.f32 %v591, %v2172
        %v2174 = vpop.f32.mrf.mxu0
        %2175 = vmatprep.mubr.f32.mxu0 0.0
        %2176 = vmatmul.mubr.f32.gmra.mxu0 %v1044
        %v2177 = vpop.f32.mrf.mxu0
        %v2178 = vadd.f32 %v591, %v2177
        %v2179 = vpop.f32.mrf.mxu0
        %2180 = vmatprep.mubr.f32.mxu0 0.0
        %2181 = vmatmul.mubr.f32.gmra.mxu0 %v1047
        %v2182 = vpop.f32.mrf.mxu0
        %v2183 = vadd.f32 %v591, %v2182
        %v2184 = vpop.f32.mrf.mxu0
        %2185 = vmatprep.mubr.f32.mxu0 0.0
        %2186 = vmatmul.mubr.f32.gmra.mxu0 %v1050
        %v2187 = vpop.f32.mrf.mxu0
        %v2188 = vadd.f32 %v591, %v2187
        %v2189 = vpop.f32.mrf.mxu0
        %2190 = vmatprep.mubr.f32.mxu0 0.0
        %2191 = vmatmul.mubr.f32.gmra.mxu0 %v1053
        %v2192 = vpop.f32.mrf.mxu0
        %v2193 = vadd.f32 %v591, %v2192
        %v2194 = vpop.f32.mrf.mxu0
        %2195 = vmatprep.mubr.f32.mxu0 0.0
        %2196 = vmatmul.mubr.f32.gmra.mxu0 %v1056
        %v2197 = vpop.f32.mrf.mxu0
        %v2198 = vadd.f32 %v591, %v2197
        %v2199 = vpop.f32.mrf.mxu0
        %2200 = vmatprep.mubr.f32.mxu0 0.0
        %2201 = vmatmul.mubr.f32.gmra.mxu0 %v1059
        %v2202 = vpop.f32.mrf.mxu0
        %v2203 = vadd.f32 %v591, %v2202
        %v2204 = vpop.f32.mrf.mxu0
        %2205 = vmatprep.mubr.f32.mxu0 0.0
        %2206 = vmatmul.mubr.f32.gmra.mxu0 %v1062
        %v2207 = vpop.f32.mrf.mxu0
        %v2208 = vadd.f32 %v591, %v2207
        %v2209 = vpop.f32.mrf.mxu0
        %2210 = vmatprep.mubr.f32.mxu0 0.0
        %2211 = vmatmul.mubr.f32.gmra.mxu0 %v1065
        %v2212 = vpop.f32.mrf.mxu0
        %v2213 = vadd.f32 %v591, %v2212
        %v2214 = vpop.f32.mrf.mxu0
        %2215 = vmatprep.mubr.f32.mxu0 0.0
        %2216 = vmatmul.mubr.f32.gmra.mxu0 %v1068
        %v2217 = vpop.f32.mrf.mxu0
        %v2218 = vadd.f32 %v591, %v2217
        %v2219 = vpop.f32.mrf.mxu0
        %2220 = vmatprep.mubr.f32.mxu0 0.0
        %2221 = vmatmul.mubr.f32.gmra.mxu0 %v1071
        %v2222 = vpop.f32.mrf.mxu0
        %v2223 = vadd.f32 %v591, %v2222
        %v2224 = vpop.f32.mrf.mxu0
        %2225 = vmatprep.mubr.f32.mxu0 0.0
        %2226 = vmatmul.mubr.f32.gmra.mxu0 %v1074
        %v2227 = vpop.f32.mrf.mxu0
        %v2228 = vadd.f32 %v591, %v2227
        %v2229 = vpop.f32.mrf.mxu0
        %2230 = vmatprep.mubr.f32.mxu0 0.0
        %2231 = vmatmul.mubr.f32.gmra.mxu0 %v1077
        %v2232 = vpop.f32.mrf.mxu0
        %v2233 = vadd.f32 %v591, %v2232
        %v2234 = vpop.f32.mrf.mxu0
        %2235 = vmatprep.mubr.f32.mxu0 0.0
        %2236 = vmatmul.mubr.f32.gmra.mxu0 %v1080
        %v2237 = vpop.f32.mrf.mxu0
        %v2238 = vadd.f32 %v591, %v2237
        %v2239 = vpop.f32.mrf.mxu0
        %2240 = vmatprep.mubr.f32.mxu0 0.0
        %2241 = vmatmul.mubr.f32.gmra.mxu0 %v1083
        %v2242 = vpop.f32.mrf.mxu0
        %v2243 = vadd.f32 %v591, %v2242
        %v2244 = vpop.f32.mrf.mxu0
        %2245 = vmatprep.mubr.f32.mxu0 0.0
        %2246 = vmatmul.mubr.f32.gmra.mxu0 %v1086
        %v2247 = vpop.f32.mrf.mxu0
        %v2248 = vadd.f32 %v591, %v2247
        %v2249 = vpop.f32.mrf.mxu0
        %2250 = vmatprep.mubr.f32.mxu0 0.0
        %2251 = vmatmul.mubr.f32.gmra.mxu0 %v1089
        %v2252 = vpop.f32.mrf.mxu0
        %v2253 = vadd.f32 %v591, %v2252
        %v2254 = vpop.f32.mrf.mxu0
        %2255 = vmatprep.mubr.f32.mxu0 0.0
        %2256 = vmatmul.mubr.f32.gmra.mxu0 %v1092
        %v2257 = vpop.f32.mrf.mxu0
        %v2258 = vadd.f32 %v591, %v2257
        %v2259 = vpop.f32.mrf.mxu0
        %2260 = vmatprep.mubr.f32.mxu0 0.0
        %2261 = vmatmul.mubr.f32.gmra.mxu0 %v1095
        %v2262 = vpop.f32.mrf.mxu0
        %v2263 = vadd.f32 %v591, %v2262
        %v2264 = vpop.f32.mrf.mxu0
        %2265 = vmatprep.mubr.f32.mxu0 0.0
        %2266 = vmatmul.mubr.f32.gmra.mxu0 %v1098
        %v2267 = vpop.f32.mrf.mxu0
        %v2268 = vadd.f32 %v591, %v2267
        %v2269 = vpop.f32.mrf.mxu0
        %2270 = vmatprep.mubr.f32.mxu0 0.0
        %2271 = vmatmul.mubr.f32.gmra.mxu0 %v1101
        %v2272 = vpop.f32.mrf.mxu0
        %v2273 = vadd.f32 %v591, %v2272
        %v2274 = vpop.f32.mrf.mxu0
        %2275 = vmatprep.mubr.f32.mxu0 0.0
        %2276 = vmatmul.mubr.f32.gmra.mxu0 %v1104
        %v2277 = vpop.f32.mrf.mxu0
        %v2278 = vadd.f32 %v591, %v2277
        %v2279 = vpop.f32.mrf.mxu0
        %2280 = vmatprep.mubr.f32.mxu0 0.0
        %2281 = vmatmul.mubr.f32.gmra.mxu0 %v1107
        %v2282 = vpop.f32.mrf.mxu0
        %v2283 = vadd.f32 %v591, %v2282
        %v2284 = vpop.f32.mrf.mxu0
        %2285 = vmatprep.mubr.f32.mxu0 0.0
        %2286 = vmatmul.mubr.f32.gmra.mxu0 %v1110
        %v2287 = vpop.f32.mrf.mxu0
        %v2288 = vadd.f32 %v591, %v2287
        %v2289 = vpop.f32.mrf.mxu0
        %2290 = vmatprep.mubr.f32.mxu0 0.0
        %2291 = vmatmul.mubr.f32.gmra.mxu0 %v1113
        %v2292 = vpop.f32.mrf.mxu0
        %v2293 = vadd.f32 %v591, %v2292
        %v2294 = vpop.f32.mrf.mxu0
        %2295 = vmatprep.mubr.f32.mxu0 0.0
        %2296 = vmatmul.mubr.f32.gmra.mxu0 %v1116
        %v2297 = vpop.f32.mrf.mxu0
        %v2298 = vadd.f32 %v591, %v2297
        %v2299 = vpop.f32.mrf.mxu0
        %2300 = vmatprep.mubr.f32.mxu0 0.0
        %2301 = vmatmul.mubr.f32.gmra.mxu0 %v1119
        %v2302 = vpop.f32.mrf.mxu0
        %v2303 = vadd.f32 %v591, %v2302
        %v2304 = vpop.f32.mrf.mxu0
        %2305 = vmatprep.mubr.f32.mxu0 0.0
        %2306 = vmatmul.mubr.f32.gmra.mxu0 %v1122
        %v2307 = vpop.f32.mrf.mxu0
        %v2308 = vadd.f32 %v591, %v2307
        %v2309 = vpop.f32.mrf.mxu0
        %2310 = vmatprep.mubr.f32.mxu0 0.0
        %2311 = vmatmul.mubr.f32.gmra.mxu0 %v1125
        %v2312 = vpop.f32.mrf.mxu0
        %v2313 = vadd.f32 %v591, %v2312
        %v2314 = vpop.f32.mrf.mxu0
        %2315 = vmatprep.mubr.f32.mxu0 0.0
        %2316 = vmatmul.mubr.f32.gmra.mxu0 %v1128
        %v2317 = vpop.f32.mrf.mxu0
        %v2318 = vadd.f32 %v591, %v2317
        %v2319 = vpop.f32.mrf.mxu0
        %2320 = vmatprep.mubr.f32.mxu0 0.0
        %2321 = vmatmul.mubr.f32.gmra.mxu0 %v1131
        %v2322 = vpop.f32.mrf.mxu0
        %v2323 = vadd.f32 %v591, %v2322
        %v2324 = vpop.f32.mrf.mxu0
        %2325 = vmatprep.mubr.f32.mxu0 0.0
        %2326 = vmatmul.mubr.f32.gmra.mxu0 %v1134
        %v2327 = vpop.f32.mrf.mxu0
        %v2328 = vadd.f32 %v591, %v2327
        %v2329 = vpop.f32.mrf.mxu0
        %2330 = vmatprep.mubr.f32.mxu0 0.0
        %2331 = vmatmul.mubr.f32.gmra.mxu0 %v1137
        %v2332 = vpop.f32.mrf.mxu0
        %v2333 = vadd.f32 %v591, %v2332
        %v2334 = vpop.f32.mrf.mxu0
        %2335 = vmatprep.mubr.f32.mxu0 0.0
        %2336 = vmatmul.mubr.f32.gmra.mxu0 %v1140
        %v2337 = vpop.f32.mrf.mxu0
        %v2338 = vadd.f32 %v591, %v2337
        %v2339 = vpop.f32.mrf.mxu0
        %2340 = vmatprep.mubr.f32.mxu0 0.0
        %2341 = vmatmul.mubr.f32.gmra.mxu0 %v1143
        %v2342 = vpop.f32.mrf.mxu0
        %v2343 = vadd.f32 %v591, %v2342
        %v2344 = vpop.f32.mrf.mxu0
        %2345 = vmatprep.mubr.f32.mxu0 0.0
        %2346 = vmatmul.mubr.f32.gmra.mxu0 %v1146
        %v2347 = vpop.f32.mrf.mxu0
        %v2348 = vadd.f32 %v591, %v2347
        %v2349 = vpop.f32.mrf.mxu0
        %2350 = vmatprep.mubr.f32.mxu0 0.0
        %2351 = vmatmul.mubr.f32.gmra.mxu0 %v1149
        %v2352 = vpop.f32.mrf.mxu0
        %v2353 = vadd.f32 %v591, %v2352
        %v2354 = vpop.f32.mrf.mxu0
        %2355 = vmatprep.mubr.f32.mxu0 0.0
        %2356 = vmatmul.mubr.f32.gmra.mxu0 %v1152
        %v2357 = vpop.f32.mrf.mxu0
        %v2358 = vadd.f32 %v591, %v2357
        %v2359 = vpop.f32.mrf.mxu0
        %2360 = vmatprep.mubr.f32.mxu0 0.0
        %2361 = vmatmul.mubr.f32.gmra.mxu0 %v1155
        %v2362 = vpop.f32.mrf.mxu0
        %v2363 = vadd.f32 %v591, %v2362
        %v2364 = vpop.f32.mrf.mxu0
        %2365 = vmatprep.mubr.f32.mxu0 0.0
        %2366 = vmatmul.mubr.f32.gmra.mxu0 %v1158
        %v2367 = vpop.f32.mrf.mxu0
        %v2368 = vadd.f32 %v591, %v2367
        %v2369 = vpop.f32.mrf.mxu0
        %2370 = vmatprep.mubr.f32.mxu0 0.0
        %2371 = vmatmul.mubr.f32.gmra.mxu0 %v1161
        %v2372 = vpop.f32.mrf.mxu0
        %v2373 = vadd.f32 %v591, %v2372
        %v2374 = vpop.f32.mrf.mxu0
        %2375 = vmatprep.mubr.f32.mxu0 0.0
        %2376 = vmatmul.mubr.f32.gmra.mxu0 %v1164
        %v2377 = vpop.f32.mrf.mxu0
        %v2378 = vadd.f32 %v591, %v2377
        %v2379 = vpop.f32.mrf.mxu0
        %2380 = vmatprep.mubr.f32.mxu0 0.0
        %2381 = vmatmul.mubr.f32.gmra.mxu0 %v1167
        %v2382 = vpop.f32.mrf.mxu0
        %v2383 = vadd.f32 %v591, %v2382
        %v2384 = vpop.f32.mrf.mxu0
        %2385 = vmatprep.mubr.f32.mxu0 0.0
        %2386 = vmatmul.mubr.f32.gmra.mxu0 %v1170
        %v2387 = vpop.f32.mrf.mxu0
        %v2388 = vadd.f32 %v591, %v2387
        %v2389 = vpop.f32.mrf.mxu0
        %2390 = vmatprep.mubr.f32.mxu0 0.0
        %2391 = vmatmul.mubr.f32.gmra.mxu0 %v1173
        %v2392 = vpop.f32.mrf.mxu0
        %v2393 = vadd.f32 %v591, %v2392
        %v2394 = vpop.f32.mrf.mxu0
        %2395 = vmatprep.mubr.f32.mxu0 0.0
        %2396 = vmatmul.mubr.f32.gmra.mxu0 %v1176
        %v2397 = vpop.f32.mrf.mxu0
        %v2398 = vadd.f32 %v591, %v2397
        %v2399 = vpop.f32.mrf.mxu0
        %2400 = vmatprep.mubr.f32.mxu0 0.0
        %2401 = vmatmul.mubr.f32.gmra.mxu0 %v1179
        %v2402 = vpop.f32.mrf.mxu0
        %v2403 = vadd.f32 %v591, %v2402
        %v2404 = vpop.f32.mrf.mxu0
        %2405 = vmatprep.mubr.f32.mxu0 0.0
        %2406 = vmatmul.mubr.f32.gmra.mxu0 %v1182
        %v2407 = vpop.f32.mrf.mxu0
        %v2408 = vadd.f32 %v591, %v2407
        %v2409 = vpop.f32.mrf.mxu0
        %2410 = vmatprep.mubr.f32.mxu0 0.0
        %2411 = vmatmul.mubr.f32.gmra.mxu0 %v1185
        %v2412 = vpop.f32.mrf.mxu0
        %v2413 = vadd.f32 %v591, %v2412
        %v2414 = vpop.f32.mrf.mxu0
        %2415 = vmatprep.mubr.f32.mxu0 0.0
        %2416 = vmatmul.mubr.f32.gmra.mxu0 %v1188
        %v2417 = vpop.f32.mrf.mxu0
        %v2418 = vadd.f32 %v591, %v2417
        %v2419 = vpop.f32.mrf.mxu0
        %2420 = vmatprep.mubr.f32.mxu0 0.0
        %2421 = vmatmul.mubr.f32.gmra.mxu0 %v1191
        %v2422 = vpop.f32.mrf.mxu0
        %v2423 = vadd.f32 %v591, %v2422
        %v2424 = vpop.f32.mrf.mxu0
        %2425 = vmatprep.mubr.f32.mxu0 0.0
        %2426 = vmatmul.mubr.f32.gmra.mxu0 %v1194
        %v2427 = vpop.f32.mrf.mxu0
        %v2428 = vadd.f32 %v591, %v2427
        %v2429 = vpop.f32.mrf.mxu0
        %2430 = vmatprep.mubr.f32.mxu0 0.0
        %2431 = vmatmul.mubr.f32.gmra.mxu0 %v1197
        %v2432 = vpop.f32.mrf.mxu0
        %v2433 = vadd.f32 %v591, %v2432
        %v2434 = vpop.f32.mrf.mxu0
        %2435 = vmatprep.mubr.f32.mxu0 0.0
        %2436 = vmatmul.mubr.f32.gmra.mxu0 %v1200
        %v2437 = vpop.f32.mrf.mxu0
        %v2438 = vadd.f32 %v591, %v2437
        %v2439 = vpop.f32.mrf.mxu0
        %2440 = vmatprep.mubr.f32.mxu0 0.0
        %2441 = vmatmul.mubr.f32.gmra.mxu0 %v1203
        %v2442 = vpop.f32.mrf.mxu0
        %v2443 = vadd.f32 %v591, %v2442
        %v2444 = vpop.f32.mrf.mxu0
        %2445 = vmatprep.mubr.f32.mxu0 0.0
        %2446 = vmatmul.mubr.f32.gmra.mxu0 %v1206
        %v2447 = vpop.f32.mrf.mxu0
        %v2448 = vadd.f32 %v591, %v2447
        %v2449 = vpop.f32.mrf.mxu0
        %2450 = vmatprep.mubr.f32.mxu0 0.0
        %2451 = vmatmul.mubr.f32.gmra.mxu0 %v1209
        %v2452 = vpop.f32.mrf.mxu0
        %v2453 = vadd.f32 %v591, %v2452
        %v2454 = vpop.f32.mrf.mxu0
        %2455 = vmatprep.mubr.f32.mxu0 0.0
        %2456 = vmatmul.mubr.f32.gmra.mxu0 %v1212
        %v2457 = vpop.f32.mrf.mxu0
        %v2458 = vadd.f32 %v591, %v2457
        %v2459 = vpop.f32.mrf.mxu0
        %2460 = vmatprep.mubr.f32.mxu0 0.0
        %2461 = vmatmul.mubr.f32.gmra.mxu0 %v1215
        %v2462 = vpop.f32.mrf.mxu0
        %v2463 = vadd.f32 %v591, %v2462
        %v2464 = vpop.f32.mrf.mxu0
        %2465 = vmatprep.mubr.f32.mxu0 0.0
        %2466 = vmatmul.mubr.f32.gmra.mxu0 %v1218
        %v2467 = vpop.f32.mrf.mxu0
        %v2468 = vadd.f32 %v591, %v2467
        %v2469 = vpop.f32.mrf.mxu0
        %2470 = vmatprep.mubr.f32.mxu0 0.0
        %2471 = vmatmul.mubr.f32.gmra.mxu0 %v1221
        %v2472 = vpop.f32.mrf.mxu0
        %v2473 = vadd.f32 %v591, %v2472
        %v2474 = vpop.f32.mrf.mxu0
        %2475 = vmatprep.mubr.f32.mxu0 0.0
        %2476 = vmatmul.mubr.f32.gmra.mxu0 %v1224
        %v2477 = vpop.f32.mrf.mxu0
        %v2478 = vadd.f32 %v591, %v2477
        %v2479 = vpop.f32.mrf.mxu0
        %2480 = vmatprep.mubr.f32.mxu0 0.0
        %2481 = vmatmul.mubr.f32.gmra.mxu0 %v1227
        %v2482 = vpop.f32.mrf.mxu0
        %v2483 = vadd.f32 %v591, %v2482
        %v2484 = vpop.f32.mrf.mxu0
        %2485 = vmatprep.mubr.f32.mxu0 0.0
        %2486 = vmatmul.mubr.f32.gmra.mxu0 %v1230
        %v2487 = vpop.f32.mrf.mxu0
        %v2488 = vadd.f32 %v591, %v2487
        %v2489 = vpop.f32.mrf.mxu0
        %2490 = vmatprep.mubr.f32.mxu0 0.0
        %2491 = vmatmul.mubr.f32.gmra.mxu0 %v1233
        %v2492 = vpop.f32.mrf.mxu0
        %v2493 = vadd.f32 %v591, %v2492
        %v2494 = vpop.f32.mrf.mxu0
        %2495 = vmatprep.mubr.f32.mxu0 0.0
        %2496 = vmatmul.mubr.f32.gmra.mxu0 %v1236
        %v2497 = vpop.f32.mrf.mxu0
        %v2498 = vadd.f32 %v591, %v2497
        %v2499 = vpop.f32.mrf.mxu0
        %2500 = vmatprep.mubr.f32.mxu0 0.0
        %2501 = vmatmul.mubr.f32.gmra.mxu0 %v1239
        %v2502 = vpop.f32.mrf.mxu0
        %v2503 = vadd.f32 %v591, %v2502
        %v2504 = vpop.f32.mrf.mxu0
        %2505 = vmatprep.mubr.f32.mxu0 0.0
        %2506 = vmatmul.mubr.f32.gmra.mxu0 %v1242
        %v2507 = vpop.f32.mrf.mxu0
        %v2508 = vadd.f32 %v591, %v2507
        %v2509 = vpop.f32.mrf.mxu0
        %2510 = vmatprep.mubr.f32.mxu0 0.0
        %2511 = vmatmul.mubr.f32.gmra.mxu0 %v1245
        %v2512 = vpop.f32.mrf.mxu0
        %v2513 = vadd.f32 %v591, %v2512
        %v2514 = vpop.f32.mrf.mxu0
        %2515 = vmatprep.mubr.f32.mxu0 0.0
        %2516 = vmatmul.mubr.f32.gmra.mxu0 %v1248
        %v2517 = vpop.f32.mrf.mxu0
        %v2518 = vadd.f32 %v591, %v2517
        %v2519 = vpop.f32.mrf.mxu0
        %2520 = vmatprep.mubr.f32.mxu0 0.0
        %2521 = vmatmul.mubr.f32.gmra.mxu0 %v1251
        %v2522 = vpop.f32.mrf.mxu0
        %v2523 = vadd.f32 %v591, %v2522
        %v2524 = vpop.f32.mrf.mxu0
        %2525 = vmatprep.mubr.f32.mxu0 0.0
        %2526 = vmatmul.mubr.f32.gmra.mxu0 %v1254
        %v2527 = vpop.f32.mrf.mxu0
        %v2528 = vadd.f32 %v591, %v2527
        %v2529 = vpop.f32.mrf.mxu0
        %2530 = vmatprep.mubr.f32.mxu0 0.0
        %2531 = vmatmul.mubr.f32.gmra.mxu0 %v1257
        %v2532 = vpop.f32.mrf.mxu0
        %v2533 = vadd.f32 %v591, %v2532
        %v2534 = vpop.f32.mrf.mxu0
        %2535 = vmatprep.mubr.f32.mxu0 0.0
        %2536 = vmatmul.mubr.f32.gmra.mxu0 %v1260
        %v2537 = vpop.f32.mrf.mxu0
        %v2538 = vadd.f32 %v591, %v2537
        %v2539 = vpop.f32.mrf.mxu0
        %2540 = vmatprep.mubr.f32.mxu0 0.0
        %2541 = vmatmul.mubr.f32.gmra.mxu0 %v1263
        %v2542 = vpop.f32.mrf.mxu0
        %v2543 = vadd.f32 %v591, %v2542
        %v2544 = vpop.f32.mrf.mxu0
        %2545 = vmatprep.mubr.f32.mxu0 0.0
        %2546 = vmatmul.mubr.f32.gmra.mxu0 %v1266
        %v2547 = vpop.f32.mrf.mxu0
        %v2548 = vadd.f32 %v591, %v2547
        %v2549 = vpop.f32.mrf.mxu0
        %2550 = vmatprep.mubr.f32.mxu0 0.0
        %2551 = vmatmul.mubr.f32.gmra.mxu0 %v1269
        %v2552 = vpop.f32.mrf.mxu0
        %v2553 = vadd.f32 %v591, %v2552
        %v2554 = vpop.f32.mrf.mxu0
        %2555 = vmatprep.mubr.f32.mxu0 0.0
        %2556 = vmatmul.mubr.f32.gmra.mxu0 %v1272
        %v2557 = vpop.f32.mrf.mxu0
        %v2558 = vadd.f32 %v591, %v2557
        %v2559 = vpop.f32.mrf.mxu0
        %2560 = vmatprep.mubr.f32.mxu0 0.0
        %2561 = vmatmul.mubr.f32.gmra.mxu0 %v1275
        %v2562 = vpop.f32.mrf.mxu0
        %v2563 = vadd.f32 %v591, %v2562
        %v2564 = vpop.f32.mrf.mxu0
        %2565 = vmatprep.mubr.f32.mxu0 0.0
        %2566 = vmatmul.mubr.f32.gmra.mxu0 %v1278
        %v2567 = vpop.f32.mrf.mxu0
        %v2568 = vadd.f32 %v591, %v2567
        %v2569 = vpop.f32.mrf.mxu0
        %2570 = vmatprep.mubr.f32.mxu0 0.0
        %2571 = vmatmul.mubr.f32.gmra.mxu0 %v1281
        %v2572 = vpop.f32.mrf.mxu0
        %v2573 = vadd.f32 %v591, %v2572
        %v2574 = vpop.f32.mrf.mxu0
        %2575 = vmatprep.mubr.f32.mxu0 0.0
        %2576 = vmatmul.mubr.f32.gmra.mxu0 %v1284
        %v2577 = vpop.f32.mrf.mxu0
        %v2578 = vadd.f32 %v591, %v2577
        %v2579 = vpop.f32.mrf.mxu0
        %2580 = vmatprep.mubr.f32.mxu0 0.0
        %2581 = vmatmul.mubr.f32.gmra.mxu0 %v1287
        %v2582 = vpop.f32.mrf.mxu0
        %v2583 = vadd.f32 %v591, %v2582
        %v2584 = vpop.f32.mrf.mxu0
        %2585 = vmatprep.mubr.f32.mxu0 0.0
        %2586 = vmatmul.mubr.f32.gmra.mxu0 %v1290
        %v2587 = vpop.f32.mrf.mxu0
        %v2588 = vadd.f32 %v591, %v2587
        %v2589 = vpop.f32.mrf.mxu0
        %2590 = vmatprep.mubr.f32.mxu0 0.0
        %2591 = vmatmul.mubr.f32.gmra.mxu0 %v1293
        %v2592 = vpop.f32.mrf.mxu0
        %v2593 = vadd.f32 %v591, %v2592
        %v2594 = vpop.f32.mrf.mxu0
        %2595 = vmatprep.mubr.f32.mxu0 0.0
        %2596 = vmatmul.mubr.f32.gmra.mxu0 %v1296
        %v2597 = vpop.f32.mrf.mxu0
        %v2598 = vadd.f32 %v591, %v2597
        %v2599 = vpop.f32.mrf.mxu0
        %2600 = vmatprep.mubr.f32.mxu0 0.0
        %2601 = vmatmul.mubr.f32.gmra.mxu0 %v1299
        %v2602 = vpop.f32.mrf.mxu0
        %v2603 = vadd.f32 %v591, %v2602
        %v2604 = vpop.f32.mrf.mxu0
        %2605 = vmatprep.mubr.f32.mxu0 0.0
        %2606 = vmatmul.mubr.f32.gmra.mxu0 %v1302
        %v2607 = vpop.f32.mrf.mxu0
        %v2608 = vadd.f32 %v591, %v2607
        %v2609 = vpop.f32.mrf.mxu0
        %2610 = vmatprep.mubr.f32.mxu0 0.0
        %2611 = vmatmul.mubr.f32.gmra.mxu0 %v1305
        %v2612 = vpop.f32.mrf.mxu0
        %v2613 = vadd.f32 %v591, %v2612
        %v2614 = vpop.f32.mrf.mxu0
        %2615 = vmatprep.mubr.f32.mxu0 0.0
        %2616 = vmatmul.mubr.f32.gmra.mxu0 %v1308
        %v2617 = vpop.f32.mrf.mxu0
        %v2618 = vadd.f32 %v591, %v2617
        %v2619 = vpop.f32.mrf.mxu0
        %2620 = vmatprep.mubr.f32.mxu0 0.0
        %2621 = vmatmul.mubr.f32.gmra.mxu0 %v1311
        %v2622 = vpop.f32.mrf.mxu0
        %v2623 = vadd.f32 %v591, %v2622
        %v2624 = vpop.f32.mrf.mxu0
        %2625 = vmatprep.mubr.f32.mxu0 0.0
        %2626 = vmatmul.mubr.f32.gmra.mxu0 %v1314
        %v2627 = vpop.f32.mrf.mxu0
        %v2628 = vadd.f32 %v591, %v2627
        %v2629 = vpop.f32.mrf.mxu0
        %2630 = vmatprep.mubr.f32.mxu0 0.0
        %2631 = vmatmul.mubr.f32.gmra.mxu0 %v1317
        %v2632 = vpop.f32.mrf.mxu0
        %v2633 = vadd.f32 %v591, %v2632
        %v2634 = vpop.f32.mrf.mxu0
        %2635 = vmatprep.mubr.f32.mxu0 0.0
        %2636 = vmatmul.mubr.f32.gmra.mxu0 %v1320
        %v2637 = vpop.f32.mrf.mxu0
        %v2638 = vadd.f32 %v591, %v2637
        %v2639 = vpop.f32.mrf.mxu0
        %2640 = vmatprep.mubr.f32.mxu0 0.0
        %2641 = vmatmul.mubr.f32.gmra.mxu0 %v1323
        %v2642 = vpop.f32.mrf.mxu0
        %v2643 = vadd.f32 %v591, %v2642
        %v2644 = vpop.f32.mrf.mxu0
        %2645 = vmatprep.mubr.f32.mxu0 0.0
        %2646 = vmatmul.mubr.f32.gmra.mxu0 %v1326
        %v2647 = vpop.f32.mrf.mxu0
        %v2648 = vadd.f32 %v591, %v2647
        %v2649 = vpop.f32.mrf.mxu0
        %2650 = vmatprep.mubr.f32.mxu0 0.0
        %2651 = vmatmul.mubr.f32.gmra.mxu0 %v1329
        %v2652 = vpop.f32.mrf.mxu0
        %v2653 = vadd.f32 %v591, %v2652
        %v2654 = vpop.f32.mrf.mxu0
        %2655 = vmatprep.mubr.f32.mxu0 0.0
        %2656 = vmatmul.mubr.f32.gmra.mxu0 %v1332
        %v2657 = vpop.f32.mrf.mxu0
        %v2658 = vadd.f32 %v591, %v2657
        %v2659 = vpop.f32.mrf.mxu0
        %2660 = vmatprep.mubr.f32.mxu0 0.0
        %2661 = vmatmul.mubr.f32.gmra.mxu0 %v1335
        %v2662 = vpop.f32.mrf.mxu0
        %v2663 = vadd.f32 %v591, %v2662
        %v2664 = vpop.f32.mrf.mxu0
        %2665 = vmatprep.mubr.f32.mxu0 0.0
        %2666 = vmatmul.mubr.f32.gmra.mxu0 %v1338
        %v2667 = vpop.f32.mrf.mxu0
        %v2668 = vadd.f32 %v591, %v2667
        %v2669 = vpop.f32.mrf.mxu0
        %2670 = vmatprep.mubr.f32.mxu0 0.0
        %2671 = vmatmul.mubr.f32.gmra.mxu0 %v1341
        %v2672 = vpop.f32.mrf.mxu0
        %v2673 = vadd.f32 %v591, %v2672
        %v2674 = vpop.f32.mrf.mxu0
        %2675 = vmatprep.mubr.f32.mxu0 0.0
        %2676 = vmatmul.mubr.f32.gmra.mxu0 %v1344
        %v2677 = vpop.f32.mrf.mxu0
        %v2678 = vadd.f32 %v591, %v2677
        %v2679 = vpop.f32.mrf.mxu0
        %2680 = vmatprep.mubr.f32.mxu0 0.0
        %2681 = vmatmul.mubr.f32.gmra.mxu0 %v1347
        %v2682 = vpop.f32.mrf.mxu0
        %v2683 = vadd.f32 %v591, %v2682
        %v2684 = vpop.f32.mrf.mxu0
        %2685 = vmatprep.mubr.f32.mxu0 0.0
        %2686 = vmatmul.mubr.f32.gmra.mxu0 %v1350
        %v2687 = vpop.f32.mrf.mxu0
        %v2688 = vadd.f32 %v591, %v2687
        %v2689 = vpop.f32.mrf.mxu0
        %2690 = vmatprep.mubr.f32.mxu0 0.0
        %2691 = vmatmul.mubr.f32.gmra.mxu0 %v1353
        %v2692 = vpop.f32.mrf.mxu0
        %v2693 = vadd.f32 %v591, %v2692
        %v2694 = vpop.f32.mrf.mxu0
        %2695 = vmatprep.mubr.f32.mxu0 0.0
        %2696 = vmatmul.mubr.f32.gmra.mxu0 %v1356
        %v2697 = vpop.f32.mrf.mxu0
        %v2698 = vadd.f32 %v591, %v2697
        %v2699 = vpop.f32.mrf.mxu0
        %2700 = vmatprep.mubr.f32.mxu0 0.0
        %2701 = vmatmul.mubr.f32.gmra.mxu0 %v1359
        %v2702 = vpop.f32.mrf.mxu0
        %v2703 = vadd.f32 %v591, %v2702
        %v2704 = vpop.f32.mrf.mxu0
        %2705 = vdwg.mxu0
        %v2706 = vmax.f32 %v1428, 0.0
        %v2707 = vmax.f32 %v1433, 0.0
        %v2708 = vmax.f32 %v1438, 0.0
        %v2709 = vmax.f32 %v1443, 0.0
        %v2710 = vmax.f32 %v1448, 0.0
        %v2711 = vmax.f32 %v1453, 0.0
        %v2712 = vmax.f32 %v1458, 0.0
        %v2713 = vmax.f32 %v1463, 0.0
        %v2714 = vmax.f32 %v1468, 0.0
        %v2715 = vmax.f32 %v1473, 0.0
        %v2716 = vmax.f32 %v1478, 0.0
        %v2717 = vmax.f32 %v1483, 0.0
        %v2718 = vmax.f32 %v1488, 0.0
        %v2719 = vmax.f32 %v1493, 0.0
        %v2720 = vmax.f32 %v1498, 0.0
        %v2721 = vmax.f32 %v1503, 0.0
        %v2722 = vmax.f32 %v1508, 0.0
        %v2723 = vmax.f32 %v1513, 0.0
        %v2724 = vmax.f32 %v1518, 0.0
        %v2725 = vmax.f32 %v1523, 0.0
        %v2726 = vmax.f32 %v1528, 0.0
        %v2727 = vmax.f32 %v1533, 0.0
        %v2728 = vmax.f32 %v1538, 0.0
        %v2729 = vmax.f32 %v1543, 0.0
        %v2730 = vmax.f32 %v1548, 0.0
        %v2731 = vmax.f32 %v1553, 0.0
        %v2732 = vmax.f32 %v1558, 0.0
        %v2733 = vmax.f32 %v1563, 0.0
        %v2734 = vmax.f32 %v1568, 0.0
        %v2735 = vmax.f32 %v1573, 0.0
        %v2736 = vmax.f32 %v1578, 0.0
        %v2737 = vmax.f32 %v1583, 0.0
        %v2738 = vmax.f32 %v1588, 0.0
        %v2739 = vmax.f32 %v1593, 0.0
        %v2740 = vmax.f32 %v1598, 0.0
        %v2741 = vmax.f32 %v1603, 0.0
        %v2742 = vmax.f32 %v1608, 0.0
        %v2743 = vmax.f32 %v1613, 0.0
        %v2744 = vmax.f32 %v1618, 0.0
        %v2745 = vmax.f32 %v1623, 0.0
        %v2746 = vmax.f32 %v1628, 0.0
        %v2747 = vmax.f32 %v1633, 0.0
        %v2748 = vmax.f32 %v1638, 0.0
        %v2749 = vmax.f32 %v1643, 0.0
        %v2750 = vmax.f32 %v1648, 0.0
        %v2751 = vmax.f32 %v1653, 0.0
        %v2752 = vmax.f32 %v1658, 0.0
        %v2753 = vmax.f32 %v1663, 0.0
        %v2754 = vmax.f32 %v1668, 0.0
        %v2755 = vmax.f32 %v1673, 0.0
        %v2756 = vmax.f32 %v1678, 0.0
        %v2757 = vmax.f32 %v1683, 0.0
        %v2758 = vmax.f32 %v1688, 0.0
        %v2759 = vmax.f32 %v1693, 0.0
        %v2760 = vmax.f32 %v1698, 0.0
        %v2761 = vmax.f32 %v1703, 0.0
        %v2762 = vmax.f32 %v1708, 0.0
        %v2763 = vmax.f32 %v1713, 0.0
        %v2764 = vmax.f32 %v1718, 0.0
        %v2765 = vmax.f32 %v1723, 0.0
        %v2766 = vmax.f32 %v1728, 0.0
        %v2767 = vmax.f32 %v1733, 0.0
        %v2768 = vmax.f32 %v1738, 0.0
        %v2769 = vmax.f32 %v1743, 0.0
        %v2770 = vmax.f32 %v1748, 0.0
        %v2771 = vmax.f32 %v1753, 0.0
        %v2772 = vmax.f32 %v1758, 0.0
        %v2773 = vmax.f32 %v1763, 0.0
        %v2774 = vmax.f32 %v1768, 0.0
        %v2775 = vmax.f32 %v1773, 0.0
        %v2776 = vmax.f32 %v1778, 0.0
        %v2777 = vmax.f32 %v1783, 0.0
        %v2778 = vmax.f32 %v1788, 0.0
        %v2779 = vmax.f32 %v1793, 0.0
        %v2780 = vmax.f32 %v1798, 0.0
        %v2781 = vmax.f32 %v1803, 0.0
        %v2782 = vmax.f32 %v1808, 0.0
        %v2783 = vmax.f32 %v1813, 0.0
        %v2784 = vmax.f32 %v1818, 0.0
        %v2785 = vmax.f32 %v1823, 0.0
        %v2786 = vmax.f32 %v1828, 0.0
        %v2787 = vmax.f32 %v1833, 0.0
        %v2788 = vmax.f32 %v1838, 0.0
        %v2789 = vmax.f32 %v1843, 0.0
        %v2790 = vmax.f32 %v1848, 0.0
        %v2791 = vmax.f32 %v1853, 0.0
        %v2792 = vmax.f32 %v1858, 0.0
        %v2793 = vmax.f32 %v1863, 0.0
        %v2794 = vmax.f32 %v1868, 0.0
        %v2795 = vmax.f32 %v1873, 0.0
        %v2796 = vmax.f32 %v1878, 0.0
        %v2797 = vmax.f32 %v1883, 0.0
        %v2798 = vmax.f32 %v1888, 0.0
        %v2799 = vmax.f32 %v1893, 0.0
        %v2800 = vmax.f32 %v1898, 0.0
        %v2801 = vmax.f32 %v1903, 0.0
        %v2802 = vmax.f32 %v1908, 0.0
        %v2803 = vmax.f32 %v1913, 0.0
        %v2804 = vmax.f32 %v1918, 0.0
        %v2805 = vmax.f32 %v1923, 0.0
        %v2806 = vmax.f32 %v1928, 0.0
        %v2807 = vmax.f32 %v1933, 0.0
        %v2808 = vmax.f32 %v1938, 0.0
        %v2809 = vmax.f32 %v1943, 0.0
        %v2810 = vmax.f32 %v1948, 0.0
        %v2811 = vmax.f32 %v1953, 0.0
        %v2812 = vmax.f32 %v1958, 0.0
        %v2813 = vmax.f32 %v1963, 0.0
        %v2814 = vmax.f32 %v1968, 0.0
        %v2815 = vmax.f32 %v1973, 0.0
        %v2816 = vmax.f32 %v1978, 0.0
        %v2817 = vmax.f32 %v1983, 0.0
        %v2818 = vmax.f32 %v1988, 0.0
        %v2819 = vmax.f32 %v1993, 0.0
        %v2820 = vmax.f32 %v1998, 0.0
        %v2821 = vmax.f32 %v2003, 0.0
        %v2822 = vmax.f32 %v2008, 0.0
        %v2823 = vmax.f32 %v2013, 0.0
        %v2824 = vmax.f32 %v2018, 0.0
        %v2825 = vmax.f32 %v2023, 0.0
        %v2826 = vmax.f32 %v2028, 0.0
        %v2827 = vmax.f32 %v2033, 0.0
        %v2828 = vmax.f32 %v2038, 0.0
        %v2829 = vmax.f32 %v2043, 0.0
        %v2830 = vmax.f32 %v2048, 0.0
        %v2831 = vmax.f32 %v2053, 0.0
        %v2832 = vmax.f32 %v2058, 0.0
        %v2833 = vmax.f32 %v2063, 0.0
        %v2834 = vmax.f32 %v2068, 0.0
        %v2835 = vmax.f32 %v2073, 0.0
        %v2836 = vmax.f32 %v2078, 0.0
        %v2837 = vmax.f32 %v2083, 0.0
        %v2838 = vmax.f32 %v2088, 0.0
        %v2839 = vmax.f32 %v2093, 0.0
        %v2840 = vmax.f32 %v2098, 0.0
        %v2841 = vmax.f32 %v2103, 0.0
        %v2842 = vmax.f32 %v2108, 0.0
        %v2843 = vmax.f32 %v2113, 0.0
        %v2844 = vmax.f32 %v2118, 0.0
        %v2845 = vmax.f32 %v2123, 0.0
        %v2846 = vmax.f32 %v2128, 0.0
        %v2847 = vmax.f32 %v2133, 0.0
        %v2848 = vmax.f32 %v2138, 0.0
        %v2849 = vmax.f32 %v2143, 0.0
        %v2850 = vmax.f32 %v2148, 0.0
        %v2851 = vmax.f32 %v2153, 0.0
        %v2852 = vmax.f32 %v2158, 0.0
        %v2853 = vmax.f32 %v2163, 0.0
        %v2854 = vmax.f32 %v2168, 0.0
        %v2855 = vmax.f32 %v2173, 0.0
        %v2856 = vmax.f32 %v2178, 0.0
        %v2857 = vmax.f32 %v2183, 0.0
        %v2858 = vmax.f32 %v2188, 0.0
        %v2859 = vmax.f32 %v2193, 0.0
        %v2860 = vmax.f32 %v2198, 0.0
        %v2861 = vmax.f32 %v2203, 0.0
        %v2862 = vmax.f32 %v2208, 0.0
        %v2863 = vmax.f32 %v2213, 0.0
        %v2864 = vmax.f32 %v2218, 0.0
        %v2865 = vmax.f32 %v2223, 0.0
        %v2866 = vmax.f32 %v2228, 0.0
        %v2867 = vmax.f32 %v2233, 0.0
        %v2868 = vmax.f32 %v2238, 0.0
        %v2869 = vmax.f32 %v2243, 0.0
        %v2870 = vmax.f32 %v2248, 0.0
        %v2871 = vmax.f32 %v2253, 0.0
        %v2872 = vmax.f32 %v2258, 0.0
        %v2873 = vmax.f32 %v2263, 0.0
        %v2874 = vmax.f32 %v2268, 0.0
        %v2875 = vmax.f32 %v2273, 0.0
        %v2876 = vmax.f32 %v2278, 0.0
        %v2877 = vmax.f32 %v2283, 0.0
        %v2878 = vmax.f32 %v2288, 0.0
        %v2879 = vmax.f32 %v2293, 0.0
        %v2880 = vmax.f32 %v2298, 0.0
        %v2881 = vmax.f32 %v2303, 0.0
        %v2882 = vmax.f32 %v2308, 0.0
        %v2883 = vmax.f32 %v2313, 0.0
        %v2884 = vmax.f32 %v2318, 0.0
        %v2885 = vmax.f32 %v2323, 0.0
        %v2886 = vmax.f32 %v2328, 0.0
        %v2887 = vmax.f32 %v2333, 0.0
        %v2888 = vmax.f32 %v2338, 0.0
        %v2889 = vmax.f32 %v2343, 0.0
        %v2890 = vmax.f32 %v2348, 0.0
        %v2891 = vmax.f32 %v2353, 0.0
        %v2892 = vmax.f32 %v2358, 0.0
        %v2893 = vmax.f32 %v2363, 0.0
        %v2894 = vmax.f32 %v2368, 0.0
        %v2895 = vmax.f32 %v2373, 0.0
        %v2896 = vmax.f32 %v2378, 0.0
        %v2897 = vmax.f32 %v2383, 0.0
        %v2898 = vmax.f32 %v2388, 0.0
        %v2899 = vmax.f32 %v2393, 0.0
        %v2900 = vmax.f32 %v2398, 0.0
        %v2901 = vmax.f32 %v2403, 0.0
        %v2902 = vmax.f32 %v2408, 0.0
        %v2903 = vmax.f32 %v2413, 0.0
        %v2904 = vmax.f32 %v2418, 0.0
        %v2905 = vmax.f32 %v2423, 0.0
        %v2906 = vmax.f32 %v2428, 0.0
        %v2907 = vmax.f32 %v2433, 0.0
        %v2908 = vmax.f32 %v2438, 0.0
        %v2909 = vmax.f32 %v2443, 0.0
        %v2910 = vmax.f32 %v2448, 0.0
        %v2911 = vmax.f32 %v2453, 0.0
        %v2912 = vmax.f32 %v2458, 0.0
        %v2913 = vmax.f32 %v2463, 0.0
        %v2914 = vmax.f32 %v2468, 0.0
        %v2915 = vmax.f32 %v2473, 0.0
        %v2916 = vmax.f32 %v2478, 0.0
        %v2917 = vmax.f32 %v2483, 0.0
        %v2918 = vmax.f32 %v2488, 0.0
        %v2919 = vmax.f32 %v2493, 0.0
        %v2920 = vmax.f32 %v2498, 0.0
        %v2921 = vmax.f32 %v2503, 0.0
        %v2922 = vmax.f32 %v2508, 0.0
        %v2923 = vmax.f32 %v2513, 0.0
        %v2924 = vmax.f32 %v2518, 0.0
        %v2925 = vmax.f32 %v2523, 0.0
        %v2926 = vmax.f32 %v2528, 0.0
        %v2927 = vmax.f32 %v2533, 0.0
        %v2928 = vmax.f32 %v2538, 0.0
        %v2929 = vmax.f32 %v2543, 0.0
        %v2930 = vmax.f32 %v2548, 0.0
        %v2931 = vmax.f32 %v2553, 0.0
        %v2932 = vmax.f32 %v2558, 0.0
        %v2933 = vmax.f32 %v2563, 0.0
        %v2934 = vmax.f32 %v2568, 0.0
        %v2935 = vmax.f32 %v2573, 0.0
        %v2936 = vmax.f32 %v2578, 0.0
        %v2937 = vmax.f32 %v2583, 0.0
        %v2938 = vmax.f32 %v2588, 0.0
        %v2939 = vmax.f32 %v2593, 0.0
        %v2940 = vmax.f32 %v2598, 0.0
        %v2941 = vmax.f32 %v2603, 0.0
        %v2942 = vmax.f32 %v2608, 0.0
        %v2943 = vmax.f32 %v2613, 0.0
        %v2944 = vmax.f32 %v2618, 0.0
        %v2945 = vmax.f32 %v2623, 0.0
        %v2946 = vmax.f32 %v2628, 0.0
        %v2947 = vmax.f32 %v2633, 0.0
        %v2948 = vmax.f32 %v2638, 0.0
        %v2949 = vmax.f32 %v2643, 0.0
        %v2950 = vmax.f32 %v2648, 0.0
        %v2951 = vmax.f32 %v2653, 0.0
        %v2952 = vmax.f32 %v2658, 0.0
        %v2953 = vmax.f32 %v2663, 0.0
        %v2954 = vmax.f32 %v2668, 0.0
        %v2955 = vmax.f32 %v2673, 0.0
        %v2956 = vmax.f32 %v2678, 0.0
        %v2957 = vmax.f32 %v2683, 0.0
        %v2958 = vmax.f32 %v2688, 0.0
        %v2959 = vmax.f32 %v2693, 0.0
        %v2960 = vmax.f32 %v2698, 0.0
        %v2961 = vmax.f32 %v2703, 0.0
        %v2962 = vld [vmem:[%s3] sm:$0xff]
        %v2963 = vld [vmem:[%s3 + $0x8] sm:$0xff]
        %v2964 = vld [vmem:[%s3 + $0x10] sm:$0xff]
        %v2965 = vld [vmem:[%s3 + $0x18] sm:$0xff]
        %v2966 = vld [vmem:[%s3 + $0x20] sm:$0xff]
        %v2967 = vld [vmem:[%s3 + $0x28] sm:$0xff]
        %v2968 = vld [vmem:[%s3 + $0x30] sm:$0xff]
        %v2969 = vld [vmem:[%s3 + $0x38] sm:$0xff]
        %v2970 = vld [vmem:[%s4 + $0x1] sm:$0x1]
        %v2971 = vlaneseq
        %v2972 = vshrl.u32 %v2971, 7
        %v2973 = vsub.s32 0, %v2972
        %v2974 = vrot.slane %v2970, %v2973
        %vm2975 = vcmask 523264
        %v2977 = vsel %vm2975, %v2706, 0
        %v2980 = vsel %vm2975, %v2707, 0
        %v2983 = vsel %vm2975, %v2708, 0
        %v2986 = vsel %vm2975, %v2709, 0
        %v2989 = vsel %vm2975, %v2710, 0
        %v2992 = vsel %vm2975, %v2711, 0
        %v2995 = vsel %vm2975, %v2712, 0
        %v2998 = vsel %vm2975, %v2713, 0
        %v3001 = vsel %vm2975, %v2714, 0
        %v3004 = vsel %vm2975, %v2715, 0
        %v3007 = vsel %vm2975, %v2716, 0
        %v3010 = vsel %vm2975, %v2717, 0
        %v3013 = vsel %vm2975, %v2718, 0
        %v3016 = vsel %vm2975, %v2719, 0
        %v3019 = vsel %vm2975, %v2720, 0
        %v3022 = vsel %vm2975, %v2721, 0
        %v3025 = vsel %vm2975, %v2722, 0
        %v3028 = vsel %vm2975, %v2723, 0
        %v3031 = vsel %vm2975, %v2724, 0
        %v3034 = vsel %vm2975, %v2725, 0
        %v3037 = vsel %vm2975, %v2726, 0
        %v3040 = vsel %vm2975, %v2727, 0
        %v3043 = vsel %vm2975, %v2728, 0
        %v3046 = vsel %vm2975, %v2729, 0
        %v3049 = vsel %vm2975, %v2730, 0
        %v3052 = vsel %vm2975, %v2731, 0
        %v3055 = vsel %vm2975, %v2732, 0
        %v3058 = vsel %vm2975, %v2733, 0
        %v3061 = vsel %vm2975, %v2734, 0
        %v3064 = vsel %vm2975, %v2735, 0
        %v3067 = vsel %vm2975, %v2736, 0
        %v3070 = vsel %vm2975, %v2737, 0
        %v3073 = vsel %vm2975, %v2738, 0
        %v3076 = vsel %vm2975, %v2739, 0
        %v3079 = vsel %vm2975, %v2740, 0
        %v3082 = vsel %vm2975, %v2741, 0
        %v3085 = vsel %vm2975, %v2742, 0
        %v3088 = vsel %vm2975, %v2743, 0
        %v3091 = vsel %vm2975, %v2744, 0
        %v3094 = vsel %vm2975, %v2745, 0
        %v3097 = vsel %vm2975, %v2746, 0
        %v3100 = vsel %vm2975, %v2747, 0
        %v3103 = vsel %vm2975, %v2748, 0
        %v3106 = vsel %vm2975, %v2749, 0
        %v3109 = vsel %vm2975, %v2750, 0
        %v3112 = vsel %vm2975, %v2751, 0
        %v3115 = vsel %vm2975, %v2752, 0
        %v3118 = vsel %vm2975, %v2753, 0
        %v3121 = vsel %vm2975, %v2754, 0
        %v3124 = vsel %vm2975, %v2755, 0
        %v3127 = vsel %vm2975, %v2756, 0
        %v3130 = vsel %vm2975, %v2757, 0
        %v3133 = vsel %vm2975, %v2758, 0
        %v3136 = vsel %vm2975, %v2759, 0
        %v3139 = vsel %vm2975, %v2760, 0
        %v3142 = vsel %vm2975, %v2761, 0
        %v3145 = vsel %vm2975, %v2762, 0
        %v3148 = vsel %vm2975, %v2763, 0
        %v3151 = vsel %vm2975, %v2764, 0
        %v3154 = vsel %vm2975, %v2765, 0
        %v3157 = vsel %vm2975, %v2766, 0
        %v3160 = vsel %vm2975, %v2767, 0
        %v3163 = vsel %vm2975, %v2768, 0
        %v3166 = vsel %vm2975, %v2769, 0
        %v3169 = vsel %vm2975, %v2770, 0
        %v3172 = vsel %vm2975, %v2771, 0
        %v3175 = vsel %vm2975, %v2772, 0
        %v3178 = vsel %vm2975, %v2773, 0
        %v3181 = vsel %vm2975, %v2774, 0
        %v3184 = vsel %vm2975, %v2775, 0
        %v3187 = vsel %vm2975, %v2776, 0
        %v3190 = vsel %vm2975, %v2777, 0
        %v3193 = vsel %vm2975, %v2778, 0
        %v3196 = vsel %vm2975, %v2779, 0
        %v3199 = vsel %vm2975, %v2780, 0
        %v3202 = vsel %vm2975, %v2781, 0
        %v3205 = vsel %vm2975, %v2782, 0
        %v3208 = vsel %vm2975, %v2783, 0
        %v3211 = vsel %vm2975, %v2784, 0
        %v3214 = vsel %vm2975, %v2785, 0
        %v3217 = vsel %vm2975, %v2786, 0
        %v3220 = vsel %vm2975, %v2787, 0
        %v3223 = vsel %vm2975, %v2788, 0
        %v3226 = vsel %vm2975, %v2789, 0
        %v3229 = vsel %vm2975, %v2790, 0
        %v3232 = vsel %vm2975, %v2791, 0
        %v3235 = vsel %vm2975, %v2792, 0
        %v3238 = vsel %vm2975, %v2793, 0
        %v3241 = vsel %vm2975, %v2794, 0
        %v3244 = vsel %vm2975, %v2795, 0
        %v3247 = vsel %vm2975, %v2796, 0
        %v3250 = vsel %vm2975, %v2797, 0
        %v3253 = vsel %vm2975, %v2798, 0
        %v3256 = vsel %vm2975, %v2799, 0
        %v3259 = vsel %vm2975, %v2800, 0
        %v3262 = vsel %vm2975, %v2801, 0
        %v3265 = vsel %vm2975, %v2802, 0
        %v3268 = vsel %vm2975, %v2803, 0
        %v3271 = vsel %vm2975, %v2804, 0
        %v3274 = vsel %vm2975, %v2805, 0
        %v3277 = vsel %vm2975, %v2806, 0
        %v3280 = vsel %vm2975, %v2807, 0
        %v3283 = vsel %vm2975, %v2808, 0
        %v3286 = vsel %vm2975, %v2809, 0
        %v3289 = vsel %vm2975, %v2810, 0
        %v3292 = vsel %vm2975, %v2811, 0
        %v3295 = vsel %vm2975, %v2812, 0
        %v3298 = vsel %vm2975, %v2813, 0
        %v3301 = vsel %vm2975, %v2814, 0
        %v3304 = vsel %vm2975, %v2815, 0
        %v3307 = vsel %vm2975, %v2816, 0
        %v3310 = vsel %vm2975, %v2817, 0
        %v3313 = vsel %vm2975, %v2818, 0
        %v3316 = vsel %vm2975, %v2819, 0
        %v3319 = vsel %vm2975, %v2820, 0
        %v3322 = vsel %vm2975, %v2821, 0
        %v3325 = vsel %vm2975, %v2822, 0
        %v3328 = vsel %vm2975, %v2823, 0
        %v3331 = vsel %vm2975, %v2824, 0
        %v3334 = vsel %vm2975, %v2825, 0
        %v3337 = vsel %vm2975, %v2826, 0
        %v3340 = vsel %vm2975, %v2827, 0
        %v3343 = vsel %vm2975, %v2828, 0
        %v3346 = vsel %vm2975, %v2829, 0
        %v3349 = vsel %vm2975, %v2830, 0
        %v3352 = vsel %vm2975, %v2831, 0
        %v3355 = vsel %vm2975, %v2832, 0
        %v3358 = vsel %vm2975, %v2833, 0
        %v3361 = vsel %vm2975, %v2834, 0
        %v3364 = vsel %vm2975, %v2835, 0
        %v3367 = vsel %vm2975, %v2836, 0
        %v3370 = vsel %vm2975, %v2837, 0
        %v3373 = vsel %vm2975, %v2838, 0
        %v3376 = vsel %vm2975, %v2839, 0
        %v3379 = vsel %vm2975, %v2840, 0
        %v3382 = vsel %vm2975, %v2841, 0
        %v3385 = vsel %vm2975, %v2842, 0
        %v3388 = vsel %vm2975, %v2843, 0
        %v3391 = vsel %vm2975, %v2844, 0
        %v3394 = vsel %vm2975, %v2845, 0
        %v3397 = vsel %vm2975, %v2846, 0
        %v3400 = vsel %vm2975, %v2847, 0
        %v3403 = vsel %vm2975, %v2848, 0
        %v3406 = vsel %vm2975, %v2849, 0
        %v3409 = vsel %vm2975, %v2850, 0
        %v3412 = vsel %vm2975, %v2851, 0
        %v3415 = vsel %vm2975, %v2852, 0
        %v3418 = vsel %vm2975, %v2853, 0
        %v3421 = vsel %vm2975, %v2854, 0
        %v3424 = vsel %vm2975, %v2855, 0
        %v3427 = vsel %vm2975, %v2856, 0
        %v3430 = vsel %vm2975, %v2857, 0
        %v3433 = vsel %vm2975, %v2858, 0
        %v3436 = vsel %vm2975, %v2859, 0
        %v3439 = vsel %vm2975, %v2860, 0
        %v3442 = vsel %vm2975, %v2861, 0
        %v3445 = vsel %vm2975, %v2862, 0
        %v3448 = vsel %vm2975, %v2863, 0
        %v3451 = vsel %vm2975, %v2864, 0
        %v3454 = vsel %vm2975, %v2865, 0
        %v3457 = vsel %vm2975, %v2866, 0
        %v3460 = vsel %vm2975, %v2867, 0
        %v3463 = vsel %vm2975, %v2868, 0
        %v3466 = vsel %vm2975, %v2869, 0
        %v3469 = vsel %vm2975, %v2870, 0
        %v3472 = vsel %vm2975, %v2871, 0
        %v3475 = vsel %vm2975, %v2872, 0
        %v3478 = vsel %vm2975, %v2873, 0
        %v3481 = vsel %vm2975, %v2874, 0
        %v3484 = vsel %vm2975, %v2875, 0
        %v3487 = vsel %vm2975, %v2876, 0
        %v3490 = vsel %vm2975, %v2877, 0
        %v3493 = vsel %vm2975, %v2878, 0
        %v3496 = vsel %vm2975, %v2879, 0
        %v3499 = vsel %vm2975, %v2880, 0
        %v3502 = vsel %vm2975, %v2881, 0
        %v3505 = vsel %vm2975, %v2882, 0
        %v3508 = vsel %vm2975, %v2883, 0
        %v3511 = vsel %vm2975, %v2884, 0
        %v3514 = vsel %vm2975, %v2885, 0
        %v3517 = vsel %vm2975, %v2886, 0
        %v3520 = vsel %vm2975, %v2887, 0
        %v3523 = vsel %vm2975, %v2888, 0
        %v3526 = vsel %vm2975, %v2889, 0
        %v3529 = vsel %vm2975, %v2890, 0
        %v3532 = vsel %vm2975, %v2891, 0
        %v3535 = vsel %vm2975, %v2892, 0
        %v3538 = vsel %vm2975, %v2893, 0
        %v3541 = vsel %vm2975, %v2894, 0
        %v3544 = vsel %vm2975, %v2895, 0
        %v3547 = vsel %vm2975, %v2896, 0
        %v3550 = vsel %vm2975, %v2897, 0
        %v3553 = vsel %vm2975, %v2898, 0
        %v3556 = vsel %vm2975, %v2899, 0
        %v3559 = vsel %vm2975, %v2900, 0
        %v3562 = vsel %vm2975, %v2901, 0
        %v3565 = vsel %vm2975, %v2902, 0
        %v3568 = vsel %vm2975, %v2903, 0
        %v3571 = vsel %vm2975, %v2904, 0
        %v3574 = vsel %vm2975, %v2905, 0
        %v3577 = vsel %vm2975, %v2906, 0
        %v3580 = vsel %vm2975, %v2907, 0
        %v3583 = vsel %vm2975, %v2908, 0
        %v3586 = vsel %vm2975, %v2909, 0
        %v3589 = vsel %vm2975, %v2910, 0
        %v3592 = vsel %vm2975, %v2911, 0
        %v3595 = vsel %vm2975, %v2912, 0
        %v3598 = vsel %vm2975, %v2913, 0
        %v3601 = vsel %vm2975, %v2914, 0
        %v3604 = vsel %vm2975, %v2915, 0
        %v3607 = vsel %vm2975, %v2916, 0
        %v3610 = vsel %vm2975, %v2917, 0
        %v3613 = vsel %vm2975, %v2918, 0
        %v3616 = vsel %vm2975, %v2919, 0
        %v3619 = vsel %vm2975, %v2920, 0
        %v3622 = vsel %vm2975, %v2921, 0
        %v3625 = vsel %vm2975, %v2922, 0
        %v3628 = vsel %vm2975, %v2923, 0
        %v3631 = vsel %vm2975, %v2924, 0
        %v3634 = vsel %vm2975, %v2925, 0
        %v3637 = vsel %vm2975, %v2926, 0
        %v3640 = vsel %vm2975, %v2927, 0
        %v3643 = vsel %vm2975, %v2928, 0
        %v3646 = vsel %vm2975, %v2929, 0
        %v3649 = vsel %vm2975, %v2930, 0
        %v3652 = vsel %vm2975, %v2931, 0
        %v3655 = vsel %vm2975, %v2932, 0
        %v3658 = vsel %vm2975, %v2933, 0
        %v3661 = vsel %vm2975, %v2934, 0
        %v3664 = vsel %vm2975, %v2935, 0
        %v3667 = vsel %vm2975, %v2936, 0
        %v3670 = vsel %vm2975, %v2937, 0
        %v3673 = vsel %vm2975, %v2938, 0
        %v3676 = vsel %vm2975, %v2939, 0
        %v3679 = vsel %vm2975, %v2940, 0
        %v3682 = vsel %vm2975, %v2941, 0
        %v3685 = vsel %vm2975, %v2942, 0
        %v3688 = vsel %vm2975, %v2943, 0
        %v3691 = vsel %vm2975, %v2944, 0
        %v3694 = vsel %vm2975, %v2945, 0
        %v3697 = vsel %vm2975, %v2946, 0
        %v3700 = vsel %vm2975, %v2947, 0
        %v3703 = vsel %vm2975, %v2948, 0
        %v3706 = vsel %vm2975, %v2949, 0
        %v3709 = vsel %vm2975, %v2950, 0
        %v3712 = vsel %vm2975, %v2951, 0
        %v3715 = vsel %vm2975, %v2952, 0
        %v3718 = vsel %vm2975, %v2953, 0
        %v3721 = vsel %vm2975, %v2954, 0
        %v3724 = vsel %vm2975, %v2955, 0
        %v3727 = vsel %vm2975, %v2956, 0
        %v3730 = vsel %vm2975, %v2957, 0
        %v3733 = vsel %vm2975, %v2958, 0
        %v3736 = vsel %vm2975, %v2959, 0
        %v3739 = vsel %vm2975, %v2960, 0
        %v3742 = vsel %vm2975, %v2961, 0
        %3744 = vmatprep.subr.mxu0 0.0
        %3745 = vmatpush1.msra.mxu0 0.0
        %3746 = vmatprep.subr.mxu0 0.0
        %3747 = vmatpush1.msra.mxu0 0.0
        %3748 = vmatprep.subr.mxu0 0.0
        %3749 = vmatpush1.msra.mxu0 0.0
        %3750 = vmatprep.subr.mxu0 0.0
        %3751 = vmatpush1.msra.mxu0 0.0
        %3752 = vmatprep.subr.mxu0 0.0
        %3753 = vmatpush1.msra.mxu0 0.0
        %3754 = vmatprep.subr.mxu0 0.0
        %3755 = vmatpush1.msra.mxu0 0.0
        %3756 = vmatprep.subr.mxu0 0.0
        %3757 = vmatpush1.msra.mxu0 0.0
        %3758 = vmatprep.subr.mxu0 0.0
        %3759 = vmatpush1.msra.mxu0 0.0
        %3760 = vmatprep.subr.mxu0 0.0
        %3761 = vmatpush1.msra.mxu0 %v2969
        %3762 = vmatprep.subr.mxu0 0.0
        %3763 = vmatpush1.msra.mxu0 %v2968
        %3764 = vmatprep.subr.mxu0 0.0
        %3765 = vmatpush1.msra.mxu0 %v2967
        %3766 = vmatprep.subr.mxu0 0.0
        %3767 = vmatpush1.msra.mxu0 %v2966
        %3768 = vmatprep.subr.mxu0 0.0
        %3769 = vmatpush1.msra.mxu0 %v2965
        %3770 = vmatprep.subr.mxu0 0.0
        %3771 = vmatpush1.msra.mxu0 %v2964
        %3772 = vmatprep.subr.mxu0 0.0
        %3773 = vmatpush1.msra.mxu0 %v2963
        %3774 = vmatprep.subr.mxu0 0.0
        %3775 = vmatpush1.msra.mxu0 %v2962
        %3776 = vmatprep.subr.mxu0 0.0
        %3777 = vmatpush2.msra.mxu0 0.0
        %3778 = vmatprep.subr.mxu0 0.0
        %3779 = vmatpush2.msra.mxu0 0.0
        %3780 = vmatprep.subr.mxu0 0.0
        %3781 = vmatpush2.msra.mxu0 0.0
        %3782 = vmatprep.subr.mxu0 0.0
        %3783 = vmatpush2.msra.mxu0 0.0
        %3784 = vmatprep.subr.mxu0 0.0
        %3785 = vmatpush2.msra.mxu0 0.0
        %3786 = vmatprep.subr.mxu0 0.0
        %3787 = vmatpush2.msra.mxu0 0.0
        %3788 = vmatprep.subr.mxu0 0.0
        %3789 = vmatpush2.msra.mxu0 0.0
        %3790 = vmatprep.subr.mxu0 0.0
        %3791 = vmatpush2.msra.mxu0 0.0
        %3792 = vmatprep.subr.mxu0 0.0
        %3793 = vmatpush2.msra.mxu0 0.0
        %3794 = vmatprep.subr.mxu0 0.0
        %3795 = vmatpush2.msra.mxu0 0.0
        %3796 = vmatprep.subr.mxu0 0.0
        %3797 = vmatpush2.msra.mxu0 0.0
        %3798 = vmatprep.subr.mxu0 0.0
        %3799 = vmatpush2.msra.mxu0 0.0
        %3800 = vmatprep.subr.mxu0 0.0
        %3801 = vmatpush2.msra.mxu0 0.0
        %3802 = vmatprep.subr.mxu0 0.0
        %3803 = vmatpush2.msra.mxu0 0.0
        %3804 = vmatprep.subr.mxu0 0.0
        %3805 = vmatpush2.msra.mxu0 0.0
        %3806 = vmatprep.subr.mxu0 0.0
        %3807 = vmatpush2.msra.mxu0 0.0
        %3808 = vmatprep.mubr.f32.mxu0 0.0
        %3809 = vmatmul.mubr.f32.gmra.mxu0 %v2977
        %v3810 = vpop.f32.mrf.mxu0
        %v3811 = vadd.f32 %v2974, %v3810
        %v3812 = vpop.f32.mrf.mxu0
        %3813 = vmatprep.mubr.f32.mxu0 0.0
        %3814 = vmatmul.mubr.f32.gmra.mxu0 %v2980
        %v3815 = vpop.f32.mrf.mxu0
        %v3816 = vadd.f32 %v2974, %v3815
        %v3817 = vpop.f32.mrf.mxu0
        %3818 = vmatprep.mubr.f32.mxu0 0.0
        %3819 = vmatmul.mubr.f32.gmra.mxu0 %v2983
        %v3820 = vpop.f32.mrf.mxu0
        %v3821 = vadd.f32 %v2974, %v3820
        %v3822 = vpop.f32.mrf.mxu0
        %3823 = vmatprep.mubr.f32.mxu0 0.0
        %3824 = vmatmul.mubr.f32.gmra.mxu0 %v2986
        %v3825 = vpop.f32.mrf.mxu0
        %v3826 = vadd.f32 %v2974, %v3825
        %v3827 = vpop.f32.mrf.mxu0
        %3828 = vmatprep.mubr.f32.mxu0 0.0
        %3829 = vmatmul.mubr.f32.gmra.mxu0 %v2989
        %v3830 = vpop.f32.mrf.mxu0
        %v3831 = vadd.f32 %v2974, %v3830
        %v3832 = vpop.f32.mrf.mxu0
        %3833 = vmatprep.mubr.f32.mxu0 0.0
        %3834 = vmatmul.mubr.f32.gmra.mxu0 %v2992
        %v3835 = vpop.f32.mrf.mxu0
        %v3836 = vadd.f32 %v2974, %v3835
        %v3837 = vpop.f32.mrf.mxu0
        %3838 = vmatprep.mubr.f32.mxu0 0.0
        %3839 = vmatmul.mubr.f32.gmra.mxu0 %v2995
        %v3840 = vpop.f32.mrf.mxu0
        %v3841 = vadd.f32 %v2974, %v3840
        %v3842 = vpop.f32.mrf.mxu0
        %3843 = vmatprep.mubr.f32.mxu0 0.0
        %3844 = vmatmul.mubr.f32.gmra.mxu0 %v2998
        %v3845 = vpop.f32.mrf.mxu0
        %v3846 = vadd.f32 %v2974, %v3845
        %v3847 = vpop.f32.mrf.mxu0
        %3848 = vmatprep.mubr.f32.mxu0 0.0
        %3849 = vmatmul.mubr.f32.gmra.mxu0 %v3001
        %v3850 = vpop.f32.mrf.mxu0
        %v3851 = vadd.f32 %v2974, %v3850
        %v3852 = vpop.f32.mrf.mxu0
        %3853 = vmatprep.mubr.f32.mxu0 0.0
        %3854 = vmatmul.mubr.f32.gmra.mxu0 %v3004
        %v3855 = vpop.f32.mrf.mxu0
        %v3856 = vadd.f32 %v2974, %v3855
        %v3857 = vpop.f32.mrf.mxu0
        %3858 = vmatprep.mubr.f32.mxu0 0.0
        %3859 = vmatmul.mubr.f32.gmra.mxu0 %v3007
        %v3860 = vpop.f32.mrf.mxu0
        %v3861 = vadd.f32 %v2974, %v3860
        %v3862 = vpop.f32.mrf.mxu0
        %3863 = vmatprep.mubr.f32.mxu0 0.0
        %3864 = vmatmul.mubr.f32.gmra.mxu0 %v3010
        %v3865 = vpop.f32.mrf.mxu0
        %v3866 = vadd.f32 %v2974, %v3865
        %v3867 = vpop.f32.mrf.mxu0
        %3868 = vmatprep.mubr.f32.mxu0 0.0
        %3869 = vmatmul.mubr.f32.gmra.mxu0 %v3013
        %v3870 = vpop.f32.mrf.mxu0
        %v3871 = vadd.f32 %v2974, %v3870
        %v3872 = vpop.f32.mrf.mxu0
        %3873 = vmatprep.mubr.f32.mxu0 0.0
        %3874 = vmatmul.mubr.f32.gmra.mxu0 %v3016
        %v3875 = vpop.f32.mrf.mxu0
        %v3876 = vadd.f32 %v2974, %v3875
        %v3877 = vpop.f32.mrf.mxu0
        %3878 = vmatprep.mubr.f32.mxu0 0.0
        %3879 = vmatmul.mubr.f32.gmra.mxu0 %v3019
        %v3880 = vpop.f32.mrf.mxu0
        %v3881 = vadd.f32 %v2974, %v3880
        %v3882 = vpop.f32.mrf.mxu0
        %3883 = vmatprep.mubr.f32.mxu0 0.0
        %3884 = vmatmul.mubr.f32.gmra.mxu0 %v3022
        %v3885 = vpop.f32.mrf.mxu0
        %v3886 = vadd.f32 %v2974, %v3885
        %v3887 = vpop.f32.mrf.mxu0
        %3888 = vmatprep.mubr.f32.mxu0 0.0
        %3889 = vmatmul.mubr.f32.gmra.mxu0 %v3025
        %v3890 = vpop.f32.mrf.mxu0
        %v3891 = vadd.f32 %v2974, %v3890
        %v3892 = vpop.f32.mrf.mxu0
        %3893 = vmatprep.mubr.f32.mxu0 0.0
        %3894 = vmatmul.mubr.f32.gmra.mxu0 %v3028
        %v3895 = vpop.f32.mrf.mxu0
        %v3896 = vadd.f32 %v2974, %v3895
        %v3897 = vpop.f32.mrf.mxu0
        %3898 = vmatprep.mubr.f32.mxu0 0.0
        %3899 = vmatmul.mubr.f32.gmra.mxu0 %v3031
        %v3900 = vpop.f32.mrf.mxu0
        %v3901 = vadd.f32 %v2974, %v3900
        %v3902 = vpop.f32.mrf.mxu0
        %3903 = vmatprep.mubr.f32.mxu0 0.0
        %3904 = vmatmul.mubr.f32.gmra.mxu0 %v3034
        %v3905 = vpop.f32.mrf.mxu0
        %v3906 = vadd.f32 %v2974, %v3905
        %v3907 = vpop.f32.mrf.mxu0
        %3908 = vmatprep.mubr.f32.mxu0 0.0
        %3909 = vmatmul.mubr.f32.gmra.mxu0 %v3037
        %v3910 = vpop.f32.mrf.mxu0
        %v3911 = vadd.f32 %v2974, %v3910
        %v3912 = vpop.f32.mrf.mxu0
        %3913 = vmatprep.mubr.f32.mxu0 0.0
        %3914 = vmatmul.mubr.f32.gmra.mxu0 %v3040
        %v3915 = vpop.f32.mrf.mxu0
        %v3916 = vadd.f32 %v2974, %v3915
        %v3917 = vpop.f32.mrf.mxu0
        %3918 = vmatprep.mubr.f32.mxu0 0.0
        %3919 = vmatmul.mubr.f32.gmra.mxu0 %v3043
        %v3920 = vpop.f32.mrf.mxu0
        %v3921 = vadd.f32 %v2974, %v3920
        %v3922 = vpop.f32.mrf.mxu0
        %3923 = vmatprep.mubr.f32.mxu0 0.0
        %3924 = vmatmul.mubr.f32.gmra.mxu0 %v3046
        %v3925 = vpop.f32.mrf.mxu0
        %v3926 = vadd.f32 %v2974, %v3925
        %v3927 = vpop.f32.mrf.mxu0
        %3928 = vmatprep.mubr.f32.mxu0 0.0
        %3929 = vmatmul.mubr.f32.gmra.mxu0 %v3049
        %v3930 = vpop.f32.mrf.mxu0
        %v3931 = vadd.f32 %v2974, %v3930
        %v3932 = vpop.f32.mrf.mxu0
        %3933 = vmatprep.mubr.f32.mxu0 0.0
        %3934 = vmatmul.mubr.f32.gmra.mxu0 %v3052
        %v3935 = vpop.f32.mrf.mxu0
        %v3936 = vadd.f32 %v2974, %v3935
        %v3937 = vpop.f32.mrf.mxu0
        %3938 = vmatprep.mubr.f32.mxu0 0.0
        %3939 = vmatmul.mubr.f32.gmra.mxu0 %v3055
        %v3940 = vpop.f32.mrf.mxu0
        %v3941 = vadd.f32 %v2974, %v3940
        %v3942 = vpop.f32.mrf.mxu0
        %3943 = vmatprep.mubr.f32.mxu0 0.0
        %3944 = vmatmul.mubr.f32.gmra.mxu0 %v3058
        %v3945 = vpop.f32.mrf.mxu0
        %v3946 = vadd.f32 %v2974, %v3945
        %v3947 = vpop.f32.mrf.mxu0
        %3948 = vmatprep.mubr.f32.mxu0 0.0
        %3949 = vmatmul.mubr.f32.gmra.mxu0 %v3061
        %v3950 = vpop.f32.mrf.mxu0
        %v3951 = vadd.f32 %v2974, %v3950
        %v3952 = vpop.f32.mrf.mxu0
        %3953 = vmatprep.mubr.f32.mxu0 0.0
        %3954 = vmatmul.mubr.f32.gmra.mxu0 %v3064
        %v3955 = vpop.f32.mrf.mxu0
        %v3956 = vadd.f32 %v2974, %v3955
        %v3957 = vpop.f32.mrf.mxu0
        %3958 = vmatprep.mubr.f32.mxu0 0.0
        %3959 = vmatmul.mubr.f32.gmra.mxu0 %v3067
        %v3960 = vpop.f32.mrf.mxu0
        %v3961 = vadd.f32 %v2974, %v3960
        %v3962 = vpop.f32.mrf.mxu0
        %3963 = vmatprep.mubr.f32.mxu0 0.0
        %3964 = vmatmul.mubr.f32.gmra.mxu0 %v3070
        %v3965 = vpop.f32.mrf.mxu0
        %v3966 = vadd.f32 %v2974, %v3965
        %v3967 = vpop.f32.mrf.mxu0
        %3968 = vmatprep.mubr.f32.mxu0 0.0
        %3969 = vmatmul.mubr.f32.gmra.mxu0 %v3073
        %v3970 = vpop.f32.mrf.mxu0
        %v3971 = vadd.f32 %v2974, %v3970
        %v3972 = vpop.f32.mrf.mxu0
        %3973 = vmatprep.mubr.f32.mxu0 0.0
        %3974 = vmatmul.mubr.f32.gmra.mxu0 %v3076
        %v3975 = vpop.f32.mrf.mxu0
        %v3976 = vadd.f32 %v2974, %v3975
        %v3977 = vpop.f32.mrf.mxu0
        %3978 = vmatprep.mubr.f32.mxu0 0.0
        %3979 = vmatmul.mubr.f32.gmra.mxu0 %v3079
        %v3980 = vpop.f32.mrf.mxu0
        %v3981 = vadd.f32 %v2974, %v3980
        %v3982 = vpop.f32.mrf.mxu0
        %3983 = vmatprep.mubr.f32.mxu0 0.0
        %3984 = vmatmul.mubr.f32.gmra.mxu0 %v3082
        %v3985 = vpop.f32.mrf.mxu0
        %v3986 = vadd.f32 %v2974, %v3985
        %v3987 = vpop.f32.mrf.mxu0
        %3988 = vmatprep.mubr.f32.mxu0 0.0
        %3989 = vmatmul.mubr.f32.gmra.mxu0 %v3085
        %v3990 = vpop.f32.mrf.mxu0
        %v3991 = vadd.f32 %v2974, %v3990
        %v3992 = vpop.f32.mrf.mxu0
        %3993 = vmatprep.mubr.f32.mxu0 0.0
        %3994 = vmatmul.mubr.f32.gmra.mxu0 %v3088
        %v3995 = vpop.f32.mrf.mxu0
        %v3996 = vadd.f32 %v2974, %v3995
        %v3997 = vpop.f32.mrf.mxu0
        %3998 = vmatprep.mubr.f32.mxu0 0.0
        %3999 = vmatmul.mubr.f32.gmra.mxu0 %v3091
        %v4000 = vpop.f32.mrf.mxu0
        %v4001 = vadd.f32 %v2974, %v4000
        %v4002 = vpop.f32.mrf.mxu0
        %4003 = vmatprep.mubr.f32.mxu0 0.0
        %4004 = vmatmul.mubr.f32.gmra.mxu0 %v3094
        %v4005 = vpop.f32.mrf.mxu0
        %v4006 = vadd.f32 %v2974, %v4005
        %v4007 = vpop.f32.mrf.mxu0
        %4008 = vmatprep.mubr.f32.mxu0 0.0
        %4009 = vmatmul.mubr.f32.gmra.mxu0 %v3097
        %v4010 = vpop.f32.mrf.mxu0
        %v4011 = vadd.f32 %v2974, %v4010
        %v4012 = vpop.f32.mrf.mxu0
        %4013 = vmatprep.mubr.f32.mxu0 0.0
        %4014 = vmatmul.mubr.f32.gmra.mxu0 %v3100
        %v4015 = vpop.f32.mrf.mxu0
        %v4016 = vadd.f32 %v2974, %v4015
        %v4017 = vpop.f32.mrf.mxu0
        %4018 = vmatprep.mubr.f32.mxu0 0.0
        %4019 = vmatmul.mubr.f32.gmra.mxu0 %v3103
        %v4020 = vpop.f32.mrf.mxu0
        %v4021 = vadd.f32 %v2974, %v4020
        %v4022 = vpop.f32.mrf.mxu0
        %4023 = vmatprep.mubr.f32.mxu0 0.0
        %4024 = vmatmul.mubr.f32.gmra.mxu0 %v3106
        %v4025 = vpop.f32.mrf.mxu0
        %v4026 = vadd.f32 %v2974, %v4025
        %v4027 = vpop.f32.mrf.mxu0
        %4028 = vmatprep.mubr.f32.mxu0 0.0
        %4029 = vmatmul.mubr.f32.gmra.mxu0 %v3109
        %v4030 = vpop.f32.mrf.mxu0
        %v4031 = vadd.f32 %v2974, %v4030
        %v4032 = vpop.f32.mrf.mxu0
        %4033 = vmatprep.mubr.f32.mxu0 0.0
        %4034 = vmatmul.mubr.f32.gmra.mxu0 %v3112
        %v4035 = vpop.f32.mrf.mxu0
        %v4036 = vadd.f32 %v2974, %v4035
        %v4037 = vpop.f32.mrf.mxu0
        %4038 = vmatprep.mubr.f32.mxu0 0.0
        %4039 = vmatmul.mubr.f32.gmra.mxu0 %v3115
        %v4040 = vpop.f32.mrf.mxu0
        %v4041 = vadd.f32 %v2974, %v4040
        %v4042 = vpop.f32.mrf.mxu0
        %4043 = vmatprep.mubr.f32.mxu0 0.0
        %4044 = vmatmul.mubr.f32.gmra.mxu0 %v3118
        %v4045 = vpop.f32.mrf.mxu0
        %v4046 = vadd.f32 %v2974, %v4045
        %v4047 = vpop.f32.mrf.mxu0
        %4048 = vmatprep.mubr.f32.mxu0 0.0
        %4049 = vmatmul.mubr.f32.gmra.mxu0 %v3121
        %v4050 = vpop.f32.mrf.mxu0
        %v4051 = vadd.f32 %v2974, %v4050
        %v4052 = vpop.f32.mrf.mxu0
        %4053 = vmatprep.mubr.f32.mxu0 0.0
        %4054 = vmatmul.mubr.f32.gmra.mxu0 %v3124
        %v4055 = vpop.f32.mrf.mxu0
        %v4056 = vadd.f32 %v2974, %v4055
        %v4057 = vpop.f32.mrf.mxu0
        %4058 = vmatprep.mubr.f32.mxu0 0.0
        %4059 = vmatmul.mubr.f32.gmra.mxu0 %v3127
        %v4060 = vpop.f32.mrf.mxu0
        %v4061 = vadd.f32 %v2974, %v4060
        %v4062 = vpop.f32.mrf.mxu0
        %4063 = vmatprep.mubr.f32.mxu0 0.0
        %4064 = vmatmul.mubr.f32.gmra.mxu0 %v3130
        %v4065 = vpop.f32.mrf.mxu0
        %v4066 = vadd.f32 %v2974, %v4065
        %v4067 = vpop.f32.mrf.mxu0
        %4068 = vmatprep.mubr.f32.mxu0 0.0
        %4069 = vmatmul.mubr.f32.gmra.mxu0 %v3133
        %v4070 = vpop.f32.mrf.mxu0
        %v4071 = vadd.f32 %v2974, %v4070
        %v4072 = vpop.f32.mrf.mxu0
        %4073 = vmatprep.mubr.f32.mxu0 0.0
        %4074 = vmatmul.mubr.f32.gmra.mxu0 %v3136
        %v4075 = vpop.f32.mrf.mxu0
        %v4076 = vadd.f32 %v2974, %v4075
        %v4077 = vpop.f32.mrf.mxu0
        %4078 = vmatprep.mubr.f32.mxu0 0.0
        %4079 = vmatmul.mubr.f32.gmra.mxu0 %v3139
        %v4080 = vpop.f32.mrf.mxu0
        %v4081 = vadd.f32 %v2974, %v4080
        %v4082 = vpop.f32.mrf.mxu0
        %4083 = vmatprep.mubr.f32.mxu0 0.0
        %4084 = vmatmul.mubr.f32.gmra.mxu0 %v3142
        %v4085 = vpop.f32.mrf.mxu0
        %v4086 = vadd.f32 %v2974, %v4085
        %v4087 = vpop.f32.mrf.mxu0
        %4088 = vmatprep.mubr.f32.mxu0 0.0
        %4089 = vmatmul.mubr.f32.gmra.mxu0 %v3145
        %v4090 = vpop.f32.mrf.mxu0
        %v4091 = vadd.f32 %v2974, %v4090
        %v4092 = vpop.f32.mrf.mxu0
        %4093 = vmatprep.mubr.f32.mxu0 0.0
        %4094 = vmatmul.mubr.f32.gmra.mxu0 %v3148
        %v4095 = vpop.f32.mrf.mxu0
        %v4096 = vadd.f32 %v2974, %v4095
        %v4097 = vpop.f32.mrf.mxu0
        %4098 = vmatprep.mubr.f32.mxu0 0.0
        %4099 = vmatmul.mubr.f32.gmra.mxu0 %v3151
        %v4100 = vpop.f32.mrf.mxu0
        %v4101 = vadd.f32 %v2974, %v4100
        %v4102 = vpop.f32.mrf.mxu0
        %4103 = vmatprep.mubr.f32.mxu0 0.0
        %4104 = vmatmul.mubr.f32.gmra.mxu0 %v3154
        %v4105 = vpop.f32.mrf.mxu0
        %v4106 = vadd.f32 %v2974, %v4105
        %v4107 = vpop.f32.mrf.mxu0
        %4108 = vmatprep.mubr.f32.mxu0 0.0
        %4109 = vmatmul.mubr.f32.gmra.mxu0 %v3157
        %v4110 = vpop.f32.mrf.mxu0
        %v4111 = vadd.f32 %v2974, %v4110
        %v4112 = vpop.f32.mrf.mxu0
        %4113 = vmatprep.mubr.f32.mxu0 0.0
        %4114 = vmatmul.mubr.f32.gmra.mxu0 %v3160
        %v4115 = vpop.f32.mrf.mxu0
        %v4116 = vadd.f32 %v2974, %v4115
        %v4117 = vpop.f32.mrf.mxu0
        %4118 = vmatprep.mubr.f32.mxu0 0.0
        %4119 = vmatmul.mubr.f32.gmra.mxu0 %v3163
        %v4120 = vpop.f32.mrf.mxu0
        %v4121 = vadd.f32 %v2974, %v4120
        %v4122 = vpop.f32.mrf.mxu0
        %4123 = vmatprep.mubr.f32.mxu0 0.0
        %4124 = vmatmul.mubr.f32.gmra.mxu0 %v3166
        %v4125 = vpop.f32.mrf.mxu0
        %v4126 = vadd.f32 %v2974, %v4125
        %v4127 = vpop.f32.mrf.mxu0
        %4128 = vmatprep.mubr.f32.mxu0 0.0
        %4129 = vmatmul.mubr.f32.gmra.mxu0 %v3169
        %v4130 = vpop.f32.mrf.mxu0
        %v4131 = vadd.f32 %v2974, %v4130
        %v4132 = vpop.f32.mrf.mxu0
        %4133 = vmatprep.mubr.f32.mxu0 0.0
        %4134 = vmatmul.mubr.f32.gmra.mxu0 %v3172
        %v4135 = vpop.f32.mrf.mxu0
        %v4136 = vadd.f32 %v2974, %v4135
        %v4137 = vpop.f32.mrf.mxu0
        %4138 = vmatprep.mubr.f32.mxu0 0.0
        %4139 = vmatmul.mubr.f32.gmra.mxu0 %v3175
        %v4140 = vpop.f32.mrf.mxu0
        %v4141 = vadd.f32 %v2974, %v4140
        %v4142 = vpop.f32.mrf.mxu0
        %4143 = vmatprep.mubr.f32.mxu0 0.0
        %4144 = vmatmul.mubr.f32.gmra.mxu0 %v3178
        %v4145 = vpop.f32.mrf.mxu0
        %v4146 = vadd.f32 %v2974, %v4145
        %v4147 = vpop.f32.mrf.mxu0
        %4148 = vmatprep.mubr.f32.mxu0 0.0
        %4149 = vmatmul.mubr.f32.gmra.mxu0 %v3181
        %v4150 = vpop.f32.mrf.mxu0
        %v4151 = vadd.f32 %v2974, %v4150
        %v4152 = vpop.f32.mrf.mxu0
        %4153 = vmatprep.mubr.f32.mxu0 0.0
        %4154 = vmatmul.mubr.f32.gmra.mxu0 %v3184
        %v4155 = vpop.f32.mrf.mxu0
        %v4156 = vadd.f32 %v2974, %v4155
        %v4157 = vpop.f32.mrf.mxu0
        %4158 = vmatprep.mubr.f32.mxu0 0.0
        %4159 = vmatmul.mubr.f32.gmra.mxu0 %v3187
        %v4160 = vpop.f32.mrf.mxu0
        %v4161 = vadd.f32 %v2974, %v4160
        %v4162 = vpop.f32.mrf.mxu0
        %4163 = vmatprep.mubr.f32.mxu0 0.0
        %4164 = vmatmul.mubr.f32.gmra.mxu0 %v3190
        %v4165 = vpop.f32.mrf.mxu0
        %v4166 = vadd.f32 %v2974, %v4165
        %v4167 = vpop.f32.mrf.mxu0
        %4168 = vmatprep.mubr.f32.mxu0 0.0
        %4169 = vmatmul.mubr.f32.gmra.mxu0 %v3193
        %v4170 = vpop.f32.mrf.mxu0
        %v4171 = vadd.f32 %v2974, %v4170
        %v4172 = vpop.f32.mrf.mxu0
        %4173 = vmatprep.mubr.f32.mxu0 0.0
        %4174 = vmatmul.mubr.f32.gmra.mxu0 %v3196
        %v4175 = vpop.f32.mrf.mxu0
        %v4176 = vadd.f32 %v2974, %v4175
        %v4177 = vpop.f32.mrf.mxu0
        %4178 = vmatprep.mubr.f32.mxu0 0.0
        %4179 = vmatmul.mubr.f32.gmra.mxu0 %v3199
        %v4180 = vpop.f32.mrf.mxu0
        %v4181 = vadd.f32 %v2974, %v4180
        %v4182 = vpop.f32.mrf.mxu0
        %4183 = vmatprep.mubr.f32.mxu0 0.0
        %4184 = vmatmul.mubr.f32.gmra.mxu0 %v3202
        %v4185 = vpop.f32.mrf.mxu0
        %v4186 = vadd.f32 %v2974, %v4185
        %v4187 = vpop.f32.mrf.mxu0
        %4188 = vmatprep.mubr.f32.mxu0 0.0
        %4189 = vmatmul.mubr.f32.gmra.mxu0 %v3205
        %v4190 = vpop.f32.mrf.mxu0
        %v4191 = vadd.f32 %v2974, %v4190
        %v4192 = vpop.f32.mrf.mxu0
        %4193 = vmatprep.mubr.f32.mxu0 0.0
        %4194 = vmatmul.mubr.f32.gmra.mxu0 %v3208
        %v4195 = vpop.f32.mrf.mxu0
        %v4196 = vadd.f32 %v2974, %v4195
        %v4197 = vpop.f32.mrf.mxu0
        %4198 = vmatprep.mubr.f32.mxu0 0.0
        %4199 = vmatmul.mubr.f32.gmra.mxu0 %v3211
        %v4200 = vpop.f32.mrf.mxu0
        %v4201 = vadd.f32 %v2974, %v4200
        %v4202 = vpop.f32.mrf.mxu0
        %4203 = vmatprep.mubr.f32.mxu0 0.0
        %4204 = vmatmul.mubr.f32.gmra.mxu0 %v3214
        %v4205 = vpop.f32.mrf.mxu0
        %v4206 = vadd.f32 %v2974, %v4205
        %v4207 = vpop.f32.mrf.mxu0
        %4208 = vmatprep.mubr.f32.mxu0 0.0
        %4209 = vmatmul.mubr.f32.gmra.mxu0 %v3217
        %v4210 = vpop.f32.mrf.mxu0
        %v4211 = vadd.f32 %v2974, %v4210
        %v4212 = vpop.f32.mrf.mxu0
        %4213 = vmatprep.mubr.f32.mxu0 0.0
        %4214 = vmatmul.mubr.f32.gmra.mxu0 %v3220
        %v4215 = vpop.f32.mrf.mxu0
        %v4216 = vadd.f32 %v2974, %v4215
        %v4217 = vpop.f32.mrf.mxu0
        %4218 = vmatprep.mubr.f32.mxu0 0.0
        %4219 = vmatmul.mubr.f32.gmra.mxu0 %v3223
        %v4220 = vpop.f32.mrf.mxu0
        %v4221 = vadd.f32 %v2974, %v4220
        %v4222 = vpop.f32.mrf.mxu0
        %4223 = vmatprep.mubr.f32.mxu0 0.0
        %4224 = vmatmul.mubr.f32.gmra.mxu0 %v3226
        %v4225 = vpop.f32.mrf.mxu0
        %v4226 = vadd.f32 %v2974, %v4225
        %v4227 = vpop.f32.mrf.mxu0
        %4228 = vmatprep.mubr.f32.mxu0 0.0
        %4229 = vmatmul.mubr.f32.gmra.mxu0 %v3229
        %v4230 = vpop.f32.mrf.mxu0
        %v4231 = vadd.f32 %v2974, %v4230
        %v4232 = vpop.f32.mrf.mxu0
        %4233 = vmatprep.mubr.f32.mxu0 0.0
        %4234 = vmatmul.mubr.f32.gmra.mxu0 %v3232
        %v4235 = vpop.f32.mrf.mxu0
        %v4236 = vadd.f32 %v2974, %v4235
        %v4237 = vpop.f32.mrf.mxu0
        %4238 = vmatprep.mubr.f32.mxu0 0.0
        %4239 = vmatmul.mubr.f32.gmra.mxu0 %v3235
        %v4240 = vpop.f32.mrf.mxu0
        %v4241 = vadd.f32 %v2974, %v4240
        %v4242 = vpop.f32.mrf.mxu0
        %4243 = vmatprep.mubr.f32.mxu0 0.0
        %4244 = vmatmul.mubr.f32.gmra.mxu0 %v3238
        %v4245 = vpop.f32.mrf.mxu0
        %v4246 = vadd.f32 %v2974, %v4245
        %v4247 = vpop.f32.mrf.mxu0
        %4248 = vmatprep.mubr.f32.mxu0 0.0
        %4249 = vmatmul.mubr.f32.gmra.mxu0 %v3241
        %v4250 = vpop.f32.mrf.mxu0
        %v4251 = vadd.f32 %v2974, %v4250
        %v4252 = vpop.f32.mrf.mxu0
        %4253 = vmatprep.mubr.f32.mxu0 0.0
        %4254 = vmatmul.mubr.f32.gmra.mxu0 %v3244
        %v4255 = vpop.f32.mrf.mxu0
        %v4256 = vadd.f32 %v2974, %v4255
        %v4257 = vpop.f32.mrf.mxu0
        %4258 = vmatprep.mubr.f32.mxu0 0.0
        %4259 = vmatmul.mubr.f32.gmra.mxu0 %v3247
        %v4260 = vpop.f32.mrf.mxu0
        %v4261 = vadd.f32 %v2974, %v4260
        %v4262 = vpop.f32.mrf.mxu0
        %4263 = vmatprep.mubr.f32.mxu0 0.0
        %4264 = vmatmul.mubr.f32.gmra.mxu0 %v3250
        %v4265 = vpop.f32.mrf.mxu0
        %v4266 = vadd.f32 %v2974, %v4265
        %v4267 = vpop.f32.mrf.mxu0
        %4268 = vmatprep.mubr.f32.mxu0 0.0
        %4269 = vmatmul.mubr.f32.gmra.mxu0 %v3253
        %v4270 = vpop.f32.mrf.mxu0
        %v4271 = vadd.f32 %v2974, %v4270
        %v4272 = vpop.f32.mrf.mxu0
        %4273 = vmatprep.mubr.f32.mxu0 0.0
        %4274 = vmatmul.mubr.f32.gmra.mxu0 %v3256
        %v4275 = vpop.f32.mrf.mxu0
        %v4276 = vadd.f32 %v2974, %v4275
        %v4277 = vpop.f32.mrf.mxu0
        %4278 = vmatprep.mubr.f32.mxu0 0.0
        %4279 = vmatmul.mubr.f32.gmra.mxu0 %v3259
        %v4280 = vpop.f32.mrf.mxu0
        %v4281 = vadd.f32 %v2974, %v4280
        %v4282 = vpop.f32.mrf.mxu0
        %4283 = vmatprep.mubr.f32.mxu0 0.0
        %4284 = vmatmul.mubr.f32.gmra.mxu0 %v3262
        %v4285 = vpop.f32.mrf.mxu0
        %v4286 = vadd.f32 %v2974, %v4285
        %v4287 = vpop.f32.mrf.mxu0
        %4288 = vmatprep.mubr.f32.mxu0 0.0
        %4289 = vmatmul.mubr.f32.gmra.mxu0 %v3265
        %v4290 = vpop.f32.mrf.mxu0
        %v4291 = vadd.f32 %v2974, %v4290
        %v4292 = vpop.f32.mrf.mxu0
        %4293 = vmatprep.mubr.f32.mxu0 0.0
        %4294 = vmatmul.mubr.f32.gmra.mxu0 %v3268
        %v4295 = vpop.f32.mrf.mxu0
        %v4296 = vadd.f32 %v2974, %v4295
        %v4297 = vpop.f32.mrf.mxu0
        %4298 = vmatprep.mubr.f32.mxu0 0.0
        %4299 = vmatmul.mubr.f32.gmra.mxu0 %v3271
        %v4300 = vpop.f32.mrf.mxu0
        %v4301 = vadd.f32 %v2974, %v4300
        %v4302 = vpop.f32.mrf.mxu0
        %4303 = vmatprep.mubr.f32.mxu0 0.0
        %4304 = vmatmul.mubr.f32.gmra.mxu0 %v3274
        %v4305 = vpop.f32.mrf.mxu0
        %v4306 = vadd.f32 %v2974, %v4305
        %v4307 = vpop.f32.mrf.mxu0
        %4308 = vmatprep.mubr.f32.mxu0 0.0
        %4309 = vmatmul.mubr.f32.gmra.mxu0 %v3277
        %v4310 = vpop.f32.mrf.mxu0
        %v4311 = vadd.f32 %v2974, %v4310
        %v4312 = vpop.f32.mrf.mxu0
        %4313 = vmatprep.mubr.f32.mxu0 0.0
        %4314 = vmatmul.mubr.f32.gmra.mxu0 %v3280
        %v4315 = vpop.f32.mrf.mxu0
        %v4316 = vadd.f32 %v2974, %v4315
        %v4317 = vpop.f32.mrf.mxu0
        %4318 = vmatprep.mubr.f32.mxu0 0.0
        %4319 = vmatmul.mubr.f32.gmra.mxu0 %v3283
        %v4320 = vpop.f32.mrf.mxu0
        %v4321 = vadd.f32 %v2974, %v4320
        %v4322 = vpop.f32.mrf.mxu0
        %4323 = vmatprep.mubr.f32.mxu0 0.0
        %4324 = vmatmul.mubr.f32.gmra.mxu0 %v3286
        %v4325 = vpop.f32.mrf.mxu0
        %v4326 = vadd.f32 %v2974, %v4325
        %v4327 = vpop.f32.mrf.mxu0
        %4328 = vmatprep.mubr.f32.mxu0 0.0
        %4329 = vmatmul.mubr.f32.gmra.mxu0 %v3289
        %v4330 = vpop.f32.mrf.mxu0
        %v4331 = vadd.f32 %v2974, %v4330
        %v4332 = vpop.f32.mrf.mxu0
        %4333 = vmatprep.mubr.f32.mxu0 0.0
        %4334 = vmatmul.mubr.f32.gmra.mxu0 %v3292
        %v4335 = vpop.f32.mrf.mxu0
        %v4336 = vadd.f32 %v2974, %v4335
        %v4337 = vpop.f32.mrf.mxu0
        %4338 = vmatprep.mubr.f32.mxu0 0.0
        %4339 = vmatmul.mubr.f32.gmra.mxu0 %v3295
        %v4340 = vpop.f32.mrf.mxu0
        %v4341 = vadd.f32 %v2974, %v4340
        %v4342 = vpop.f32.mrf.mxu0
        %4343 = vmatprep.mubr.f32.mxu0 0.0
        %4344 = vmatmul.mubr.f32.gmra.mxu0 %v3298
        %v4345 = vpop.f32.mrf.mxu0
        %v4346 = vadd.f32 %v2974, %v4345
        %v4347 = vpop.f32.mrf.mxu0
        %4348 = vmatprep.mubr.f32.mxu0 0.0
        %4349 = vmatmul.mubr.f32.gmra.mxu0 %v3301
        %v4350 = vpop.f32.mrf.mxu0
        %v4351 = vadd.f32 %v2974, %v4350
        %v4352 = vpop.f32.mrf.mxu0
        %4353 = vmatprep.mubr.f32.mxu0 0.0
        %4354 = vmatmul.mubr.f32.gmra.mxu0 %v3304
        %v4355 = vpop.f32.mrf.mxu0
        %v4356 = vadd.f32 %v2974, %v4355
        %v4357 = vpop.f32.mrf.mxu0
        %4358 = vmatprep.mubr.f32.mxu0 0.0
        %4359 = vmatmul.mubr.f32.gmra.mxu0 %v3307
        %v4360 = vpop.f32.mrf.mxu0
        %v4361 = vadd.f32 %v2974, %v4360
        %v4362 = vpop.f32.mrf.mxu0
        %4363 = vmatprep.mubr.f32.mxu0 0.0
        %4364 = vmatmul.mubr.f32.gmra.mxu0 %v3310
        %v4365 = vpop.f32.mrf.mxu0
        %v4366 = vadd.f32 %v2974, %v4365
        %v4367 = vpop.f32.mrf.mxu0
        %4368 = vmatprep.mubr.f32.mxu0 0.0
        %4369 = vmatmul.mubr.f32.gmra.mxu0 %v3313
        %v4370 = vpop.f32.mrf.mxu0
        %v4371 = vadd.f32 %v2974, %v4370
        %v4372 = vpop.f32.mrf.mxu0
        %4373 = vmatprep.mubr.f32.mxu0 0.0
        %4374 = vmatmul.mubr.f32.gmra.mxu0 %v3316
        %v4375 = vpop.f32.mrf.mxu0
        %v4376 = vadd.f32 %v2974, %v4375
        %v4377 = vpop.f32.mrf.mxu0
        %4378 = vmatprep.mubr.f32.mxu0 0.0
        %4379 = vmatmul.mubr.f32.gmra.mxu0 %v3319
        %v4380 = vpop.f32.mrf.mxu0
        %v4381 = vadd.f32 %v2974, %v4380
        %v4382 = vpop.f32.mrf.mxu0
        %4383 = vmatprep.mubr.f32.mxu0 0.0
        %4384 = vmatmul.mubr.f32.gmra.mxu0 %v3322
        %v4385 = vpop.f32.mrf.mxu0
        %v4386 = vadd.f32 %v2974, %v4385
        %v4387 = vpop.f32.mrf.mxu0
        %4388 = vmatprep.mubr.f32.mxu0 0.0
        %4389 = vmatmul.mubr.f32.gmra.mxu0 %v3325
        %v4390 = vpop.f32.mrf.mxu0
        %v4391 = vadd.f32 %v2974, %v4390
        %v4392 = vpop.f32.mrf.mxu0
        %4393 = vmatprep.mubr.f32.mxu0 0.0
        %4394 = vmatmul.mubr.f32.gmra.mxu0 %v3328
        %v4395 = vpop.f32.mrf.mxu0
        %v4396 = vadd.f32 %v2974, %v4395
        %v4397 = vpop.f32.mrf.mxu0
        %4398 = vmatprep.mubr.f32.mxu0 0.0
        %4399 = vmatmul.mubr.f32.gmra.mxu0 %v3331
        %v4400 = vpop.f32.mrf.mxu0
        %v4401 = vadd.f32 %v2974, %v4400
        %v4402 = vpop.f32.mrf.mxu0
        %4403 = vmatprep.mubr.f32.mxu0 0.0
        %4404 = vmatmul.mubr.f32.gmra.mxu0 %v3334
        %v4405 = vpop.f32.mrf.mxu0
        %v4406 = vadd.f32 %v2974, %v4405
        %v4407 = vpop.f32.mrf.mxu0
        %4408 = vmatprep.mubr.f32.mxu0 0.0
        %4409 = vmatmul.mubr.f32.gmra.mxu0 %v3337
        %v4410 = vpop.f32.mrf.mxu0
        %v4411 = vadd.f32 %v2974, %v4410
        %v4412 = vpop.f32.mrf.mxu0
        %4413 = vmatprep.mubr.f32.mxu0 0.0
        %4414 = vmatmul.mubr.f32.gmra.mxu0 %v3340
        %v4415 = vpop.f32.mrf.mxu0
        %v4416 = vadd.f32 %v2974, %v4415
        %v4417 = vpop.f32.mrf.mxu0
        %4418 = vmatprep.mubr.f32.mxu0 0.0
        %4419 = vmatmul.mubr.f32.gmra.mxu0 %v3343
        %v4420 = vpop.f32.mrf.mxu0
        %v4421 = vadd.f32 %v2974, %v4420
        %v4422 = vpop.f32.mrf.mxu0
        %4423 = vmatprep.mubr.f32.mxu0 0.0
        %4424 = vmatmul.mubr.f32.gmra.mxu0 %v3346
        %v4425 = vpop.f32.mrf.mxu0
        %v4426 = vadd.f32 %v2974, %v4425
        %v4427 = vpop.f32.mrf.mxu0
        %4428 = vmatprep.mubr.f32.mxu0 0.0
        %4429 = vmatmul.mubr.f32.gmra.mxu0 %v3349
        %v4430 = vpop.f32.mrf.mxu0
        %v4431 = vadd.f32 %v2974, %v4430
        %v4432 = vpop.f32.mrf.mxu0
        %4433 = vmatprep.mubr.f32.mxu0 0.0
        %4434 = vmatmul.mubr.f32.gmra.mxu0 %v3352
        %v4435 = vpop.f32.mrf.mxu0
        %v4436 = vadd.f32 %v2974, %v4435
        %v4437 = vpop.f32.mrf.mxu0
        %4438 = vmatprep.mubr.f32.mxu0 0.0
        %4439 = vmatmul.mubr.f32.gmra.mxu0 %v3355
        %v4440 = vpop.f32.mrf.mxu0
        %v4441 = vadd.f32 %v2974, %v4440
        %v4442 = vpop.f32.mrf.mxu0
        %4443 = vmatprep.mubr.f32.mxu0 0.0
        %4444 = vmatmul.mubr.f32.gmra.mxu0 %v3358
        %v4445 = vpop.f32.mrf.mxu0
        %v4446 = vadd.f32 %v2974, %v4445
        %v4447 = vpop.f32.mrf.mxu0
        %4448 = vmatprep.mubr.f32.mxu0 0.0
        %4449 = vmatmul.mubr.f32.gmra.mxu0 %v3361
        %v4450 = vpop.f32.mrf.mxu0
        %v4451 = vadd.f32 %v2974, %v4450
        %v4452 = vpop.f32.mrf.mxu0
        %4453 = vmatprep.mubr.f32.mxu0 0.0
        %4454 = vmatmul.mubr.f32.gmra.mxu0 %v3364
        %v4455 = vpop.f32.mrf.mxu0
        %v4456 = vadd.f32 %v2974, %v4455
        %v4457 = vpop.f32.mrf.mxu0
        %4458 = vmatprep.mubr.f32.mxu0 0.0
        %4459 = vmatmul.mubr.f32.gmra.mxu0 %v3367
        %v4460 = vpop.f32.mrf.mxu0
        %v4461 = vadd.f32 %v2974, %v4460
        %v4462 = vpop.f32.mrf.mxu0
        %4463 = vmatprep.mubr.f32.mxu0 0.0
        %4464 = vmatmul.mubr.f32.gmra.mxu0 %v3370
        %v4465 = vpop.f32.mrf.mxu0
        %v4466 = vadd.f32 %v2974, %v4465
        %v4467 = vpop.f32.mrf.mxu0
        %4468 = vmatprep.mubr.f32.mxu0 0.0
        %4469 = vmatmul.mubr.f32.gmra.mxu0 %v3373
        %v4470 = vpop.f32.mrf.mxu0
        %v4471 = vadd.f32 %v2974, %v4470
        %v4472 = vpop.f32.mrf.mxu0
        %4473 = vmatprep.mubr.f32.mxu0 0.0
        %4474 = vmatmul.mubr.f32.gmra.mxu0 %v3376
        %v4475 = vpop.f32.mrf.mxu0
        %v4476 = vadd.f32 %v2974, %v4475
        %v4477 = vpop.f32.mrf.mxu0
        %4478 = vmatprep.mubr.f32.mxu0 0.0
        %4479 = vmatmul.mubr.f32.gmra.mxu0 %v3379
        %v4480 = vpop.f32.mrf.mxu0
        %v4481 = vadd.f32 %v2974, %v4480
        %v4482 = vpop.f32.mrf.mxu0
        %4483 = vmatprep.mubr.f32.mxu0 0.0
        %4484 = vmatmul.mubr.f32.gmra.mxu0 %v3382
        %v4485 = vpop.f32.mrf.mxu0
        %v4486 = vadd.f32 %v2974, %v4485
        %v4487 = vpop.f32.mrf.mxu0
        %4488 = vmatprep.mubr.f32.mxu0 0.0
        %4489 = vmatmul.mubr.f32.gmra.mxu0 %v3385
        %v4490 = vpop.f32.mrf.mxu0
        %v4491 = vadd.f32 %v2974, %v4490
        %v4492 = vpop.f32.mrf.mxu0
        %4493 = vmatprep.mubr.f32.mxu0 0.0
        %4494 = vmatmul.mubr.f32.gmra.mxu0 %v3388
        %v4495 = vpop.f32.mrf.mxu0
        %v4496 = vadd.f32 %v2974, %v4495
        %v4497 = vpop.f32.mrf.mxu0
        %4498 = vmatprep.mubr.f32.mxu0 0.0
        %4499 = vmatmul.mubr.f32.gmra.mxu0 %v3391
        %v4500 = vpop.f32.mrf.mxu0
        %v4501 = vadd.f32 %v2974, %v4500
        %v4502 = vpop.f32.mrf.mxu0
        %4503 = vmatprep.mubr.f32.mxu0 0.0
        %4504 = vmatmul.mubr.f32.gmra.mxu0 %v3394
        %v4505 = vpop.f32.mrf.mxu0
        %v4506 = vadd.f32 %v2974, %v4505
        %v4507 = vpop.f32.mrf.mxu0
        %4508 = vmatprep.mubr.f32.mxu0 0.0
        %4509 = vmatmul.mubr.f32.gmra.mxu0 %v3397
        %v4510 = vpop.f32.mrf.mxu0
        %v4511 = vadd.f32 %v2974, %v4510
        %v4512 = vpop.f32.mrf.mxu0
        %4513 = vmatprep.mubr.f32.mxu0 0.0
        %4514 = vmatmul.mubr.f32.gmra.mxu0 %v3400
        %v4515 = vpop.f32.mrf.mxu0
        %v4516 = vadd.f32 %v2974, %v4515
        %v4517 = vpop.f32.mrf.mxu0
        %4518 = vmatprep.mubr.f32.mxu0 0.0
        %4519 = vmatmul.mubr.f32.gmra.mxu0 %v3403
        %v4520 = vpop.f32.mrf.mxu0
        %v4521 = vadd.f32 %v2974, %v4520
        %v4522 = vpop.f32.mrf.mxu0
        %4523 = vmatprep.mubr.f32.mxu0 0.0
        %4524 = vmatmul.mubr.f32.gmra.mxu0 %v3406
        %v4525 = vpop.f32.mrf.mxu0
        %v4526 = vadd.f32 %v2974, %v4525
        %v4527 = vpop.f32.mrf.mxu0
        %4528 = vmatprep.mubr.f32.mxu0 0.0
        %4529 = vmatmul.mubr.f32.gmra.mxu0 %v3409
        %v4530 = vpop.f32.mrf.mxu0
        %v4531 = vadd.f32 %v2974, %v4530
        %v4532 = vpop.f32.mrf.mxu0
        %4533 = vmatprep.mubr.f32.mxu0 0.0
        %4534 = vmatmul.mubr.f32.gmra.mxu0 %v3412
        %v4535 = vpop.f32.mrf.mxu0
        %v4536 = vadd.f32 %v2974, %v4535
        %v4537 = vpop.f32.mrf.mxu0
        %4538 = vmatprep.mubr.f32.mxu0 0.0
        %4539 = vmatmul.mubr.f32.gmra.mxu0 %v3415
        %v4540 = vpop.f32.mrf.mxu0
        %v4541 = vadd.f32 %v2974, %v4540
        %v4542 = vpop.f32.mrf.mxu0
        %4543 = vmatprep.mubr.f32.mxu0 0.0
        %4544 = vmatmul.mubr.f32.gmra.mxu0 %v3418
        %v4545 = vpop.f32.mrf.mxu0
        %v4546 = vadd.f32 %v2974, %v4545
        %v4547 = vpop.f32.mrf.mxu0
        %4548 = vmatprep.mubr.f32.mxu0 0.0
        %4549 = vmatmul.mubr.f32.gmra.mxu0 %v3421
        %v4550 = vpop.f32.mrf.mxu0
        %v4551 = vadd.f32 %v2974, %v4550
        %v4552 = vpop.f32.mrf.mxu0
        %4553 = vmatprep.mubr.f32.mxu0 0.0
        %4554 = vmatmul.mubr.f32.gmra.mxu0 %v3424
        %v4555 = vpop.f32.mrf.mxu0
        %v4556 = vadd.f32 %v2974, %v4555
        %v4557 = vpop.f32.mrf.mxu0
        %4558 = vmatprep.mubr.f32.mxu0 0.0
        %4559 = vmatmul.mubr.f32.gmra.mxu0 %v3427
        %v4560 = vpop.f32.mrf.mxu0
        %v4561 = vadd.f32 %v2974, %v4560
        %v4562 = vpop.f32.mrf.mxu0
        %4563 = vmatprep.mubr.f32.mxu0 0.0
        %4564 = vmatmul.mubr.f32.gmra.mxu0 %v3430
        %v4565 = vpop.f32.mrf.mxu0
        %v4566 = vadd.f32 %v2974, %v4565
        %v4567 = vpop.f32.mrf.mxu0
        %4568 = vmatprep.mubr.f32.mxu0 0.0
        %4569 = vmatmul.mubr.f32.gmra.mxu0 %v3433
        %v4570 = vpop.f32.mrf.mxu0
        %v4571 = vadd.f32 %v2974, %v4570
        %v4572 = vpop.f32.mrf.mxu0
        %4573 = vmatprep.mubr.f32.mxu0 0.0
        %4574 = vmatmul.mubr.f32.gmra.mxu0 %v3436
        %v4575 = vpop.f32.mrf.mxu0
        %v4576 = vadd.f32 %v2974, %v4575
        %v4577 = vpop.f32.mrf.mxu0
        %4578 = vmatprep.mubr.f32.mxu0 0.0
        %4579 = vmatmul.mubr.f32.gmra.mxu0 %v3439
        %v4580 = vpop.f32.mrf.mxu0
        %v4581 = vadd.f32 %v2974, %v4580
        %v4582 = vpop.f32.mrf.mxu0
        %4583 = vmatprep.mubr.f32.mxu0 0.0
        %4584 = vmatmul.mubr.f32.gmra.mxu0 %v3442
        %v4585 = vpop.f32.mrf.mxu0
        %v4586 = vadd.f32 %v2974, %v4585
        %v4587 = vpop.f32.mrf.mxu0
        %4588 = vmatprep.mubr.f32.mxu0 0.0
        %4589 = vmatmul.mubr.f32.gmra.mxu0 %v3445
        %v4590 = vpop.f32.mrf.mxu0
        %v4591 = vadd.f32 %v2974, %v4590
        %v4592 = vpop.f32.mrf.mxu0
        %4593 = vmatprep.mubr.f32.mxu0 0.0
        %4594 = vmatmul.mubr.f32.gmra.mxu0 %v3448
        %v4595 = vpop.f32.mrf.mxu0
        %v4596 = vadd.f32 %v2974, %v4595
        %v4597 = vpop.f32.mrf.mxu0
        %4598 = vmatprep.mubr.f32.mxu0 0.0
        %4599 = vmatmul.mubr.f32.gmra.mxu0 %v3451
        %v4600 = vpop.f32.mrf.mxu0
        %v4601 = vadd.f32 %v2974, %v4600
        %v4602 = vpop.f32.mrf.mxu0
        %4603 = vmatprep.mubr.f32.mxu0 0.0
        %4604 = vmatmul.mubr.f32.gmra.mxu0 %v3454
        %v4605 = vpop.f32.mrf.mxu0
        %v4606 = vadd.f32 %v2974, %v4605
        %v4607 = vpop.f32.mrf.mxu0
        %4608 = vmatprep.mubr.f32.mxu0 0.0
        %4609 = vmatmul.mubr.f32.gmra.mxu0 %v3457
        %v4610 = vpop.f32.mrf.mxu0
        %v4611 = vadd.f32 %v2974, %v4610
        %v4612 = vpop.f32.mrf.mxu0
        %4613 = vmatprep.mubr.f32.mxu0 0.0
        %4614 = vmatmul.mubr.f32.gmra.mxu0 %v3460
        %v4615 = vpop.f32.mrf.mxu0
        %v4616 = vadd.f32 %v2974, %v4615
        %v4617 = vpop.f32.mrf.mxu0
        %4618 = vmatprep.mubr.f32.mxu0 0.0
        %4619 = vmatmul.mubr.f32.gmra.mxu0 %v3463
        %v4620 = vpop.f32.mrf.mxu0
        %v4621 = vadd.f32 %v2974, %v4620
        %v4622 = vpop.f32.mrf.mxu0
        %4623 = vmatprep.mubr.f32.mxu0 0.0
        %4624 = vmatmul.mubr.f32.gmra.mxu0 %v3466
        %v4625 = vpop.f32.mrf.mxu0
        %v4626 = vadd.f32 %v2974, %v4625
        %v4627 = vpop.f32.mrf.mxu0
        %4628 = vmatprep.mubr.f32.mxu0 0.0
        %4629 = vmatmul.mubr.f32.gmra.mxu0 %v3469
        %v4630 = vpop.f32.mrf.mxu0
        %v4631 = vadd.f32 %v2974, %v4630
        %v4632 = vpop.f32.mrf.mxu0
        %4633 = vmatprep.mubr.f32.mxu0 0.0
        %4634 = vmatmul.mubr.f32.gmra.mxu0 %v3472
        %v4635 = vpop.f32.mrf.mxu0
        %v4636 = vadd.f32 %v2974, %v4635
        %v4637 = vpop.f32.mrf.mxu0
        %4638 = vmatprep.mubr.f32.mxu0 0.0
        %4639 = vmatmul.mubr.f32.gmra.mxu0 %v3475
        %v4640 = vpop.f32.mrf.mxu0
        %v4641 = vadd.f32 %v2974, %v4640
        %v4642 = vpop.f32.mrf.mxu0
        %4643 = vmatprep.mubr.f32.mxu0 0.0
        %4644 = vmatmul.mubr.f32.gmra.mxu0 %v3478
        %v4645 = vpop.f32.mrf.mxu0
        %v4646 = vadd.f32 %v2974, %v4645
        %v4647 = vpop.f32.mrf.mxu0
        %4648 = vmatprep.mubr.f32.mxu0 0.0
        %4649 = vmatmul.mubr.f32.gmra.mxu0 %v3481
        %v4650 = vpop.f32.mrf.mxu0
        %v4651 = vadd.f32 %v2974, %v4650
        %v4652 = vpop.f32.mrf.mxu0
        %4653 = vmatprep.mubr.f32.mxu0 0.0
        %4654 = vmatmul.mubr.f32.gmra.mxu0 %v3484
        %v4655 = vpop.f32.mrf.mxu0
        %v4656 = vadd.f32 %v2974, %v4655
        %v4657 = vpop.f32.mrf.mxu0
        %4658 = vmatprep.mubr.f32.mxu0 0.0
        %4659 = vmatmul.mubr.f32.gmra.mxu0 %v3487
        %v4660 = vpop.f32.mrf.mxu0
        %v4661 = vadd.f32 %v2974, %v4660
        %v4662 = vpop.f32.mrf.mxu0
        %4663 = vmatprep.mubr.f32.mxu0 0.0
        %4664 = vmatmul.mubr.f32.gmra.mxu0 %v3490
        %v4665 = vpop.f32.mrf.mxu0
        %v4666 = vadd.f32 %v2974, %v4665
        %v4667 = vpop.f32.mrf.mxu0
        %4668 = vmatprep.mubr.f32.mxu0 0.0
        %4669 = vmatmul.mubr.f32.gmra.mxu0 %v3493
        %v4670 = vpop.f32.mrf.mxu0
        %v4671 = vadd.f32 %v2974, %v4670
        %v4672 = vpop.f32.mrf.mxu0
        %4673 = vmatprep.mubr.f32.mxu0 0.0
        %4674 = vmatmul.mubr.f32.gmra.mxu0 %v3496
        %v4675 = vpop.f32.mrf.mxu0
        %v4676 = vadd.f32 %v2974, %v4675
        %v4677 = vpop.f32.mrf.mxu0
        %4678 = vmatprep.mubr.f32.mxu0 0.0
        %4679 = vmatmul.mubr.f32.gmra.mxu0 %v3499
        %v4680 = vpop.f32.mrf.mxu0
        %v4681 = vadd.f32 %v2974, %v4680
        %v4682 = vpop.f32.mrf.mxu0
        %4683 = vmatprep.mubr.f32.mxu0 0.0
        %4684 = vmatmul.mubr.f32.gmra.mxu0 %v3502
        %v4685 = vpop.f32.mrf.mxu0
        %v4686 = vadd.f32 %v2974, %v4685
        %v4687 = vpop.f32.mrf.mxu0
        %4688 = vmatprep.mubr.f32.mxu0 0.0
        %4689 = vmatmul.mubr.f32.gmra.mxu0 %v3505
        %v4690 = vpop.f32.mrf.mxu0
        %v4691 = vadd.f32 %v2974, %v4690
        %v4692 = vpop.f32.mrf.mxu0
        %4693 = vmatprep.mubr.f32.mxu0 0.0
        %4694 = vmatmul.mubr.f32.gmra.mxu0 %v3508
        %v4695 = vpop.f32.mrf.mxu0
        %v4696 = vadd.f32 %v2974, %v4695
        %v4697 = vpop.f32.mrf.mxu0
        %4698 = vmatprep.mubr.f32.mxu0 0.0
        %4699 = vmatmul.mubr.f32.gmra.mxu0 %v3511
        %v4700 = vpop.f32.mrf.mxu0
        %v4701 = vadd.f32 %v2974, %v4700
        %v4702 = vpop.f32.mrf.mxu0
        %4703 = vmatprep.mubr.f32.mxu0 0.0
        %4704 = vmatmul.mubr.f32.gmra.mxu0 %v3514
        %v4705 = vpop.f32.mrf.mxu0
        %v4706 = vadd.f32 %v2974, %v4705
        %v4707 = vpop.f32.mrf.mxu0
        %4708 = vmatprep.mubr.f32.mxu0 0.0
        %4709 = vmatmul.mubr.f32.gmra.mxu0 %v3517
        %v4710 = vpop.f32.mrf.mxu0
        %v4711 = vadd.f32 %v2974, %v4710
        %v4712 = vpop.f32.mrf.mxu0
        %4713 = vmatprep.mubr.f32.mxu0 0.0
        %4714 = vmatmul.mubr.f32.gmra.mxu0 %v3520
        %v4715 = vpop.f32.mrf.mxu0
        %v4716 = vadd.f32 %v2974, %v4715
        %v4717 = vpop.f32.mrf.mxu0
        %4718 = vmatprep.mubr.f32.mxu0 0.0
        %4719 = vmatmul.mubr.f32.gmra.mxu0 %v3523
        %v4720 = vpop.f32.mrf.mxu0
        %v4721 = vadd.f32 %v2974, %v4720
        %v4722 = vpop.f32.mrf.mxu0
        %4723 = vmatprep.mubr.f32.mxu0 0.0
        %4724 = vmatmul.mubr.f32.gmra.mxu0 %v3526
        %v4725 = vpop.f32.mrf.mxu0
        %v4726 = vadd.f32 %v2974, %v4725
        %v4727 = vpop.f32.mrf.mxu0
        %4728 = vmatprep.mubr.f32.mxu0 0.0
        %4729 = vmatmul.mubr.f32.gmra.mxu0 %v3529
        %v4730 = vpop.f32.mrf.mxu0
        %v4731 = vadd.f32 %v2974, %v4730
        %v4732 = vpop.f32.mrf.mxu0
        %4733 = vmatprep.mubr.f32.mxu0 0.0
        %4734 = vmatmul.mubr.f32.gmra.mxu0 %v3532
        %v4735 = vpop.f32.mrf.mxu0
        %v4736 = vadd.f32 %v2974, %v4735
        %v4737 = vpop.f32.mrf.mxu0
        %4738 = vmatprep.mubr.f32.mxu0 0.0
        %4739 = vmatmul.mubr.f32.gmra.mxu0 %v3535
        %v4740 = vpop.f32.mrf.mxu0
        %v4741 = vadd.f32 %v2974, %v4740
        %v4742 = vpop.f32.mrf.mxu0
        %4743 = vmatprep.mubr.f32.mxu0 0.0
        %4744 = vmatmul.mubr.f32.gmra.mxu0 %v3538
        %v4745 = vpop.f32.mrf.mxu0
        %v4746 = vadd.f32 %v2974, %v4745
        %v4747 = vpop.f32.mrf.mxu0
        %4748 = vmatprep.mubr.f32.mxu0 0.0
        %4749 = vmatmul.mubr.f32.gmra.mxu0 %v3541
        %v4750 = vpop.f32.mrf.mxu0
        %v4751 = vadd.f32 %v2974, %v4750
        %v4752 = vpop.f32.mrf.mxu0
        %4753 = vmatprep.mubr.f32.mxu0 0.0
        %4754 = vmatmul.mubr.f32.gmra.mxu0 %v3544
        %v4755 = vpop.f32.mrf.mxu0
        %v4756 = vadd.f32 %v2974, %v4755
        %v4757 = vpop.f32.mrf.mxu0
        %4758 = vmatprep.mubr.f32.mxu0 0.0
        %4759 = vmatmul.mubr.f32.gmra.mxu0 %v3547
        %v4760 = vpop.f32.mrf.mxu0
        %v4761 = vadd.f32 %v2974, %v4760
        %v4762 = vpop.f32.mrf.mxu0
        %4763 = vmatprep.mubr.f32.mxu0 0.0
        %4764 = vmatmul.mubr.f32.gmra.mxu0 %v3550
        %v4765 = vpop.f32.mrf.mxu0
        %v4766 = vadd.f32 %v2974, %v4765
        %v4767 = vpop.f32.mrf.mxu0
        %4768 = vmatprep.mubr.f32.mxu0 0.0
        %4769 = vmatmul.mubr.f32.gmra.mxu0 %v3553
        %v4770 = vpop.f32.mrf.mxu0
        %v4771 = vadd.f32 %v2974, %v4770
        %v4772 = vpop.f32.mrf.mxu0
        %4773 = vmatprep.mubr.f32.mxu0 0.0
        %4774 = vmatmul.mubr.f32.gmra.mxu0 %v3556
        %v4775 = vpop.f32.mrf.mxu0
        %v4776 = vadd.f32 %v2974, %v4775
        %v4777 = vpop.f32.mrf.mxu0
        %4778 = vmatprep.mubr.f32.mxu0 0.0
        %4779 = vmatmul.mubr.f32.gmra.mxu0 %v3559
        %v4780 = vpop.f32.mrf.mxu0
        %v4781 = vadd.f32 %v2974, %v4780
        %v4782 = vpop.f32.mrf.mxu0
        %4783 = vmatprep.mubr.f32.mxu0 0.0
        %4784 = vmatmul.mubr.f32.gmra.mxu0 %v3562
        %v4785 = vpop.f32.mrf.mxu0
        %v4786 = vadd.f32 %v2974, %v4785
        %v4787 = vpop.f32.mrf.mxu0
        %4788 = vmatprep.mubr.f32.mxu0 0.0
        %4789 = vmatmul.mubr.f32.gmra.mxu0 %v3565
        %v4790 = vpop.f32.mrf.mxu0
        %v4791 = vadd.f32 %v2974, %v4790
        %v4792 = vpop.f32.mrf.mxu0
        %4793 = vmatprep.mubr.f32.mxu0 0.0
        %4794 = vmatmul.mubr.f32.gmra.mxu0 %v3568
        %v4795 = vpop.f32.mrf.mxu0
        %v4796 = vadd.f32 %v2974, %v4795
        %v4797 = vpop.f32.mrf.mxu0
        %4798 = vmatprep.mubr.f32.mxu0 0.0
        %4799 = vmatmul.mubr.f32.gmra.mxu0 %v3571
        %v4800 = vpop.f32.mrf.mxu0
        %v4801 = vadd.f32 %v2974, %v4800
        %v4802 = vpop.f32.mrf.mxu0
        %4803 = vmatprep.mubr.f32.mxu0 0.0
        %4804 = vmatmul.mubr.f32.gmra.mxu0 %v3574
        %v4805 = vpop.f32.mrf.mxu0
        %v4806 = vadd.f32 %v2974, %v4805
        %v4807 = vpop.f32.mrf.mxu0
        %4808 = vmatprep.mubr.f32.mxu0 0.0
        %4809 = vmatmul.mubr.f32.gmra.mxu0 %v3577
        %v4810 = vpop.f32.mrf.mxu0
        %v4811 = vadd.f32 %v2974, %v4810
        %v4812 = vpop.f32.mrf.mxu0
        %4813 = vmatprep.mubr.f32.mxu0 0.0
        %4814 = vmatmul.mubr.f32.gmra.mxu0 %v3580
        %v4815 = vpop.f32.mrf.mxu0
        %v4816 = vadd.f32 %v2974, %v4815
        %v4817 = vpop.f32.mrf.mxu0
        %4818 = vmatprep.mubr.f32.mxu0 0.0
        %4819 = vmatmul.mubr.f32.gmra.mxu0 %v3583
        %v4820 = vpop.f32.mrf.mxu0
        %v4821 = vadd.f32 %v2974, %v4820
        %v4822 = vpop.f32.mrf.mxu0
        %4823 = vmatprep.mubr.f32.mxu0 0.0
        %4824 = vmatmul.mubr.f32.gmra.mxu0 %v3586
        %v4825 = vpop.f32.mrf.mxu0
        %v4826 = vadd.f32 %v2974, %v4825
        %v4827 = vpop.f32.mrf.mxu0
        %4828 = vmatprep.mubr.f32.mxu0 0.0
        %4829 = vmatmul.mubr.f32.gmra.mxu0 %v3589
        %v4830 = vpop.f32.mrf.mxu0
        %v4831 = vadd.f32 %v2974, %v4830
        %v4832 = vpop.f32.mrf.mxu0
        %4833 = vmatprep.mubr.f32.mxu0 0.0
        %4834 = vmatmul.mubr.f32.gmra.mxu0 %v3592
        %v4835 = vpop.f32.mrf.mxu0
        %v4836 = vadd.f32 %v2974, %v4835
        %v4837 = vpop.f32.mrf.mxu0
        %4838 = vmatprep.mubr.f32.mxu0 0.0
        %4839 = vmatmul.mubr.f32.gmra.mxu0 %v3595
        %v4840 = vpop.f32.mrf.mxu0
        %v4841 = vadd.f32 %v2974, %v4840
        %v4842 = vpop.f32.mrf.mxu0
        %4843 = vmatprep.mubr.f32.mxu0 0.0
        %4844 = vmatmul.mubr.f32.gmra.mxu0 %v3598
        %v4845 = vpop.f32.mrf.mxu0
        %v4846 = vadd.f32 %v2974, %v4845
        %v4847 = vpop.f32.mrf.mxu0
        %4848 = vmatprep.mubr.f32.mxu0 0.0
        %4849 = vmatmul.mubr.f32.gmra.mxu0 %v3601
        %v4850 = vpop.f32.mrf.mxu0
        %v4851 = vadd.f32 %v2974, %v4850
        %v4852 = vpop.f32.mrf.mxu0
        %4853 = vmatprep.mubr.f32.mxu0 0.0
        %4854 = vmatmul.mubr.f32.gmra.mxu0 %v3604
        %v4855 = vpop.f32.mrf.mxu0
        %v4856 = vadd.f32 %v2974, %v4855
        %v4857 = vpop.f32.mrf.mxu0
        %4858 = vmatprep.mubr.f32.mxu0 0.0
        %4859 = vmatmul.mubr.f32.gmra.mxu0 %v3607
        %v4860 = vpop.f32.mrf.mxu0
        %v4861 = vadd.f32 %v2974, %v4860
        %v4862 = vpop.f32.mrf.mxu0
        %4863 = vmatprep.mubr.f32.mxu0 0.0
        %4864 = vmatmul.mubr.f32.gmra.mxu0 %v3610
        %v4865 = vpop.f32.mrf.mxu0
        %v4866 = vadd.f32 %v2974, %v4865
        %v4867 = vpop.f32.mrf.mxu0
        %4868 = vmatprep.mubr.f32.mxu0 0.0
        %4869 = vmatmul.mubr.f32.gmra.mxu0 %v3613
        %v4870 = vpop.f32.mrf.mxu0
        %v4871 = vadd.f32 %v2974, %v4870
        %v4872 = vpop.f32.mrf.mxu0
        %4873 = vmatprep.mubr.f32.mxu0 0.0
        %4874 = vmatmul.mubr.f32.gmra.mxu0 %v3616
        %v4875 = vpop.f32.mrf.mxu0
        %v4876 = vadd.f32 %v2974, %v4875
        %v4877 = vpop.f32.mrf.mxu0
        %4878 = vmatprep.mubr.f32.mxu0 0.0
        %4879 = vmatmul.mubr.f32.gmra.mxu0 %v3619
        %v4880 = vpop.f32.mrf.mxu0
        %v4881 = vadd.f32 %v2974, %v4880
        %v4882 = vpop.f32.mrf.mxu0
        %4883 = vmatprep.mubr.f32.mxu0 0.0
        %4884 = vmatmul.mubr.f32.gmra.mxu0 %v3622
        %v4885 = vpop.f32.mrf.mxu0
        %v4886 = vadd.f32 %v2974, %v4885
        %v4887 = vpop.f32.mrf.mxu0
        %4888 = vmatprep.mubr.f32.mxu0 0.0
        %4889 = vmatmul.mubr.f32.gmra.mxu0 %v3625
        %v4890 = vpop.f32.mrf.mxu0
        %v4891 = vadd.f32 %v2974, %v4890
        %v4892 = vpop.f32.mrf.mxu0
        %4893 = vmatprep.mubr.f32.mxu0 0.0
        %4894 = vmatmul.mubr.f32.gmra.mxu0 %v3628
        %v4895 = vpop.f32.mrf.mxu0
        %v4896 = vadd.f32 %v2974, %v4895
        %v4897 = vpop.f32.mrf.mxu0
        %4898 = vmatprep.mubr.f32.mxu0 0.0
        %4899 = vmatmul.mubr.f32.gmra.mxu0 %v3631
        %v4900 = vpop.f32.mrf.mxu0
        %v4901 = vadd.f32 %v2974, %v4900
        %v4902 = vpop.f32.mrf.mxu0
        %4903 = vmatprep.mubr.f32.mxu0 0.0
        %4904 = vmatmul.mubr.f32.gmra.mxu0 %v3634
        %v4905 = vpop.f32.mrf.mxu0
        %v4906 = vadd.f32 %v2974, %v4905
        %v4907 = vpop.f32.mrf.mxu0
        %4908 = vmatprep.mubr.f32.mxu0 0.0
        %4909 = vmatmul.mubr.f32.gmra.mxu0 %v3637
        %v4910 = vpop.f32.mrf.mxu0
        %v4911 = vadd.f32 %v2974, %v4910
        %v4912 = vpop.f32.mrf.mxu0
        %4913 = vmatprep.mubr.f32.mxu0 0.0
        %4914 = vmatmul.mubr.f32.gmra.mxu0 %v3640
        %v4915 = vpop.f32.mrf.mxu0
        %v4916 = vadd.f32 %v2974, %v4915
        %v4917 = vpop.f32.mrf.mxu0
        %4918 = vmatprep.mubr.f32.mxu0 0.0
        %4919 = vmatmul.mubr.f32.gmra.mxu0 %v3643
        %v4920 = vpop.f32.mrf.mxu0
        %v4921 = vadd.f32 %v2974, %v4920
        %v4922 = vpop.f32.mrf.mxu0
        %4923 = vmatprep.mubr.f32.mxu0 0.0
        %4924 = vmatmul.mubr.f32.gmra.mxu0 %v3646
        %v4925 = vpop.f32.mrf.mxu0
        %v4926 = vadd.f32 %v2974, %v4925
        %v4927 = vpop.f32.mrf.mxu0
        %4928 = vmatprep.mubr.f32.mxu0 0.0
        %4929 = vmatmul.mubr.f32.gmra.mxu0 %v3649
        %v4930 = vpop.f32.mrf.mxu0
        %v4931 = vadd.f32 %v2974, %v4930
        %v4932 = vpop.f32.mrf.mxu0
        %4933 = vmatprep.mubr.f32.mxu0 0.0
        %4934 = vmatmul.mubr.f32.gmra.mxu0 %v3652
        %v4935 = vpop.f32.mrf.mxu0
        %v4936 = vadd.f32 %v2974, %v4935
        %v4937 = vpop.f32.mrf.mxu0
        %4938 = vmatprep.mubr.f32.mxu0 0.0
        %4939 = vmatmul.mubr.f32.gmra.mxu0 %v3655
        %v4940 = vpop.f32.mrf.mxu0
        %v4941 = vadd.f32 %v2974, %v4940
        %v4942 = vpop.f32.mrf.mxu0
        %4943 = vmatprep.mubr.f32.mxu0 0.0
        %4944 = vmatmul.mubr.f32.gmra.mxu0 %v3658
        %v4945 = vpop.f32.mrf.mxu0
        %v4946 = vadd.f32 %v2974, %v4945
        %v4947 = vpop.f32.mrf.mxu0
        %4948 = vmatprep.mubr.f32.mxu0 0.0
        %4949 = vmatmul.mubr.f32.gmra.mxu0 %v3661
        %v4950 = vpop.f32.mrf.mxu0
        %v4951 = vadd.f32 %v2974, %v4950
        %v4952 = vpop.f32.mrf.mxu0
        %4953 = vmatprep.mubr.f32.mxu0 0.0
        %4954 = vmatmul.mubr.f32.gmra.mxu0 %v3664
        %v4955 = vpop.f32.mrf.mxu0
        %v4956 = vadd.f32 %v2974, %v4955
        %v4957 = vpop.f32.mrf.mxu0
        %4958 = vmatprep.mubr.f32.mxu0 0.0
        %4959 = vmatmul.mubr.f32.gmra.mxu0 %v3667
        %v4960 = vpop.f32.mrf.mxu0
        %v4961 = vadd.f32 %v2974, %v4960
        %v4962 = vpop.f32.mrf.mxu0
        %4963 = vmatprep.mubr.f32.mxu0 0.0
        %4964 = vmatmul.mubr.f32.gmra.mxu0 %v3670
        %v4965 = vpop.f32.mrf.mxu0
        %v4966 = vadd.f32 %v2974, %v4965
        %v4967 = vpop.f32.mrf.mxu0
        %4968 = vmatprep.mubr.f32.mxu0 0.0
        %4969 = vmatmul.mubr.f32.gmra.mxu0 %v3673
        %v4970 = vpop.f32.mrf.mxu0
        %v4971 = vadd.f32 %v2974, %v4970
        %v4972 = vpop.f32.mrf.mxu0
        %4973 = vmatprep.mubr.f32.mxu0 0.0
        %4974 = vmatmul.mubr.f32.gmra.mxu0 %v3676
        %v4975 = vpop.f32.mrf.mxu0
        %v4976 = vadd.f32 %v2974, %v4975
        %v4977 = vpop.f32.mrf.mxu0
        %4978 = vmatprep.mubr.f32.mxu0 0.0
        %4979 = vmatmul.mubr.f32.gmra.mxu0 %v3679
        %v4980 = vpop.f32.mrf.mxu0
        %v4981 = vadd.f32 %v2974, %v4980
        %v4982 = vpop.f32.mrf.mxu0
        %4983 = vmatprep.mubr.f32.mxu0 0.0
        %4984 = vmatmul.mubr.f32.gmra.mxu0 %v3682
        %v4985 = vpop.f32.mrf.mxu0
        %v4986 = vadd.f32 %v2974, %v4985
        %v4987 = vpop.f32.mrf.mxu0
        %4988 = vmatprep.mubr.f32.mxu0 0.0
        %4989 = vmatmul.mubr.f32.gmra.mxu0 %v3685
        %v4990 = vpop.f32.mrf.mxu0
        %v4991 = vadd.f32 %v2974, %v4990
        %v4992 = vpop.f32.mrf.mxu0
        %4993 = vmatprep.mubr.f32.mxu0 0.0
        %4994 = vmatmul.mubr.f32.gmra.mxu0 %v3688
        %v4995 = vpop.f32.mrf.mxu0
        %v4996 = vadd.f32 %v2974, %v4995
        %v4997 = vpop.f32.mrf.mxu0
        %4998 = vmatprep.mubr.f32.mxu0 0.0
        %4999 = vmatmul.mubr.f32.gmra.mxu0 %v3691
        %v5000 = vpop.f32.mrf.mxu0
        %v5001 = vadd.f32 %v2974, %v5000
        %v5002 = vpop.f32.mrf.mxu0
        %5003 = vmatprep.mubr.f32.mxu0 0.0
        %5004 = vmatmul.mubr.f32.gmra.mxu0 %v3694
        %v5005 = vpop.f32.mrf.mxu0
        %v5006 = vadd.f32 %v2974, %v5005
        %v5007 = vpop.f32.mrf.mxu0
        %5008 = vmatprep.mubr.f32.mxu0 0.0
        %5009 = vmatmul.mubr.f32.gmra.mxu0 %v3697
        %v5010 = vpop.f32.mrf.mxu0
        %v5011 = vadd.f32 %v2974, %v5010
        %v5012 = vpop.f32.mrf.mxu0
        %5013 = vmatprep.mubr.f32.mxu0 0.0
        %5014 = vmatmul.mubr.f32.gmra.mxu0 %v3700
        %v5015 = vpop.f32.mrf.mxu0
        %v5016 = vadd.f32 %v2974, %v5015
        %v5017 = vpop.f32.mrf.mxu0
        %5018 = vmatprep.mubr.f32.mxu0 0.0
        %5019 = vmatmul.mubr.f32.gmra.mxu0 %v3703
        %v5020 = vpop.f32.mrf.mxu0
        %v5021 = vadd.f32 %v2974, %v5020
        %v5022 = vpop.f32.mrf.mxu0
        %5023 = vmatprep.mubr.f32.mxu0 0.0
        %5024 = vmatmul.mubr.f32.gmra.mxu0 %v3706
        %v5025 = vpop.f32.mrf.mxu0
        %v5026 = vadd.f32 %v2974, %v5025
        %v5027 = vpop.f32.mrf.mxu0
        %5028 = vmatprep.mubr.f32.mxu0 0.0
        %5029 = vmatmul.mubr.f32.gmra.mxu0 %v3709
        %v5030 = vpop.f32.mrf.mxu0
        %v5031 = vadd.f32 %v2974, %v5030
        %v5032 = vpop.f32.mrf.mxu0
        %5033 = vmatprep.mubr.f32.mxu0 0.0
        %5034 = vmatmul.mubr.f32.gmra.mxu0 %v3712
        %v5035 = vpop.f32.mrf.mxu0
        %v5036 = vadd.f32 %v2974, %v5035
        %v5037 = vpop.f32.mrf.mxu0
        %5038 = vmatprep.mubr.f32.mxu0 0.0
        %5039 = vmatmul.mubr.f32.gmra.mxu0 %v3715
        %v5040 = vpop.f32.mrf.mxu0
        %v5041 = vadd.f32 %v2974, %v5040
        %v5042 = vpop.f32.mrf.mxu0
        %5043 = vmatprep.mubr.f32.mxu0 0.0
        %5044 = vmatmul.mubr.f32.gmra.mxu0 %v3718
        %v5045 = vpop.f32.mrf.mxu0
        %v5046 = vadd.f32 %v2974, %v5045
        %v5047 = vpop.f32.mrf.mxu0
        %5048 = vmatprep.mubr.f32.mxu0 0.0
        %5049 = vmatmul.mubr.f32.gmra.mxu0 %v3721
        %v5050 = vpop.f32.mrf.mxu0
        %v5051 = vadd.f32 %v2974, %v5050
        %v5052 = vpop.f32.mrf.mxu0
        %5053 = vmatprep.mubr.f32.mxu0 0.0
        %5054 = vmatmul.mubr.f32.gmra.mxu0 %v3724
        %v5055 = vpop.f32.mrf.mxu0
        %v5056 = vadd.f32 %v2974, %v5055
        %v5057 = vpop.f32.mrf.mxu0
        %5058 = vmatprep.mubr.f32.mxu0 0.0
        %5059 = vmatmul.mubr.f32.gmra.mxu0 %v3727
        %v5060 = vpop.f32.mrf.mxu0
        %v5061 = vadd.f32 %v2974, %v5060
        %v5062 = vpop.f32.mrf.mxu0
        %5063 = vmatprep.mubr.f32.mxu0 0.0
        %5064 = vmatmul.mubr.f32.gmra.mxu0 %v3730
        %v5065 = vpop.f32.mrf.mxu0
        %v5066 = vadd.f32 %v2974, %v5065
        %v5067 = vpop.f32.mrf.mxu0
        %5068 = vmatprep.mubr.f32.mxu0 0.0
        %5069 = vmatmul.mubr.f32.gmra.mxu0 %v3733
        %v5070 = vpop.f32.mrf.mxu0
        %v5071 = vadd.f32 %v2974, %v5070
        %v5072 = vpop.f32.mrf.mxu0
        %5073 = vmatprep.mubr.f32.mxu0 0.0
        %5074 = vmatmul.mubr.f32.gmra.mxu0 %v3736
        %v5075 = vpop.f32.mrf.mxu0
        %v5076 = vadd.f32 %v2974, %v5075
        %v5077 = vpop.f32.mrf.mxu0
        %5078 = vmatprep.mubr.f32.mxu0 0.0
        %5079 = vmatmul.mubr.f32.gmra.mxu0 %v3739
        %v5080 = vpop.f32.mrf.mxu0
        %v5081 = vadd.f32 %v2974, %v5080
        %v5082 = vpop.f32.mrf.mxu0
        %5083 = vmatprep.mubr.f32.mxu0 0.0
        %5084 = vmatmul.mubr.f32.gmra.mxu0 %v3742
        %v5085 = vpop.f32.mrf.mxu0
        %v5086 = vadd.f32 %v2974, %v5085
        %v5087 = vpop.f32.mrf.mxu0
        %5088 = vdwg.mxu0
        %v5089 = vmax.f32 %v3811, 0.0
        %v5090 = vmax.f32 %v3816, 0.0
        %v5091 = vmax.f32 %v3821, 0.0
        %v5092 = vmax.f32 %v3826, 0.0
        %v5093 = vmax.f32 %v3831, 0.0
        %v5094 = vmax.f32 %v3836, 0.0
        %v5095 = vmax.f32 %v3841, 0.0
        %v5096 = vmax.f32 %v3846, 0.0
        %v5097 = vmax.f32 %v3851, 0.0
        %v5098 = vmax.f32 %v3856, 0.0
        %v5099 = vmax.f32 %v3861, 0.0
        %v5100 = vmax.f32 %v3866, 0.0
        %v5101 = vmax.f32 %v3871, 0.0
        %v5102 = vmax.f32 %v3876, 0.0
        %v5103 = vmax.f32 %v3881, 0.0
        %v5104 = vmax.f32 %v3886, 0.0
        %v5105 = vmax.f32 %v3891, 0.0
        %v5106 = vmax.f32 %v3896, 0.0
        %v5107 = vmax.f32 %v3901, 0.0
        %v5108 = vmax.f32 %v3906, 0.0
        %v5109 = vmax.f32 %v3911, 0.0
        %v5110 = vmax.f32 %v3916, 0.0
        %v5111 = vmax.f32 %v3921, 0.0
        %v5112 = vmax.f32 %v3926, 0.0
        %v5113 = vmax.f32 %v3931, 0.0
        %v5114 = vmax.f32 %v3936, 0.0
        %v5115 = vmax.f32 %v3941, 0.0
        %v5116 = vmax.f32 %v3946, 0.0
        %v5117 = vmax.f32 %v3951, 0.0
        %v5118 = vmax.f32 %v3956, 0.0
        %v5119 = vmax.f32 %v3961, 0.0
        %v5120 = vmax.f32 %v3966, 0.0
        %v5121 = vmax.f32 %v3971, 0.0
        %v5122 = vmax.f32 %v3976, 0.0
        %v5123 = vmax.f32 %v3981, 0.0
        %v5124 = vmax.f32 %v3986, 0.0
        %v5125 = vmax.f32 %v3991, 0.0
        %v5126 = vmax.f32 %v3996, 0.0
        %v5127 = vmax.f32 %v4001, 0.0
        %v5128 = vmax.f32 %v4006, 0.0
        %v5129 = vmax.f32 %v4011, 0.0
        %v5130 = vmax.f32 %v4016, 0.0
        %v5131 = vmax.f32 %v4021, 0.0
        %v5132 = vmax.f32 %v4026, 0.0
        %v5133 = vmax.f32 %v4031, 0.0
        %v5134 = vmax.f32 %v4036, 0.0
        %v5135 = vmax.f32 %v4041, 0.0
        %v5136 = vmax.f32 %v4046, 0.0
        %v5137 = vmax.f32 %v4051, 0.0
        %v5138 = vmax.f32 %v4056, 0.0
        %v5139 = vmax.f32 %v4061, 0.0
        %v5140 = vmax.f32 %v4066, 0.0
        %v5141 = vmax.f32 %v4071, 0.0
        %v5142 = vmax.f32 %v4076, 0.0
        %v5143 = vmax.f32 %v4081, 0.0
        %v5144 = vmax.f32 %v4086, 0.0
        %v5145 = vmax.f32 %v4091, 0.0
        %v5146 = vmax.f32 %v4096, 0.0
        %v5147 = vmax.f32 %v4101, 0.0
        %v5148 = vmax.f32 %v4106, 0.0
        %v5149 = vmax.f32 %v4111, 0.0
        %v5150 = vmax.f32 %v4116, 0.0
        %v5151 = vmax.f32 %v4121, 0.0
        %v5152 = vmax.f32 %v4126, 0.0
        %v5153 = vmax.f32 %v4131, 0.0
        %v5154 = vmax.f32 %v4136, 0.0
        %v5155 = vmax.f32 %v4141, 0.0
        %v5156 = vmax.f32 %v4146, 0.0
        %v5157 = vmax.f32 %v4151, 0.0
        %v5158 = vmax.f32 %v4156, 0.0
        %v5159 = vmax.f32 %v4161, 0.0
        %v5160 = vmax.f32 %v4166, 0.0
        %v5161 = vmax.f32 %v4171, 0.0
        %v5162 = vmax.f32 %v4176, 0.0
        %v5163 = vmax.f32 %v4181, 0.0
        %v5164 = vmax.f32 %v4186, 0.0
        %v5165 = vmax.f32 %v4191, 0.0
        %v5166 = vmax.f32 %v4196, 0.0
        %v5167 = vmax.f32 %v4201, 0.0
        %v5168 = vmax.f32 %v4206, 0.0
        %v5169 = vmax.f32 %v4211, 0.0
        %v5170 = vmax.f32 %v4216, 0.0
        %v5171 = vmax.f32 %v4221, 0.0
        %v5172 = vmax.f32 %v4226, 0.0
        %v5173 = vmax.f32 %v4231, 0.0
        %v5174 = vmax.f32 %v4236, 0.0
        %v5175 = vmax.f32 %v4241, 0.0
        %v5176 = vmax.f32 %v4246, 0.0
        %v5177 = vmax.f32 %v4251, 0.0
        %v5178 = vmax.f32 %v4256, 0.0
        %v5179 = vmax.f32 %v4261, 0.0
        %v5180 = vmax.f32 %v4266, 0.0
        %v5181 = vmax.f32 %v4271, 0.0
        %v5182 = vmax.f32 %v4276, 0.0
        %v5183 = vmax.f32 %v4281, 0.0
        %v5184 = vmax.f32 %v4286, 0.0
        %v5185 = vmax.f32 %v4291, 0.0
        %v5186 = vmax.f32 %v4296, 0.0
        %v5187 = vmax.f32 %v4301, 0.0
        %v5188 = vmax.f32 %v4306, 0.0
        %v5189 = vmax.f32 %v4311, 0.0
        %v5190 = vmax.f32 %v4316, 0.0
        %v5191 = vmax.f32 %v4321, 0.0
        %v5192 = vmax.f32 %v4326, 0.0
        %v5193 = vmax.f32 %v4331, 0.0
        %v5194 = vmax.f32 %v4336, 0.0
        %v5195 = vmax.f32 %v4341, 0.0
        %v5196 = vmax.f32 %v4346, 0.0
        %v5197 = vmax.f32 %v4351, 0.0
        %v5198 = vmax.f32 %v4356, 0.0
        %v5199 = vmax.f32 %v4361, 0.0
        %v5200 = vmax.f32 %v4366, 0.0
        %v5201 = vmax.f32 %v4371, 0.0
        %v5202 = vmax.f32 %v4376, 0.0
        %v5203 = vmax.f32 %v4381, 0.0
        %v5204 = vmax.f32 %v4386, 0.0
        %v5205 = vmax.f32 %v4391, 0.0
        %v5206 = vmax.f32 %v4396, 0.0
        %v5207 = vmax.f32 %v4401, 0.0
        %v5208 = vmax.f32 %v4406, 0.0
        %v5209 = vmax.f32 %v4411, 0.0
        %v5210 = vmax.f32 %v4416, 0.0
        %v5211 = vmax.f32 %v4421, 0.0
        %v5212 = vmax.f32 %v4426, 0.0
        %v5213 = vmax.f32 %v4431, 0.0
        %v5214 = vmax.f32 %v4436, 0.0
        %v5215 = vmax.f32 %v4441, 0.0
        %v5216 = vmax.f32 %v4446, 0.0
        %v5217 = vmax.f32 %v4451, 0.0
        %v5218 = vmax.f32 %v4456, 0.0
        %v5219 = vmax.f32 %v4461, 0.0
        %v5220 = vmax.f32 %v4466, 0.0
        %v5221 = vmax.f32 %v4471, 0.0
        %v5222 = vmax.f32 %v4476, 0.0
        %v5223 = vmax.f32 %v4481, 0.0
        %v5224 = vmax.f32 %v4486, 0.0
        %v5225 = vmax.f32 %v4491, 0.0
        %v5226 = vmax.f32 %v4496, 0.0
        %v5227 = vmax.f32 %v4501, 0.0
        %v5228 = vmax.f32 %v4506, 0.0
        %v5229 = vmax.f32 %v4511, 0.0
        %v5230 = vmax.f32 %v4516, 0.0
        %v5231 = vmax.f32 %v4521, 0.0
        %v5232 = vmax.f32 %v4526, 0.0
        %v5233 = vmax.f32 %v4531, 0.0
        %v5234 = vmax.f32 %v4536, 0.0
        %v5235 = vmax.f32 %v4541, 0.0
        %v5236 = vmax.f32 %v4546, 0.0
        %v5237 = vmax.f32 %v4551, 0.0
        %v5238 = vmax.f32 %v4556, 0.0
        %v5239 = vmax.f32 %v4561, 0.0
        %v5240 = vmax.f32 %v4566, 0.0
        %v5241 = vmax.f32 %v4571, 0.0
        %v5242 = vmax.f32 %v4576, 0.0
        %v5243 = vmax.f32 %v4581, 0.0
        %v5244 = vmax.f32 %v4586, 0.0
        %v5245 = vmax.f32 %v4591, 0.0
        %v5246 = vmax.f32 %v4596, 0.0
        %v5247 = vmax.f32 %v4601, 0.0
        %v5248 = vmax.f32 %v4606, 0.0
        %v5249 = vmax.f32 %v4611, 0.0
        %v5250 = vmax.f32 %v4616, 0.0
        %v5251 = vmax.f32 %v4621, 0.0
        %v5252 = vmax.f32 %v4626, 0.0
        %v5253 = vmax.f32 %v4631, 0.0
        %v5254 = vmax.f32 %v4636, 0.0
        %v5255 = vmax.f32 %v4641, 0.0
        %v5256 = vmax.f32 %v4646, 0.0
        %v5257 = vmax.f32 %v4651, 0.0
        %v5258 = vmax.f32 %v4656, 0.0
        %v5259 = vmax.f32 %v4661, 0.0
        %v5260 = vmax.f32 %v4666, 0.0
        %v5261 = vmax.f32 %v4671, 0.0
        %v5262 = vmax.f32 %v4676, 0.0
        %v5263 = vmax.f32 %v4681, 0.0
        %v5264 = vmax.f32 %v4686, 0.0
        %v5265 = vmax.f32 %v4691, 0.0
        %v5266 = vmax.f32 %v4696, 0.0
        %v5267 = vmax.f32 %v4701, 0.0
        %v5268 = vmax.f32 %v4706, 0.0
        %v5269 = vmax.f32 %v4711, 0.0
        %v5270 = vmax.f32 %v4716, 0.0
        %v5271 = vmax.f32 %v4721, 0.0
        %v5272 = vmax.f32 %v4726, 0.0
        %v5273 = vmax.f32 %v4731, 0.0
        %v5274 = vmax.f32 %v4736, 0.0
        %v5275 = vmax.f32 %v4741, 0.0
        %v5276 = vmax.f32 %v4746, 0.0
        %v5277 = vmax.f32 %v4751, 0.0
        %v5278 = vmax.f32 %v4756, 0.0
        %v5279 = vmax.f32 %v4761, 0.0
        %v5280 = vmax.f32 %v4766, 0.0
        %v5281 = vmax.f32 %v4771, 0.0
        %v5282 = vmax.f32 %v4776, 0.0
        %v5283 = vmax.f32 %v4781, 0.0
        %v5284 = vmax.f32 %v4786, 0.0
        %v5285 = vmax.f32 %v4791, 0.0
        %v5286 = vmax.f32 %v4796, 0.0
        %v5287 = vmax.f32 %v4801, 0.0
        %v5288 = vmax.f32 %v4806, 0.0
        %v5289 = vmax.f32 %v4811, 0.0
        %v5290 = vmax.f32 %v4816, 0.0
        %v5291 = vmax.f32 %v4821, 0.0
        %v5292 = vmax.f32 %v4826, 0.0
        %v5293 = vmax.f32 %v4831, 0.0
        %v5294 = vmax.f32 %v4836, 0.0
        %v5295 = vmax.f32 %v4841, 0.0
        %v5296 = vmax.f32 %v4846, 0.0
        %v5297 = vmax.f32 %v4851, 0.0
        %v5298 = vmax.f32 %v4856, 0.0
        %v5299 = vmax.f32 %v4861, 0.0
        %v5300 = vmax.f32 %v4866, 0.0
        %v5301 = vmax.f32 %v4871, 0.0
        %v5302 = vmax.f32 %v4876, 0.0
        %v5303 = vmax.f32 %v4881, 0.0
        %v5304 = vmax.f32 %v4886, 0.0
        %v5305 = vmax.f32 %v4891, 0.0
        %v5306 = vmax.f32 %v4896, 0.0
        %v5307 = vmax.f32 %v4901, 0.0
        %v5308 = vmax.f32 %v4906, 0.0
        %v5309 = vmax.f32 %v4911, 0.0
        %v5310 = vmax.f32 %v4916, 0.0
        %v5311 = vmax.f32 %v4921, 0.0
        %v5312 = vmax.f32 %v4926, 0.0
        %v5313 = vmax.f32 %v4931, 0.0
        %v5314 = vmax.f32 %v4936, 0.0
        %v5315 = vmax.f32 %v4941, 0.0
        %v5316 = vmax.f32 %v4946, 0.0
        %v5317 = vmax.f32 %v4951, 0.0
        %v5318 = vmax.f32 %v4956, 0.0
        %v5319 = vmax.f32 %v4961, 0.0
        %v5320 = vmax.f32 %v4966, 0.0
        %v5321 = vmax.f32 %v4971, 0.0
        %v5322 = vmax.f32 %v4976, 0.0
        %v5323 = vmax.f32 %v4981, 0.0
        %v5324 = vmax.f32 %v4986, 0.0
        %v5325 = vmax.f32 %v4991, 0.0
        %v5326 = vmax.f32 %v4996, 0.0
        %v5327 = vmax.f32 %v5001, 0.0
        %v5328 = vmax.f32 %v5006, 0.0
        %v5329 = vmax.f32 %v5011, 0.0
        %v5330 = vmax.f32 %v5016, 0.0
        %v5331 = vmax.f32 %v5021, 0.0
        %v5332 = vmax.f32 %v5026, 0.0
        %v5333 = vmax.f32 %v5031, 0.0
        %v5334 = vmax.f32 %v5036, 0.0
        %v5335 = vmax.f32 %v5041, 0.0
        %v5336 = vmax.f32 %v5046, 0.0
        %v5337 = vmax.f32 %v5051, 0.0
        %v5338 = vmax.f32 %v5056, 0.0
        %v5339 = vmax.f32 %v5061, 0.0
        %v5340 = vmax.f32 %v5066, 0.0
        %v5341 = vmax.f32 %v5071, 0.0
        %v5342 = vmax.f32 %v5076, 0.0
        %v5343 = vmax.f32 %v5081, 0.0
        %v5344 = vmax.f32 %v5086, 0.0
        %s5345 = scalar_lea.vmem %s3, 64
        %v5346 = vld [vmem:[%s5345] sm:$0xff]
        %v5347 = vld [vmem:[%s5345 + $0x8] sm:$0xff]
        %v5348 = vld [vmem:[%s5345 + $0x10] sm:$0xff]
        %v5349 = vld [vmem:[%s5345 + $0x18] sm:$0xff]
        %v5350 = vld [vmem:[%s5345 + $0x20] sm:$0xff]
        %v5351 = vld [vmem:[%s5345 + $0x28] sm:$0xff]
        %v5352 = vld [vmem:[%s5345 + $0x30] sm:$0xff]
        %v5353 = vld [vmem:[%s5345 + $0x38] sm:$0xff]
        %v5354 = vld [vmem:[%s4 + $0x2] sm:$0x1]
        %v5355 = vlaneseq
        %v5356 = vshrl.u32 %v5355, 7
        %v5357 = vsub.s32 0, %v5356
        %v5358 = vrot.slane %v5354, %v5357
        %v5360 = vsel %vm2975, %v5089, 0
        %v5363 = vsel %vm2975, %v5090, 0
        %v5366 = vsel %vm2975, %v5091, 0
        %v5369 = vsel %vm2975, %v5092, 0
        %v5372 = vsel %vm2975, %v5093, 0
        %v5375 = vsel %vm2975, %v5094, 0
        %v5378 = vsel %vm2975, %v5095, 0
        %v5381 = vsel %vm2975, %v5096, 0
        %v5384 = vsel %vm2975, %v5097, 0
        %v5387 = vsel %vm2975, %v5098, 0
        %v5390 = vsel %vm2975, %v5099, 0
        %v5393 = vsel %vm2975, %v5100, 0
        %v5396 = vsel %vm2975, %v5101, 0
        %v5399 = vsel %vm2975, %v5102, 0
        %v5402 = vsel %vm2975, %v5103, 0
        %v5405 = vsel %vm2975, %v5104, 0
        %v5408 = vsel %vm2975, %v5105, 0
        %v5411 = vsel %vm2975, %v5106, 0
        %v5414 = vsel %vm2975, %v5107, 0
        %v5417 = vsel %vm2975, %v5108, 0
        %v5420 = vsel %vm2975, %v5109, 0
        %v5423 = vsel %vm2975, %v5110, 0
        %v5426 = vsel %vm2975, %v5111, 0
        %v5429 = vsel %vm2975, %v5112, 0
        %v5432 = vsel %vm2975, %v5113, 0
        %v5435 = vsel %vm2975, %v5114, 0
        %v5438 = vsel %vm2975, %v5115, 0
        %v5441 = vsel %vm2975, %v5116, 0
        %v5444 = vsel %vm2975, %v5117, 0
        %v5447 = vsel %vm2975, %v5118, 0
        %v5450 = vsel %vm2975, %v5119, 0
        %v5453 = vsel %vm2975, %v5120, 0
        %v5456 = vsel %vm2975, %v5121, 0
        %v5459 = vsel %vm2975, %v5122, 0
        %v5462 = vsel %vm2975, %v5123, 0
        %v5465 = vsel %vm2975, %v5124, 0
        %v5468 = vsel %vm2975, %v5125, 0
        %v5471 = vsel %vm2975, %v5126, 0
        %v5474 = vsel %vm2975, %v5127, 0
        %v5477 = vsel %vm2975, %v5128, 0
        %v5480 = vsel %vm2975, %v5129, 0
        %v5483 = vsel %vm2975, %v5130, 0
        %v5486 = vsel %vm2975, %v5131, 0
        %v5489 = vsel %vm2975, %v5132, 0
        %v5492 = vsel %vm2975, %v5133, 0
        %v5495 = vsel %vm2975, %v5134, 0
        %v5498 = vsel %vm2975, %v5135, 0
        %v5501 = vsel %vm2975, %v5136, 0
        %v5504 = vsel %vm2975, %v5137, 0
        %v5507 = vsel %vm2975, %v5138, 0
        %v5510 = vsel %vm2975, %v5139, 0
        %v5513 = vsel %vm2975, %v5140, 0
        %v5516 = vsel %vm2975, %v5141, 0
        %v5519 = vsel %vm2975, %v5142, 0
        %v5522 = vsel %vm2975, %v5143, 0
        %v5525 = vsel %vm2975, %v5144, 0
        %v5528 = vsel %vm2975, %v5145, 0
        %v5531 = vsel %vm2975, %v5146, 0
        %v5534 = vsel %vm2975, %v5147, 0
        %v5537 = vsel %vm2975, %v5148, 0
        %v5540 = vsel %vm2975, %v5149, 0
        %v5543 = vsel %vm2975, %v5150, 0
        %v5546 = vsel %vm2975, %v5151, 0
        %v5549 = vsel %vm2975, %v5152, 0
        %v5552 = vsel %vm2975, %v5153, 0
        %v5555 = vsel %vm2975, %v5154, 0
        %v5558 = vsel %vm2975, %v5155, 0
        %v5561 = vsel %vm2975, %v5156, 0
        %v5564 = vsel %vm2975, %v5157, 0
        %v5567 = vsel %vm2975, %v5158, 0
        %v5570 = vsel %vm2975, %v5159, 0
        %v5573 = vsel %vm2975, %v5160, 0
        %v5576 = vsel %vm2975, %v5161, 0
        %v5579 = vsel %vm2975, %v5162, 0
        %v5582 = vsel %vm2975, %v5163, 0
        %v5585 = vsel %vm2975, %v5164, 0
        %v5588 = vsel %vm2975, %v5165, 0
        %v5591 = vsel %vm2975, %v5166, 0
        %v5594 = vsel %vm2975, %v5167, 0
        %v5597 = vsel %vm2975, %v5168, 0
        %v5600 = vsel %vm2975, %v5169, 0
        %v5603 = vsel %vm2975, %v5170, 0
        %v5606 = vsel %vm2975, %v5171, 0
        %v5609 = vsel %vm2975, %v5172, 0
        %v5612 = vsel %vm2975, %v5173, 0
        %v5615 = vsel %vm2975, %v5174, 0
        %v5618 = vsel %vm2975, %v5175, 0
        %v5621 = vsel %vm2975, %v5176, 0
        %v5624 = vsel %vm2975, %v5177, 0
        %v5627 = vsel %vm2975, %v5178, 0
        %v5630 = vsel %vm2975, %v5179, 0
        %v5633 = vsel %vm2975, %v5180, 0
        %v5636 = vsel %vm2975, %v5181, 0
        %v5639 = vsel %vm2975, %v5182, 0
        %v5642 = vsel %vm2975, %v5183, 0
        %v5645 = vsel %vm2975, %v5184, 0
        %v5648 = vsel %vm2975, %v5185, 0
        %v5651 = vsel %vm2975, %v5186, 0
        %v5654 = vsel %vm2975, %v5187, 0
        %v5657 = vsel %vm2975, %v5188, 0
        %v5660 = vsel %vm2975, %v5189, 0
        %v5663 = vsel %vm2975, %v5190, 0
        %v5666 = vsel %vm2975, %v5191, 0
        %v5669 = vsel %vm2975, %v5192, 0
        %v5672 = vsel %vm2975, %v5193, 0
        %v5675 = vsel %vm2975, %v5194, 0
        %v5678 = vsel %vm2975, %v5195, 0
        %v5681 = vsel %vm2975, %v5196, 0
        %v5684 = vsel %vm2975, %v5197, 0
        %v5687 = vsel %vm2975, %v5198, 0
        %v5690 = vsel %vm2975, %v5199, 0
        %v5693 = vsel %vm2975, %v5200, 0
        %v5696 = vsel %vm2975, %v5201, 0
        %v5699 = vsel %vm2975, %v5202, 0
        %v5702 = vsel %vm2975, %v5203, 0
        %v5705 = vsel %vm2975, %v5204, 0
        %v5708 = vsel %vm2975, %v5205, 0
        %v5711 = vsel %vm2975, %v5206, 0
        %v5714 = vsel %vm2975, %v5207, 0
        %v5717 = vsel %vm2975, %v5208, 0
        %v5720 = vsel %vm2975, %v5209, 0
        %v5723 = vsel %vm2975, %v5210, 0
        %v5726 = vsel %vm2975, %v5211, 0
        %v5729 = vsel %vm2975, %v5212, 0
        %v5732 = vsel %vm2975, %v5213, 0
        %v5735 = vsel %vm2975, %v5214, 0
        %v5738 = vsel %vm2975, %v5215, 0
        %v5741 = vsel %vm2975, %v5216, 0
        %v5744 = vsel %vm2975, %v5217, 0
        %v5747 = vsel %vm2975, %v5218, 0
        %v5750 = vsel %vm2975, %v5219, 0
        %v5753 = vsel %vm2975, %v5220, 0
        %v5756 = vsel %vm2975, %v5221, 0
        %v5759 = vsel %vm2975, %v5222, 0
        %v5762 = vsel %vm2975, %v5223, 0
        %v5765 = vsel %vm2975, %v5224, 0
        %v5768 = vsel %vm2975, %v5225, 0
        %v5771 = vsel %vm2975, %v5226, 0
        %v5774 = vsel %vm2975, %v5227, 0
        %v5777 = vsel %vm2975, %v5228, 0
        %v5780 = vsel %vm2975, %v5229, 0
        %v5783 = vsel %vm2975, %v5230, 0
        %v5786 = vsel %vm2975, %v5231, 0
        %v5789 = vsel %vm2975, %v5232, 0
        %v5792 = vsel %vm2975, %v5233, 0
        %v5795 = vsel %vm2975, %v5234, 0
        %v5798 = vsel %vm2975, %v5235, 0
        %v5801 = vsel %vm2975, %v5236, 0
        %v5804 = vsel %vm2975, %v5237, 0
        %v5807 = vsel %vm2975, %v5238, 0
        %v5810 = vsel %vm2975, %v5239, 0
        %v5813 = vsel %vm2975, %v5240, 0
        %v5816 = vsel %vm2975, %v5241, 0
        %v5819 = vsel %vm2975, %v5242, 0
        %v5822 = vsel %vm2975, %v5243, 0
        %v5825 = vsel %vm2975, %v5244, 0
        %v5828 = vsel %vm2975, %v5245, 0
        %v5831 = vsel %vm2975, %v5246, 0
        %v5834 = vsel %vm2975, %v5247, 0
        %v5837 = vsel %vm2975, %v5248, 0
        %v5840 = vsel %vm2975, %v5249, 0
        %v5843 = vsel %vm2975, %v5250, 0
        %v5846 = vsel %vm2975, %v5251, 0
        %v5849 = vsel %vm2975, %v5252, 0
        %v5852 = vsel %vm2975, %v5253, 0
        %v5855 = vsel %vm2975, %v5254, 0
        %v5858 = vsel %vm2975, %v5255, 0
        %v5861 = vsel %vm2975, %v5256, 0
        %v5864 = vsel %vm2975, %v5257, 0
        %v5867 = vsel %vm2975, %v5258, 0
        %v5870 = vsel %vm2975, %v5259, 0
        %v5873 = vsel %vm2975, %v5260, 0
        %v5876 = vsel %vm2975, %v5261, 0
        %v5879 = vsel %vm2975, %v5262, 0
        %v5882 = vsel %vm2975, %v5263, 0
        %v5885 = vsel %vm2975, %v5264, 0
        %v5888 = vsel %vm2975, %v5265, 0
        %v5891 = vsel %vm2975, %v5266, 0
        %v5894 = vsel %vm2975, %v5267, 0
        %v5897 = vsel %vm2975, %v5268, 0
        %v5900 = vsel %vm2975, %v5269, 0
        %v5903 = vsel %vm2975, %v5270, 0
        %v5906 = vsel %vm2975, %v5271, 0
        %v5909 = vsel %vm2975, %v5272, 0
        %v5912 = vsel %vm2975, %v5273, 0
        %v5915 = vsel %vm2975, %v5274, 0
        %v5918 = vsel %vm2975, %v5275, 0
        %v5921 = vsel %vm2975, %v5276, 0
        %v5924 = vsel %vm2975, %v5277, 0
        %v5927 = vsel %vm2975, %v5278, 0
        %v5930 = vsel %vm2975, %v5279, 0
        %v5933 = vsel %vm2975, %v5280, 0
        %v5936 = vsel %vm2975, %v5281, 0
        %v5939 = vsel %vm2975, %v5282, 0
        %v5942 = vsel %vm2975, %v5283, 0
        %v5945 = vsel %vm2975, %v5284, 0
        %v5948 = vsel %vm2975, %v5285, 0
        %v5951 = vsel %vm2975, %v5286, 0
        %v5954 = vsel %vm2975, %v5287, 0
        %v5957 = vsel %vm2975, %v5288, 0
        %v5960 = vsel %vm2975, %v5289, 0
        %v5963 = vsel %vm2975, %v5290, 0
        %v5966 = vsel %vm2975, %v5291, 0
        %v5969 = vsel %vm2975, %v5292, 0
        %v5972 = vsel %vm2975, %v5293, 0
        %v5975 = vsel %vm2975, %v5294, 0
        %v5978 = vsel %vm2975, %v5295, 0
        %v5981 = vsel %vm2975, %v5296, 0
        %v5984 = vsel %vm2975, %v5297, 0
        %v5987 = vsel %vm2975, %v5298, 0
        %v5990 = vsel %vm2975, %v5299, 0
        %v5993 = vsel %vm2975, %v5300, 0
        %v5996 = vsel %vm2975, %v5301, 0
        %v5999 = vsel %vm2975, %v5302, 0
        %v6002 = vsel %vm2975, %v5303, 0
        %v6005 = vsel %vm2975, %v5304, 0
        %v6008 = vsel %vm2975, %v5305, 0
        %v6011 = vsel %vm2975, %v5306, 0
        %v6014 = vsel %vm2975, %v5307, 0
        %v6017 = vsel %vm2975, %v5308, 0
        %v6020 = vsel %vm2975, %v5309, 0
        %v6023 = vsel %vm2975, %v5310, 0
        %v6026 = vsel %vm2975, %v5311, 0
        %v6029 = vsel %vm2975, %v5312, 0
        %v6032 = vsel %vm2975, %v5313, 0
        %v6035 = vsel %vm2975, %v5314, 0
        %v6038 = vsel %vm2975, %v5315, 0
        %v6041 = vsel %vm2975, %v5316, 0
        %v6044 = vsel %vm2975, %v5317, 0
        %v6047 = vsel %vm2975, %v5318, 0
        %v6050 = vsel %vm2975, %v5319, 0
        %v6053 = vsel %vm2975, %v5320, 0
        %v6056 = vsel %vm2975, %v5321, 0
        %v6059 = vsel %vm2975, %v5322, 0
        %v6062 = vsel %vm2975, %v5323, 0
        %v6065 = vsel %vm2975, %v5324, 0
        %v6068 = vsel %vm2975, %v5325, 0
        %v6071 = vsel %vm2975, %v5326, 0
        %v6074 = vsel %vm2975, %v5327, 0
        %v6077 = vsel %vm2975, %v5328, 0
        %v6080 = vsel %vm2975, %v5329, 0
        %v6083 = vsel %vm2975, %v5330, 0
        %v6086 = vsel %vm2975, %v5331, 0
        %v6089 = vsel %vm2975, %v5332, 0
        %v6092 = vsel %vm2975, %v5333, 0
        %v6095 = vsel %vm2975, %v5334, 0
        %v6098 = vsel %vm2975, %v5335, 0
        %v6101 = vsel %vm2975, %v5336, 0
        %v6104 = vsel %vm2975, %v5337, 0
        %v6107 = vsel %vm2975, %v5338, 0
        %v6110 = vsel %vm2975, %v5339, 0
        %v6113 = vsel %vm2975, %v5340, 0
        %v6116 = vsel %vm2975, %v5341, 0
        %v6119 = vsel %vm2975, %v5342, 0
        %v6122 = vsel %vm2975, %v5343, 0
        %v6125 = vsel %vm2975, %v5344, 0
        %6127 = vmatprep.subr.mxu0 0.0
        %6128 = vmatpush1.msra.mxu0 0.0
        %6129 = vmatprep.subr.mxu0 0.0
        %6130 = vmatpush1.msra.mxu0 0.0
        %6131 = vmatprep.subr.mxu0 0.0
        %6132 = vmatpush1.msra.mxu0 0.0
        %6133 = vmatprep.subr.mxu0 0.0
        %6134 = vmatpush1.msra.mxu0 0.0
        %6135 = vmatprep.subr.mxu0 0.0
        %6136 = vmatpush1.msra.mxu0 0.0
        %6137 = vmatprep.subr.mxu0 0.0
        %6138 = vmatpush1.msra.mxu0 0.0
        %6139 = vmatprep.subr.mxu0 0.0
        %6140 = vmatpush1.msra.mxu0 0.0
        %6141 = vmatprep.subr.mxu0 0.0
        %6142 = vmatpush1.msra.mxu0 0.0
        %6143 = vmatprep.subr.mxu0 0.0
        %6144 = vmatpush1.msra.mxu0 %v5353
        %6145 = vmatprep.subr.mxu0 0.0
        %6146 = vmatpush1.msra.mxu0 %v5352
        %6147 = vmatprep.subr.mxu0 0.0
        %6148 = vmatpush1.msra.mxu0 %v5351
        %6149 = vmatprep.subr.mxu0 0.0
        %6150 = vmatpush1.msra.mxu0 %v5350
        %6151 = vmatprep.subr.mxu0 0.0
        %6152 = vmatpush1.msra.mxu0 %v5349
        %6153 = vmatprep.subr.mxu0 0.0
        %6154 = vmatpush1.msra.mxu0 %v5348
        %6155 = vmatprep.subr.mxu0 0.0
        %6156 = vmatpush1.msra.mxu0 %v5347
        %6157 = vmatprep.subr.mxu0 0.0
        %6158 = vmatpush1.msra.mxu0 %v5346
        %6159 = vmatprep.subr.mxu0 0.0
        %6160 = vmatpush2.msra.mxu0 0.0
        %6161 = vmatprep.subr.mxu0 0.0
        %6162 = vmatpush2.msra.mxu0 0.0
        %6163 = vmatprep.subr.mxu0 0.0
        %6164 = vmatpush2.msra.mxu0 0.0
        %6165 = vmatprep.subr.mxu0 0.0
        %6166 = vmatpush2.msra.mxu0 0.0
        %6167 = vmatprep.subr.mxu0 0.0
        %6168 = vmatpush2.msra.mxu0 0.0
        %6169 = vmatprep.subr.mxu0 0.0
        %6170 = vmatpush2.msra.mxu0 0.0
        %6171 = vmatprep.subr.mxu0 0.0
        %6172 = vmatpush2.msra.mxu0 0.0
        %6173 = vmatprep.subr.mxu0 0.0
        %6174 = vmatpush2.msra.mxu0 0.0
        %6175 = vmatprep.subr.mxu0 0.0
        %6176 = vmatpush2.msra.mxu0 0.0
        %6177 = vmatprep.subr.mxu0 0.0
        %6178 = vmatpush2.msra.mxu0 0.0
        %6179 = vmatprep.subr.mxu0 0.0
        %6180 = vmatpush2.msra.mxu0 0.0
        %6181 = vmatprep.subr.mxu0 0.0
        %6182 = vmatpush2.msra.mxu0 0.0
        %6183 = vmatprep.subr.mxu0 0.0
        %6184 = vmatpush2.msra.mxu0 0.0
        %6185 = vmatprep.subr.mxu0 0.0
        %6186 = vmatpush2.msra.mxu0 0.0
        %6187 = vmatprep.subr.mxu0 0.0
        %6188 = vmatpush2.msra.mxu0 0.0
        %6189 = vmatprep.subr.mxu0 0.0
        %6190 = vmatpush2.msra.mxu0 0.0
        %6191 = vmatprep.mubr.f32.mxu0 0.0
        %6192 = vmatmul.mubr.f32.gmra.mxu0 %v5360
        %v6193 = vpop.f32.mrf.mxu0
        %v6194 = vadd.f32 %v5358, %v6193
        %v6195 = vpop.f32.mrf.mxu0
        %6196 = vmatprep.mubr.f32.mxu0 0.0
        %6197 = vmatmul.mubr.f32.gmra.mxu0 %v5363
        %v6198 = vpop.f32.mrf.mxu0
        %v6199 = vadd.f32 %v5358, %v6198
        %v6200 = vpop.f32.mrf.mxu0
        %6201 = vmatprep.mubr.f32.mxu0 0.0
        %6202 = vmatmul.mubr.f32.gmra.mxu0 %v5366
        %v6203 = vpop.f32.mrf.mxu0
        %v6204 = vadd.f32 %v5358, %v6203
        %v6205 = vpop.f32.mrf.mxu0
        %6206 = vmatprep.mubr.f32.mxu0 0.0
        %6207 = vmatmul.mubr.f32.gmra.mxu0 %v5369
        %v6208 = vpop.f32.mrf.mxu0
        %v6209 = vadd.f32 %v5358, %v6208
        %v6210 = vpop.f32.mrf.mxu0
        %6211 = vmatprep.mubr.f32.mxu0 0.0
        %6212 = vmatmul.mubr.f32.gmra.mxu0 %v5372
        %v6213 = vpop.f32.mrf.mxu0
        %v6214 = vadd.f32 %v5358, %v6213
        %v6215 = vpop.f32.mrf.mxu0
        %6216 = vmatprep.mubr.f32.mxu0 0.0
        %6217 = vmatmul.mubr.f32.gmra.mxu0 %v5375
        %v6218 = vpop.f32.mrf.mxu0
        %v6219 = vadd.f32 %v5358, %v6218
        %v6220 = vpop.f32.mrf.mxu0
        %6221 = vmatprep.mubr.f32.mxu0 0.0
        %6222 = vmatmul.mubr.f32.gmra.mxu0 %v5378
        %v6223 = vpop.f32.mrf.mxu0
        %v6224 = vadd.f32 %v5358, %v6223
        %v6225 = vpop.f32.mrf.mxu0
        %6226 = vmatprep.mubr.f32.mxu0 0.0
        %6227 = vmatmul.mubr.f32.gmra.mxu0 %v5381
        %v6228 = vpop.f32.mrf.mxu0
        %v6229 = vadd.f32 %v5358, %v6228
        %v6230 = vpop.f32.mrf.mxu0
        %6231 = vmatprep.mubr.f32.mxu0 0.0
        %6232 = vmatmul.mubr.f32.gmra.mxu0 %v5384
        %v6233 = vpop.f32.mrf.mxu0
        %v6234 = vadd.f32 %v5358, %v6233
        %v6235 = vpop.f32.mrf.mxu0
        %6236 = vmatprep.mubr.f32.mxu0 0.0
        %6237 = vmatmul.mubr.f32.gmra.mxu0 %v5387
        %v6238 = vpop.f32.mrf.mxu0
        %v6239 = vadd.f32 %v5358, %v6238
        %v6240 = vpop.f32.mrf.mxu0
        %6241 = vmatprep.mubr.f32.mxu0 0.0
        %6242 = vmatmul.mubr.f32.gmra.mxu0 %v5390
        %v6243 = vpop.f32.mrf.mxu0
        %v6244 = vadd.f32 %v5358, %v6243
        %v6245 = vpop.f32.mrf.mxu0
        %6246 = vmatprep.mubr.f32.mxu0 0.0
        %6247 = vmatmul.mubr.f32.gmra.mxu0 %v5393
        %v6248 = vpop.f32.mrf.mxu0
        %v6249 = vadd.f32 %v5358, %v6248
        %v6250 = vpop.f32.mrf.mxu0
        %6251 = vmatprep.mubr.f32.mxu0 0.0
        %6252 = vmatmul.mubr.f32.gmra.mxu0 %v5396
        %v6253 = vpop.f32.mrf.mxu0
        %v6254 = vadd.f32 %v5358, %v6253
        %v6255 = vpop.f32.mrf.mxu0
        %6256 = vmatprep.mubr.f32.mxu0 0.0
        %6257 = vmatmul.mubr.f32.gmra.mxu0 %v5399
        %v6258 = vpop.f32.mrf.mxu0
        %v6259 = vadd.f32 %v5358, %v6258
        %v6260 = vpop.f32.mrf.mxu0
        %6261 = vmatprep.mubr.f32.mxu0 0.0
        %6262 = vmatmul.mubr.f32.gmra.mxu0 %v5402
        %v6263 = vpop.f32.mrf.mxu0
        %v6264 = vadd.f32 %v5358, %v6263
        %v6265 = vpop.f32.mrf.mxu0
        %6266 = vmatprep.mubr.f32.mxu0 0.0
        %6267 = vmatmul.mubr.f32.gmra.mxu0 %v5405
        %v6268 = vpop.f32.mrf.mxu0
        %v6269 = vadd.f32 %v5358, %v6268
        %v6270 = vpop.f32.mrf.mxu0
        %6271 = vmatprep.mubr.f32.mxu0 0.0
        %6272 = vmatmul.mubr.f32.gmra.mxu0 %v5408
        %v6273 = vpop.f32.mrf.mxu0
        %v6274 = vadd.f32 %v5358, %v6273
        %v6275 = vpop.f32.mrf.mxu0
        %6276 = vmatprep.mubr.f32.mxu0 0.0
        %6277 = vmatmul.mubr.f32.gmra.mxu0 %v5411
        %v6278 = vpop.f32.mrf.mxu0
        %v6279 = vadd.f32 %v5358, %v6278
        %v6280 = vpop.f32.mrf.mxu0
        %6281 = vmatprep.mubr.f32.mxu0 0.0
        %6282 = vmatmul.mubr.f32.gmra.mxu0 %v5414
        %v6283 = vpop.f32.mrf.mxu0
        %v6284 = vadd.f32 %v5358, %v6283
        %v6285 = vpop.f32.mrf.mxu0
        %6286 = vmatprep.mubr.f32.mxu0 0.0
        %6287 = vmatmul.mubr.f32.gmra.mxu0 %v5417
        %v6288 = vpop.f32.mrf.mxu0
        %v6289 = vadd.f32 %v5358, %v6288
        %v6290 = vpop.f32.mrf.mxu0
        %6291 = vmatprep.mubr.f32.mxu0 0.0
        %6292 = vmatmul.mubr.f32.gmra.mxu0 %v5420
        %v6293 = vpop.f32.mrf.mxu0
        %v6294 = vadd.f32 %v5358, %v6293
        %v6295 = vpop.f32.mrf.mxu0
        %6296 = vmatprep.mubr.f32.mxu0 0.0
        %6297 = vmatmul.mubr.f32.gmra.mxu0 %v5423
        %v6298 = vpop.f32.mrf.mxu0
        %v6299 = vadd.f32 %v5358, %v6298
        %v6300 = vpop.f32.mrf.mxu0
        %6301 = vmatprep.mubr.f32.mxu0 0.0
        %6302 = vmatmul.mubr.f32.gmra.mxu0 %v5426
        %v6303 = vpop.f32.mrf.mxu0
        %v6304 = vadd.f32 %v5358, %v6303
        %v6305 = vpop.f32.mrf.mxu0
        %6306 = vmatprep.mubr.f32.mxu0 0.0
        %6307 = vmatmul.mubr.f32.gmra.mxu0 %v5429
        %v6308 = vpop.f32.mrf.mxu0
        %v6309 = vadd.f32 %v5358, %v6308
        %v6310 = vpop.f32.mrf.mxu0
        %6311 = vmatprep.mubr.f32.mxu0 0.0
        %6312 = vmatmul.mubr.f32.gmra.mxu0 %v5432
        %v6313 = vpop.f32.mrf.mxu0
        %v6314 = vadd.f32 %v5358, %v6313
        %v6315 = vpop.f32.mrf.mxu0
        %6316 = vmatprep.mubr.f32.mxu0 0.0
        %6317 = vmatmul.mubr.f32.gmra.mxu0 %v5435
        %v6318 = vpop.f32.mrf.mxu0
        %v6319 = vadd.f32 %v5358, %v6318
        %v6320 = vpop.f32.mrf.mxu0
        %6321 = vmatprep.mubr.f32.mxu0 0.0
        %6322 = vmatmul.mubr.f32.gmra.mxu0 %v5438
        %v6323 = vpop.f32.mrf.mxu0
        %v6324 = vadd.f32 %v5358, %v6323
        %v6325 = vpop.f32.mrf.mxu0
        %6326 = vmatprep.mubr.f32.mxu0 0.0
        %6327 = vmatmul.mubr.f32.gmra.mxu0 %v5441
        %v6328 = vpop.f32.mrf.mxu0
        %v6329 = vadd.f32 %v5358, %v6328
        %v6330 = vpop.f32.mrf.mxu0
        %6331 = vmatprep.mubr.f32.mxu0 0.0
        %6332 = vmatmul.mubr.f32.gmra.mxu0 %v5444
        %v6333 = vpop.f32.mrf.mxu0
        %v6334 = vadd.f32 %v5358, %v6333
        %v6335 = vpop.f32.mrf.mxu0
        %6336 = vmatprep.mubr.f32.mxu0 0.0
        %6337 = vmatmul.mubr.f32.gmra.mxu0 %v5447
        %v6338 = vpop.f32.mrf.mxu0
        %v6339 = vadd.f32 %v5358, %v6338
        %v6340 = vpop.f32.mrf.mxu0
        %6341 = vmatprep.mubr.f32.mxu0 0.0
        %6342 = vmatmul.mubr.f32.gmra.mxu0 %v5450
        %v6343 = vpop.f32.mrf.mxu0
        %v6344 = vadd.f32 %v5358, %v6343
        %v6345 = vpop.f32.mrf.mxu0
        %6346 = vmatprep.mubr.f32.mxu0 0.0
        %6347 = vmatmul.mubr.f32.gmra.mxu0 %v5453
        %v6348 = vpop.f32.mrf.mxu0
        %v6349 = vadd.f32 %v5358, %v6348
        %v6350 = vpop.f32.mrf.mxu0
        %6351 = vmatprep.mubr.f32.mxu0 0.0
        %6352 = vmatmul.mubr.f32.gmra.mxu0 %v5456
        %v6353 = vpop.f32.mrf.mxu0
        %v6354 = vadd.f32 %v5358, %v6353
        %v6355 = vpop.f32.mrf.mxu0
        %6356 = vmatprep.mubr.f32.mxu0 0.0
        %6357 = vmatmul.mubr.f32.gmra.mxu0 %v5459
        %v6358 = vpop.f32.mrf.mxu0
        %v6359 = vadd.f32 %v5358, %v6358
        %v6360 = vpop.f32.mrf.mxu0
        %6361 = vmatprep.mubr.f32.mxu0 0.0
        %6362 = vmatmul.mubr.f32.gmra.mxu0 %v5462
        %v6363 = vpop.f32.mrf.mxu0
        %v6364 = vadd.f32 %v5358, %v6363
        %v6365 = vpop.f32.mrf.mxu0
        %6366 = vmatprep.mubr.f32.mxu0 0.0
        %6367 = vmatmul.mubr.f32.gmra.mxu0 %v5465
        %v6368 = vpop.f32.mrf.mxu0
        %v6369 = vadd.f32 %v5358, %v6368
        %v6370 = vpop.f32.mrf.mxu0
        %6371 = vmatprep.mubr.f32.mxu0 0.0
        %6372 = vmatmul.mubr.f32.gmra.mxu0 %v5468
        %v6373 = vpop.f32.mrf.mxu0
        %v6374 = vadd.f32 %v5358, %v6373
        %v6375 = vpop.f32.mrf.mxu0
        %6376 = vmatprep.mubr.f32.mxu0 0.0
        %6377 = vmatmul.mubr.f32.gmra.mxu0 %v5471
        %v6378 = vpop.f32.mrf.mxu0
        %v6379 = vadd.f32 %v5358, %v6378
        %v6380 = vpop.f32.mrf.mxu0
        %6381 = vmatprep.mubr.f32.mxu0 0.0
        %6382 = vmatmul.mubr.f32.gmra.mxu0 %v5474
        %v6383 = vpop.f32.mrf.mxu0
        %v6384 = vadd.f32 %v5358, %v6383
        %v6385 = vpop.f32.mrf.mxu0
        %6386 = vmatprep.mubr.f32.mxu0 0.0
        %6387 = vmatmul.mubr.f32.gmra.mxu0 %v5477
        %v6388 = vpop.f32.mrf.mxu0
        %v6389 = vadd.f32 %v5358, %v6388
        %v6390 = vpop.f32.mrf.mxu0
        %6391 = vmatprep.mubr.f32.mxu0 0.0
        %6392 = vmatmul.mubr.f32.gmra.mxu0 %v5480
        %v6393 = vpop.f32.mrf.mxu0
        %v6394 = vadd.f32 %v5358, %v6393
        %v6395 = vpop.f32.mrf.mxu0
        %6396 = vmatprep.mubr.f32.mxu0 0.0
        %6397 = vmatmul.mubr.f32.gmra.mxu0 %v5483
        %v6398 = vpop.f32.mrf.mxu0
        %v6399 = vadd.f32 %v5358, %v6398
        %v6400 = vpop.f32.mrf.mxu0
        %6401 = vmatprep.mubr.f32.mxu0 0.0
        %6402 = vmatmul.mubr.f32.gmra.mxu0 %v5486
        %v6403 = vpop.f32.mrf.mxu0
        %v6404 = vadd.f32 %v5358, %v6403
        %v6405 = vpop.f32.mrf.mxu0
        %6406 = vmatprep.mubr.f32.mxu0 0.0
        %6407 = vmatmul.mubr.f32.gmra.mxu0 %v5489
        %v6408 = vpop.f32.mrf.mxu0
        %v6409 = vadd.f32 %v5358, %v6408
        %v6410 = vpop.f32.mrf.mxu0
        %6411 = vmatprep.mubr.f32.mxu0 0.0
        %6412 = vmatmul.mubr.f32.gmra.mxu0 %v5492
        %v6413 = vpop.f32.mrf.mxu0
        %v6414 = vadd.f32 %v5358, %v6413
        %v6415 = vpop.f32.mrf.mxu0
        %6416 = vmatprep.mubr.f32.mxu0 0.0
        %6417 = vmatmul.mubr.f32.gmra.mxu0 %v5495
        %v6418 = vpop.f32.mrf.mxu0
        %v6419 = vadd.f32 %v5358, %v6418
        %v6420 = vpop.f32.mrf.mxu0
        %6421 = vmatprep.mubr.f32.mxu0 0.0
        %6422 = vmatmul.mubr.f32.gmra.mxu0 %v5498
        %v6423 = vpop.f32.mrf.mxu0
        %v6424 = vadd.f32 %v5358, %v6423
        %v6425 = vpop.f32.mrf.mxu0
        %6426 = vmatprep.mubr.f32.mxu0 0.0
        %6427 = vmatmul.mubr.f32.gmra.mxu0 %v5501
        %v6428 = vpop.f32.mrf.mxu0
        %v6429 = vadd.f32 %v5358, %v6428
        %v6430 = vpop.f32.mrf.mxu0
        %6431 = vmatprep.mubr.f32.mxu0 0.0
        %6432 = vmatmul.mubr.f32.gmra.mxu0 %v5504
        %v6433 = vpop.f32.mrf.mxu0
        %v6434 = vadd.f32 %v5358, %v6433
        %v6435 = vpop.f32.mrf.mxu0
        %6436 = vmatprep.mubr.f32.mxu0 0.0
        %6437 = vmatmul.mubr.f32.gmra.mxu0 %v5507
        %v6438 = vpop.f32.mrf.mxu0
        %v6439 = vadd.f32 %v5358, %v6438
        %v6440 = vpop.f32.mrf.mxu0
        %6441 = vmatprep.mubr.f32.mxu0 0.0
        %6442 = vmatmul.mubr.f32.gmra.mxu0 %v5510
        %v6443 = vpop.f32.mrf.mxu0
        %v6444 = vadd.f32 %v5358, %v6443
        %v6445 = vpop.f32.mrf.mxu0
        %6446 = vmatprep.mubr.f32.mxu0 0.0
        %6447 = vmatmul.mubr.f32.gmra.mxu0 %v5513
        %v6448 = vpop.f32.mrf.mxu0
        %v6449 = vadd.f32 %v5358, %v6448
        %v6450 = vpop.f32.mrf.mxu0
        %6451 = vmatprep.mubr.f32.mxu0 0.0
        %6452 = vmatmul.mubr.f32.gmra.mxu0 %v5516
        %v6453 = vpop.f32.mrf.mxu0
        %v6454 = vadd.f32 %v5358, %v6453
        %v6455 = vpop.f32.mrf.mxu0
        %6456 = vmatprep.mubr.f32.mxu0 0.0
        %6457 = vmatmul.mubr.f32.gmra.mxu0 %v5519
        %v6458 = vpop.f32.mrf.mxu0
        %v6459 = vadd.f32 %v5358, %v6458
        %v6460 = vpop.f32.mrf.mxu0
        %6461 = vmatprep.mubr.f32.mxu0 0.0
        %6462 = vmatmul.mubr.f32.gmra.mxu0 %v5522
        %v6463 = vpop.f32.mrf.mxu0
        %v6464 = vadd.f32 %v5358, %v6463
        %v6465 = vpop.f32.mrf.mxu0
        %6466 = vmatprep.mubr.f32.mxu0 0.0
        %6467 = vmatmul.mubr.f32.gmra.mxu0 %v5525
        %v6468 = vpop.f32.mrf.mxu0
        %v6469 = vadd.f32 %v5358, %v6468
        %v6470 = vpop.f32.mrf.mxu0
        %6471 = vmatprep.mubr.f32.mxu0 0.0
        %6472 = vmatmul.mubr.f32.gmra.mxu0 %v5528
        %v6473 = vpop.f32.mrf.mxu0
        %v6474 = vadd.f32 %v5358, %v6473
        %v6475 = vpop.f32.mrf.mxu0
        %6476 = vmatprep.mubr.f32.mxu0 0.0
        %6477 = vmatmul.mubr.f32.gmra.mxu0 %v5531
        %v6478 = vpop.f32.mrf.mxu0
        %v6479 = vadd.f32 %v5358, %v6478
        %v6480 = vpop.f32.mrf.mxu0
        %6481 = vmatprep.mubr.f32.mxu0 0.0
        %6482 = vmatmul.mubr.f32.gmra.mxu0 %v5534
        %v6483 = vpop.f32.mrf.mxu0
        %v6484 = vadd.f32 %v5358, %v6483
        %v6485 = vpop.f32.mrf.mxu0
        %6486 = vmatprep.mubr.f32.mxu0 0.0
        %6487 = vmatmul.mubr.f32.gmra.mxu0 %v5537
        %v6488 = vpop.f32.mrf.mxu0
        %v6489 = vadd.f32 %v5358, %v6488
        %v6490 = vpop.f32.mrf.mxu0
        %6491 = vmatprep.mubr.f32.mxu0 0.0
        %6492 = vmatmul.mubr.f32.gmra.mxu0 %v5540
        %v6493 = vpop.f32.mrf.mxu0
        %v6494 = vadd.f32 %v5358, %v6493
        %v6495 = vpop.f32.mrf.mxu0
        %6496 = vmatprep.mubr.f32.mxu0 0.0
        %6497 = vmatmul.mubr.f32.gmra.mxu0 %v5543
        %v6498 = vpop.f32.mrf.mxu0
        %v6499 = vadd.f32 %v5358, %v6498
        %v6500 = vpop.f32.mrf.mxu0
        %6501 = vmatprep.mubr.f32.mxu0 0.0
        %6502 = vmatmul.mubr.f32.gmra.mxu0 %v5546
        %v6503 = vpop.f32.mrf.mxu0
        %v6504 = vadd.f32 %v5358, %v6503
        %v6505 = vpop.f32.mrf.mxu0
        %6506 = vmatprep.mubr.f32.mxu0 0.0
        %6507 = vmatmul.mubr.f32.gmra.mxu0 %v5549
        %v6508 = vpop.f32.mrf.mxu0
        %v6509 = vadd.f32 %v5358, %v6508
        %v6510 = vpop.f32.mrf.mxu0
        %6511 = vmatprep.mubr.f32.mxu0 0.0
        %6512 = vmatmul.mubr.f32.gmra.mxu0 %v5552
        %v6513 = vpop.f32.mrf.mxu0
        %v6514 = vadd.f32 %v5358, %v6513
        %v6515 = vpop.f32.mrf.mxu0
        %6516 = vmatprep.mubr.f32.mxu0 0.0
        %6517 = vmatmul.mubr.f32.gmra.mxu0 %v5555
        %v6518 = vpop.f32.mrf.mxu0
        %v6519 = vadd.f32 %v5358, %v6518
        %v6520 = vpop.f32.mrf.mxu0
        %6521 = vmatprep.mubr.f32.mxu0 0.0
        %6522 = vmatmul.mubr.f32.gmra.mxu0 %v5558
        %v6523 = vpop.f32.mrf.mxu0
        %v6524 = vadd.f32 %v5358, %v6523
        %v6525 = vpop.f32.mrf.mxu0
        %6526 = vmatprep.mubr.f32.mxu0 0.0
        %6527 = vmatmul.mubr.f32.gmra.mxu0 %v5561
        %v6528 = vpop.f32.mrf.mxu0
        %v6529 = vadd.f32 %v5358, %v6528
        %v6530 = vpop.f32.mrf.mxu0
        %6531 = vmatprep.mubr.f32.mxu0 0.0
        %6532 = vmatmul.mubr.f32.gmra.mxu0 %v5564
        %v6533 = vpop.f32.mrf.mxu0
        %v6534 = vadd.f32 %v5358, %v6533
        %v6535 = vpop.f32.mrf.mxu0
        %6536 = vmatprep.mubr.f32.mxu0 0.0
        %6537 = vmatmul.mubr.f32.gmra.mxu0 %v5567
        %v6538 = vpop.f32.mrf.mxu0
        %v6539 = vadd.f32 %v5358, %v6538
        %v6540 = vpop.f32.mrf.mxu0
        %6541 = vmatprep.mubr.f32.mxu0 0.0
        %6542 = vmatmul.mubr.f32.gmra.mxu0 %v5570
        %v6543 = vpop.f32.mrf.mxu0
        %v6544 = vadd.f32 %v5358, %v6543
        %v6545 = vpop.f32.mrf.mxu0
        %6546 = vmatprep.mubr.f32.mxu0 0.0
        %6547 = vmatmul.mubr.f32.gmra.mxu0 %v5573
        %v6548 = vpop.f32.mrf.mxu0
        %v6549 = vadd.f32 %v5358, %v6548
        %v6550 = vpop.f32.mrf.mxu0
        %6551 = vmatprep.mubr.f32.mxu0 0.0
        %6552 = vmatmul.mubr.f32.gmra.mxu0 %v5576
        %v6553 = vpop.f32.mrf.mxu0
        %v6554 = vadd.f32 %v5358, %v6553
        %v6555 = vpop.f32.mrf.mxu0
        %6556 = vmatprep.mubr.f32.mxu0 0.0
        %6557 = vmatmul.mubr.f32.gmra.mxu0 %v5579
        %v6558 = vpop.f32.mrf.mxu0
        %v6559 = vadd.f32 %v5358, %v6558
        %v6560 = vpop.f32.mrf.mxu0
        %6561 = vmatprep.mubr.f32.mxu0 0.0
        %6562 = vmatmul.mubr.f32.gmra.mxu0 %v5582
        %v6563 = vpop.f32.mrf.mxu0
        %v6564 = vadd.f32 %v5358, %v6563
        %v6565 = vpop.f32.mrf.mxu0
        %6566 = vmatprep.mubr.f32.mxu0 0.0
        %6567 = vmatmul.mubr.f32.gmra.mxu0 %v5585
        %v6568 = vpop.f32.mrf.mxu0
        %v6569 = vadd.f32 %v5358, %v6568
        %v6570 = vpop.f32.mrf.mxu0
        %6571 = vmatprep.mubr.f32.mxu0 0.0
        %6572 = vmatmul.mubr.f32.gmra.mxu0 %v5588
        %v6573 = vpop.f32.mrf.mxu0
        %v6574 = vadd.f32 %v5358, %v6573
        %v6575 = vpop.f32.mrf.mxu0
        %6576 = vmatprep.mubr.f32.mxu0 0.0
        %6577 = vmatmul.mubr.f32.gmra.mxu0 %v5591
        %v6578 = vpop.f32.mrf.mxu0
        %v6579 = vadd.f32 %v5358, %v6578
        %v6580 = vpop.f32.mrf.mxu0
        %6581 = vmatprep.mubr.f32.mxu0 0.0
        %6582 = vmatmul.mubr.f32.gmra.mxu0 %v5594
        %v6583 = vpop.f32.mrf.mxu0
        %v6584 = vadd.f32 %v5358, %v6583
        %v6585 = vpop.f32.mrf.mxu0
        %6586 = vmatprep.mubr.f32.mxu0 0.0
        %6587 = vmatmul.mubr.f32.gmra.mxu0 %v5597
        %v6588 = vpop.f32.mrf.mxu0
        %v6589 = vadd.f32 %v5358, %v6588
        %v6590 = vpop.f32.mrf.mxu0
        %6591 = vmatprep.mubr.f32.mxu0 0.0
        %6592 = vmatmul.mubr.f32.gmra.mxu0 %v5600
        %v6593 = vpop.f32.mrf.mxu0
        %v6594 = vadd.f32 %v5358, %v6593
        %v6595 = vpop.f32.mrf.mxu0
        %6596 = vmatprep.mubr.f32.mxu0 0.0
        %6597 = vmatmul.mubr.f32.gmra.mxu0 %v5603
        %v6598 = vpop.f32.mrf.mxu0
        %v6599 = vadd.f32 %v5358, %v6598
        %v6600 = vpop.f32.mrf.mxu0
        %6601 = vmatprep.mubr.f32.mxu0 0.0
        %6602 = vmatmul.mubr.f32.gmra.mxu0 %v5606
        %v6603 = vpop.f32.mrf.mxu0
        %v6604 = vadd.f32 %v5358, %v6603
        %v6605 = vpop.f32.mrf.mxu0
        %6606 = vmatprep.mubr.f32.mxu0 0.0
        %6607 = vmatmul.mubr.f32.gmra.mxu0 %v5609
        %v6608 = vpop.f32.mrf.mxu0
        %v6609 = vadd.f32 %v5358, %v6608
        %v6610 = vpop.f32.mrf.mxu0
        %6611 = vmatprep.mubr.f32.mxu0 0.0
        %6612 = vmatmul.mubr.f32.gmra.mxu0 %v5612
        %v6613 = vpop.f32.mrf.mxu0
        %v6614 = vadd.f32 %v5358, %v6613
        %v6615 = vpop.f32.mrf.mxu0
        %6616 = vmatprep.mubr.f32.mxu0 0.0
        %6617 = vmatmul.mubr.f32.gmra.mxu0 %v5615
        %v6618 = vpop.f32.mrf.mxu0
        %v6619 = vadd.f32 %v5358, %v6618
        %v6620 = vpop.f32.mrf.mxu0
        %6621 = vmatprep.mubr.f32.mxu0 0.0
        %6622 = vmatmul.mubr.f32.gmra.mxu0 %v5618
        %v6623 = vpop.f32.mrf.mxu0
        %v6624 = vadd.f32 %v5358, %v6623
        %v6625 = vpop.f32.mrf.mxu0
        %6626 = vmatprep.mubr.f32.mxu0 0.0
        %6627 = vmatmul.mubr.f32.gmra.mxu0 %v5621
        %v6628 = vpop.f32.mrf.mxu0
        %v6629 = vadd.f32 %v5358, %v6628
        %v6630 = vpop.f32.mrf.mxu0
        %6631 = vmatprep.mubr.f32.mxu0 0.0
        %6632 = vmatmul.mubr.f32.gmra.mxu0 %v5624
        %v6633 = vpop.f32.mrf.mxu0
        %v6634 = vadd.f32 %v5358, %v6633
        %v6635 = vpop.f32.mrf.mxu0
        %6636 = vmatprep.mubr.f32.mxu0 0.0
        %6637 = vmatmul.mubr.f32.gmra.mxu0 %v5627
        %v6638 = vpop.f32.mrf.mxu0
        %v6639 = vadd.f32 %v5358, %v6638
        %v6640 = vpop.f32.mrf.mxu0
        %6641 = vmatprep.mubr.f32.mxu0 0.0
        %6642 = vmatmul.mubr.f32.gmra.mxu0 %v5630
        %v6643 = vpop.f32.mrf.mxu0
        %v6644 = vadd.f32 %v5358, %v6643
        %v6645 = vpop.f32.mrf.mxu0
        %6646 = vmatprep.mubr.f32.mxu0 0.0
        %6647 = vmatmul.mubr.f32.gmra.mxu0 %v5633
        %v6648 = vpop.f32.mrf.mxu0
        %v6649 = vadd.f32 %v5358, %v6648
        %v6650 = vpop.f32.mrf.mxu0
        %6651 = vmatprep.mubr.f32.mxu0 0.0
        %6652 = vmatmul.mubr.f32.gmra.mxu0 %v5636
        %v6653 = vpop.f32.mrf.mxu0
        %v6654 = vadd.f32 %v5358, %v6653
        %v6655 = vpop.f32.mrf.mxu0
        %6656 = vmatprep.mubr.f32.mxu0 0.0
        %6657 = vmatmul.mubr.f32.gmra.mxu0 %v5639
        %v6658 = vpop.f32.mrf.mxu0
        %v6659 = vadd.f32 %v5358, %v6658
        %v6660 = vpop.f32.mrf.mxu0
        %6661 = vmatprep.mubr.f32.mxu0 0.0
        %6662 = vmatmul.mubr.f32.gmra.mxu0 %v5642
        %v6663 = vpop.f32.mrf.mxu0
        %v6664 = vadd.f32 %v5358, %v6663
        %v6665 = vpop.f32.mrf.mxu0
        %6666 = vmatprep.mubr.f32.mxu0 0.0
        %6667 = vmatmul.mubr.f32.gmra.mxu0 %v5645
        %v6668 = vpop.f32.mrf.mxu0
        %v6669 = vadd.f32 %v5358, %v6668
        %v6670 = vpop.f32.mrf.mxu0
        %6671 = vmatprep.mubr.f32.mxu0 0.0
        %6672 = vmatmul.mubr.f32.gmra.mxu0 %v5648
        %v6673 = vpop.f32.mrf.mxu0
        %v6674 = vadd.f32 %v5358, %v6673
        %v6675 = vpop.f32.mrf.mxu0
        %6676 = vmatprep.mubr.f32.mxu0 0.0
        %6677 = vmatmul.mubr.f32.gmra.mxu0 %v5651
        %v6678 = vpop.f32.mrf.mxu0
        %v6679 = vadd.f32 %v5358, %v6678
        %v6680 = vpop.f32.mrf.mxu0
        %6681 = vmatprep.mubr.f32.mxu0 0.0
        %6682 = vmatmul.mubr.f32.gmra.mxu0 %v5654
        %v6683 = vpop.f32.mrf.mxu0
        %v6684 = vadd.f32 %v5358, %v6683
        %v6685 = vpop.f32.mrf.mxu0
        %6686 = vmatprep.mubr.f32.mxu0 0.0
        %6687 = vmatmul.mubr.f32.gmra.mxu0 %v5657
        %v6688 = vpop.f32.mrf.mxu0
        %v6689 = vadd.f32 %v5358, %v6688
        %v6690 = vpop.f32.mrf.mxu0
        %6691 = vmatprep.mubr.f32.mxu0 0.0
        %6692 = vmatmul.mubr.f32.gmra.mxu0 %v5660
        %v6693 = vpop.f32.mrf.mxu0
        %v6694 = vadd.f32 %v5358, %v6693
        %v6695 = vpop.f32.mrf.mxu0
        %6696 = vmatprep.mubr.f32.mxu0 0.0
        %6697 = vmatmul.mubr.f32.gmra.mxu0 %v5663
        %v6698 = vpop.f32.mrf.mxu0
        %v6699 = vadd.f32 %v5358, %v6698
        %v6700 = vpop.f32.mrf.mxu0
        %6701 = vmatprep.mubr.f32.mxu0 0.0
        %6702 = vmatmul.mubr.f32.gmra.mxu0 %v5666
        %v6703 = vpop.f32.mrf.mxu0
        %v6704 = vadd.f32 %v5358, %v6703
        %v6705 = vpop.f32.mrf.mxu0
        %6706 = vmatprep.mubr.f32.mxu0 0.0
        %6707 = vmatmul.mubr.f32.gmra.mxu0 %v5669
        %v6708 = vpop.f32.mrf.mxu0
        %v6709 = vadd.f32 %v5358, %v6708
        %v6710 = vpop.f32.mrf.mxu0
        %6711 = vmatprep.mubr.f32.mxu0 0.0
        %6712 = vmatmul.mubr.f32.gmra.mxu0 %v5672
        %v6713 = vpop.f32.mrf.mxu0
        %v6714 = vadd.f32 %v5358, %v6713
        %v6715 = vpop.f32.mrf.mxu0
        %6716 = vmatprep.mubr.f32.mxu0 0.0
        %6717 = vmatmul.mubr.f32.gmra.mxu0 %v5675
        %v6718 = vpop.f32.mrf.mxu0
        %v6719 = vadd.f32 %v5358, %v6718
        %v6720 = vpop.f32.mrf.mxu0
        %6721 = vmatprep.mubr.f32.mxu0 0.0
        %6722 = vmatmul.mubr.f32.gmra.mxu0 %v5678
        %v6723 = vpop.f32.mrf.mxu0
        %v6724 = vadd.f32 %v5358, %v6723
        %v6725 = vpop.f32.mrf.mxu0
        %6726 = vmatprep.mubr.f32.mxu0 0.0
        %6727 = vmatmul.mubr.f32.gmra.mxu0 %v5681
        %v6728 = vpop.f32.mrf.mxu0
        %v6729 = vadd.f32 %v5358, %v6728
        %v6730 = vpop.f32.mrf.mxu0
        %6731 = vmatprep.mubr.f32.mxu0 0.0
        %6732 = vmatmul.mubr.f32.gmra.mxu0 %v5684
        %v6733 = vpop.f32.mrf.mxu0
        %v6734 = vadd.f32 %v5358, %v6733
        %v6735 = vpop.f32.mrf.mxu0
        %6736 = vmatprep.mubr.f32.mxu0 0.0
        %6737 = vmatmul.mubr.f32.gmra.mxu0 %v5687
        %v6738 = vpop.f32.mrf.mxu0
        %v6739 = vadd.f32 %v5358, %v6738
        %v6740 = vpop.f32.mrf.mxu0
        %6741 = vmatprep.mubr.f32.mxu0 0.0
        %6742 = vmatmul.mubr.f32.gmra.mxu0 %v5690
        %v6743 = vpop.f32.mrf.mxu0
        %v6744 = vadd.f32 %v5358, %v6743
        %v6745 = vpop.f32.mrf.mxu0
        %6746 = vmatprep.mubr.f32.mxu0 0.0
        %6747 = vmatmul.mubr.f32.gmra.mxu0 %v5693
        %v6748 = vpop.f32.mrf.mxu0
        %v6749 = vadd.f32 %v5358, %v6748
        %v6750 = vpop.f32.mrf.mxu0
        %6751 = vmatprep.mubr.f32.mxu0 0.0
        %6752 = vmatmul.mubr.f32.gmra.mxu0 %v5696
        %v6753 = vpop.f32.mrf.mxu0
        %v6754 = vadd.f32 %v5358, %v6753
        %v6755 = vpop.f32.mrf.mxu0
        %6756 = vmatprep.mubr.f32.mxu0 0.0
        %6757 = vmatmul.mubr.f32.gmra.mxu0 %v5699
        %v6758 = vpop.f32.mrf.mxu0
        %v6759 = vadd.f32 %v5358, %v6758
        %v6760 = vpop.f32.mrf.mxu0
        %6761 = vmatprep.mubr.f32.mxu0 0.0
        %6762 = vmatmul.mubr.f32.gmra.mxu0 %v5702
        %v6763 = vpop.f32.mrf.mxu0
        %v6764 = vadd.f32 %v5358, %v6763
        %v6765 = vpop.f32.mrf.mxu0
        %6766 = vmatprep.mubr.f32.mxu0 0.0
        %6767 = vmatmul.mubr.f32.gmra.mxu0 %v5705
        %v6768 = vpop.f32.mrf.mxu0
        %v6769 = vadd.f32 %v5358, %v6768
        %v6770 = vpop.f32.mrf.mxu0
        %6771 = vmatprep.mubr.f32.mxu0 0.0
        %6772 = vmatmul.mubr.f32.gmra.mxu0 %v5708
        %v6773 = vpop.f32.mrf.mxu0
        %v6774 = vadd.f32 %v5358, %v6773
        %v6775 = vpop.f32.mrf.mxu0
        %6776 = vmatprep.mubr.f32.mxu0 0.0
        %6777 = vmatmul.mubr.f32.gmra.mxu0 %v5711
        %v6778 = vpop.f32.mrf.mxu0
        %v6779 = vadd.f32 %v5358, %v6778
        %v6780 = vpop.f32.mrf.mxu0
        %6781 = vmatprep.mubr.f32.mxu0 0.0
        %6782 = vmatmul.mubr.f32.gmra.mxu0 %v5714
        %v6783 = vpop.f32.mrf.mxu0
        %v6784 = vadd.f32 %v5358, %v6783
        %v6785 = vpop.f32.mrf.mxu0
        %6786 = vmatprep.mubr.f32.mxu0 0.0
        %6787 = vmatmul.mubr.f32.gmra.mxu0 %v5717
        %v6788 = vpop.f32.mrf.mxu0
        %v6789 = vadd.f32 %v5358, %v6788
        %v6790 = vpop.f32.mrf.mxu0
        %6791 = vmatprep.mubr.f32.mxu0 0.0
        %6792 = vmatmul.mubr.f32.gmra.mxu0 %v5720
        %v6793 = vpop.f32.mrf.mxu0
        %v6794 = vadd.f32 %v5358, %v6793
        %v6795 = vpop.f32.mrf.mxu0
        %6796 = vmatprep.mubr.f32.mxu0 0.0
        %6797 = vmatmul.mubr.f32.gmra.mxu0 %v5723
        %v6798 = vpop.f32.mrf.mxu0
        %v6799 = vadd.f32 %v5358, %v6798
        %v6800 = vpop.f32.mrf.mxu0
        %6801 = vmatprep.mubr.f32.mxu0 0.0
        %6802 = vmatmul.mubr.f32.gmra.mxu0 %v5726
        %v6803 = vpop.f32.mrf.mxu0
        %v6804 = vadd.f32 %v5358, %v6803
        %v6805 = vpop.f32.mrf.mxu0
        %6806 = vmatprep.mubr.f32.mxu0 0.0
        %6807 = vmatmul.mubr.f32.gmra.mxu0 %v5729
        %v6808 = vpop.f32.mrf.mxu0
        %v6809 = vadd.f32 %v5358, %v6808
        %v6810 = vpop.f32.mrf.mxu0
        %6811 = vmatprep.mubr.f32.mxu0 0.0
        %6812 = vmatmul.mubr.f32.gmra.mxu0 %v5732
        %v6813 = vpop.f32.mrf.mxu0
        %v6814 = vadd.f32 %v5358, %v6813
        %v6815 = vpop.f32.mrf.mxu0
        %6816 = vmatprep.mubr.f32.mxu0 0.0
        %6817 = vmatmul.mubr.f32.gmra.mxu0 %v5735
        %v6818 = vpop.f32.mrf.mxu0
        %v6819 = vadd.f32 %v5358, %v6818
        %v6820 = vpop.f32.mrf.mxu0
        %6821 = vmatprep.mubr.f32.mxu0 0.0
        %6822 = vmatmul.mubr.f32.gmra.mxu0 %v5738
        %v6823 = vpop.f32.mrf.mxu0
        %v6824 = vadd.f32 %v5358, %v6823
        %v6825 = vpop.f32.mrf.mxu0
        %6826 = vmatprep.mubr.f32.mxu0 0.0
        %6827 = vmatmul.mubr.f32.gmra.mxu0 %v5741
        %v6828 = vpop.f32.mrf.mxu0
        %v6829 = vadd.f32 %v5358, %v6828
        %v6830 = vpop.f32.mrf.mxu0
        %6831 = vmatprep.mubr.f32.mxu0 0.0
        %6832 = vmatmul.mubr.f32.gmra.mxu0 %v5744
        %v6833 = vpop.f32.mrf.mxu0
        %v6834 = vadd.f32 %v5358, %v6833
        %v6835 = vpop.f32.mrf.mxu0
        %6836 = vmatprep.mubr.f32.mxu0 0.0
        %6837 = vmatmul.mubr.f32.gmra.mxu0 %v5747
        %v6838 = vpop.f32.mrf.mxu0
        %v6839 = vadd.f32 %v5358, %v6838
        %v6840 = vpop.f32.mrf.mxu0
        %6841 = vmatprep.mubr.f32.mxu0 0.0
        %6842 = vmatmul.mubr.f32.gmra.mxu0 %v5750
        %v6843 = vpop.f32.mrf.mxu0
        %v6844 = vadd.f32 %v5358, %v6843
        %v6845 = vpop.f32.mrf.mxu0
        %6846 = vmatprep.mubr.f32.mxu0 0.0
        %6847 = vmatmul.mubr.f32.gmra.mxu0 %v5753
        %v6848 = vpop.f32.mrf.mxu0
        %v6849 = vadd.f32 %v5358, %v6848
        %v6850 = vpop.f32.mrf.mxu0
        %6851 = vmatprep.mubr.f32.mxu0 0.0
        %6852 = vmatmul.mubr.f32.gmra.mxu0 %v5756
        %v6853 = vpop.f32.mrf.mxu0
        %v6854 = vadd.f32 %v5358, %v6853
        %v6855 = vpop.f32.mrf.mxu0
        %6856 = vmatprep.mubr.f32.mxu0 0.0
        %6857 = vmatmul.mubr.f32.gmra.mxu0 %v5759
        %v6858 = vpop.f32.mrf.mxu0
        %v6859 = vadd.f32 %v5358, %v6858
        %v6860 = vpop.f32.mrf.mxu0
        %6861 = vmatprep.mubr.f32.mxu0 0.0
        %6862 = vmatmul.mubr.f32.gmra.mxu0 %v5762
        %v6863 = vpop.f32.mrf.mxu0
        %v6864 = vadd.f32 %v5358, %v6863
        %v6865 = vpop.f32.mrf.mxu0
        %6866 = vmatprep.mubr.f32.mxu0 0.0
        %6867 = vmatmul.mubr.f32.gmra.mxu0 %v5765
        %v6868 = vpop.f32.mrf.mxu0
        %v6869 = vadd.f32 %v5358, %v6868
        %v6870 = vpop.f32.mrf.mxu0
        %6871 = vmatprep.mubr.f32.mxu0 0.0
        %6872 = vmatmul.mubr.f32.gmra.mxu0 %v5768
        %v6873 = vpop.f32.mrf.mxu0
        %v6874 = vadd.f32 %v5358, %v6873
        %v6875 = vpop.f32.mrf.mxu0
        %6876 = vmatprep.mubr.f32.mxu0 0.0
        %6877 = vmatmul.mubr.f32.gmra.mxu0 %v5771
        %v6878 = vpop.f32.mrf.mxu0
        %v6879 = vadd.f32 %v5358, %v6878
        %v6880 = vpop.f32.mrf.mxu0
        %6881 = vmatprep.mubr.f32.mxu0 0.0
        %6882 = vmatmul.mubr.f32.gmra.mxu0 %v5774
        %v6883 = vpop.f32.mrf.mxu0
        %v6884 = vadd.f32 %v5358, %v6883
        %v6885 = vpop.f32.mrf.mxu0
        %6886 = vmatprep.mubr.f32.mxu0 0.0
        %6887 = vmatmul.mubr.f32.gmra.mxu0 %v5777
        %v6888 = vpop.f32.mrf.mxu0
        %v6889 = vadd.f32 %v5358, %v6888
        %v6890 = vpop.f32.mrf.mxu0
        %6891 = vmatprep.mubr.f32.mxu0 0.0
        %6892 = vmatmul.mubr.f32.gmra.mxu0 %v5780
        %v6893 = vpop.f32.mrf.mxu0
        %v6894 = vadd.f32 %v5358, %v6893
        %v6895 = vpop.f32.mrf.mxu0
        %6896 = vmatprep.mubr.f32.mxu0 0.0
        %6897 = vmatmul.mubr.f32.gmra.mxu0 %v5783
        %v6898 = vpop.f32.mrf.mxu0
        %v6899 = vadd.f32 %v5358, %v6898
        %v6900 = vpop.f32.mrf.mxu0
        %6901 = vmatprep.mubr.f32.mxu0 0.0
        %6902 = vmatmul.mubr.f32.gmra.mxu0 %v5786
        %v6903 = vpop.f32.mrf.mxu0
        %v6904 = vadd.f32 %v5358, %v6903
        %v6905 = vpop.f32.mrf.mxu0
        %6906 = vmatprep.mubr.f32.mxu0 0.0
        %6907 = vmatmul.mubr.f32.gmra.mxu0 %v5789
        %v6908 = vpop.f32.mrf.mxu0
        %v6909 = vadd.f32 %v5358, %v6908
        %v6910 = vpop.f32.mrf.mxu0
        %6911 = vmatprep.mubr.f32.mxu0 0.0
        %6912 = vmatmul.mubr.f32.gmra.mxu0 %v5792
        %v6913 = vpop.f32.mrf.mxu0
        %v6914 = vadd.f32 %v5358, %v6913
        %v6915 = vpop.f32.mrf.mxu0
        %6916 = vmatprep.mubr.f32.mxu0 0.0
        %6917 = vmatmul.mubr.f32.gmra.mxu0 %v5795
        %v6918 = vpop.f32.mrf.mxu0
        %v6919 = vadd.f32 %v5358, %v6918
        %v6920 = vpop.f32.mrf.mxu0
        %6921 = vmatprep.mubr.f32.mxu0 0.0
        %6922 = vmatmul.mubr.f32.gmra.mxu0 %v5798
        %v6923 = vpop.f32.mrf.mxu0
        %v6924 = vadd.f32 %v5358, %v6923
        %v6925 = vpop.f32.mrf.mxu0
        %6926 = vmatprep.mubr.f32.mxu0 0.0
        %6927 = vmatmul.mubr.f32.gmra.mxu0 %v5801
        %v6928 = vpop.f32.mrf.mxu0
        %v6929 = vadd.f32 %v5358, %v6928
        %v6930 = vpop.f32.mrf.mxu0
        %6931 = vmatprep.mubr.f32.mxu0 0.0
        %6932 = vmatmul.mubr.f32.gmra.mxu0 %v5804
        %v6933 = vpop.f32.mrf.mxu0
        %v6934 = vadd.f32 %v5358, %v6933
        %v6935 = vpop.f32.mrf.mxu0
        %6936 = vmatprep.mubr.f32.mxu0 0.0
        %6937 = vmatmul.mubr.f32.gmra.mxu0 %v5807
        %v6938 = vpop.f32.mrf.mxu0
        %v6939 = vadd.f32 %v5358, %v6938
        %v6940 = vpop.f32.mrf.mxu0
        %6941 = vmatprep.mubr.f32.mxu0 0.0
        %6942 = vmatmul.mubr.f32.gmra.mxu0 %v5810
        %v6943 = vpop.f32.mrf.mxu0
        %v6944 = vadd.f32 %v5358, %v6943
        %v6945 = vpop.f32.mrf.mxu0
        %6946 = vmatprep.mubr.f32.mxu0 0.0
        %6947 = vmatmul.mubr.f32.gmra.mxu0 %v5813
        %v6948 = vpop.f32.mrf.mxu0
        %v6949 = vadd.f32 %v5358, %v6948
        %v6950 = vpop.f32.mrf.mxu0
        %6951 = vmatprep.mubr.f32.mxu0 0.0
        %6952 = vmatmul.mubr.f32.gmra.mxu0 %v5816
        %v6953 = vpop.f32.mrf.mxu0
        %v6954 = vadd.f32 %v5358, %v6953
        %v6955 = vpop.f32.mrf.mxu0
        %6956 = vmatprep.mubr.f32.mxu0 0.0
        %6957 = vmatmul.mubr.f32.gmra.mxu0 %v5819
        %v6958 = vpop.f32.mrf.mxu0
        %v6959 = vadd.f32 %v5358, %v6958
        %v6960 = vpop.f32.mrf.mxu0
        %6961 = vmatprep.mubr.f32.mxu0 0.0
        %6962 = vmatmul.mubr.f32.gmra.mxu0 %v5822
        %v6963 = vpop.f32.mrf.mxu0
        %v6964 = vadd.f32 %v5358, %v6963
        %v6965 = vpop.f32.mrf.mxu0
        %6966 = vmatprep.mubr.f32.mxu0 0.0
        %6967 = vmatmul.mubr.f32.gmra.mxu0 %v5825
        %v6968 = vpop.f32.mrf.mxu0
        %v6969 = vadd.f32 %v5358, %v6968
        %v6970 = vpop.f32.mrf.mxu0
        %6971 = vmatprep.mubr.f32.mxu0 0.0
        %6972 = vmatmul.mubr.f32.gmra.mxu0 %v5828
        %v6973 = vpop.f32.mrf.mxu0
        %v6974 = vadd.f32 %v5358, %v6973
        %v6975 = vpop.f32.mrf.mxu0
        %6976 = vmatprep.mubr.f32.mxu0 0.0
        %6977 = vmatmul.mubr.f32.gmra.mxu0 %v5831
        %v6978 = vpop.f32.mrf.mxu0
        %v6979 = vadd.f32 %v5358, %v6978
        %v6980 = vpop.f32.mrf.mxu0
        %6981 = vmatprep.mubr.f32.mxu0 0.0
        %6982 = vmatmul.mubr.f32.gmra.mxu0 %v5834
        %v6983 = vpop.f32.mrf.mxu0
        %v6984 = vadd.f32 %v5358, %v6983
        %v6985 = vpop.f32.mrf.mxu0
        %6986 = vmatprep.mubr.f32.mxu0 0.0
        %6987 = vmatmul.mubr.f32.gmra.mxu0 %v5837
        %v6988 = vpop.f32.mrf.mxu0
        %v6989 = vadd.f32 %v5358, %v6988
        %v6990 = vpop.f32.mrf.mxu0
        %6991 = vmatprep.mubr.f32.mxu0 0.0
        %6992 = vmatmul.mubr.f32.gmra.mxu0 %v5840
        %v6993 = vpop.f32.mrf.mxu0
        %v6994 = vadd.f32 %v5358, %v6993
        %v6995 = vpop.f32.mrf.mxu0
        %6996 = vmatprep.mubr.f32.mxu0 0.0
        %6997 = vmatmul.mubr.f32.gmra.mxu0 %v5843
        %v6998 = vpop.f32.mrf.mxu0
        %v6999 = vadd.f32 %v5358, %v6998
        %v7000 = vpop.f32.mrf.mxu0
        %7001 = vmatprep.mubr.f32.mxu0 0.0
        %7002 = vmatmul.mubr.f32.gmra.mxu0 %v5846
        %v7003 = vpop.f32.mrf.mxu0
        %v7004 = vadd.f32 %v5358, %v7003
        %v7005 = vpop.f32.mrf.mxu0
        %7006 = vmatprep.mubr.f32.mxu0 0.0
        %7007 = vmatmul.mubr.f32.gmra.mxu0 %v5849
        %v7008 = vpop.f32.mrf.mxu0
        %v7009 = vadd.f32 %v5358, %v7008
        %v7010 = vpop.f32.mrf.mxu0
        %7011 = vmatprep.mubr.f32.mxu0 0.0
        %7012 = vmatmul.mubr.f32.gmra.mxu0 %v5852
        %v7013 = vpop.f32.mrf.mxu0
        %v7014 = vadd.f32 %v5358, %v7013
        %v7015 = vpop.f32.mrf.mxu0
        %7016 = vmatprep.mubr.f32.mxu0 0.0
        %7017 = vmatmul.mubr.f32.gmra.mxu0 %v5855
        %v7018 = vpop.f32.mrf.mxu0
        %v7019 = vadd.f32 %v5358, %v7018
        %v7020 = vpop.f32.mrf.mxu0
        %7021 = vmatprep.mubr.f32.mxu0 0.0
        %7022 = vmatmul.mubr.f32.gmra.mxu0 %v5858
        %v7023 = vpop.f32.mrf.mxu0
        %v7024 = vadd.f32 %v5358, %v7023
        %v7025 = vpop.f32.mrf.mxu0
        %7026 = vmatprep.mubr.f32.mxu0 0.0
        %7027 = vmatmul.mubr.f32.gmra.mxu0 %v5861
        %v7028 = vpop.f32.mrf.mxu0
        %v7029 = vadd.f32 %v5358, %v7028
        %v7030 = vpop.f32.mrf.mxu0
        %7031 = vmatprep.mubr.f32.mxu0 0.0
        %7032 = vmatmul.mubr.f32.gmra.mxu0 %v5864
        %v7033 = vpop.f32.mrf.mxu0
        %v7034 = vadd.f32 %v5358, %v7033
        %v7035 = vpop.f32.mrf.mxu0
        %7036 = vmatprep.mubr.f32.mxu0 0.0
        %7037 = vmatmul.mubr.f32.gmra.mxu0 %v5867
        %v7038 = vpop.f32.mrf.mxu0
        %v7039 = vadd.f32 %v5358, %v7038
        %v7040 = vpop.f32.mrf.mxu0
        %7041 = vmatprep.mubr.f32.mxu0 0.0
        %7042 = vmatmul.mubr.f32.gmra.mxu0 %v5870
        %v7043 = vpop.f32.mrf.mxu0
        %v7044 = vadd.f32 %v5358, %v7043
        %v7045 = vpop.f32.mrf.mxu0
        %7046 = vmatprep.mubr.f32.mxu0 0.0
        %7047 = vmatmul.mubr.f32.gmra.mxu0 %v5873
        %v7048 = vpop.f32.mrf.mxu0
        %v7049 = vadd.f32 %v5358, %v7048
        %v7050 = vpop.f32.mrf.mxu0
        %7051 = vmatprep.mubr.f32.mxu0 0.0
        %7052 = vmatmul.mubr.f32.gmra.mxu0 %v5876
        %v7053 = vpop.f32.mrf.mxu0
        %v7054 = vadd.f32 %v5358, %v7053
        %v7055 = vpop.f32.mrf.mxu0
        %7056 = vmatprep.mubr.f32.mxu0 0.0
        %7057 = vmatmul.mubr.f32.gmra.mxu0 %v5879
        %v7058 = vpop.f32.mrf.mxu0
        %v7059 = vadd.f32 %v5358, %v7058
        %v7060 = vpop.f32.mrf.mxu0
        %7061 = vmatprep.mubr.f32.mxu0 0.0
        %7062 = vmatmul.mubr.f32.gmra.mxu0 %v5882
        %v7063 = vpop.f32.mrf.mxu0
        %v7064 = vadd.f32 %v5358, %v7063
        %v7065 = vpop.f32.mrf.mxu0
        %7066 = vmatprep.mubr.f32.mxu0 0.0
        %7067 = vmatmul.mubr.f32.gmra.mxu0 %v5885
        %v7068 = vpop.f32.mrf.mxu0
        %v7069 = vadd.f32 %v5358, %v7068
        %v7070 = vpop.f32.mrf.mxu0
        %7071 = vmatprep.mubr.f32.mxu0 0.0
        %7072 = vmatmul.mubr.f32.gmra.mxu0 %v5888
        %v7073 = vpop.f32.mrf.mxu0
        %v7074 = vadd.f32 %v5358, %v7073
        %v7075 = vpop.f32.mrf.mxu0
        %7076 = vmatprep.mubr.f32.mxu0 0.0
        %7077 = vmatmul.mubr.f32.gmra.mxu0 %v5891
        %v7078 = vpop.f32.mrf.mxu0
        %v7079 = vadd.f32 %v5358, %v7078
        %v7080 = vpop.f32.mrf.mxu0
        %7081 = vmatprep.mubr.f32.mxu0 0.0
        %7082 = vmatmul.mubr.f32.gmra.mxu0 %v5894
        %v7083 = vpop.f32.mrf.mxu0
        %v7084 = vadd.f32 %v5358, %v7083
        %v7085 = vpop.f32.mrf.mxu0
        %7086 = vmatprep.mubr.f32.mxu0 0.0
        %7087 = vmatmul.mubr.f32.gmra.mxu0 %v5897
        %v7088 = vpop.f32.mrf.mxu0
        %v7089 = vadd.f32 %v5358, %v7088
        %v7090 = vpop.f32.mrf.mxu0
        %7091 = vmatprep.mubr.f32.mxu0 0.0
        %7092 = vmatmul.mubr.f32.gmra.mxu0 %v5900
        %v7093 = vpop.f32.mrf.mxu0
        %v7094 = vadd.f32 %v5358, %v7093
        %v7095 = vpop.f32.mrf.mxu0
        %7096 = vmatprep.mubr.f32.mxu0 0.0
        %7097 = vmatmul.mubr.f32.gmra.mxu0 %v5903
        %v7098 = vpop.f32.mrf.mxu0
        %v7099 = vadd.f32 %v5358, %v7098
        %v7100 = vpop.f32.mrf.mxu0
        %7101 = vmatprep.mubr.f32.mxu0 0.0
        %7102 = vmatmul.mubr.f32.gmra.mxu0 %v5906
        %v7103 = vpop.f32.mrf.mxu0
        %v7104 = vadd.f32 %v5358, %v7103
        %v7105 = vpop.f32.mrf.mxu0
        %7106 = vmatprep.mubr.f32.mxu0 0.0
        %7107 = vmatmul.mubr.f32.gmra.mxu0 %v5909
        %v7108 = vpop.f32.mrf.mxu0
        %v7109 = vadd.f32 %v5358, %v7108
        %v7110 = vpop.f32.mrf.mxu0
        %7111 = vmatprep.mubr.f32.mxu0 0.0
        %7112 = vmatmul.mubr.f32.gmra.mxu0 %v5912
        %v7113 = vpop.f32.mrf.mxu0
        %v7114 = vadd.f32 %v5358, %v7113
        %v7115 = vpop.f32.mrf.mxu0
        %7116 = vmatprep.mubr.f32.mxu0 0.0
        %7117 = vmatmul.mubr.f32.gmra.mxu0 %v5915
        %v7118 = vpop.f32.mrf.mxu0
        %v7119 = vadd.f32 %v5358, %v7118
        %v7120 = vpop.f32.mrf.mxu0
        %7121 = vmatprep.mubr.f32.mxu0 0.0
        %7122 = vmatmul.mubr.f32.gmra.mxu0 %v5918
        %v7123 = vpop.f32.mrf.mxu0
        %v7124 = vadd.f32 %v5358, %v7123
        %v7125 = vpop.f32.mrf.mxu0
        %7126 = vmatprep.mubr.f32.mxu0 0.0
        %7127 = vmatmul.mubr.f32.gmra.mxu0 %v5921
        %v7128 = vpop.f32.mrf.mxu0
        %v7129 = vadd.f32 %v5358, %v7128
        %v7130 = vpop.f32.mrf.mxu0
        %7131 = vmatprep.mubr.f32.mxu0 0.0
        %7132 = vmatmul.mubr.f32.gmra.mxu0 %v5924
        %v7133 = vpop.f32.mrf.mxu0
        %v7134 = vadd.f32 %v5358, %v7133
        %v7135 = vpop.f32.mrf.mxu0
        %7136 = vmatprep.mubr.f32.mxu0 0.0
        %7137 = vmatmul.mubr.f32.gmra.mxu0 %v5927
        %v7138 = vpop.f32.mrf.mxu0
        %v7139 = vadd.f32 %v5358, %v7138
        %v7140 = vpop.f32.mrf.mxu0
        %7141 = vmatprep.mubr.f32.mxu0 0.0
        %7142 = vmatmul.mubr.f32.gmra.mxu0 %v5930
        %v7143 = vpop.f32.mrf.mxu0
        %v7144 = vadd.f32 %v5358, %v7143
        %v7145 = vpop.f32.mrf.mxu0
        %7146 = vmatprep.mubr.f32.mxu0 0.0
        %7147 = vmatmul.mubr.f32.gmra.mxu0 %v5933
        %v7148 = vpop.f32.mrf.mxu0
        %v7149 = vadd.f32 %v5358, %v7148
        %v7150 = vpop.f32.mrf.mxu0
        %7151 = vmatprep.mubr.f32.mxu0 0.0
        %7152 = vmatmul.mubr.f32.gmra.mxu0 %v5936
        %v7153 = vpop.f32.mrf.mxu0
        %v7154 = vadd.f32 %v5358, %v7153
        %v7155 = vpop.f32.mrf.mxu0
        %7156 = vmatprep.mubr.f32.mxu0 0.0
        %7157 = vmatmul.mubr.f32.gmra.mxu0 %v5939
        %v7158 = vpop.f32.mrf.mxu0
        %v7159 = vadd.f32 %v5358, %v7158
        %v7160 = vpop.f32.mrf.mxu0
        %7161 = vmatprep.mubr.f32.mxu0 0.0
        %7162 = vmatmul.mubr.f32.gmra.mxu0 %v5942
        %v7163 = vpop.f32.mrf.mxu0
        %v7164 = vadd.f32 %v5358, %v7163
        %v7165 = vpop.f32.mrf.mxu0
        %7166 = vmatprep.mubr.f32.mxu0 0.0
        %7167 = vmatmul.mubr.f32.gmra.mxu0 %v5945
        %v7168 = vpop.f32.mrf.mxu0
        %v7169 = vadd.f32 %v5358, %v7168
        %v7170 = vpop.f32.mrf.mxu0
        %7171 = vmatprep.mubr.f32.mxu0 0.0
        %7172 = vmatmul.mubr.f32.gmra.mxu0 %v5948
        %v7173 = vpop.f32.mrf.mxu0
        %v7174 = vadd.f32 %v5358, %v7173
        %v7175 = vpop.f32.mrf.mxu0
        %7176 = vmatprep.mubr.f32.mxu0 0.0
        %7177 = vmatmul.mubr.f32.gmra.mxu0 %v5951
        %v7178 = vpop.f32.mrf.mxu0
        %v7179 = vadd.f32 %v5358, %v7178
        %v7180 = vpop.f32.mrf.mxu0
        %7181 = vmatprep.mubr.f32.mxu0 0.0
        %7182 = vmatmul.mubr.f32.gmra.mxu0 %v5954
        %v7183 = vpop.f32.mrf.mxu0
        %v7184 = vadd.f32 %v5358, %v7183
        %v7185 = vpop.f32.mrf.mxu0
        %7186 = vmatprep.mubr.f32.mxu0 0.0
        %7187 = vmatmul.mubr.f32.gmra.mxu0 %v5957
        %v7188 = vpop.f32.mrf.mxu0
        %v7189 = vadd.f32 %v5358, %v7188
        %v7190 = vpop.f32.mrf.mxu0
        %7191 = vmatprep.mubr.f32.mxu0 0.0
        %7192 = vmatmul.mubr.f32.gmra.mxu0 %v5960
        %v7193 = vpop.f32.mrf.mxu0
        %v7194 = vadd.f32 %v5358, %v7193
        %v7195 = vpop.f32.mrf.mxu0
        %7196 = vmatprep.mubr.f32.mxu0 0.0
        %7197 = vmatmul.mubr.f32.gmra.mxu0 %v5963
        %v7198 = vpop.f32.mrf.mxu0
        %v7199 = vadd.f32 %v5358, %v7198
        %v7200 = vpop.f32.mrf.mxu0
        %7201 = vmatprep.mubr.f32.mxu0 0.0
        %7202 = vmatmul.mubr.f32.gmra.mxu0 %v5966
        %v7203 = vpop.f32.mrf.mxu0
        %v7204 = vadd.f32 %v5358, %v7203
        %v7205 = vpop.f32.mrf.mxu0
        %7206 = vmatprep.mubr.f32.mxu0 0.0
        %7207 = vmatmul.mubr.f32.gmra.mxu0 %v5969
        %v7208 = vpop.f32.mrf.mxu0
        %v7209 = vadd.f32 %v5358, %v7208
        %v7210 = vpop.f32.mrf.mxu0
        %7211 = vmatprep.mubr.f32.mxu0 0.0
        %7212 = vmatmul.mubr.f32.gmra.mxu0 %v5972
        %v7213 = vpop.f32.mrf.mxu0
        %v7214 = vadd.f32 %v5358, %v7213
        %v7215 = vpop.f32.mrf.mxu0
        %7216 = vmatprep.mubr.f32.mxu0 0.0
        %7217 = vmatmul.mubr.f32.gmra.mxu0 %v5975
        %v7218 = vpop.f32.mrf.mxu0
        %v7219 = vadd.f32 %v5358, %v7218
        %v7220 = vpop.f32.mrf.mxu0
        %7221 = vmatprep.mubr.f32.mxu0 0.0
        %7222 = vmatmul.mubr.f32.gmra.mxu0 %v5978
        %v7223 = vpop.f32.mrf.mxu0
        %v7224 = vadd.f32 %v5358, %v7223
        %v7225 = vpop.f32.mrf.mxu0
        %7226 = vmatprep.mubr.f32.mxu0 0.0
        %7227 = vmatmul.mubr.f32.gmra.mxu0 %v5981
        %v7228 = vpop.f32.mrf.mxu0
        %v7229 = vadd.f32 %v5358, %v7228
        %v7230 = vpop.f32.mrf.mxu0
        %7231 = vmatprep.mubr.f32.mxu0 0.0
        %7232 = vmatmul.mubr.f32.gmra.mxu0 %v5984
        %v7233 = vpop.f32.mrf.mxu0
        %v7234 = vadd.f32 %v5358, %v7233
        %v7235 = vpop.f32.mrf.mxu0
        %7236 = vmatprep.mubr.f32.mxu0 0.0
        %7237 = vmatmul.mubr.f32.gmra.mxu0 %v5987
        %v7238 = vpop.f32.mrf.mxu0
        %v7239 = vadd.f32 %v5358, %v7238
        %v7240 = vpop.f32.mrf.mxu0
        %7241 = vmatprep.mubr.f32.mxu0 0.0
        %7242 = vmatmul.mubr.f32.gmra.mxu0 %v5990
        %v7243 = vpop.f32.mrf.mxu0
        %v7244 = vadd.f32 %v5358, %v7243
        %v7245 = vpop.f32.mrf.mxu0
        %7246 = vmatprep.mubr.f32.mxu0 0.0
        %7247 = vmatmul.mubr.f32.gmra.mxu0 %v5993
        %v7248 = vpop.f32.mrf.mxu0
        %v7249 = vadd.f32 %v5358, %v7248
        %v7250 = vpop.f32.mrf.mxu0
        %7251 = vmatprep.mubr.f32.mxu0 0.0
        %7252 = vmatmul.mubr.f32.gmra.mxu0 %v5996
        %v7253 = vpop.f32.mrf.mxu0
        %v7254 = vadd.f32 %v5358, %v7253
        %v7255 = vpop.f32.mrf.mxu0
        %7256 = vmatprep.mubr.f32.mxu0 0.0
        %7257 = vmatmul.mubr.f32.gmra.mxu0 %v5999
        %v7258 = vpop.f32.mrf.mxu0
        %v7259 = vadd.f32 %v5358, %v7258
        %v7260 = vpop.f32.mrf.mxu0
        %7261 = vmatprep.mubr.f32.mxu0 0.0
        %7262 = vmatmul.mubr.f32.gmra.mxu0 %v6002
        %v7263 = vpop.f32.mrf.mxu0
        %v7264 = vadd.f32 %v5358, %v7263
        %v7265 = vpop.f32.mrf.mxu0
        %7266 = vmatprep.mubr.f32.mxu0 0.0
        %7267 = vmatmul.mubr.f32.gmra.mxu0 %v6005
        %v7268 = vpop.f32.mrf.mxu0
        %v7269 = vadd.f32 %v5358, %v7268
        %v7270 = vpop.f32.mrf.mxu0
        %7271 = vmatprep.mubr.f32.mxu0 0.0
        %7272 = vmatmul.mubr.f32.gmra.mxu0 %v6008
        %v7273 = vpop.f32.mrf.mxu0
        %v7274 = vadd.f32 %v5358, %v7273
        %v7275 = vpop.f32.mrf.mxu0
        %7276 = vmatprep.mubr.f32.mxu0 0.0
        %7277 = vmatmul.mubr.f32.gmra.mxu0 %v6011
        %v7278 = vpop.f32.mrf.mxu0
        %v7279 = vadd.f32 %v5358, %v7278
        %v7280 = vpop.f32.mrf.mxu0
        %7281 = vmatprep.mubr.f32.mxu0 0.0
        %7282 = vmatmul.mubr.f32.gmra.mxu0 %v6014
        %v7283 = vpop.f32.mrf.mxu0
        %v7284 = vadd.f32 %v5358, %v7283
        %v7285 = vpop.f32.mrf.mxu0
        %7286 = vmatprep.mubr.f32.mxu0 0.0
        %7287 = vmatmul.mubr.f32.gmra.mxu0 %v6017
        %v7288 = vpop.f32.mrf.mxu0
        %v7289 = vadd.f32 %v5358, %v7288
        %v7290 = vpop.f32.mrf.mxu0
        %7291 = vmatprep.mubr.f32.mxu0 0.0
        %7292 = vmatmul.mubr.f32.gmra.mxu0 %v6020
        %v7293 = vpop.f32.mrf.mxu0
        %v7294 = vadd.f32 %v5358, %v7293
        %v7295 = vpop.f32.mrf.mxu0
        %7296 = vmatprep.mubr.f32.mxu0 0.0
        %7297 = vmatmul.mubr.f32.gmra.mxu0 %v6023
        %v7298 = vpop.f32.mrf.mxu0
        %v7299 = vadd.f32 %v5358, %v7298
        %v7300 = vpop.f32.mrf.mxu0
        %7301 = vmatprep.mubr.f32.mxu0 0.0
        %7302 = vmatmul.mubr.f32.gmra.mxu0 %v6026
        %v7303 = vpop.f32.mrf.mxu0
        %v7304 = vadd.f32 %v5358, %v7303
        %v7305 = vpop.f32.mrf.mxu0
        %7306 = vmatprep.mubr.f32.mxu0 0.0
        %7307 = vmatmul.mubr.f32.gmra.mxu0 %v6029
        %v7308 = vpop.f32.mrf.mxu0
        %v7309 = vadd.f32 %v5358, %v7308
        %v7310 = vpop.f32.mrf.mxu0
        %7311 = vmatprep.mubr.f32.mxu0 0.0
        %7312 = vmatmul.mubr.f32.gmra.mxu0 %v6032
        %v7313 = vpop.f32.mrf.mxu0
        %v7314 = vadd.f32 %v5358, %v7313
        %v7315 = vpop.f32.mrf.mxu0
        %7316 = vmatprep.mubr.f32.mxu0 0.0
        %7317 = vmatmul.mubr.f32.gmra.mxu0 %v6035
        %v7318 = vpop.f32.mrf.mxu0
        %v7319 = vadd.f32 %v5358, %v7318
        %v7320 = vpop.f32.mrf.mxu0
        %7321 = vmatprep.mubr.f32.mxu0 0.0
        %7322 = vmatmul.mubr.f32.gmra.mxu0 %v6038
        %v7323 = vpop.f32.mrf.mxu0
        %v7324 = vadd.f32 %v5358, %v7323
        %v7325 = vpop.f32.mrf.mxu0
        %7326 = vmatprep.mubr.f32.mxu0 0.0
        %7327 = vmatmul.mubr.f32.gmra.mxu0 %v6041
        %v7328 = vpop.f32.mrf.mxu0
        %v7329 = vadd.f32 %v5358, %v7328
        %v7330 = vpop.f32.mrf.mxu0
        %7331 = vmatprep.mubr.f32.mxu0 0.0
        %7332 = vmatmul.mubr.f32.gmra.mxu0 %v6044
        %v7333 = vpop.f32.mrf.mxu0
        %v7334 = vadd.f32 %v5358, %v7333
        %v7335 = vpop.f32.mrf.mxu0
        %7336 = vmatprep.mubr.f32.mxu0 0.0
        %7337 = vmatmul.mubr.f32.gmra.mxu0 %v6047
        %v7338 = vpop.f32.mrf.mxu0
        %v7339 = vadd.f32 %v5358, %v7338
        %v7340 = vpop.f32.mrf.mxu0
        %7341 = vmatprep.mubr.f32.mxu0 0.0
        %7342 = vmatmul.mubr.f32.gmra.mxu0 %v6050
        %v7343 = vpop.f32.mrf.mxu0
        %v7344 = vadd.f32 %v5358, %v7343
        %v7345 = vpop.f32.mrf.mxu0
        %7346 = vmatprep.mubr.f32.mxu0 0.0
        %7347 = vmatmul.mubr.f32.gmra.mxu0 %v6053
        %v7348 = vpop.f32.mrf.mxu0
        %v7349 = vadd.f32 %v5358, %v7348
        %v7350 = vpop.f32.mrf.mxu0
        %7351 = vmatprep.mubr.f32.mxu0 0.0
        %7352 = vmatmul.mubr.f32.gmra.mxu0 %v6056
        %v7353 = vpop.f32.mrf.mxu0
        %v7354 = vadd.f32 %v5358, %v7353
        %v7355 = vpop.f32.mrf.mxu0
        %7356 = vmatprep.mubr.f32.mxu0 0.0
        %7357 = vmatmul.mubr.f32.gmra.mxu0 %v6059
        %v7358 = vpop.f32.mrf.mxu0
        %v7359 = vadd.f32 %v5358, %v7358
        %v7360 = vpop.f32.mrf.mxu0
        %7361 = vmatprep.mubr.f32.mxu0 0.0
        %7362 = vmatmul.mubr.f32.gmra.mxu0 %v6062
        %v7363 = vpop.f32.mrf.mxu0
        %v7364 = vadd.f32 %v5358, %v7363
        %v7365 = vpop.f32.mrf.mxu0
        %7366 = vmatprep.mubr.f32.mxu0 0.0
        %7367 = vmatmul.mubr.f32.gmra.mxu0 %v6065
        %v7368 = vpop.f32.mrf.mxu0
        %v7369 = vadd.f32 %v5358, %v7368
        %v7370 = vpop.f32.mrf.mxu0
        %7371 = vmatprep.mubr.f32.mxu0 0.0
        %7372 = vmatmul.mubr.f32.gmra.mxu0 %v6068
        %v7373 = vpop.f32.mrf.mxu0
        %v7374 = vadd.f32 %v5358, %v7373
        %v7375 = vpop.f32.mrf.mxu0
        %7376 = vmatprep.mubr.f32.mxu0 0.0
        %7377 = vmatmul.mubr.f32.gmra.mxu0 %v6071
        %v7378 = vpop.f32.mrf.mxu0
        %v7379 = vadd.f32 %v5358, %v7378
        %v7380 = vpop.f32.mrf.mxu0
        %7381 = vmatprep.mubr.f32.mxu0 0.0
        %7382 = vmatmul.mubr.f32.gmra.mxu0 %v6074
        %v7383 = vpop.f32.mrf.mxu0
        %v7384 = vadd.f32 %v5358, %v7383
        %v7385 = vpop.f32.mrf.mxu0
        %7386 = vmatprep.mubr.f32.mxu0 0.0
        %7387 = vmatmul.mubr.f32.gmra.mxu0 %v6077
        %v7388 = vpop.f32.mrf.mxu0
        %v7389 = vadd.f32 %v5358, %v7388
        %v7390 = vpop.f32.mrf.mxu0
        %7391 = vmatprep.mubr.f32.mxu0 0.0
        %7392 = vmatmul.mubr.f32.gmra.mxu0 %v6080
        %v7393 = vpop.f32.mrf.mxu0
        %v7394 = vadd.f32 %v5358, %v7393
        %v7395 = vpop.f32.mrf.mxu0
        %7396 = vmatprep.mubr.f32.mxu0 0.0
        %7397 = vmatmul.mubr.f32.gmra.mxu0 %v6083
        %v7398 = vpop.f32.mrf.mxu0
        %v7399 = vadd.f32 %v5358, %v7398
        %v7400 = vpop.f32.mrf.mxu0
        %7401 = vmatprep.mubr.f32.mxu0 0.0
        %7402 = vmatmul.mubr.f32.gmra.mxu0 %v6086
        %v7403 = vpop.f32.mrf.mxu0
        %v7404 = vadd.f32 %v5358, %v7403
        %v7405 = vpop.f32.mrf.mxu0
        %7406 = vmatprep.mubr.f32.mxu0 0.0
        %7407 = vmatmul.mubr.f32.gmra.mxu0 %v6089
        %v7408 = vpop.f32.mrf.mxu0
        %v7409 = vadd.f32 %v5358, %v7408
        %v7410 = vpop.f32.mrf.mxu0
        %7411 = vmatprep.mubr.f32.mxu0 0.0
        %7412 = vmatmul.mubr.f32.gmra.mxu0 %v6092
        %v7413 = vpop.f32.mrf.mxu0
        %v7414 = vadd.f32 %v5358, %v7413
        %v7415 = vpop.f32.mrf.mxu0
        %7416 = vmatprep.mubr.f32.mxu0 0.0
        %7417 = vmatmul.mubr.f32.gmra.mxu0 %v6095
        %v7418 = vpop.f32.mrf.mxu0
        %v7419 = vadd.f32 %v5358, %v7418
        %v7420 = vpop.f32.mrf.mxu0
        %7421 = vmatprep.mubr.f32.mxu0 0.0
        %7422 = vmatmul.mubr.f32.gmra.mxu0 %v6098
        %v7423 = vpop.f32.mrf.mxu0
        %v7424 = vadd.f32 %v5358, %v7423
        %v7425 = vpop.f32.mrf.mxu0
        %7426 = vmatprep.mubr.f32.mxu0 0.0
        %7427 = vmatmul.mubr.f32.gmra.mxu0 %v6101
        %v7428 = vpop.f32.mrf.mxu0
        %v7429 = vadd.f32 %v5358, %v7428
        %v7430 = vpop.f32.mrf.mxu0
        %7431 = vmatprep.mubr.f32.mxu0 0.0
        %7432 = vmatmul.mubr.f32.gmra.mxu0 %v6104
        %v7433 = vpop.f32.mrf.mxu0
        %v7434 = vadd.f32 %v5358, %v7433
        %v7435 = vpop.f32.mrf.mxu0
        %7436 = vmatprep.mubr.f32.mxu0 0.0
        %7437 = vmatmul.mubr.f32.gmra.mxu0 %v6107
        %v7438 = vpop.f32.mrf.mxu0
        %v7439 = vadd.f32 %v5358, %v7438
        %v7440 = vpop.f32.mrf.mxu0
        %7441 = vmatprep.mubr.f32.mxu0 0.0
        %7442 = vmatmul.mubr.f32.gmra.mxu0 %v6110
        %v7443 = vpop.f32.mrf.mxu0
        %v7444 = vadd.f32 %v5358, %v7443
        %v7445 = vpop.f32.mrf.mxu0
        %7446 = vmatprep.mubr.f32.mxu0 0.0
        %7447 = vmatmul.mubr.f32.gmra.mxu0 %v6113
        %v7448 = vpop.f32.mrf.mxu0
        %v7449 = vadd.f32 %v5358, %v7448
        %v7450 = vpop.f32.mrf.mxu0
        %7451 = vmatprep.mubr.f32.mxu0 0.0
        %7452 = vmatmul.mubr.f32.gmra.mxu0 %v6116
        %v7453 = vpop.f32.mrf.mxu0
        %v7454 = vadd.f32 %v5358, %v7453
        %v7455 = vpop.f32.mrf.mxu0
        %7456 = vmatprep.mubr.f32.mxu0 0.0
        %7457 = vmatmul.mubr.f32.gmra.mxu0 %v6119
        %v7458 = vpop.f32.mrf.mxu0
        %v7459 = vadd.f32 %v5358, %v7458
        %v7460 = vpop.f32.mrf.mxu0
        %7461 = vmatprep.mubr.f32.mxu0 0.0
        %7462 = vmatmul.mubr.f32.gmra.mxu0 %v6122
        %v7463 = vpop.f32.mrf.mxu0
        %v7464 = vadd.f32 %v5358, %v7463
        %v7465 = vpop.f32.mrf.mxu0
        %7466 = vmatprep.mubr.f32.mxu0 0.0
        %7467 = vmatmul.mubr.f32.gmra.mxu0 %v6125
        %v7468 = vpop.f32.mrf.mxu0
        %v7469 = vadd.f32 %v5358, %v7468
        %v7470 = vpop.f32.mrf.mxu0
        %7471 = vdwg.mxu0
        %v7472 = vmax.f32 %v6194, 0.0
        %v7473 = vmax.f32 %v6199, 0.0
        %v7474 = vmax.f32 %v6204, 0.0
        %v7475 = vmax.f32 %v6209, 0.0
        %v7476 = vmax.f32 %v6214, 0.0
        %v7477 = vmax.f32 %v6219, 0.0
        %v7478 = vmax.f32 %v6224, 0.0
        %v7479 = vmax.f32 %v6229, 0.0
        %v7480 = vmax.f32 %v6234, 0.0
        %v7481 = vmax.f32 %v6239, 0.0
        %v7482 = vmax.f32 %v6244, 0.0
        %v7483 = vmax.f32 %v6249, 0.0
        %v7484 = vmax.f32 %v6254, 0.0
        %v7485 = vmax.f32 %v6259, 0.0
        %v7486 = vmax.f32 %v6264, 0.0
        %v7487 = vmax.f32 %v6269, 0.0
        %v7488 = vmax.f32 %v6274, 0.0
        %v7489 = vmax.f32 %v6279, 0.0
        %v7490 = vmax.f32 %v6284, 0.0
        %v7491 = vmax.f32 %v6289, 0.0
        %v7492 = vmax.f32 %v6294, 0.0
        %v7493 = vmax.f32 %v6299, 0.0
        %v7494 = vmax.f32 %v6304, 0.0
        %v7495 = vmax.f32 %v6309, 0.0
        %v7496 = vmax.f32 %v6314, 0.0
        %v7497 = vmax.f32 %v6319, 0.0
        %v7498 = vmax.f32 %v6324, 0.0
        %v7499 = vmax.f32 %v6329, 0.0
        %v7500 = vmax.f32 %v6334, 0.0
        %v7501 = vmax.f32 %v6339, 0.0
        %v7502 = vmax.f32 %v6344, 0.0
        %v7503 = vmax.f32 %v6349, 0.0
        %v7504 = vmax.f32 %v6354, 0.0
        %v7505 = vmax.f32 %v6359, 0.0
        %v7506 = vmax.f32 %v6364, 0.0
        %v7507 = vmax.f32 %v6369, 0.0
        %v7508 = vmax.f32 %v6374, 0.0
        %v7509 = vmax.f32 %v6379, 0.0
        %v7510 = vmax.f32 %v6384, 0.0
        %v7511 = vmax.f32 %v6389, 0.0
        %v7512 = vmax.f32 %v6394, 0.0
        %v7513 = vmax.f32 %v6399, 0.0
        %v7514 = vmax.f32 %v6404, 0.0
        %v7515 = vmax.f32 %v6409, 0.0
        %v7516 = vmax.f32 %v6414, 0.0
        %v7517 = vmax.f32 %v6419, 0.0
        %v7518 = vmax.f32 %v6424, 0.0
        %v7519 = vmax.f32 %v6429, 0.0
        %v7520 = vmax.f32 %v6434, 0.0
        %v7521 = vmax.f32 %v6439, 0.0
        %v7522 = vmax.f32 %v6444, 0.0
        %v7523 = vmax.f32 %v6449, 0.0
        %v7524 = vmax.f32 %v6454, 0.0
        %v7525 = vmax.f32 %v6459, 0.0
        %v7526 = vmax.f32 %v6464, 0.0
        %v7527 = vmax.f32 %v6469, 0.0
        %v7528 = vmax.f32 %v6474, 0.0
        %v7529 = vmax.f32 %v6479, 0.0
        %v7530 = vmax.f32 %v6484, 0.0
        %v7531 = vmax.f32 %v6489, 0.0
        %v7532 = vmax.f32 %v6494, 0.0
        %v7533 = vmax.f32 %v6499, 0.0
        %v7534 = vmax.f32 %v6504, 0.0
        %v7535 = vmax.f32 %v6509, 0.0
        %v7536 = vmax.f32 %v6514, 0.0
        %v7537 = vmax.f32 %v6519, 0.0
        %v7538 = vmax.f32 %v6524, 0.0
        %v7539 = vmax.f32 %v6529, 0.0
        %v7540 = vmax.f32 %v6534, 0.0
        %v7541 = vmax.f32 %v6539, 0.0
        %v7542 = vmax.f32 %v6544, 0.0
        %v7543 = vmax.f32 %v6549, 0.0
        %v7544 = vmax.f32 %v6554, 0.0
        %v7545 = vmax.f32 %v6559, 0.0
        %v7546 = vmax.f32 %v6564, 0.0
        %v7547 = vmax.f32 %v6569, 0.0
        %v7548 = vmax.f32 %v6574, 0.0
        %v7549 = vmax.f32 %v6579, 0.0
        %v7550 = vmax.f32 %v6584, 0.0
        %v7551 = vmax.f32 %v6589, 0.0
        %v7552 = vmax.f32 %v6594, 0.0
        %v7553 = vmax.f32 %v6599, 0.0
        %v7554 = vmax.f32 %v6604, 0.0
        %v7555 = vmax.f32 %v6609, 0.0
        %v7556 = vmax.f32 %v6614, 0.0
        %v7557 = vmax.f32 %v6619, 0.0
        %v7558 = vmax.f32 %v6624, 0.0
        %v7559 = vmax.f32 %v6629, 0.0
        %v7560 = vmax.f32 %v6634, 0.0
        %v7561 = vmax.f32 %v6639, 0.0
        %v7562 = vmax.f32 %v6644, 0.0
        %v7563 = vmax.f32 %v6649, 0.0
        %v7564 = vmax.f32 %v6654, 0.0
        %v7565 = vmax.f32 %v6659, 0.0
        %v7566 = vmax.f32 %v6664, 0.0
        %v7567 = vmax.f32 %v6669, 0.0
        %v7568 = vmax.f32 %v6674, 0.0
        %v7569 = vmax.f32 %v6679, 0.0
        %v7570 = vmax.f32 %v6684, 0.0
        %v7571 = vmax.f32 %v6689, 0.0
        %v7572 = vmax.f32 %v6694, 0.0
        %v7573 = vmax.f32 %v6699, 0.0
        %v7574 = vmax.f32 %v6704, 0.0
        %v7575 = vmax.f32 %v6709, 0.0
        %v7576 = vmax.f32 %v6714, 0.0
        %v7577 = vmax.f32 %v6719, 0.0
        %v7578 = vmax.f32 %v6724, 0.0
        %v7579 = vmax.f32 %v6729, 0.0
        %v7580 = vmax.f32 %v6734, 0.0
        %v7581 = vmax.f32 %v6739, 0.0
        %v7582 = vmax.f32 %v6744, 0.0
        %v7583 = vmax.f32 %v6749, 0.0
        %v7584 = vmax.f32 %v6754, 0.0
        %v7585 = vmax.f32 %v6759, 0.0
        %v7586 = vmax.f32 %v6764, 0.0
        %v7587 = vmax.f32 %v6769, 0.0
        %v7588 = vmax.f32 %v6774, 0.0
        %v7589 = vmax.f32 %v6779, 0.0
        %v7590 = vmax.f32 %v6784, 0.0
        %v7591 = vmax.f32 %v6789, 0.0
        %v7592 = vmax.f32 %v6794, 0.0
        %v7593 = vmax.f32 %v6799, 0.0
        %v7594 = vmax.f32 %v6804, 0.0
        %v7595 = vmax.f32 %v6809, 0.0
        %v7596 = vmax.f32 %v6814, 0.0
        %v7597 = vmax.f32 %v6819, 0.0
        %v7598 = vmax.f32 %v6824, 0.0
        %v7599 = vmax.f32 %v6829, 0.0
        %v7600 = vmax.f32 %v6834, 0.0
        %v7601 = vmax.f32 %v6839, 0.0
        %v7602 = vmax.f32 %v6844, 0.0
        %v7603 = vmax.f32 %v6849, 0.0
        %v7604 = vmax.f32 %v6854, 0.0
        %v7605 = vmax.f32 %v6859, 0.0
        %v7606 = vmax.f32 %v6864, 0.0
        %v7607 = vmax.f32 %v6869, 0.0
        %v7608 = vmax.f32 %v6874, 0.0
        %v7609 = vmax.f32 %v6879, 0.0
        %v7610 = vmax.f32 %v6884, 0.0
        %v7611 = vmax.f32 %v6889, 0.0
        %v7612 = vmax.f32 %v6894, 0.0
        %v7613 = vmax.f32 %v6899, 0.0
        %v7614 = vmax.f32 %v6904, 0.0
        %v7615 = vmax.f32 %v6909, 0.0
        %v7616 = vmax.f32 %v6914, 0.0
        %v7617 = vmax.f32 %v6919, 0.0
        %v7618 = vmax.f32 %v6924, 0.0
        %v7619 = vmax.f32 %v6929, 0.0
        %v7620 = vmax.f32 %v6934, 0.0
        %v7621 = vmax.f32 %v6939, 0.0
        %v7622 = vmax.f32 %v6944, 0.0
        %v7623 = vmax.f32 %v6949, 0.0
        %v7624 = vmax.f32 %v6954, 0.0
        %v7625 = vmax.f32 %v6959, 0.0
        %v7626 = vmax.f32 %v6964, 0.0
        %v7627 = vmax.f32 %v6969, 0.0
        %v7628 = vmax.f32 %v6974, 0.0
        %v7629 = vmax.f32 %v6979, 0.0
        %v7630 = vmax.f32 %v6984, 0.0
        %v7631 = vmax.f32 %v6989, 0.0
        %v7632 = vmax.f32 %v6994, 0.0
        %v7633 = vmax.f32 %v6999, 0.0
        %v7634 = vmax.f32 %v7004, 0.0
        %v7635 = vmax.f32 %v7009, 0.0
        %v7636 = vmax.f32 %v7014, 0.0
        %v7637 = vmax.f32 %v7019, 0.0
        %v7638 = vmax.f32 %v7024, 0.0
        %v7639 = vmax.f32 %v7029, 0.0
        %v7640 = vmax.f32 %v7034, 0.0
        %v7641 = vmax.f32 %v7039, 0.0
        %v7642 = vmax.f32 %v7044, 0.0
        %v7643 = vmax.f32 %v7049, 0.0
        %v7644 = vmax.f32 %v7054, 0.0
        %v7645 = vmax.f32 %v7059, 0.0
        %v7646 = vmax.f32 %v7064, 0.0
        %v7647 = vmax.f32 %v7069, 0.0
        %v7648 = vmax.f32 %v7074, 0.0
        %v7649 = vmax.f32 %v7079, 0.0
        %v7650 = vmax.f32 %v7084, 0.0
        %v7651 = vmax.f32 %v7089, 0.0
        %v7652 = vmax.f32 %v7094, 0.0
        %v7653 = vmax.f32 %v7099, 0.0
        %v7654 = vmax.f32 %v7104, 0.0
        %v7655 = vmax.f32 %v7109, 0.0
        %v7656 = vmax.f32 %v7114, 0.0
        %v7657 = vmax.f32 %v7119, 0.0
        %v7658 = vmax.f32 %v7124, 0.0
        %v7659 = vmax.f32 %v7129, 0.0
        %v7660 = vmax.f32 %v7134, 0.0
        %v7661 = vmax.f32 %v7139, 0.0
        %v7662 = vmax.f32 %v7144, 0.0
        %v7663 = vmax.f32 %v7149, 0.0
        %v7664 = vmax.f32 %v7154, 0.0
        %v7665 = vmax.f32 %v7159, 0.0
        %v7666 = vmax.f32 %v7164, 0.0
        %v7667 = vmax.f32 %v7169, 0.0
        %v7668 = vmax.f32 %v7174, 0.0
        %v7669 = vmax.f32 %v7179, 0.0
        %v7670 = vmax.f32 %v7184, 0.0
        %v7671 = vmax.f32 %v7189, 0.0
        %v7672 = vmax.f32 %v7194, 0.0
        %v7673 = vmax.f32 %v7199, 0.0
        %v7674 = vmax.f32 %v7204, 0.0
        %v7675 = vmax.f32 %v7209, 0.0
        %v7676 = vmax.f32 %v7214, 0.0
        %v7677 = vmax.f32 %v7219, 0.0
        %v7678 = vmax.f32 %v7224, 0.0
        %v7679 = vmax.f32 %v7229, 0.0
        %v7680 = vmax.f32 %v7234, 0.0
        %v7681 = vmax.f32 %v7239, 0.0
        %v7682 = vmax.f32 %v7244, 0.0
        %v7683 = vmax.f32 %v7249, 0.0
        %v7684 = vmax.f32 %v7254, 0.0
        %v7685 = vmax.f32 %v7259, 0.0
        %v7686 = vmax.f32 %v7264, 0.0
        %v7687 = vmax.f32 %v7269, 0.0
        %v7688 = vmax.f32 %v7274, 0.0
        %v7689 = vmax.f32 %v7279, 0.0
        %v7690 = vmax.f32 %v7284, 0.0
        %v7691 = vmax.f32 %v7289, 0.0
        %v7692 = vmax.f32 %v7294, 0.0
        %v7693 = vmax.f32 %v7299, 0.0
        %v7694 = vmax.f32 %v7304, 0.0
        %v7695 = vmax.f32 %v7309, 0.0
        %v7696 = vmax.f32 %v7314, 0.0
        %v7697 = vmax.f32 %v7319, 0.0
        %v7698 = vmax.f32 %v7324, 0.0
        %v7699 = vmax.f32 %v7329, 0.0
        %v7700 = vmax.f32 %v7334, 0.0
        %v7701 = vmax.f32 %v7339, 0.0
        %v7702 = vmax.f32 %v7344, 0.0
        %v7703 = vmax.f32 %v7349, 0.0
        %v7704 = vmax.f32 %v7354, 0.0
        %v7705 = vmax.f32 %v7359, 0.0
        %v7706 = vmax.f32 %v7364, 0.0
        %v7707 = vmax.f32 %v7369, 0.0
        %v7708 = vmax.f32 %v7374, 0.0
        %v7709 = vmax.f32 %v7379, 0.0
        %v7710 = vmax.f32 %v7384, 0.0
        %v7711 = vmax.f32 %v7389, 0.0
        %v7712 = vmax.f32 %v7394, 0.0
        %v7713 = vmax.f32 %v7399, 0.0
        %v7714 = vmax.f32 %v7404, 0.0
        %v7715 = vmax.f32 %v7409, 0.0
        %v7716 = vmax.f32 %v7414, 0.0
        %v7717 = vmax.f32 %v7419, 0.0
        %v7718 = vmax.f32 %v7424, 0.0
        %v7719 = vmax.f32 %v7429, 0.0
        %v7720 = vmax.f32 %v7434, 0.0
        %v7721 = vmax.f32 %v7439, 0.0
        %v7722 = vmax.f32 %v7444, 0.0
        %v7723 = vmax.f32 %v7449, 0.0
        %v7724 = vmax.f32 %v7454, 0.0
        %v7725 = vmax.f32 %v7459, 0.0
        %v7726 = vmax.f32 %v7464, 0.0
        %v7727 = vmax.f32 %v7469, 0.0
        %s7728 = scalar_lea.vmem %s3, 128
        %v7729 = vld [vmem:[%s7728] sm:$0xff]
        %v7730 = vld [vmem:[%s7728 + $0x8] sm:$0xff]
        %v7731 = vld [vmem:[%s7728 + $0x10] sm:$0xff]
        %v7732 = vld [vmem:[%s7728 + $0x18] sm:$0xff]
        %v7733 = vld [vmem:[%s7728 + $0x20] sm:$0xff]
        %v7734 = vld [vmem:[%s7728 + $0x28] sm:$0xff]
        %v7735 = vld [vmem:[%s7728 + $0x30] sm:$0xff]
        %v7736 = vld [vmem:[%s7728 + $0x38] sm:$0xff]
        %v7737 = vld [vmem:[%s4 + $0x3] sm:$0x1]
        %v7738 = vlaneseq
        %v7739 = vshrl.u32 %v7738, 7
        %v7740 = vsub.s32 0, %v7739
        %v7741 = vrot.slane %v7737, %v7740
        %v7743 = vsel %vm2975, %v7472, 0
        %v7746 = vsel %vm2975, %v7473, 0
        %v7749 = vsel %vm2975, %v7474, 0
        %v7752 = vsel %vm2975, %v7475, 0
        %v7755 = vsel %vm2975, %v7476, 0
        %v7758 = vsel %vm2975, %v7477, 0
        %v7761 = vsel %vm2975, %v7478, 0
        %v7764 = vsel %vm2975, %v7479, 0
        %v7767 = vsel %vm2975, %v7480, 0
        %v7770 = vsel %vm2975, %v7481, 0
        %v7773 = vsel %vm2975, %v7482, 0
        %v7776 = vsel %vm2975, %v7483, 0
        %v7779 = vsel %vm2975, %v7484, 0
        %v7782 = vsel %vm2975, %v7485, 0
        %v7785 = vsel %vm2975, %v7486, 0
        %v7788 = vsel %vm2975, %v7487, 0
        %v7791 = vsel %vm2975, %v7488, 0
        %v7794 = vsel %vm2975, %v7489, 0
        %v7797 = vsel %vm2975, %v7490, 0
        %v7800 = vsel %vm2975, %v7491, 0
        %v7803 = vsel %vm2975, %v7492, 0
        %v7806 = vsel %vm2975, %v7493, 0
        %v7809 = vsel %vm2975, %v7494, 0
        %v7812 = vsel %vm2975, %v7495, 0
        %v7815 = vsel %vm2975, %v7496, 0
        %v7818 = vsel %vm2975, %v7497, 0
        %v7821 = vsel %vm2975, %v7498, 0
        %v7824 = vsel %vm2975, %v7499, 0
        %v7827 = vsel %vm2975, %v7500, 0
        %v7830 = vsel %vm2975, %v7501, 0
        %v7833 = vsel %vm2975, %v7502, 0
        %v7836 = vsel %vm2975, %v7503, 0
        %v7839 = vsel %vm2975, %v7504, 0
        %v7842 = vsel %vm2975, %v7505, 0
        %v7845 = vsel %vm2975, %v7506, 0
        %v7848 = vsel %vm2975, %v7507, 0
        %v7851 = vsel %vm2975, %v7508, 0
        %v7854 = vsel %vm2975, %v7509, 0
        %v7857 = vsel %vm2975, %v7510, 0
        %v7860 = vsel %vm2975, %v7511, 0
        %v7863 = vsel %vm2975, %v7512, 0
        %v7866 = vsel %vm2975, %v7513, 0
        %v7869 = vsel %vm2975, %v7514, 0
        %v7872 = vsel %vm2975, %v7515, 0
        %v7875 = vsel %vm2975, %v7516, 0
        %v7878 = vsel %vm2975, %v7517, 0
        %v7881 = vsel %vm2975, %v7518, 0
        %v7884 = vsel %vm2975, %v7519, 0
        %v7887 = vsel %vm2975, %v7520, 0
        %v7890 = vsel %vm2975, %v7521, 0
        %v7893 = vsel %vm2975, %v7522, 0
        %v7896 = vsel %vm2975, %v7523, 0
        %v7899 = vsel %vm2975, %v7524, 0
        %v7902 = vsel %vm2975, %v7525, 0
        %v7905 = vsel %vm2975, %v7526, 0
        %v7908 = vsel %vm2975, %v7527, 0
        %v7911 = vsel %vm2975, %v7528, 0
        %v7914 = vsel %vm2975, %v7529, 0
        %v7917 = vsel %vm2975, %v7530, 0
        %v7920 = vsel %vm2975, %v7531, 0
        %v7923 = vsel %vm2975, %v7532, 0
        %v7926 = vsel %vm2975, %v7533, 0
        %v7929 = vsel %vm2975, %v7534, 0
        %v7932 = vsel %vm2975, %v7535, 0
        %v7935 = vsel %vm2975, %v7536, 0
        %v7938 = vsel %vm2975, %v7537, 0
        %v7941 = vsel %vm2975, %v7538, 0
        %v7944 = vsel %vm2975, %v7539, 0
        %v7947 = vsel %vm2975, %v7540, 0
        %v7950 = vsel %vm2975, %v7541, 0
        %v7953 = vsel %vm2975, %v7542, 0
        %v7956 = vsel %vm2975, %v7543, 0
        %v7959 = vsel %vm2975, %v7544, 0
        %v7962 = vsel %vm2975, %v7545, 0
        %v7965 = vsel %vm2975, %v7546, 0
        %v7968 = vsel %vm2975, %v7547, 0
        %v7971 = vsel %vm2975, %v7548, 0
        %v7974 = vsel %vm2975, %v7549, 0
        %v7977 = vsel %vm2975, %v7550, 0
        %v7980 = vsel %vm2975, %v7551, 0
        %v7983 = vsel %vm2975, %v7552, 0
        %v7986 = vsel %vm2975, %v7553, 0
        %v7989 = vsel %vm2975, %v7554, 0
        %v7992 = vsel %vm2975, %v7555, 0
        %v7995 = vsel %vm2975, %v7556, 0
        %v7998 = vsel %vm2975, %v7557, 0
        %v8001 = vsel %vm2975, %v7558, 0
        %v8004 = vsel %vm2975, %v7559, 0
        %v8007 = vsel %vm2975, %v7560, 0
        %v8010 = vsel %vm2975, %v7561, 0
        %v8013 = vsel %vm2975, %v7562, 0
        %v8016 = vsel %vm2975, %v7563, 0
        %v8019 = vsel %vm2975, %v7564, 0
        %v8022 = vsel %vm2975, %v7565, 0
        %v8025 = vsel %vm2975, %v7566, 0
        %v8028 = vsel %vm2975, %v7567, 0
        %v8031 = vsel %vm2975, %v7568, 0
        %v8034 = vsel %vm2975, %v7569, 0
        %v8037 = vsel %vm2975, %v7570, 0
        %v8040 = vsel %vm2975, %v7571, 0
        %v8043 = vsel %vm2975, %v7572, 0
        %v8046 = vsel %vm2975, %v7573, 0
        %v8049 = vsel %vm2975, %v7574, 0
        %v8052 = vsel %vm2975, %v7575, 0
        %v8055 = vsel %vm2975, %v7576, 0
        %v8058 = vsel %vm2975, %v7577, 0
        %v8061 = vsel %vm2975, %v7578, 0
        %v8064 = vsel %vm2975, %v7579, 0
        %v8067 = vsel %vm2975, %v7580, 0
        %v8070 = vsel %vm2975, %v7581, 0
        %v8073 = vsel %vm2975, %v7582, 0
        %v8076 = vsel %vm2975, %v7583, 0
        %v8079 = vsel %vm2975, %v7584, 0
        %v8082 = vsel %vm2975, %v7585, 0
        %v8085 = vsel %vm2975, %v7586, 0
        %v8088 = vsel %vm2975, %v7587, 0
        %v8091 = vsel %vm2975, %v7588, 0
        %v8094 = vsel %vm2975, %v7589, 0
        %v8097 = vsel %vm2975, %v7590, 0
        %v8100 = vsel %vm2975, %v7591, 0
        %v8103 = vsel %vm2975, %v7592, 0
        %v8106 = vsel %vm2975, %v7593, 0
        %v8109 = vsel %vm2975, %v7594, 0
        %v8112 = vsel %vm2975, %v7595, 0
        %v8115 = vsel %vm2975, %v7596, 0
        %v8118 = vsel %vm2975, %v7597, 0
        %v8121 = vsel %vm2975, %v7598, 0
        %v8124 = vsel %vm2975, %v7599, 0
        %v8127 = vsel %vm2975, %v7600, 0
        %v8130 = vsel %vm2975, %v7601, 0
        %v8133 = vsel %vm2975, %v7602, 0
        %v8136 = vsel %vm2975, %v7603, 0
        %v8139 = vsel %vm2975, %v7604, 0
        %v8142 = vsel %vm2975, %v7605, 0
        %v8145 = vsel %vm2975, %v7606, 0
        %v8148 = vsel %vm2975, %v7607, 0
        %v8151 = vsel %vm2975, %v7608, 0
        %v8154 = vsel %vm2975, %v7609, 0
        %v8157 = vsel %vm2975, %v7610, 0
        %v8160 = vsel %vm2975, %v7611, 0
        %v8163 = vsel %vm2975, %v7612, 0
        %v8166 = vsel %vm2975, %v7613, 0
        %v8169 = vsel %vm2975, %v7614, 0
        %v8172 = vsel %vm2975, %v7615, 0
        %v8175 = vsel %vm2975, %v7616, 0
        %v8178 = vsel %vm2975, %v7617, 0
        %v8181 = vsel %vm2975, %v7618, 0
        %v8184 = vsel %vm2975, %v7619, 0
        %v8187 = vsel %vm2975, %v7620, 0
        %v8190 = vsel %vm2975, %v7621, 0
        %v8193 = vsel %vm2975, %v7622, 0
        %v8196 = vsel %vm2975, %v7623, 0
        %v8199 = vsel %vm2975, %v7624, 0
        %v8202 = vsel %vm2975, %v7625, 0
        %v8205 = vsel %vm2975, %v7626, 0
        %v8208 = vsel %vm2975, %v7627, 0
        %v8211 = vsel %vm2975, %v7628, 0
        %v8214 = vsel %vm2975, %v7629, 0
        %v8217 = vsel %vm2975, %v7630, 0
        %v8220 = vsel %vm2975, %v7631, 0
        %v8223 = vsel %vm2975, %v7632, 0
        %v8226 = vsel %vm2975, %v7633, 0
        %v8229 = vsel %vm2975, %v7634, 0
        %v8232 = vsel %vm2975, %v7635, 0
        %v8235 = vsel %vm2975, %v7636, 0
        %v8238 = vsel %vm2975, %v7637, 0
        %v8241 = vsel %vm2975, %v7638, 0
        %v8244 = vsel %vm2975, %v7639, 0
        %v8247 = vsel %vm2975, %v7640, 0
        %v8250 = vsel %vm2975, %v7641, 0
        %v8253 = vsel %vm2975, %v7642, 0
        %v8256 = vsel %vm2975, %v7643, 0
        %v8259 = vsel %vm2975, %v7644, 0
        %v8262 = vsel %vm2975, %v7645, 0
        %v8265 = vsel %vm2975, %v7646, 0
        %v8268 = vsel %vm2975, %v7647, 0
        %v8271 = vsel %vm2975, %v7648, 0
        %v8274 = vsel %vm2975, %v7649, 0
        %v8277 = vsel %vm2975, %v7650, 0
        %v8280 = vsel %vm2975, %v7651, 0
        %v8283 = vsel %vm2975, %v7652, 0
        %v8286 = vsel %vm2975, %v7653, 0
        %v8289 = vsel %vm2975, %v7654, 0
        %v8292 = vsel %vm2975, %v7655, 0
        %v8295 = vsel %vm2975, %v7656, 0
        %v8298 = vsel %vm2975, %v7657, 0
        %v8301 = vsel %vm2975, %v7658, 0
        %v8304 = vsel %vm2975, %v7659, 0
        %v8307 = vsel %vm2975, %v7660, 0
        %v8310 = vsel %vm2975, %v7661, 0
        %v8313 = vsel %vm2975, %v7662, 0
        %v8316 = vsel %vm2975, %v7663, 0
        %v8319 = vsel %vm2975, %v7664, 0
        %v8322 = vsel %vm2975, %v7665, 0
        %v8325 = vsel %vm2975, %v7666, 0
        %v8328 = vsel %vm2975, %v7667, 0
        %v8331 = vsel %vm2975, %v7668, 0
        %v8334 = vsel %vm2975, %v7669, 0
        %v8337 = vsel %vm2975, %v7670, 0
        %v8340 = vsel %vm2975, %v7671, 0
        %v8343 = vsel %vm2975, %v7672, 0
        %v8346 = vsel %vm2975, %v7673, 0
        %v8349 = vsel %vm2975, %v7674, 0
        %v8352 = vsel %vm2975, %v7675, 0
        %v8355 = vsel %vm2975, %v7676, 0
        %v8358 = vsel %vm2975, %v7677, 0
        %v8361 = vsel %vm2975, %v7678, 0
        %v8364 = vsel %vm2975, %v7679, 0
        %v8367 = vsel %vm2975, %v7680, 0
        %v8370 = vsel %vm2975, %v7681, 0
        %v8373 = vsel %vm2975, %v7682, 0
        %v8376 = vsel %vm2975, %v7683, 0
        %v8379 = vsel %vm2975, %v7684, 0
        %v8382 = vsel %vm2975, %v7685, 0
        %v8385 = vsel %vm2975, %v7686, 0
        %v8388 = vsel %vm2975, %v7687, 0
        %v8391 = vsel %vm2975, %v7688, 0
        %v8394 = vsel %vm2975, %v7689, 0
        %v8397 = vsel %vm2975, %v7690, 0
        %v8400 = vsel %vm2975, %v7691, 0
        %v8403 = vsel %vm2975, %v7692, 0
        %v8406 = vsel %vm2975, %v7693, 0
        %v8409 = vsel %vm2975, %v7694, 0
        %v8412 = vsel %vm2975, %v7695, 0
        %v8415 = vsel %vm2975, %v7696, 0
        %v8418 = vsel %vm2975, %v7697, 0
        %v8421 = vsel %vm2975, %v7698, 0
        %v8424 = vsel %vm2975, %v7699, 0
        %v8427 = vsel %vm2975, %v7700, 0
        %v8430 = vsel %vm2975, %v7701, 0
        %v8433 = vsel %vm2975, %v7702, 0
        %v8436 = vsel %vm2975, %v7703, 0
        %v8439 = vsel %vm2975, %v7704, 0
        %v8442 = vsel %vm2975, %v7705, 0
        %v8445 = vsel %vm2975, %v7706, 0
        %v8448 = vsel %vm2975, %v7707, 0
        %v8451 = vsel %vm2975, %v7708, 0
        %v8454 = vsel %vm2975, %v7709, 0
        %v8457 = vsel %vm2975, %v7710, 0
        %v8460 = vsel %vm2975, %v7711, 0
        %v8463 = vsel %vm2975, %v7712, 0
        %v8466 = vsel %vm2975, %v7713, 0
        %v8469 = vsel %vm2975, %v7714, 0
        %v8472 = vsel %vm2975, %v7715, 0
        %v8475 = vsel %vm2975, %v7716, 0
        %v8478 = vsel %vm2975, %v7717, 0
        %v8481 = vsel %vm2975, %v7718, 0
        %v8484 = vsel %vm2975, %v7719, 0
        %v8487 = vsel %vm2975, %v7720, 0
        %v8490 = vsel %vm2975, %v7721, 0
        %v8493 = vsel %vm2975, %v7722, 0
        %v8496 = vsel %vm2975, %v7723, 0
        %v8499 = vsel %vm2975, %v7724, 0
        %v8502 = vsel %vm2975, %v7725, 0
        %v8505 = vsel %vm2975, %v7726, 0
        %v8508 = vsel %vm2975, %v7727, 0
        %8510 = vmatprep.subr.mxu0 0.0
        %8511 = vmatpush1.msra.mxu0 0.0
        %8512 = vmatprep.subr.mxu0 0.0
        %8513 = vmatpush1.msra.mxu0 0.0
        %8514 = vmatprep.subr.mxu0 0.0
        %8515 = vmatpush1.msra.mxu0 0.0
        %8516 = vmatprep.subr.mxu0 0.0
        %8517 = vmatpush1.msra.mxu0 0.0
        %8518 = vmatprep.subr.mxu0 0.0
        %8519 = vmatpush1.msra.mxu0 0.0
        %8520 = vmatprep.subr.mxu0 0.0
        %8521 = vmatpush1.msra.mxu0 0.0
        %8522 = vmatprep.subr.mxu0 0.0
        %8523 = vmatpush1.msra.mxu0 0.0
        %8524 = vmatprep.subr.mxu0 0.0
        %8525 = vmatpush1.msra.mxu0 0.0
        %8526 = vmatprep.subr.mxu0 0.0
        %8527 = vmatpush1.msra.mxu0 %v7736
        %8528 = vmatprep.subr.mxu0 0.0
        %8529 = vmatpush1.msra.mxu0 %v7735
        %8530 = vmatprep.subr.mxu0 0.0
        %8531 = vmatpush1.msra.mxu0 %v7734
        %8532 = vmatprep.subr.mxu0 0.0
        %8533 = vmatpush1.msra.mxu0 %v7733
        %8534 = vmatprep.subr.mxu0 0.0
        %8535 = vmatpush1.msra.mxu0 %v7732
        %8536 = vmatprep.subr.mxu0 0.0
        %8537 = vmatpush1.msra.mxu0 %v7731
        %8538 = vmatprep.subr.mxu0 0.0
        %8539 = vmatpush1.msra.mxu0 %v7730
        %8540 = vmatprep.subr.mxu0 0.0
        %8541 = vmatpush1.msra.mxu0 %v7729
        %8542 = vmatprep.subr.mxu0 0.0
        %8543 = vmatpush2.msra.mxu0 0.0
        %8544 = vmatprep.subr.mxu0 0.0
        %8545 = vmatpush2.msra.mxu0 0.0
        %8546 = vmatprep.subr.mxu0 0.0
        %8547 = vmatpush2.msra.mxu0 0.0
        %8548 = vmatprep.subr.mxu0 0.0
        %8549 = vmatpush2.msra.mxu0 0.0
        %8550 = vmatprep.subr.mxu0 0.0
        %8551 = vmatpush2.msra.mxu0 0.0
        %8552 = vmatprep.subr.mxu0 0.0
        %8553 = vmatpush2.msra.mxu0 0.0
        %8554 = vmatprep.subr.mxu0 0.0
        %8555 = vmatpush2.msra.mxu0 0.0
        %8556 = vmatprep.subr.mxu0 0.0
        %8557 = vmatpush2.msra.mxu0 0.0
        %8558 = vmatprep.subr.mxu0 0.0
        %8559 = vmatpush2.msra.mxu0 0.0
        %8560 = vmatprep.subr.mxu0 0.0
        %8561 = vmatpush2.msra.mxu0 0.0
        %8562 = vmatprep.subr.mxu0 0.0
        %8563 = vmatpush2.msra.mxu0 0.0
        %8564 = vmatprep.subr.mxu0 0.0
        %8565 = vmatpush2.msra.mxu0 0.0
        %8566 = vmatprep.subr.mxu0 0.0
        %8567 = vmatpush2.msra.mxu0 0.0
        %8568 = vmatprep.subr.mxu0 0.0
        %8569 = vmatpush2.msra.mxu0 0.0
        %8570 = vmatprep.subr.mxu0 0.0
        %8571 = vmatpush2.msra.mxu0 0.0
        %8572 = vmatprep.subr.mxu0 0.0
        %8573 = vmatpush2.msra.mxu0 0.0
        %8574 = vmatprep.mubr.f32.mxu0 0.0
        %8575 = vmatmul.mubr.f32.gmra.mxu0 %v7743
        %v8576 = vpop.f32.mrf.mxu0
        %v8577 = vadd.f32 %v7741, %v8576
        %v8578 = vpop.f32.mrf.mxu0
        %8579 = vmatprep.mubr.f32.mxu0 0.0
        %8580 = vmatmul.mubr.f32.gmra.mxu0 %v7746
        %v8581 = vpop.f32.mrf.mxu0
        %v8582 = vadd.f32 %v7741, %v8581
        %v8583 = vpop.f32.mrf.mxu0
        %8584 = vmatprep.mubr.f32.mxu0 0.0
        %8585 = vmatmul.mubr.f32.gmra.mxu0 %v7749
        %v8586 = vpop.f32.mrf.mxu0
        %v8587 = vadd.f32 %v7741, %v8586
        %v8588 = vpop.f32.mrf.mxu0
        %8589 = vmatprep.mubr.f32.mxu0 0.0
        %8590 = vmatmul.mubr.f32.gmra.mxu0 %v7752
        %v8591 = vpop.f32.mrf.mxu0
        %v8592 = vadd.f32 %v7741, %v8591
        %v8593 = vpop.f32.mrf.mxu0
        %8594 = vmatprep.mubr.f32.mxu0 0.0
        %8595 = vmatmul.mubr.f32.gmra.mxu0 %v7755
        %v8596 = vpop.f32.mrf.mxu0
        %v8597 = vadd.f32 %v7741, %v8596
        %v8598 = vpop.f32.mrf.mxu0
        %8599 = vmatprep.mubr.f32.mxu0 0.0
        %8600 = vmatmul.mubr.f32.gmra.mxu0 %v7758
        %v8601 = vpop.f32.mrf.mxu0
        %v8602 = vadd.f32 %v7741, %v8601
        %v8603 = vpop.f32.mrf.mxu0
        %8604 = vmatprep.mubr.f32.mxu0 0.0
        %8605 = vmatmul.mubr.f32.gmra.mxu0 %v7761
        %v8606 = vpop.f32.mrf.mxu0
        %v8607 = vadd.f32 %v7741, %v8606
        %v8608 = vpop.f32.mrf.mxu0
        %8609 = vmatprep.mubr.f32.mxu0 0.0
        %8610 = vmatmul.mubr.f32.gmra.mxu0 %v7764
        %v8611 = vpop.f32.mrf.mxu0
        %v8612 = vadd.f32 %v7741, %v8611
        %v8613 = vpop.f32.mrf.mxu0
        %8614 = vmatprep.mubr.f32.mxu0 0.0
        %8615 = vmatmul.mubr.f32.gmra.mxu0 %v7767
        %v8616 = vpop.f32.mrf.mxu0
        %v8617 = vadd.f32 %v7741, %v8616
        %v8618 = vpop.f32.mrf.mxu0
        %8619 = vmatprep.mubr.f32.mxu0 0.0
        %8620 = vmatmul.mubr.f32.gmra.mxu0 %v7770
        %v8621 = vpop.f32.mrf.mxu0
        %v8622 = vadd.f32 %v7741, %v8621
        %v8623 = vpop.f32.mrf.mxu0
        %8624 = vmatprep.mubr.f32.mxu0 0.0
        %8625 = vmatmul.mubr.f32.gmra.mxu0 %v7773
        %v8626 = vpop.f32.mrf.mxu0
        %v8627 = vadd.f32 %v7741, %v8626
        %v8628 = vpop.f32.mrf.mxu0
        %8629 = vmatprep.mubr.f32.mxu0 0.0
        %8630 = vmatmul.mubr.f32.gmra.mxu0 %v7776
        %v8631 = vpop.f32.mrf.mxu0
        %v8632 = vadd.f32 %v7741, %v8631
        %v8633 = vpop.f32.mrf.mxu0
        %8634 = vmatprep.mubr.f32.mxu0 0.0
        %8635 = vmatmul.mubr.f32.gmra.mxu0 %v7779
        %v8636 = vpop.f32.mrf.mxu0
        %v8637 = vadd.f32 %v7741, %v8636
        %v8638 = vpop.f32.mrf.mxu0
        %8639 = vmatprep.mubr.f32.mxu0 0.0
        %8640 = vmatmul.mubr.f32.gmra.mxu0 %v7782
        %v8641 = vpop.f32.mrf.mxu0
        %v8642 = vadd.f32 %v7741, %v8641
        %v8643 = vpop.f32.mrf.mxu0
        %8644 = vmatprep.mubr.f32.mxu0 0.0
        %8645 = vmatmul.mubr.f32.gmra.mxu0 %v7785
        %v8646 = vpop.f32.mrf.mxu0
        %v8647 = vadd.f32 %v7741, %v8646
        %v8648 = vpop.f32.mrf.mxu0
        %8649 = vmatprep.mubr.f32.mxu0 0.0
        %8650 = vmatmul.mubr.f32.gmra.mxu0 %v7788
        %v8651 = vpop.f32.mrf.mxu0
        %v8652 = vadd.f32 %v7741, %v8651
        %v8653 = vpop.f32.mrf.mxu0
        %8654 = vmatprep.mubr.f32.mxu0 0.0
        %8655 = vmatmul.mubr.f32.gmra.mxu0 %v7791
        %v8656 = vpop.f32.mrf.mxu0
        %v8657 = vadd.f32 %v7741, %v8656
        %v8658 = vpop.f32.mrf.mxu0
        %8659 = vmatprep.mubr.f32.mxu0 0.0
        %8660 = vmatmul.mubr.f32.gmra.mxu0 %v7794
        %v8661 = vpop.f32.mrf.mxu0
        %v8662 = vadd.f32 %v7741, %v8661
        %v8663 = vpop.f32.mrf.mxu0
        %8664 = vmatprep.mubr.f32.mxu0 0.0
        %8665 = vmatmul.mubr.f32.gmra.mxu0 %v7797
        %v8666 = vpop.f32.mrf.mxu0
        %v8667 = vadd.f32 %v7741, %v8666
        %v8668 = vpop.f32.mrf.mxu0
        %8669 = vmatprep.mubr.f32.mxu0 0.0
        %8670 = vmatmul.mubr.f32.gmra.mxu0 %v7800
        %v8671 = vpop.f32.mrf.mxu0
        %v8672 = vadd.f32 %v7741, %v8671
        %v8673 = vpop.f32.mrf.mxu0
        %8674 = vmatprep.mubr.f32.mxu0 0.0
        %8675 = vmatmul.mubr.f32.gmra.mxu0 %v7803
        %v8676 = vpop.f32.mrf.mxu0
        %v8677 = vadd.f32 %v7741, %v8676
        %v8678 = vpop.f32.mrf.mxu0
        %8679 = vmatprep.mubr.f32.mxu0 0.0
        %8680 = vmatmul.mubr.f32.gmra.mxu0 %v7806
        %v8681 = vpop.f32.mrf.mxu0
        %v8682 = vadd.f32 %v7741, %v8681
        %v8683 = vpop.f32.mrf.mxu0
        %8684 = vmatprep.mubr.f32.mxu0 0.0
        %8685 = vmatmul.mubr.f32.gmra.mxu0 %v7809
        %v8686 = vpop.f32.mrf.mxu0
        %v8687 = vadd.f32 %v7741, %v8686
        %v8688 = vpop.f32.mrf.mxu0
        %8689 = vmatprep.mubr.f32.mxu0 0.0
        %8690 = vmatmul.mubr.f32.gmra.mxu0 %v7812
        %v8691 = vpop.f32.mrf.mxu0
        %v8692 = vadd.f32 %v7741, %v8691
        %v8693 = vpop.f32.mrf.mxu0
        %8694 = vmatprep.mubr.f32.mxu0 0.0
        %8695 = vmatmul.mubr.f32.gmra.mxu0 %v7815
        %v8696 = vpop.f32.mrf.mxu0
        %v8697 = vadd.f32 %v7741, %v8696
        %v8698 = vpop.f32.mrf.mxu0
        %8699 = vmatprep.mubr.f32.mxu0 0.0
        %8700 = vmatmul.mubr.f32.gmra.mxu0 %v7818
        %v8701 = vpop.f32.mrf.mxu0
        %v8702 = vadd.f32 %v7741, %v8701
        %v8703 = vpop.f32.mrf.mxu0
        %8704 = vmatprep.mubr.f32.mxu0 0.0
        %8705 = vmatmul.mubr.f32.gmra.mxu0 %v7821
        %v8706 = vpop.f32.mrf.mxu0
        %v8707 = vadd.f32 %v7741, %v8706
        %v8708 = vpop.f32.mrf.mxu0
        %8709 = vmatprep.mubr.f32.mxu0 0.0
        %8710 = vmatmul.mubr.f32.gmra.mxu0 %v7824
        %v8711 = vpop.f32.mrf.mxu0
        %v8712 = vadd.f32 %v7741, %v8711
        %v8713 = vpop.f32.mrf.mxu0
        %8714 = vmatprep.mubr.f32.mxu0 0.0
        %8715 = vmatmul.mubr.f32.gmra.mxu0 %v7827
        %v8716 = vpop.f32.mrf.mxu0
        %v8717 = vadd.f32 %v7741, %v8716
        %v8718 = vpop.f32.mrf.mxu0
        %8719 = vmatprep.mubr.f32.mxu0 0.0
        %8720 = vmatmul.mubr.f32.gmra.mxu0 %v7830
        %v8721 = vpop.f32.mrf.mxu0
        %v8722 = vadd.f32 %v7741, %v8721
        %v8723 = vpop.f32.mrf.mxu0
        %8724 = vmatprep.mubr.f32.mxu0 0.0
        %8725 = vmatmul.mubr.f32.gmra.mxu0 %v7833
        %v8726 = vpop.f32.mrf.mxu0
        %v8727 = vadd.f32 %v7741, %v8726
        %v8728 = vpop.f32.mrf.mxu0
        %8729 = vmatprep.mubr.f32.mxu0 0.0
        %8730 = vmatmul.mubr.f32.gmra.mxu0 %v7836
        %v8731 = vpop.f32.mrf.mxu0
        %v8732 = vadd.f32 %v7741, %v8731
        %v8733 = vpop.f32.mrf.mxu0
        %8734 = vmatprep.mubr.f32.mxu0 0.0
        %8735 = vmatmul.mubr.f32.gmra.mxu0 %v7839
        %v8736 = vpop.f32.mrf.mxu0
        %v8737 = vadd.f32 %v7741, %v8736
        %v8738 = vpop.f32.mrf.mxu0
        %8739 = vmatprep.mubr.f32.mxu0 0.0
        %8740 = vmatmul.mubr.f32.gmra.mxu0 %v7842
        %v8741 = vpop.f32.mrf.mxu0
        %v8742 = vadd.f32 %v7741, %v8741
        %v8743 = vpop.f32.mrf.mxu0
        %8744 = vmatprep.mubr.f32.mxu0 0.0
        %8745 = vmatmul.mubr.f32.gmra.mxu0 %v7845
        %v8746 = vpop.f32.mrf.mxu0
        %v8747 = vadd.f32 %v7741, %v8746
        %v8748 = vpop.f32.mrf.mxu0
        %8749 = vmatprep.mubr.f32.mxu0 0.0
        %8750 = vmatmul.mubr.f32.gmra.mxu0 %v7848
        %v8751 = vpop.f32.mrf.mxu0
        %v8752 = vadd.f32 %v7741, %v8751
        %v8753 = vpop.f32.mrf.mxu0
        %8754 = vmatprep.mubr.f32.mxu0 0.0
        %8755 = vmatmul.mubr.f32.gmra.mxu0 %v7851
        %v8756 = vpop.f32.mrf.mxu0
        %v8757 = vadd.f32 %v7741, %v8756
        %v8758 = vpop.f32.mrf.mxu0
        %8759 = vmatprep.mubr.f32.mxu0 0.0
        %8760 = vmatmul.mubr.f32.gmra.mxu0 %v7854
        %v8761 = vpop.f32.mrf.mxu0
        %v8762 = vadd.f32 %v7741, %v8761
        %v8763 = vpop.f32.mrf.mxu0
        %8764 = vmatprep.mubr.f32.mxu0 0.0
        %8765 = vmatmul.mubr.f32.gmra.mxu0 %v7857
        %v8766 = vpop.f32.mrf.mxu0
        %v8767 = vadd.f32 %v7741, %v8766
        %v8768 = vpop.f32.mrf.mxu0
        %8769 = vmatprep.mubr.f32.mxu0 0.0
        %8770 = vmatmul.mubr.f32.gmra.mxu0 %v7860
        %v8771 = vpop.f32.mrf.mxu0
        %v8772 = vadd.f32 %v7741, %v8771
        %v8773 = vpop.f32.mrf.mxu0
        %8774 = vmatprep.mubr.f32.mxu0 0.0
        %8775 = vmatmul.mubr.f32.gmra.mxu0 %v7863
        %v8776 = vpop.f32.mrf.mxu0
        %v8777 = vadd.f32 %v7741, %v8776
        %v8778 = vpop.f32.mrf.mxu0
        %8779 = vmatprep.mubr.f32.mxu0 0.0
        %8780 = vmatmul.mubr.f32.gmra.mxu0 %v7866
        %v8781 = vpop.f32.mrf.mxu0
        %v8782 = vadd.f32 %v7741, %v8781
        %v8783 = vpop.f32.mrf.mxu0
        %8784 = vmatprep.mubr.f32.mxu0 0.0
        %8785 = vmatmul.mubr.f32.gmra.mxu0 %v7869
        %v8786 = vpop.f32.mrf.mxu0
        %v8787 = vadd.f32 %v7741, %v8786
        %v8788 = vpop.f32.mrf.mxu0
        %8789 = vmatprep.mubr.f32.mxu0 0.0
        %8790 = vmatmul.mubr.f32.gmra.mxu0 %v7872
        %v8791 = vpop.f32.mrf.mxu0
        %v8792 = vadd.f32 %v7741, %v8791
        %v8793 = vpop.f32.mrf.mxu0
        %8794 = vmatprep.mubr.f32.mxu0 0.0
        %8795 = vmatmul.mubr.f32.gmra.mxu0 %v7875
        %v8796 = vpop.f32.mrf.mxu0
        %v8797 = vadd.f32 %v7741, %v8796
        %v8798 = vpop.f32.mrf.mxu0
        %8799 = vmatprep.mubr.f32.mxu0 0.0
        %8800 = vmatmul.mubr.f32.gmra.mxu0 %v7878
        %v8801 = vpop.f32.mrf.mxu0
        %v8802 = vadd.f32 %v7741, %v8801
        %v8803 = vpop.f32.mrf.mxu0
        %8804 = vmatprep.mubr.f32.mxu0 0.0
        %8805 = vmatmul.mubr.f32.gmra.mxu0 %v7881
        %v8806 = vpop.f32.mrf.mxu0
        %v8807 = vadd.f32 %v7741, %v8806
        %v8808 = vpop.f32.mrf.mxu0
        %8809 = vmatprep.mubr.f32.mxu0 0.0
        %8810 = vmatmul.mubr.f32.gmra.mxu0 %v7884
        %v8811 = vpop.f32.mrf.mxu0
        %v8812 = vadd.f32 %v7741, %v8811
        %v8813 = vpop.f32.mrf.mxu0
        %8814 = vmatprep.mubr.f32.mxu0 0.0
        %8815 = vmatmul.mubr.f32.gmra.mxu0 %v7887
        %v8816 = vpop.f32.mrf.mxu0
        %v8817 = vadd.f32 %v7741, %v8816
        %v8818 = vpop.f32.mrf.mxu0
        %8819 = vmatprep.mubr.f32.mxu0 0.0
        %8820 = vmatmul.mubr.f32.gmra.mxu0 %v7890
        %v8821 = vpop.f32.mrf.mxu0
        %v8822 = vadd.f32 %v7741, %v8821
        %v8823 = vpop.f32.mrf.mxu0
        %8824 = vmatprep.mubr.f32.mxu0 0.0
        %8825 = vmatmul.mubr.f32.gmra.mxu0 %v7893
        %v8826 = vpop.f32.mrf.mxu0
        %v8827 = vadd.f32 %v7741, %v8826
        %v8828 = vpop.f32.mrf.mxu0
        %8829 = vmatprep.mubr.f32.mxu0 0.0
        %8830 = vmatmul.mubr.f32.gmra.mxu0 %v7896
        %v8831 = vpop.f32.mrf.mxu0
        %v8832 = vadd.f32 %v7741, %v8831
        %v8833 = vpop.f32.mrf.mxu0
        %8834 = vmatprep.mubr.f32.mxu0 0.0
        %8835 = vmatmul.mubr.f32.gmra.mxu0 %v7899
        %v8836 = vpop.f32.mrf.mxu0
        %v8837 = vadd.f32 %v7741, %v8836
        %v8838 = vpop.f32.mrf.mxu0
        %8839 = vmatprep.mubr.f32.mxu0 0.0
        %8840 = vmatmul.mubr.f32.gmra.mxu0 %v7902
        %v8841 = vpop.f32.mrf.mxu0
        %v8842 = vadd.f32 %v7741, %v8841
        %v8843 = vpop.f32.mrf.mxu0
        %8844 = vmatprep.mubr.f32.mxu0 0.0
        %8845 = vmatmul.mubr.f32.gmra.mxu0 %v7905
        %v8846 = vpop.f32.mrf.mxu0
        %v8847 = vadd.f32 %v7741, %v8846
        %v8848 = vpop.f32.mrf.mxu0
        %8849 = vmatprep.mubr.f32.mxu0 0.0
        %8850 = vmatmul.mubr.f32.gmra.mxu0 %v7908
        %v8851 = vpop.f32.mrf.mxu0
        %v8852 = vadd.f32 %v7741, %v8851
        %v8853 = vpop.f32.mrf.mxu0
        %8854 = vmatprep.mubr.f32.mxu0 0.0
        %8855 = vmatmul.mubr.f32.gmra.mxu0 %v7911
        %v8856 = vpop.f32.mrf.mxu0
        %v8857 = vadd.f32 %v7741, %v8856
        %v8858 = vpop.f32.mrf.mxu0
        %8859 = vmatprep.mubr.f32.mxu0 0.0
        %8860 = vmatmul.mubr.f32.gmra.mxu0 %v7914
        %v8861 = vpop.f32.mrf.mxu0
        %v8862 = vadd.f32 %v7741, %v8861
        %v8863 = vpop.f32.mrf.mxu0
        %8864 = vmatprep.mubr.f32.mxu0 0.0
        %8865 = vmatmul.mubr.f32.gmra.mxu0 %v7917
        %v8866 = vpop.f32.mrf.mxu0
        %v8867 = vadd.f32 %v7741, %v8866
        %v8868 = vpop.f32.mrf.mxu0
        %8869 = vmatprep.mubr.f32.mxu0 0.0
        %8870 = vmatmul.mubr.f32.gmra.mxu0 %v7920
        %v8871 = vpop.f32.mrf.mxu0
        %v8872 = vadd.f32 %v7741, %v8871
        %v8873 = vpop.f32.mrf.mxu0
        %8874 = vmatprep.mubr.f32.mxu0 0.0
        %8875 = vmatmul.mubr.f32.gmra.mxu0 %v7923
        %v8876 = vpop.f32.mrf.mxu0
        %v8877 = vadd.f32 %v7741, %v8876
        %v8878 = vpop.f32.mrf.mxu0
        %8879 = vmatprep.mubr.f32.mxu0 0.0
        %8880 = vmatmul.mubr.f32.gmra.mxu0 %v7926
        %v8881 = vpop.f32.mrf.mxu0
        %v8882 = vadd.f32 %v7741, %v8881
        %v8883 = vpop.f32.mrf.mxu0
        %8884 = vmatprep.mubr.f32.mxu0 0.0
        %8885 = vmatmul.mubr.f32.gmra.mxu0 %v7929
        %v8886 = vpop.f32.mrf.mxu0
        %v8887 = vadd.f32 %v7741, %v8886
        %v8888 = vpop.f32.mrf.mxu0
        %8889 = vmatprep.mubr.f32.mxu0 0.0
        %8890 = vmatmul.mubr.f32.gmra.mxu0 %v7932
        %v8891 = vpop.f32.mrf.mxu0
        %v8892 = vadd.f32 %v7741, %v8891
        %v8893 = vpop.f32.mrf.mxu0
        %8894 = vmatprep.mubr.f32.mxu0 0.0
        %8895 = vmatmul.mubr.f32.gmra.mxu0 %v7935
        %v8896 = vpop.f32.mrf.mxu0
        %v8897 = vadd.f32 %v7741, %v8896
        %v8898 = vpop.f32.mrf.mxu0
        %8899 = vmatprep.mubr.f32.mxu0 0.0
        %8900 = vmatmul.mubr.f32.gmra.mxu0 %v7938
        %v8901 = vpop.f32.mrf.mxu0
        %v8902 = vadd.f32 %v7741, %v8901
        %v8903 = vpop.f32.mrf.mxu0
        %8904 = vmatprep.mubr.f32.mxu0 0.0
        %8905 = vmatmul.mubr.f32.gmra.mxu0 %v7941
        %v8906 = vpop.f32.mrf.mxu0
        %v8907 = vadd.f32 %v7741, %v8906
        %v8908 = vpop.f32.mrf.mxu0
        %8909 = vmatprep.mubr.f32.mxu0 0.0
        %8910 = vmatmul.mubr.f32.gmra.mxu0 %v7944
        %v8911 = vpop.f32.mrf.mxu0
        %v8912 = vadd.f32 %v7741, %v8911
        %v8913 = vpop.f32.mrf.mxu0
        %8914 = vmatprep.mubr.f32.mxu0 0.0
        %8915 = vmatmul.mubr.f32.gmra.mxu0 %v7947
        %v8916 = vpop.f32.mrf.mxu0
        %v8917 = vadd.f32 %v7741, %v8916
        %v8918 = vpop.f32.mrf.mxu0
        %8919 = vmatprep.mubr.f32.mxu0 0.0
        %8920 = vmatmul.mubr.f32.gmra.mxu0 %v7950
        %v8921 = vpop.f32.mrf.mxu0
        %v8922 = vadd.f32 %v7741, %v8921
        %v8923 = vpop.f32.mrf.mxu0
        %8924 = vmatprep.mubr.f32.mxu0 0.0
        %8925 = vmatmul.mubr.f32.gmra.mxu0 %v7953
        %v8926 = vpop.f32.mrf.mxu0
        %v8927 = vadd.f32 %v7741, %v8926
        %v8928 = vpop.f32.mrf.mxu0
        %8929 = vmatprep.mubr.f32.mxu0 0.0
        %8930 = vmatmul.mubr.f32.gmra.mxu0 %v7956
        %v8931 = vpop.f32.mrf.mxu0
        %v8932 = vadd.f32 %v7741, %v8931
        %v8933 = vpop.f32.mrf.mxu0
        %8934 = vmatprep.mubr.f32.mxu0 0.0
        %8935 = vmatmul.mubr.f32.gmra.mxu0 %v7959
        %v8936 = vpop.f32.mrf.mxu0
        %v8937 = vadd.f32 %v7741, %v8936
        %v8938 = vpop.f32.mrf.mxu0
        %8939 = vmatprep.mubr.f32.mxu0 0.0
        %8940 = vmatmul.mubr.f32.gmra.mxu0 %v7962
        %v8941 = vpop.f32.mrf.mxu0
        %v8942 = vadd.f32 %v7741, %v8941
        %v8943 = vpop.f32.mrf.mxu0
        %8944 = vmatprep.mubr.f32.mxu0 0.0
        %8945 = vmatmul.mubr.f32.gmra.mxu0 %v7965
        %v8946 = vpop.f32.mrf.mxu0
        %v8947 = vadd.f32 %v7741, %v8946
        %v8948 = vpop.f32.mrf.mxu0
        %8949 = vmatprep.mubr.f32.mxu0 0.0
        %8950 = vmatmul.mubr.f32.gmra.mxu0 %v7968
        %v8951 = vpop.f32.mrf.mxu0
        %v8952 = vadd.f32 %v7741, %v8951
        %v8953 = vpop.f32.mrf.mxu0
        %8954 = vmatprep.mubr.f32.mxu0 0.0
        %8955 = vmatmul.mubr.f32.gmra.mxu0 %v7971
        %v8956 = vpop.f32.mrf.mxu0
        %v8957 = vadd.f32 %v7741, %v8956
        %v8958 = vpop.f32.mrf.mxu0
        %8959 = vmatprep.mubr.f32.mxu0 0.0
        %8960 = vmatmul.mubr.f32.gmra.mxu0 %v7974
        %v8961 = vpop.f32.mrf.mxu0
        %v8962 = vadd.f32 %v7741, %v8961
        %v8963 = vpop.f32.mrf.mxu0
        %8964 = vmatprep.mubr.f32.mxu0 0.0
        %8965 = vmatmul.mubr.f32.gmra.mxu0 %v7977
        %v8966 = vpop.f32.mrf.mxu0
        %v8967 = vadd.f32 %v7741, %v8966
        %v8968 = vpop.f32.mrf.mxu0
        %8969 = vmatprep.mubr.f32.mxu0 0.0
        %8970 = vmatmul.mubr.f32.gmra.mxu0 %v7980
        %v8971 = vpop.f32.mrf.mxu0
        %v8972 = vadd.f32 %v7741, %v8971
        %v8973 = vpop.f32.mrf.mxu0
        %8974 = vmatprep.mubr.f32.mxu0 0.0
        %8975 = vmatmul.mubr.f32.gmra.mxu0 %v7983
        %v8976 = vpop.f32.mrf.mxu0
        %v8977 = vadd.f32 %v7741, %v8976
        %v8978 = vpop.f32.mrf.mxu0
        %8979 = vmatprep.mubr.f32.mxu0 0.0
        %8980 = vmatmul.mubr.f32.gmra.mxu0 %v7986
        %v8981 = vpop.f32.mrf.mxu0
        %v8982 = vadd.f32 %v7741, %v8981
        %v8983 = vpop.f32.mrf.mxu0
        %8984 = vmatprep.mubr.f32.mxu0 0.0
        %8985 = vmatmul.mubr.f32.gmra.mxu0 %v7989
        %v8986 = vpop.f32.mrf.mxu0
        %v8987 = vadd.f32 %v7741, %v8986
        %v8988 = vpop.f32.mrf.mxu0
        %8989 = vmatprep.mubr.f32.mxu0 0.0
        %8990 = vmatmul.mubr.f32.gmra.mxu0 %v7992
        %v8991 = vpop.f32.mrf.mxu0
        %v8992 = vadd.f32 %v7741, %v8991
        %v8993 = vpop.f32.mrf.mxu0
        %8994 = vmatprep.mubr.f32.mxu0 0.0
        %8995 = vmatmul.mubr.f32.gmra.mxu0 %v7995
        %v8996 = vpop.f32.mrf.mxu0
        %v8997 = vadd.f32 %v7741, %v8996
        %v8998 = vpop.f32.mrf.mxu0
        %8999 = vmatprep.mubr.f32.mxu0 0.0
        %9000 = vmatmul.mubr.f32.gmra.mxu0 %v7998
        %v9001 = vpop.f32.mrf.mxu0
        %v9002 = vadd.f32 %v7741, %v9001
        %v9003 = vpop.f32.mrf.mxu0
        %9004 = vmatprep.mubr.f32.mxu0 0.0
        %9005 = vmatmul.mubr.f32.gmra.mxu0 %v8001
        %v9006 = vpop.f32.mrf.mxu0
        %v9007 = vadd.f32 %v7741, %v9006
        %v9008 = vpop.f32.mrf.mxu0
        %9009 = vmatprep.mubr.f32.mxu0 0.0
        %9010 = vmatmul.mubr.f32.gmra.mxu0 %v8004
        %v9011 = vpop.f32.mrf.mxu0
        %v9012 = vadd.f32 %v7741, %v9011
        %v9013 = vpop.f32.mrf.mxu0
        %9014 = vmatprep.mubr.f32.mxu0 0.0
        %9015 = vmatmul.mubr.f32.gmra.mxu0 %v8007
        %v9016 = vpop.f32.mrf.mxu0
        %v9017 = vadd.f32 %v7741, %v9016
        %v9018 = vpop.f32.mrf.mxu0
        %9019 = vmatprep.mubr.f32.mxu0 0.0
        %9020 = vmatmul.mubr.f32.gmra.mxu0 %v8010
        %v9021 = vpop.f32.mrf.mxu0
        %v9022 = vadd.f32 %v7741, %v9021
        %v9023 = vpop.f32.mrf.mxu0
        %9024 = vmatprep.mubr.f32.mxu0 0.0
        %9025 = vmatmul.mubr.f32.gmra.mxu0 %v8013
        %v9026 = vpop.f32.mrf.mxu0
        %v9027 = vadd.f32 %v7741, %v9026
        %v9028 = vpop.f32.mrf.mxu0
        %9029 = vmatprep.mubr.f32.mxu0 0.0
        %9030 = vmatmul.mubr.f32.gmra.mxu0 %v8016
        %v9031 = vpop.f32.mrf.mxu0
        %v9032 = vadd.f32 %v7741, %v9031
        %v9033 = vpop.f32.mrf.mxu0
        %9034 = vmatprep.mubr.f32.mxu0 0.0
        %9035 = vmatmul.mubr.f32.gmra.mxu0 %v8019
        %v9036 = vpop.f32.mrf.mxu0
        %v9037 = vadd.f32 %v7741, %v9036
        %v9038 = vpop.f32.mrf.mxu0
        %9039 = vmatprep.mubr.f32.mxu0 0.0
        %9040 = vmatmul.mubr.f32.gmra.mxu0 %v8022
        %v9041 = vpop.f32.mrf.mxu0
        %v9042 = vadd.f32 %v7741, %v9041
        %v9043 = vpop.f32.mrf.mxu0
        %9044 = vmatprep.mubr.f32.mxu0 0.0
        %9045 = vmatmul.mubr.f32.gmra.mxu0 %v8025
        %v9046 = vpop.f32.mrf.mxu0
        %v9047 = vadd.f32 %v7741, %v9046
        %v9048 = vpop.f32.mrf.mxu0
        %9049 = vmatprep.mubr.f32.mxu0 0.0
        %9050 = vmatmul.mubr.f32.gmra.mxu0 %v8028
        %v9051 = vpop.f32.mrf.mxu0
        %v9052 = vadd.f32 %v7741, %v9051
        %v9053 = vpop.f32.mrf.mxu0
        %9054 = vmatprep.mubr.f32.mxu0 0.0
        %9055 = vmatmul.mubr.f32.gmra.mxu0 %v8031
        %v9056 = vpop.f32.mrf.mxu0
        %v9057 = vadd.f32 %v7741, %v9056
        %v9058 = vpop.f32.mrf.mxu0
        %9059 = vmatprep.mubr.f32.mxu0 0.0
        %9060 = vmatmul.mubr.f32.gmra.mxu0 %v8034
        %v9061 = vpop.f32.mrf.mxu0
        %v9062 = vadd.f32 %v7741, %v9061
        %v9063 = vpop.f32.mrf.mxu0
        %9064 = vmatprep.mubr.f32.mxu0 0.0
        %9065 = vmatmul.mubr.f32.gmra.mxu0 %v8037
        %v9066 = vpop.f32.mrf.mxu0
        %v9067 = vadd.f32 %v7741, %v9066
        %v9068 = vpop.f32.mrf.mxu0
        %9069 = vmatprep.mubr.f32.mxu0 0.0
        %9070 = vmatmul.mubr.f32.gmra.mxu0 %v8040
        %v9071 = vpop.f32.mrf.mxu0
        %v9072 = vadd.f32 %v7741, %v9071
        %v9073 = vpop.f32.mrf.mxu0
        %9074 = vmatprep.mubr.f32.mxu0 0.0
        %9075 = vmatmul.mubr.f32.gmra.mxu0 %v8043
        %v9076 = vpop.f32.mrf.mxu0
        %v9077 = vadd.f32 %v7741, %v9076
        %v9078 = vpop.f32.mrf.mxu0
        %9079 = vmatprep.mubr.f32.mxu0 0.0
        %9080 = vmatmul.mubr.f32.gmra.mxu0 %v8046
        %v9081 = vpop.f32.mrf.mxu0
        %v9082 = vadd.f32 %v7741, %v9081
        %v9083 = vpop.f32.mrf.mxu0
        %9084 = vmatprep.mubr.f32.mxu0 0.0
        %9085 = vmatmul.mubr.f32.gmra.mxu0 %v8049
        %v9086 = vpop.f32.mrf.mxu0
        %v9087 = vadd.f32 %v7741, %v9086
        %v9088 = vpop.f32.mrf.mxu0
        %9089 = vmatprep.mubr.f32.mxu0 0.0
        %9090 = vmatmul.mubr.f32.gmra.mxu0 %v8052
        %v9091 = vpop.f32.mrf.mxu0
        %v9092 = vadd.f32 %v7741, %v9091
        %v9093 = vpop.f32.mrf.mxu0
        %9094 = vmatprep.mubr.f32.mxu0 0.0
        %9095 = vmatmul.mubr.f32.gmra.mxu0 %v8055
        %v9096 = vpop.f32.mrf.mxu0
        %v9097 = vadd.f32 %v7741, %v9096
        %v9098 = vpop.f32.mrf.mxu0
        %9099 = vmatprep.mubr.f32.mxu0 0.0
        %9100 = vmatmul.mubr.f32.gmra.mxu0 %v8058
        %v9101 = vpop.f32.mrf.mxu0
        %v9102 = vadd.f32 %v7741, %v9101
        %v9103 = vpop.f32.mrf.mxu0
        %9104 = vmatprep.mubr.f32.mxu0 0.0
        %9105 = vmatmul.mubr.f32.gmra.mxu0 %v8061
        %v9106 = vpop.f32.mrf.mxu0
        %v9107 = vadd.f32 %v7741, %v9106
        %v9108 = vpop.f32.mrf.mxu0
        %9109 = vmatprep.mubr.f32.mxu0 0.0
        %9110 = vmatmul.mubr.f32.gmra.mxu0 %v8064
        %v9111 = vpop.f32.mrf.mxu0
        %v9112 = vadd.f32 %v7741, %v9111
        %v9113 = vpop.f32.mrf.mxu0
        %9114 = vmatprep.mubr.f32.mxu0 0.0
        %9115 = vmatmul.mubr.f32.gmra.mxu0 %v8067
        %v9116 = vpop.f32.mrf.mxu0
        %v9117 = vadd.f32 %v7741, %v9116
        %v9118 = vpop.f32.mrf.mxu0
        %9119 = vmatprep.mubr.f32.mxu0 0.0
        %9120 = vmatmul.mubr.f32.gmra.mxu0 %v8070
        %v9121 = vpop.f32.mrf.mxu0
        %v9122 = vadd.f32 %v7741, %v9121
        %v9123 = vpop.f32.mrf.mxu0
        %9124 = vmatprep.mubr.f32.mxu0 0.0
        %9125 = vmatmul.mubr.f32.gmra.mxu0 %v8073
        %v9126 = vpop.f32.mrf.mxu0
        %v9127 = vadd.f32 %v7741, %v9126
        %v9128 = vpop.f32.mrf.mxu0
        %9129 = vmatprep.mubr.f32.mxu0 0.0
        %9130 = vmatmul.mubr.f32.gmra.mxu0 %v8076
        %v9131 = vpop.f32.mrf.mxu0
        %v9132 = vadd.f32 %v7741, %v9131
        %v9133 = vpop.f32.mrf.mxu0
        %9134 = vmatprep.mubr.f32.mxu0 0.0
        %9135 = vmatmul.mubr.f32.gmra.mxu0 %v8079
        %v9136 = vpop.f32.mrf.mxu0
        %v9137 = vadd.f32 %v7741, %v9136
        %v9138 = vpop.f32.mrf.mxu0
        %9139 = vmatprep.mubr.f32.mxu0 0.0
        %9140 = vmatmul.mubr.f32.gmra.mxu0 %v8082
        %v9141 = vpop.f32.mrf.mxu0
        %v9142 = vadd.f32 %v7741, %v9141
        %v9143 = vpop.f32.mrf.mxu0
        %9144 = vmatprep.mubr.f32.mxu0 0.0
        %9145 = vmatmul.mubr.f32.gmra.mxu0 %v8085
        %v9146 = vpop.f32.mrf.mxu0
        %v9147 = vadd.f32 %v7741, %v9146
        %v9148 = vpop.f32.mrf.mxu0
        %9149 = vmatprep.mubr.f32.mxu0 0.0
        %9150 = vmatmul.mubr.f32.gmra.mxu0 %v8088
        %v9151 = vpop.f32.mrf.mxu0
        %v9152 = vadd.f32 %v7741, %v9151
        %v9153 = vpop.f32.mrf.mxu0
        %9154 = vmatprep.mubr.f32.mxu0 0.0
        %9155 = vmatmul.mubr.f32.gmra.mxu0 %v8091
        %v9156 = vpop.f32.mrf.mxu0
        %v9157 = vadd.f32 %v7741, %v9156
        %v9158 = vpop.f32.mrf.mxu0
        %9159 = vmatprep.mubr.f32.mxu0 0.0
        %9160 = vmatmul.mubr.f32.gmra.mxu0 %v8094
        %v9161 = vpop.f32.mrf.mxu0
        %v9162 = vadd.f32 %v7741, %v9161
        %v9163 = vpop.f32.mrf.mxu0
        %9164 = vmatprep.mubr.f32.mxu0 0.0
        %9165 = vmatmul.mubr.f32.gmra.mxu0 %v8097
        %v9166 = vpop.f32.mrf.mxu0
        %v9167 = vadd.f32 %v7741, %v9166
        %v9168 = vpop.f32.mrf.mxu0
        %9169 = vmatprep.mubr.f32.mxu0 0.0
        %9170 = vmatmul.mubr.f32.gmra.mxu0 %v8100
        %v9171 = vpop.f32.mrf.mxu0
        %v9172 = vadd.f32 %v7741, %v9171
        %v9173 = vpop.f32.mrf.mxu0
        %9174 = vmatprep.mubr.f32.mxu0 0.0
        %9175 = vmatmul.mubr.f32.gmra.mxu0 %v8103
        %v9176 = vpop.f32.mrf.mxu0
        %v9177 = vadd.f32 %v7741, %v9176
        %v9178 = vpop.f32.mrf.mxu0
        %9179 = vmatprep.mubr.f32.mxu0 0.0
        %9180 = vmatmul.mubr.f32.gmra.mxu0 %v8106
        %v9181 = vpop.f32.mrf.mxu0
        %v9182 = vadd.f32 %v7741, %v9181
        %v9183 = vpop.f32.mrf.mxu0
        %9184 = vmatprep.mubr.f32.mxu0 0.0
        %9185 = vmatmul.mubr.f32.gmra.mxu0 %v8109
        %v9186 = vpop.f32.mrf.mxu0
        %v9187 = vadd.f32 %v7741, %v9186
        %v9188 = vpop.f32.mrf.mxu0
        %9189 = vmatprep.mubr.f32.mxu0 0.0
        %9190 = vmatmul.mubr.f32.gmra.mxu0 %v8112
        %v9191 = vpop.f32.mrf.mxu0
        %v9192 = vadd.f32 %v7741, %v9191
        %v9193 = vpop.f32.mrf.mxu0
        %9194 = vmatprep.mubr.f32.mxu0 0.0
        %9195 = vmatmul.mubr.f32.gmra.mxu0 %v8115
        %v9196 = vpop.f32.mrf.mxu0
        %v9197 = vadd.f32 %v7741, %v9196
        %v9198 = vpop.f32.mrf.mxu0
        %9199 = vmatprep.mubr.f32.mxu0 0.0
        %9200 = vmatmul.mubr.f32.gmra.mxu0 %v8118
        %v9201 = vpop.f32.mrf.mxu0
        %v9202 = vadd.f32 %v7741, %v9201
        %v9203 = vpop.f32.mrf.mxu0
        %9204 = vmatprep.mubr.f32.mxu0 0.0
        %9205 = vmatmul.mubr.f32.gmra.mxu0 %v8121
        %v9206 = vpop.f32.mrf.mxu0
        %v9207 = vadd.f32 %v7741, %v9206
        %v9208 = vpop.f32.mrf.mxu0
        %9209 = vmatprep.mubr.f32.mxu0 0.0
        %9210 = vmatmul.mubr.f32.gmra.mxu0 %v8124
        %v9211 = vpop.f32.mrf.mxu0
        %v9212 = vadd.f32 %v7741, %v9211
        %v9213 = vpop.f32.mrf.mxu0
        %9214 = vmatprep.mubr.f32.mxu0 0.0
        %9215 = vmatmul.mubr.f32.gmra.mxu0 %v8127
        %v9216 = vpop.f32.mrf.mxu0
        %v9217 = vadd.f32 %v7741, %v9216
        %v9218 = vpop.f32.mrf.mxu0
        %9219 = vmatprep.mubr.f32.mxu0 0.0
        %9220 = vmatmul.mubr.f32.gmra.mxu0 %v8130
        %v9221 = vpop.f32.mrf.mxu0
        %v9222 = vadd.f32 %v7741, %v9221
        %v9223 = vpop.f32.mrf.mxu0
        %9224 = vmatprep.mubr.f32.mxu0 0.0
        %9225 = vmatmul.mubr.f32.gmra.mxu0 %v8133
        %v9226 = vpop.f32.mrf.mxu0
        %v9227 = vadd.f32 %v7741, %v9226
        %v9228 = vpop.f32.mrf.mxu0
        %9229 = vmatprep.mubr.f32.mxu0 0.0
        %9230 = vmatmul.mubr.f32.gmra.mxu0 %v8136
        %v9231 = vpop.f32.mrf.mxu0
        %v9232 = vadd.f32 %v7741, %v9231
        %v9233 = vpop.f32.mrf.mxu0
        %9234 = vmatprep.mubr.f32.mxu0 0.0
        %9235 = vmatmul.mubr.f32.gmra.mxu0 %v8139
        %v9236 = vpop.f32.mrf.mxu0
        %v9237 = vadd.f32 %v7741, %v9236
        %v9238 = vpop.f32.mrf.mxu0
        %9239 = vmatprep.mubr.f32.mxu0 0.0
        %9240 = vmatmul.mubr.f32.gmra.mxu0 %v8142
        %v9241 = vpop.f32.mrf.mxu0
        %v9242 = vadd.f32 %v7741, %v9241
        %v9243 = vpop.f32.mrf.mxu0
        %9244 = vmatprep.mubr.f32.mxu0 0.0
        %9245 = vmatmul.mubr.f32.gmra.mxu0 %v8145
        %v9246 = vpop.f32.mrf.mxu0
        %v9247 = vadd.f32 %v7741, %v9246
        %v9248 = vpop.f32.mrf.mxu0
        %9249 = vmatprep.mubr.f32.mxu0 0.0
        %9250 = vmatmul.mubr.f32.gmra.mxu0 %v8148
        %v9251 = vpop.f32.mrf.mxu0
        %v9252 = vadd.f32 %v7741, %v9251
        %v9253 = vpop.f32.mrf.mxu0
        %9254 = vmatprep.mubr.f32.mxu0 0.0
        %9255 = vmatmul.mubr.f32.gmra.mxu0 %v8151
        %v9256 = vpop.f32.mrf.mxu0
        %v9257 = vadd.f32 %v7741, %v9256
        %v9258 = vpop.f32.mrf.mxu0
        %9259 = vmatprep.mubr.f32.mxu0 0.0
        %9260 = vmatmul.mubr.f32.gmra.mxu0 %v8154
        %v9261 = vpop.f32.mrf.mxu0
        %v9262 = vadd.f32 %v7741, %v9261
        %v9263 = vpop.f32.mrf.mxu0
        %9264 = vmatprep.mubr.f32.mxu0 0.0
        %9265 = vmatmul.mubr.f32.gmra.mxu0 %v8157
        %v9266 = vpop.f32.mrf.mxu0
        %v9267 = vadd.f32 %v7741, %v9266
        %v9268 = vpop.f32.mrf.mxu0
        %9269 = vmatprep.mubr.f32.mxu0 0.0
        %9270 = vmatmul.mubr.f32.gmra.mxu0 %v8160
        %v9271 = vpop.f32.mrf.mxu0
        %v9272 = vadd.f32 %v7741, %v9271
        %v9273 = vpop.f32.mrf.mxu0
        %9274 = vmatprep.mubr.f32.mxu0 0.0
        %9275 = vmatmul.mubr.f32.gmra.mxu0 %v8163
        %v9276 = vpop.f32.mrf.mxu0
        %v9277 = vadd.f32 %v7741, %v9276
        %v9278 = vpop.f32.mrf.mxu0
        %9279 = vmatprep.mubr.f32.mxu0 0.0
        %9280 = vmatmul.mubr.f32.gmra.mxu0 %v8166
        %v9281 = vpop.f32.mrf.mxu0
        %v9282 = vadd.f32 %v7741, %v9281
        %v9283 = vpop.f32.mrf.mxu0
        %9284 = vmatprep.mubr.f32.mxu0 0.0
        %9285 = vmatmul.mubr.f32.gmra.mxu0 %v8169
        %v9286 = vpop.f32.mrf.mxu0
        %v9287 = vadd.f32 %v7741, %v9286
        %v9288 = vpop.f32.mrf.mxu0
        %9289 = vmatprep.mubr.f32.mxu0 0.0
        %9290 = vmatmul.mubr.f32.gmra.mxu0 %v8172
        %v9291 = vpop.f32.mrf.mxu0
        %v9292 = vadd.f32 %v7741, %v9291
        %v9293 = vpop.f32.mrf.mxu0
        %9294 = vmatprep.mubr.f32.mxu0 0.0
        %9295 = vmatmul.mubr.f32.gmra.mxu0 %v8175
        %v9296 = vpop.f32.mrf.mxu0
        %v9297 = vadd.f32 %v7741, %v9296
        %v9298 = vpop.f32.mrf.mxu0
        %9299 = vmatprep.mubr.f32.mxu0 0.0
        %9300 = vmatmul.mubr.f32.gmra.mxu0 %v8178
        %v9301 = vpop.f32.mrf.mxu0
        %v9302 = vadd.f32 %v7741, %v9301
        %v9303 = vpop.f32.mrf.mxu0
        %9304 = vmatprep.mubr.f32.mxu0 0.0
        %9305 = vmatmul.mubr.f32.gmra.mxu0 %v8181
        %v9306 = vpop.f32.mrf.mxu0
        %v9307 = vadd.f32 %v7741, %v9306
        %v9308 = vpop.f32.mrf.mxu0
        %9309 = vmatprep.mubr.f32.mxu0 0.0
        %9310 = vmatmul.mubr.f32.gmra.mxu0 %v8184
        %v9311 = vpop.f32.mrf.mxu0
        %v9312 = vadd.f32 %v7741, %v9311
        %v9313 = vpop.f32.mrf.mxu0
        %9314 = vmatprep.mubr.f32.mxu0 0.0
        %9315 = vmatmul.mubr.f32.gmra.mxu0 %v8187
        %v9316 = vpop.f32.mrf.mxu0
        %v9317 = vadd.f32 %v7741, %v9316
        %v9318 = vpop.f32.mrf.mxu0
        %9319 = vmatprep.mubr.f32.mxu0 0.0
        %9320 = vmatmul.mubr.f32.gmra.mxu0 %v8190
        %v9321 = vpop.f32.mrf.mxu0
        %v9322 = vadd.f32 %v7741, %v9321
        %v9323 = vpop.f32.mrf.mxu0
        %9324 = vmatprep.mubr.f32.mxu0 0.0
        %9325 = vmatmul.mubr.f32.gmra.mxu0 %v8193
        %v9326 = vpop.f32.mrf.mxu0
        %v9327 = vadd.f32 %v7741, %v9326
        %v9328 = vpop.f32.mrf.mxu0
        %9329 = vmatprep.mubr.f32.mxu0 0.0
        %9330 = vmatmul.mubr.f32.gmra.mxu0 %v8196
        %v9331 = vpop.f32.mrf.mxu0
        %v9332 = vadd.f32 %v7741, %v9331
        %v9333 = vpop.f32.mrf.mxu0
        %9334 = vmatprep.mubr.f32.mxu0 0.0
        %9335 = vmatmul.mubr.f32.gmra.mxu0 %v8199
        %v9336 = vpop.f32.mrf.mxu0
        %v9337 = vadd.f32 %v7741, %v9336
        %v9338 = vpop.f32.mrf.mxu0
        %9339 = vmatprep.mubr.f32.mxu0 0.0
        %9340 = vmatmul.mubr.f32.gmra.mxu0 %v8202
        %v9341 = vpop.f32.mrf.mxu0
        %v9342 = vadd.f32 %v7741, %v9341
        %v9343 = vpop.f32.mrf.mxu0
        %9344 = vmatprep.mubr.f32.mxu0 0.0
        %9345 = vmatmul.mubr.f32.gmra.mxu0 %v8205
        %v9346 = vpop.f32.mrf.mxu0
        %v9347 = vadd.f32 %v7741, %v9346
        %v9348 = vpop.f32.mrf.mxu0
        %9349 = vmatprep.mubr.f32.mxu0 0.0
        %9350 = vmatmul.mubr.f32.gmra.mxu0 %v8208
        %v9351 = vpop.f32.mrf.mxu0
        %v9352 = vadd.f32 %v7741, %v9351
        %v9353 = vpop.f32.mrf.mxu0
        %9354 = vmatprep.mubr.f32.mxu0 0.0
        %9355 = vmatmul.mubr.f32.gmra.mxu0 %v8211
        %v9356 = vpop.f32.mrf.mxu0
        %v9357 = vadd.f32 %v7741, %v9356
        %v9358 = vpop.f32.mrf.mxu0
        %9359 = vmatprep.mubr.f32.mxu0 0.0
        %9360 = vmatmul.mubr.f32.gmra.mxu0 %v8214
        %v9361 = vpop.f32.mrf.mxu0
        %v9362 = vadd.f32 %v7741, %v9361
        %v9363 = vpop.f32.mrf.mxu0
        %9364 = vmatprep.mubr.f32.mxu0 0.0
        %9365 = vmatmul.mubr.f32.gmra.mxu0 %v8217
        %v9366 = vpop.f32.mrf.mxu0
        %v9367 = vadd.f32 %v7741, %v9366
        %v9368 = vpop.f32.mrf.mxu0
        %9369 = vmatprep.mubr.f32.mxu0 0.0
        %9370 = vmatmul.mubr.f32.gmra.mxu0 %v8220
        %v9371 = vpop.f32.mrf.mxu0
        %v9372 = vadd.f32 %v7741, %v9371
        %v9373 = vpop.f32.mrf.mxu0
        %9374 = vmatprep.mubr.f32.mxu0 0.0
        %9375 = vmatmul.mubr.f32.gmra.mxu0 %v8223
        %v9376 = vpop.f32.mrf.mxu0
        %v9377 = vadd.f32 %v7741, %v9376
        %v9378 = vpop.f32.mrf.mxu0
        %9379 = vmatprep.mubr.f32.mxu0 0.0
        %9380 = vmatmul.mubr.f32.gmra.mxu0 %v8226
        %v9381 = vpop.f32.mrf.mxu0
        %v9382 = vadd.f32 %v7741, %v9381
        %v9383 = vpop.f32.mrf.mxu0
        %9384 = vmatprep.mubr.f32.mxu0 0.0
        %9385 = vmatmul.mubr.f32.gmra.mxu0 %v8229
        %v9386 = vpop.f32.mrf.mxu0
        %v9387 = vadd.f32 %v7741, %v9386
        %v9388 = vpop.f32.mrf.mxu0
        %9389 = vmatprep.mubr.f32.mxu0 0.0
        %9390 = vmatmul.mubr.f32.gmra.mxu0 %v8232
        %v9391 = vpop.f32.mrf.mxu0
        %v9392 = vadd.f32 %v7741, %v9391
        %v9393 = vpop.f32.mrf.mxu0
        %9394 = vmatprep.mubr.f32.mxu0 0.0
        %9395 = vmatmul.mubr.f32.gmra.mxu0 %v8235
        %v9396 = vpop.f32.mrf.mxu0
        %v9397 = vadd.f32 %v7741, %v9396
        %v9398 = vpop.f32.mrf.mxu0
        %9399 = vmatprep.mubr.f32.mxu0 0.0
        %9400 = vmatmul.mubr.f32.gmra.mxu0 %v8238
        %v9401 = vpop.f32.mrf.mxu0
        %v9402 = vadd.f32 %v7741, %v9401
        %v9403 = vpop.f32.mrf.mxu0
        %9404 = vmatprep.mubr.f32.mxu0 0.0
        %9405 = vmatmul.mubr.f32.gmra.mxu0 %v8241
        %v9406 = vpop.f32.mrf.mxu0
        %v9407 = vadd.f32 %v7741, %v9406
        %v9408 = vpop.f32.mrf.mxu0
        %9409 = vmatprep.mubr.f32.mxu0 0.0
        %9410 = vmatmul.mubr.f32.gmra.mxu0 %v8244
        %v9411 = vpop.f32.mrf.mxu0
        %v9412 = vadd.f32 %v7741, %v9411
        %v9413 = vpop.f32.mrf.mxu0
        %9414 = vmatprep.mubr.f32.mxu0 0.0
        %9415 = vmatmul.mubr.f32.gmra.mxu0 %v8247
        %v9416 = vpop.f32.mrf.mxu0
        %v9417 = vadd.f32 %v7741, %v9416
        %v9418 = vpop.f32.mrf.mxu0
        %9419 = vmatprep.mubr.f32.mxu0 0.0
        %9420 = vmatmul.mubr.f32.gmra.mxu0 %v8250
        %v9421 = vpop.f32.mrf.mxu0
        %v9422 = vadd.f32 %v7741, %v9421
        %v9423 = vpop.f32.mrf.mxu0
        %9424 = vmatprep.mubr.f32.mxu0 0.0
        %9425 = vmatmul.mubr.f32.gmra.mxu0 %v8253
        %v9426 = vpop.f32.mrf.mxu0
        %v9427 = vadd.f32 %v7741, %v9426
        %v9428 = vpop.f32.mrf.mxu0
        %9429 = vmatprep.mubr.f32.mxu0 0.0
        %9430 = vmatmul.mubr.f32.gmra.mxu0 %v8256
        %v9431 = vpop.f32.mrf.mxu0
        %v9432 = vadd.f32 %v7741, %v9431
        %v9433 = vpop.f32.mrf.mxu0
        %9434 = vmatprep.mubr.f32.mxu0 0.0
        %9435 = vmatmul.mubr.f32.gmra.mxu0 %v8259
        %v9436 = vpop.f32.mrf.mxu0
        %v9437 = vadd.f32 %v7741, %v9436
        %v9438 = vpop.f32.mrf.mxu0
        %9439 = vmatprep.mubr.f32.mxu0 0.0
        %9440 = vmatmul.mubr.f32.gmra.mxu0 %v8262
        %v9441 = vpop.f32.mrf.mxu0
        %v9442 = vadd.f32 %v7741, %v9441
        %v9443 = vpop.f32.mrf.mxu0
        %9444 = vmatprep.mubr.f32.mxu0 0.0
        %9445 = vmatmul.mubr.f32.gmra.mxu0 %v8265
        %v9446 = vpop.f32.mrf.mxu0
        %v9447 = vadd.f32 %v7741, %v9446
        %v9448 = vpop.f32.mrf.mxu0
        %9449 = vmatprep.mubr.f32.mxu0 0.0
        %9450 = vmatmul.mubr.f32.gmra.mxu0 %v8268
        %v9451 = vpop.f32.mrf.mxu0
        %v9452 = vadd.f32 %v7741, %v9451
        %v9453 = vpop.f32.mrf.mxu0
        %9454 = vmatprep.mubr.f32.mxu0 0.0
        %9455 = vmatmul.mubr.f32.gmra.mxu0 %v8271
        %v9456 = vpop.f32.mrf.mxu0
        %v9457 = vadd.f32 %v7741, %v9456
        %v9458 = vpop.f32.mrf.mxu0
        %9459 = vmatprep.mubr.f32.mxu0 0.0
        %9460 = vmatmul.mubr.f32.gmra.mxu0 %v8274
        %v9461 = vpop.f32.mrf.mxu0
        %v9462 = vadd.f32 %v7741, %v9461
        %v9463 = vpop.f32.mrf.mxu0
        %9464 = vmatprep.mubr.f32.mxu0 0.0
        %9465 = vmatmul.mubr.f32.gmra.mxu0 %v8277
        %v9466 = vpop.f32.mrf.mxu0
        %v9467 = vadd.f32 %v7741, %v9466
        %v9468 = vpop.f32.mrf.mxu0
        %9469 = vmatprep.mubr.f32.mxu0 0.0
        %9470 = vmatmul.mubr.f32.gmra.mxu0 %v8280
        %v9471 = vpop.f32.mrf.mxu0
        %v9472 = vadd.f32 %v7741, %v9471
        %v9473 = vpop.f32.mrf.mxu0
        %9474 = vmatprep.mubr.f32.mxu0 0.0
        %9475 = vmatmul.mubr.f32.gmra.mxu0 %v8283
        %v9476 = vpop.f32.mrf.mxu0
        %v9477 = vadd.f32 %v7741, %v9476
        %v9478 = vpop.f32.mrf.mxu0
        %9479 = vmatprep.mubr.f32.mxu0 0.0
        %9480 = vmatmul.mubr.f32.gmra.mxu0 %v8286
        %v9481 = vpop.f32.mrf.mxu0
        %v9482 = vadd.f32 %v7741, %v9481
        %v9483 = vpop.f32.mrf.mxu0
        %9484 = vmatprep.mubr.f32.mxu0 0.0
        %9485 = vmatmul.mubr.f32.gmra.mxu0 %v8289
        %v9486 = vpop.f32.mrf.mxu0
        %v9487 = vadd.f32 %v7741, %v9486
        %v9488 = vpop.f32.mrf.mxu0
        %9489 = vmatprep.mubr.f32.mxu0 0.0
        %9490 = vmatmul.mubr.f32.gmra.mxu0 %v8292
        %v9491 = vpop.f32.mrf.mxu0
        %v9492 = vadd.f32 %v7741, %v9491
        %v9493 = vpop.f32.mrf.mxu0
        %9494 = vmatprep.mubr.f32.mxu0 0.0
        %9495 = vmatmul.mubr.f32.gmra.mxu0 %v8295
        %v9496 = vpop.f32.mrf.mxu0
        %v9497 = vadd.f32 %v7741, %v9496
        %v9498 = vpop.f32.mrf.mxu0
        %9499 = vmatprep.mubr.f32.mxu0 0.0
        %9500 = vmatmul.mubr.f32.gmra.mxu0 %v8298
        %v9501 = vpop.f32.mrf.mxu0
        %v9502 = vadd.f32 %v7741, %v9501
        %v9503 = vpop.f32.mrf.mxu0
        %9504 = vmatprep.mubr.f32.mxu0 0.0
        %9505 = vmatmul.mubr.f32.gmra.mxu0 %v8301
        %v9506 = vpop.f32.mrf.mxu0
        %v9507 = vadd.f32 %v7741, %v9506
        %v9508 = vpop.f32.mrf.mxu0
        %9509 = vmatprep.mubr.f32.mxu0 0.0
        %9510 = vmatmul.mubr.f32.gmra.mxu0 %v8304
        %v9511 = vpop.f32.mrf.mxu0
        %v9512 = vadd.f32 %v7741, %v9511
        %v9513 = vpop.f32.mrf.mxu0
        %9514 = vmatprep.mubr.f32.mxu0 0.0
        %9515 = vmatmul.mubr.f32.gmra.mxu0 %v8307
        %v9516 = vpop.f32.mrf.mxu0
        %v9517 = vadd.f32 %v7741, %v9516
        %v9518 = vpop.f32.mrf.mxu0
        %9519 = vmatprep.mubr.f32.mxu0 0.0
        %9520 = vmatmul.mubr.f32.gmra.mxu0 %v8310
        %v9521 = vpop.f32.mrf.mxu0
        %v9522 = vadd.f32 %v7741, %v9521
        %v9523 = vpop.f32.mrf.mxu0
        %9524 = vmatprep.mubr.f32.mxu0 0.0
        %9525 = vmatmul.mubr.f32.gmra.mxu0 %v8313
        %v9526 = vpop.f32.mrf.mxu0
        %v9527 = vadd.f32 %v7741, %v9526
        %v9528 = vpop.f32.mrf.mxu0
        %9529 = vmatprep.mubr.f32.mxu0 0.0
        %9530 = vmatmul.mubr.f32.gmra.mxu0 %v8316
        %v9531 = vpop.f32.mrf.mxu0
        %v9532 = vadd.f32 %v7741, %v9531
        %v9533 = vpop.f32.mrf.mxu0
        %9534 = vmatprep.mubr.f32.mxu0 0.0
        %9535 = vmatmul.mubr.f32.gmra.mxu0 %v8319
        %v9536 = vpop.f32.mrf.mxu0
        %v9537 = vadd.f32 %v7741, %v9536
        %v9538 = vpop.f32.mrf.mxu0
        %9539 = vmatprep.mubr.f32.mxu0 0.0
        %9540 = vmatmul.mubr.f32.gmra.mxu0 %v8322
        %v9541 = vpop.f32.mrf.mxu0
        %v9542 = vadd.f32 %v7741, %v9541
        %v9543 = vpop.f32.mrf.mxu0
        %9544 = vmatprep.mubr.f32.mxu0 0.0
        %9545 = vmatmul.mubr.f32.gmra.mxu0 %v8325
        %v9546 = vpop.f32.mrf.mxu0
        %v9547 = vadd.f32 %v7741, %v9546
        %v9548 = vpop.f32.mrf.mxu0
        %9549 = vmatprep.mubr.f32.mxu0 0.0
        %9550 = vmatmul.mubr.f32.gmra.mxu0 %v8328
        %v9551 = vpop.f32.mrf.mxu0
        %v9552 = vadd.f32 %v7741, %v9551
        %v9553 = vpop.f32.mrf.mxu0
        %9554 = vmatprep.mubr.f32.mxu0 0.0
        %9555 = vmatmul.mubr.f32.gmra.mxu0 %v8331
        %v9556 = vpop.f32.mrf.mxu0
        %v9557 = vadd.f32 %v7741, %v9556
        %v9558 = vpop.f32.mrf.mxu0
        %9559 = vmatprep.mubr.f32.mxu0 0.0
        %9560 = vmatmul.mubr.f32.gmra.mxu0 %v8334
        %v9561 = vpop.f32.mrf.mxu0
        %v9562 = vadd.f32 %v7741, %v9561
        %v9563 = vpop.f32.mrf.mxu0
        %9564 = vmatprep.mubr.f32.mxu0 0.0
        %9565 = vmatmul.mubr.f32.gmra.mxu0 %v8337
        %v9566 = vpop.f32.mrf.mxu0
        %v9567 = vadd.f32 %v7741, %v9566
        %v9568 = vpop.f32.mrf.mxu0
        %9569 = vmatprep.mubr.f32.mxu0 0.0
        %9570 = vmatmul.mubr.f32.gmra.mxu0 %v8340
        %v9571 = vpop.f32.mrf.mxu0
        %v9572 = vadd.f32 %v7741, %v9571
        %v9573 = vpop.f32.mrf.mxu0
        %9574 = vmatprep.mubr.f32.mxu0 0.0
        %9575 = vmatmul.mubr.f32.gmra.mxu0 %v8343
        %v9576 = vpop.f32.mrf.mxu0
        %v9577 = vadd.f32 %v7741, %v9576
        %v9578 = vpop.f32.mrf.mxu0
        %9579 = vmatprep.mubr.f32.mxu0 0.0
        %9580 = vmatmul.mubr.f32.gmra.mxu0 %v8346
        %v9581 = vpop.f32.mrf.mxu0
        %v9582 = vadd.f32 %v7741, %v9581
        %v9583 = vpop.f32.mrf.mxu0
        %9584 = vmatprep.mubr.f32.mxu0 0.0
        %9585 = vmatmul.mubr.f32.gmra.mxu0 %v8349
        %v9586 = vpop.f32.mrf.mxu0
        %v9587 = vadd.f32 %v7741, %v9586
        %v9588 = vpop.f32.mrf.mxu0
        %9589 = vmatprep.mubr.f32.mxu0 0.0
        %9590 = vmatmul.mubr.f32.gmra.mxu0 %v8352
        %v9591 = vpop.f32.mrf.mxu0
        %v9592 = vadd.f32 %v7741, %v9591
        %v9593 = vpop.f32.mrf.mxu0
        %9594 = vmatprep.mubr.f32.mxu0 0.0
        %9595 = vmatmul.mubr.f32.gmra.mxu0 %v8355
        %v9596 = vpop.f32.mrf.mxu0
        %v9597 = vadd.f32 %v7741, %v9596
        %v9598 = vpop.f32.mrf.mxu0
        %9599 = vmatprep.mubr.f32.mxu0 0.0
        %9600 = vmatmul.mubr.f32.gmra.mxu0 %v8358
        %v9601 = vpop.f32.mrf.mxu0
        %v9602 = vadd.f32 %v7741, %v9601
        %v9603 = vpop.f32.mrf.mxu0
        %9604 = vmatprep.mubr.f32.mxu0 0.0
        %9605 = vmatmul.mubr.f32.gmra.mxu0 %v8361
        %v9606 = vpop.f32.mrf.mxu0
        %v9607 = vadd.f32 %v7741, %v9606
        %v9608 = vpop.f32.mrf.mxu0
        %9609 = vmatprep.mubr.f32.mxu0 0.0
        %9610 = vmatmul.mubr.f32.gmra.mxu0 %v8364
        %v9611 = vpop.f32.mrf.mxu0
        %v9612 = vadd.f32 %v7741, %v9611
        %v9613 = vpop.f32.mrf.mxu0
        %9614 = vmatprep.mubr.f32.mxu0 0.0
        %9615 = vmatmul.mubr.f32.gmra.mxu0 %v8367
        %v9616 = vpop.f32.mrf.mxu0
        %v9617 = vadd.f32 %v7741, %v9616
        %v9618 = vpop.f32.mrf.mxu0
        %9619 = vmatprep.mubr.f32.mxu0 0.0
        %9620 = vmatmul.mubr.f32.gmra.mxu0 %v8370
        %v9621 = vpop.f32.mrf.mxu0
        %v9622 = vadd.f32 %v7741, %v9621
        %v9623 = vpop.f32.mrf.mxu0
        %9624 = vmatprep.mubr.f32.mxu0 0.0
        %9625 = vmatmul.mubr.f32.gmra.mxu0 %v8373
        %v9626 = vpop.f32.mrf.mxu0
        %v9627 = vadd.f32 %v7741, %v9626
        %v9628 = vpop.f32.mrf.mxu0
        %9629 = vmatprep.mubr.f32.mxu0 0.0
        %9630 = vmatmul.mubr.f32.gmra.mxu0 %v8376
        %v9631 = vpop.f32.mrf.mxu0
        %v9632 = vadd.f32 %v7741, %v9631
        %v9633 = vpop.f32.mrf.mxu0
        %9634 = vmatprep.mubr.f32.mxu0 0.0
        %9635 = vmatmul.mubr.f32.gmra.mxu0 %v8379
        %v9636 = vpop.f32.mrf.mxu0
        %v9637 = vadd.f32 %v7741, %v9636
        %v9638 = vpop.f32.mrf.mxu0
        %9639 = vmatprep.mubr.f32.mxu0 0.0
        %9640 = vmatmul.mubr.f32.gmra.mxu0 %v8382
        %v9641 = vpop.f32.mrf.mxu0
        %v9642 = vadd.f32 %v7741, %v9641
        %v9643 = vpop.f32.mrf.mxu0
        %9644 = vmatprep.mubr.f32.mxu0 0.0
        %9645 = vmatmul.mubr.f32.gmra.mxu0 %v8385
        %v9646 = vpop.f32.mrf.mxu0
        %v9647 = vadd.f32 %v7741, %v9646
        %v9648 = vpop.f32.mrf.mxu0
        %9649 = vmatprep.mubr.f32.mxu0 0.0
        %9650 = vmatmul.mubr.f32.gmra.mxu0 %v8388
        %v9651 = vpop.f32.mrf.mxu0
        %v9652 = vadd.f32 %v7741, %v9651
        %v9653 = vpop.f32.mrf.mxu0
        %9654 = vmatprep.mubr.f32.mxu0 0.0
        %9655 = vmatmul.mubr.f32.gmra.mxu0 %v8391
        %v9656 = vpop.f32.mrf.mxu0
        %v9657 = vadd.f32 %v7741, %v9656
        %v9658 = vpop.f32.mrf.mxu0
        %9659 = vmatprep.mubr.f32.mxu0 0.0
        %9660 = vmatmul.mubr.f32.gmra.mxu0 %v8394
        %v9661 = vpop.f32.mrf.mxu0
        %v9662 = vadd.f32 %v7741, %v9661
        %v9663 = vpop.f32.mrf.mxu0
        %9664 = vmatprep.mubr.f32.mxu0 0.0
        %9665 = vmatmul.mubr.f32.gmra.mxu0 %v8397
        %v9666 = vpop.f32.mrf.mxu0
        %v9667 = vadd.f32 %v7741, %v9666
        %v9668 = vpop.f32.mrf.mxu0
        %9669 = vmatprep.mubr.f32.mxu0 0.0
        %9670 = vmatmul.mubr.f32.gmra.mxu0 %v8400
        %v9671 = vpop.f32.mrf.mxu0
        %v9672 = vadd.f32 %v7741, %v9671
        %v9673 = vpop.f32.mrf.mxu0
        %9674 = vmatprep.mubr.f32.mxu0 0.0
        %9675 = vmatmul.mubr.f32.gmra.mxu0 %v8403
        %v9676 = vpop.f32.mrf.mxu0
        %v9677 = vadd.f32 %v7741, %v9676
        %v9678 = vpop.f32.mrf.mxu0
        %9679 = vmatprep.mubr.f32.mxu0 0.0
        %9680 = vmatmul.mubr.f32.gmra.mxu0 %v8406
        %v9681 = vpop.f32.mrf.mxu0
        %v9682 = vadd.f32 %v7741, %v9681
        %v9683 = vpop.f32.mrf.mxu0
        %9684 = vmatprep.mubr.f32.mxu0 0.0
        %9685 = vmatmul.mubr.f32.gmra.mxu0 %v8409
        %v9686 = vpop.f32.mrf.mxu0
        %v9687 = vadd.f32 %v7741, %v9686
        %v9688 = vpop.f32.mrf.mxu0
        %9689 = vmatprep.mubr.f32.mxu0 0.0
        %9690 = vmatmul.mubr.f32.gmra.mxu0 %v8412
        %v9691 = vpop.f32.mrf.mxu0
        %v9692 = vadd.f32 %v7741, %v9691
        %v9693 = vpop.f32.mrf.mxu0
        %9694 = vmatprep.mubr.f32.mxu0 0.0
        %9695 = vmatmul.mubr.f32.gmra.mxu0 %v8415
        %v9696 = vpop.f32.mrf.mxu0
        %v9697 = vadd.f32 %v7741, %v9696
        %v9698 = vpop.f32.mrf.mxu0
        %9699 = vmatprep.mubr.f32.mxu0 0.0
        %9700 = vmatmul.mubr.f32.gmra.mxu0 %v8418
        %v9701 = vpop.f32.mrf.mxu0
        %v9702 = vadd.f32 %v7741, %v9701
        %v9703 = vpop.f32.mrf.mxu0
        %9704 = vmatprep.mubr.f32.mxu0 0.0
        %9705 = vmatmul.mubr.f32.gmra.mxu0 %v8421
        %v9706 = vpop.f32.mrf.mxu0
        %v9707 = vadd.f32 %v7741, %v9706
        %v9708 = vpop.f32.mrf.mxu0
        %9709 = vmatprep.mubr.f32.mxu0 0.0
        %9710 = vmatmul.mubr.f32.gmra.mxu0 %v8424
        %v9711 = vpop.f32.mrf.mxu0
        %v9712 = vadd.f32 %v7741, %v9711
        %v9713 = vpop.f32.mrf.mxu0
        %9714 = vmatprep.mubr.f32.mxu0 0.0
        %9715 = vmatmul.mubr.f32.gmra.mxu0 %v8427
        %v9716 = vpop.f32.mrf.mxu0
        %v9717 = vadd.f32 %v7741, %v9716
        %v9718 = vpop.f32.mrf.mxu0
        %9719 = vmatprep.mubr.f32.mxu0 0.0
        %9720 = vmatmul.mubr.f32.gmra.mxu0 %v8430
        %v9721 = vpop.f32.mrf.mxu0
        %v9722 = vadd.f32 %v7741, %v9721
        %v9723 = vpop.f32.mrf.mxu0
        %9724 = vmatprep.mubr.f32.mxu0 0.0
        %9725 = vmatmul.mubr.f32.gmra.mxu0 %v8433
        %v9726 = vpop.f32.mrf.mxu0
        %v9727 = vadd.f32 %v7741, %v9726
        %v9728 = vpop.f32.mrf.mxu0
        %9729 = vmatprep.mubr.f32.mxu0 0.0
        %9730 = vmatmul.mubr.f32.gmra.mxu0 %v8436
        %v9731 = vpop.f32.mrf.mxu0
        %v9732 = vadd.f32 %v7741, %v9731
        %v9733 = vpop.f32.mrf.mxu0
        %9734 = vmatprep.mubr.f32.mxu0 0.0
        %9735 = vmatmul.mubr.f32.gmra.mxu0 %v8439
        %v9736 = vpop.f32.mrf.mxu0
        %v9737 = vadd.f32 %v7741, %v9736
        %v9738 = vpop.f32.mrf.mxu0
        %9739 = vmatprep.mubr.f32.mxu0 0.0
        %9740 = vmatmul.mubr.f32.gmra.mxu0 %v8442
        %v9741 = vpop.f32.mrf.mxu0
        %v9742 = vadd.f32 %v7741, %v9741
        %v9743 = vpop.f32.mrf.mxu0
        %9744 = vmatprep.mubr.f32.mxu0 0.0
        %9745 = vmatmul.mubr.f32.gmra.mxu0 %v8445
        %v9746 = vpop.f32.mrf.mxu0
        %v9747 = vadd.f32 %v7741, %v9746
        %v9748 = vpop.f32.mrf.mxu0
        %9749 = vmatprep.mubr.f32.mxu0 0.0
        %9750 = vmatmul.mubr.f32.gmra.mxu0 %v8448
        %v9751 = vpop.f32.mrf.mxu0
        %v9752 = vadd.f32 %v7741, %v9751
        %v9753 = vpop.f32.mrf.mxu0
        %9754 = vmatprep.mubr.f32.mxu0 0.0
        %9755 = vmatmul.mubr.f32.gmra.mxu0 %v8451
        %v9756 = vpop.f32.mrf.mxu0
        %v9757 = vadd.f32 %v7741, %v9756
        %v9758 = vpop.f32.mrf.mxu0
        %9759 = vmatprep.mubr.f32.mxu0 0.0
        %9760 = vmatmul.mubr.f32.gmra.mxu0 %v8454
        %v9761 = vpop.f32.mrf.mxu0
        %v9762 = vadd.f32 %v7741, %v9761
        %v9763 = vpop.f32.mrf.mxu0
        %9764 = vmatprep.mubr.f32.mxu0 0.0
        %9765 = vmatmul.mubr.f32.gmra.mxu0 %v8457
        %v9766 = vpop.f32.mrf.mxu0
        %v9767 = vadd.f32 %v7741, %v9766
        %v9768 = vpop.f32.mrf.mxu0
        %9769 = vmatprep.mubr.f32.mxu0 0.0
        %9770 = vmatmul.mubr.f32.gmra.mxu0 %v8460
        %v9771 = vpop.f32.mrf.mxu0
        %v9772 = vadd.f32 %v7741, %v9771
        %v9773 = vpop.f32.mrf.mxu0
        %9774 = vmatprep.mubr.f32.mxu0 0.0
        %9775 = vmatmul.mubr.f32.gmra.mxu0 %v8463
        %v9776 = vpop.f32.mrf.mxu0
        %v9777 = vadd.f32 %v7741, %v9776
        %v9778 = vpop.f32.mrf.mxu0
        %9779 = vmatprep.mubr.f32.mxu0 0.0
        %9780 = vmatmul.mubr.f32.gmra.mxu0 %v8466
        %v9781 = vpop.f32.mrf.mxu0
        %v9782 = vadd.f32 %v7741, %v9781
        %v9783 = vpop.f32.mrf.mxu0
        %9784 = vmatprep.mubr.f32.mxu0 0.0
        %9785 = vmatmul.mubr.f32.gmra.mxu0 %v8469
        %v9786 = vpop.f32.mrf.mxu0
        %v9787 = vadd.f32 %v7741, %v9786
        %v9788 = vpop.f32.mrf.mxu0
        %9789 = vmatprep.mubr.f32.mxu0 0.0
        %9790 = vmatmul.mubr.f32.gmra.mxu0 %v8472
        %v9791 = vpop.f32.mrf.mxu0
        %v9792 = vadd.f32 %v7741, %v9791
        %v9793 = vpop.f32.mrf.mxu0
        %9794 = vmatprep.mubr.f32.mxu0 0.0
        %9795 = vmatmul.mubr.f32.gmra.mxu0 %v8475
        %v9796 = vpop.f32.mrf.mxu0
        %v9797 = vadd.f32 %v7741, %v9796
        %v9798 = vpop.f32.mrf.mxu0
        %9799 = vmatprep.mubr.f32.mxu0 0.0
        %9800 = vmatmul.mubr.f32.gmra.mxu0 %v8478
        %v9801 = vpop.f32.mrf.mxu0
        %v9802 = vadd.f32 %v7741, %v9801
        %v9803 = vpop.f32.mrf.mxu0
        %9804 = vmatprep.mubr.f32.mxu0 0.0
        %9805 = vmatmul.mubr.f32.gmra.mxu0 %v8481
        %v9806 = vpop.f32.mrf.mxu0
        %v9807 = vadd.f32 %v7741, %v9806
        %v9808 = vpop.f32.mrf.mxu0
        %9809 = vmatprep.mubr.f32.mxu0 0.0
        %9810 = vmatmul.mubr.f32.gmra.mxu0 %v8484
        %v9811 = vpop.f32.mrf.mxu0
        %v9812 = vadd.f32 %v7741, %v9811
        %v9813 = vpop.f32.mrf.mxu0
        %9814 = vmatprep.mubr.f32.mxu0 0.0
        %9815 = vmatmul.mubr.f32.gmra.mxu0 %v8487
        %v9816 = vpop.f32.mrf.mxu0
        %v9817 = vadd.f32 %v7741, %v9816
        %v9818 = vpop.f32.mrf.mxu0
        %9819 = vmatprep.mubr.f32.mxu0 0.0
        %9820 = vmatmul.mubr.f32.gmra.mxu0 %v8490
        %v9821 = vpop.f32.mrf.mxu0
        %v9822 = vadd.f32 %v7741, %v9821
        %v9823 = vpop.f32.mrf.mxu0
        %9824 = vmatprep.mubr.f32.mxu0 0.0
        %9825 = vmatmul.mubr.f32.gmra.mxu0 %v8493
        %v9826 = vpop.f32.mrf.mxu0
        %v9827 = vadd.f32 %v7741, %v9826
        %v9828 = vpop.f32.mrf.mxu0
        %9829 = vmatprep.mubr.f32.mxu0 0.0
        %9830 = vmatmul.mubr.f32.gmra.mxu0 %v8496
        %v9831 = vpop.f32.mrf.mxu0
        %v9832 = vadd.f32 %v7741, %v9831
        %v9833 = vpop.f32.mrf.mxu0
        %9834 = vmatprep.mubr.f32.mxu0 0.0
        %9835 = vmatmul.mubr.f32.gmra.mxu0 %v8499
        %v9836 = vpop.f32.mrf.mxu0
        %v9837 = vadd.f32 %v7741, %v9836
        %v9838 = vpop.f32.mrf.mxu0
        %9839 = vmatprep.mubr.f32.mxu0 0.0
        %9840 = vmatmul.mubr.f32.gmra.mxu0 %v8502
        %v9841 = vpop.f32.mrf.mxu0
        %v9842 = vadd.f32 %v7741, %v9841
        %v9843 = vpop.f32.mrf.mxu0
        %9844 = vmatprep.mubr.f32.mxu0 0.0
        %9845 = vmatmul.mubr.f32.gmra.mxu0 %v8505
        %v9846 = vpop.f32.mrf.mxu0
        %v9847 = vadd.f32 %v7741, %v9846
        %v9848 = vpop.f32.mrf.mxu0
        %9849 = vmatprep.mubr.f32.mxu0 0.0
        %9850 = vmatmul.mubr.f32.gmra.mxu0 %v8508
        %v9851 = vpop.f32.mrf.mxu0
        %v9852 = vadd.f32 %v7741, %v9851
        %v9853 = vpop.f32.mrf.mxu0
        %9854 = vdwg.mxu0
        %v9855 = vsel %vm2975, %v8577, -inf
        %9856 = vmax.xlane.f32.xlu0 %v9855
        %v9857 = vpop.xlane.xlu0 %9856
        %v9858 = vsel %vm2975, %v8582, -inf
        %9859 = vmax.xlane.f32.xlu0 %v9858
        %v9860 = vpop.xlane.xlu0 %9859
        %v9861 = vsel %vm2975, %v8587, -inf
        %9862 = vmax.xlane.f32.xlu0 %v9861
        %v9863 = vpop.xlane.xlu0 %9862
        %v9864 = vsel %vm2975, %v8592, -inf
        %9865 = vmax.xlane.f32.xlu0 %v9864
        %v9866 = vpop.xlane.xlu0 %9865
        %v9867 = vsel %vm2975, %v8597, -inf
        %9868 = vmax.xlane.f32.xlu0 %v9867
        %v9869 = vpop.xlane.xlu0 %9868
        %v9870 = vsel %vm2975, %v8602, -inf
        %9871 = vmax.xlane.f32.xlu0 %v9870
        %v9872 = vpop.xlane.xlu0 %9871
        %v9873 = vsel %vm2975, %v8607, -inf
        %9874 = vmax.xlane.f32.xlu0 %v9873
        %v9875 = vpop.xlane.xlu0 %9874
        %v9876 = vsel %vm2975, %v8612, -inf
        %9877 = vmax.xlane.f32.xlu0 %v9876
        %v9878 = vpop.xlane.xlu0 %9877
        %v9879 = vsel %vm2975, %v8617, -inf
        %9880 = vmax.xlane.f32.xlu0 %v9879
        %v9881 = vpop.xlane.xlu0 %9880
        %v9882 = vsel %vm2975, %v8622, -inf
        %9883 = vmax.xlane.f32.xlu0 %v9882
        %v9884 = vpop.xlane.xlu0 %9883
        %v9885 = vsel %vm2975, %v8627, -inf
        %9886 = vmax.xlane.f32.xlu0 %v9885
        %v9887 = vpop.xlane.xlu0 %9886
        %v9888 = vsel %vm2975, %v8632, -inf
        %9889 = vmax.xlane.f32.xlu0 %v9888
        %v9890 = vpop.xlane.xlu0 %9889
        %v9891 = vsel %vm2975, %v8637, -inf
        %9892 = vmax.xlane.f32.xlu0 %v9891
        %v9893 = vpop.xlane.xlu0 %9892
        %v9894 = vsel %vm2975, %v8642, -inf
        %9895 = vmax.xlane.f32.xlu0 %v9894
        %v9896 = vpop.xlane.xlu0 %9895
        %v9897 = vsel %vm2975, %v8647, -inf
        %9898 = vmax.xlane.f32.xlu0 %v9897
        %v9899 = vpop.xlane.xlu0 %9898
        %v9900 = vsel %vm2975, %v8652, -inf
        %9901 = vmax.xlane.f32.xlu0 %v9900
        %v9902 = vpop.xlane.xlu0 %9901
        %v9903 = vsel %vm2975, %v8657, -inf
        %9904 = vmax.xlane.f32.xlu0 %v9903
        %v9905 = vpop.xlane.xlu0 %9904
        %v9906 = vsel %vm2975, %v8662, -inf
        %9907 = vmax.xlane.f32.xlu0 %v9906
        %v9908 = vpop.xlane.xlu0 %9907
        %v9909 = vsel %vm2975, %v8667, -inf
        %9910 = vmax.xlane.f32.xlu0 %v9909
        %v9911 = vpop.xlane.xlu0 %9910
        %v9912 = vsel %vm2975, %v8672, -inf
        %9913 = vmax.xlane.f32.xlu0 %v9912
        %v9914 = vpop.xlane.xlu0 %9913
        %v9915 = vsel %vm2975, %v8677, -inf
        %9916 = vmax.xlane.f32.xlu0 %v9915
        %v9917 = vpop.xlane.xlu0 %9916
        %v9918 = vsel %vm2975, %v8682, -inf
        %9919 = vmax.xlane.f32.xlu0 %v9918
        %v9920 = vpop.xlane.xlu0 %9919
        %v9921 = vsel %vm2975, %v8687, -inf
        %9922 = vmax.xlane.f32.xlu0 %v9921
        %v9923 = vpop.xlane.xlu0 %9922
        %v9924 = vsel %vm2975, %v8692, -inf
        %9925 = vmax.xlane.f32.xlu0 %v9924
        %v9926 = vpop.xlane.xlu0 %9925
        %v9927 = vsel %vm2975, %v8697, -inf
        %9928 = vmax.xlane.f32.xlu0 %v9927
        %v9929 = vpop.xlane.xlu0 %9928
        %v9930 = vsel %vm2975, %v8702, -inf
        %9931 = vmax.xlane.f32.xlu0 %v9930
        %v9932 = vpop.xlane.xlu0 %9931
        %v9933 = vsel %vm2975, %v8707, -inf
        %9934 = vmax.xlane.f32.xlu0 %v9933
        %v9935 = vpop.xlane.xlu0 %9934
        %v9936 = vsel %vm2975, %v8712, -inf
        %9937 = vmax.xlane.f32.xlu0 %v9936
        %v9938 = vpop.xlane.xlu0 %9937
        %v9939 = vsel %vm2975, %v8717, -inf
        %9940 = vmax.xlane.f32.xlu0 %v9939
        %v9941 = vpop.xlane.xlu0 %9940
        %v9942 = vsel %vm2975, %v8722, -inf
        %9943 = vmax.xlane.f32.xlu0 %v9942
        %v9944 = vpop.xlane.xlu0 %9943
        %v9945 = vsel %vm2975, %v8727, -inf
        %9946 = vmax.xlane.f32.xlu0 %v9945
        %v9947 = vpop.xlane.xlu0 %9946
        %v9948 = vsel %vm2975, %v8732, -inf
        %9949 = vmax.xlane.f32.xlu0 %v9948
        %v9950 = vpop.xlane.xlu0 %9949
        %v9951 = vsel %vm2975, %v8737, -inf
        %9952 = vmax.xlane.f32.xlu0 %v9951
        %v9953 = vpop.xlane.xlu0 %9952
        %v9954 = vsel %vm2975, %v8742, -inf
        %9955 = vmax.xlane.f32.xlu0 %v9954
        %v9956 = vpop.xlane.xlu0 %9955
        %v9957 = vsel %vm2975, %v8747, -inf
        %9958 = vmax.xlane.f32.xlu0 %v9957
        %v9959 = vpop.xlane.xlu0 %9958
        %v9960 = vsel %vm2975, %v8752, -inf
        %9961 = vmax.xlane.f32.xlu0 %v9960
        %v9962 = vpop.xlane.xlu0 %9961
        %v9963 = vsel %vm2975, %v8757, -inf
        %9964 = vmax.xlane.f32.xlu0 %v9963
        %v9965 = vpop.xlane.xlu0 %9964
        %v9966 = vsel %vm2975, %v8762, -inf
        %9967 = vmax.xlane.f32.xlu0 %v9966
        %v9968 = vpop.xlane.xlu0 %9967
        %v9969 = vsel %vm2975, %v8767, -inf
        %9970 = vmax.xlane.f32.xlu0 %v9969
        %v9971 = vpop.xlane.xlu0 %9970
        %v9972 = vsel %vm2975, %v8772, -inf
        %9973 = vmax.xlane.f32.xlu0 %v9972
        %v9974 = vpop.xlane.xlu0 %9973
        %v9975 = vsel %vm2975, %v8777, -inf
        %9976 = vmax.xlane.f32.xlu0 %v9975
        %v9977 = vpop.xlane.xlu0 %9976
        %v9978 = vsel %vm2975, %v8782, -inf
        %9979 = vmax.xlane.f32.xlu0 %v9978
        %v9980 = vpop.xlane.xlu0 %9979
        %v9981 = vsel %vm2975, %v8787, -inf
        %9982 = vmax.xlane.f32.xlu0 %v9981
        %v9983 = vpop.xlane.xlu0 %9982
        %v9984 = vsel %vm2975, %v8792, -inf
        %9985 = vmax.xlane.f32.xlu0 %v9984
        %v9986 = vpop.xlane.xlu0 %9985
        %v9987 = vsel %vm2975, %v8797, -inf
        %9988 = vmax.xlane.f32.xlu0 %v9987
        %v9989 = vpop.xlane.xlu0 %9988
        %v9990 = vsel %vm2975, %v8802, -inf
        %9991 = vmax.xlane.f32.xlu0 %v9990
        %v9992 = vpop.xlane.xlu0 %9991
        %v9993 = vsel %vm2975, %v8807, -inf
        %9994 = vmax.xlane.f32.xlu0 %v9993
        %v9995 = vpop.xlane.xlu0 %9994
        %v9996 = vsel %vm2975, %v8812, -inf
        %9997 = vmax.xlane.f32.xlu0 %v9996
        %v9998 = vpop.xlane.xlu0 %9997
        %v9999 = vsel %vm2975, %v8817, -inf
        %10000 = vmax.xlane.f32.xlu0 %v9999
        %v10001 = vpop.xlane.xlu0 %10000
        %v10002 = vsel %vm2975, %v8822, -inf
        %10003 = vmax.xlane.f32.xlu0 %v10002
        %v10004 = vpop.xlane.xlu0 %10003
        %v10005 = vsel %vm2975, %v8827, -inf
        %10006 = vmax.xlane.f32.xlu0 %v10005
        %v10007 = vpop.xlane.xlu0 %10006
        %v10008 = vsel %vm2975, %v8832, -inf
        %10009 = vmax.xlane.f32.xlu0 %v10008
        %v10010 = vpop.xlane.xlu0 %10009
        %v10011 = vsel %vm2975, %v8837, -inf
        %10012 = vmax.xlane.f32.xlu0 %v10011
        %v10013 = vpop.xlane.xlu0 %10012
        %v10014 = vsel %vm2975, %v8842, -inf
        %10015 = vmax.xlane.f32.xlu0 %v10014
        %v10016 = vpop.xlane.xlu0 %10015
        %v10017 = vsel %vm2975, %v8847, -inf
        %10018 = vmax.xlane.f32.xlu0 %v10017
        %v10019 = vpop.xlane.xlu0 %10018
        %v10020 = vsel %vm2975, %v8852, -inf
        %10021 = vmax.xlane.f32.xlu0 %v10020
        %v10022 = vpop.xlane.xlu0 %10021
        %v10023 = vsel %vm2975, %v8857, -inf
        %10024 = vmax.xlane.f32.xlu0 %v10023
        %v10025 = vpop.xlane.xlu0 %10024
        %v10026 = vsel %vm2975, %v8862, -inf
        %10027 = vmax.xlane.f32.xlu0 %v10026
        %v10028 = vpop.xlane.xlu0 %10027
        %v10029 = vsel %vm2975, %v8867, -inf
        %10030 = vmax.xlane.f32.xlu0 %v10029
        %v10031 = vpop.xlane.xlu0 %10030
        %v10032 = vsel %vm2975, %v8872, -inf
        %10033 = vmax.xlane.f32.xlu0 %v10032
        %v10034 = vpop.xlane.xlu0 %10033
        %v10035 = vsel %vm2975, %v8877, -inf
        %10036 = vmax.xlane.f32.xlu0 %v10035
        %v10037 = vpop.xlane.xlu0 %10036
        %v10038 = vsel %vm2975, %v8882, -inf
        %10039 = vmax.xlane.f32.xlu0 %v10038
        %v10040 = vpop.xlane.xlu0 %10039
        %v10041 = vsel %vm2975, %v8887, -inf
        %10042 = vmax.xlane.f32.xlu0 %v10041
        %v10043 = vpop.xlane.xlu0 %10042
        %v10044 = vsel %vm2975, %v8892, -inf
        %10045 = vmax.xlane.f32.xlu0 %v10044
        %v10046 = vpop.xlane.xlu0 %10045
        %v10047 = vsel %vm2975, %v8897, -inf
        %10048 = vmax.xlane.f32.xlu0 %v10047
        %v10049 = vpop.xlane.xlu0 %10048
        %v10050 = vsel %vm2975, %v8902, -inf
        %10051 = vmax.xlane.f32.xlu0 %v10050
        %v10052 = vpop.xlane.xlu0 %10051
        %v10053 = vsel %vm2975, %v8907, -inf
        %10054 = vmax.xlane.f32.xlu0 %v10053
        %v10055 = vpop.xlane.xlu0 %10054
        %v10056 = vsel %vm2975, %v8912, -inf
        %10057 = vmax.xlane.f32.xlu0 %v10056
        %v10058 = vpop.xlane.xlu0 %10057
        %v10059 = vsel %vm2975, %v8917, -inf
        %10060 = vmax.xlane.f32.xlu0 %v10059
        %v10061 = vpop.xlane.xlu0 %10060
        %v10062 = vsel %vm2975, %v8922, -inf
        %10063 = vmax.xlane.f32.xlu0 %v10062
        %v10064 = vpop.xlane.xlu0 %10063
        %v10065 = vsel %vm2975, %v8927, -inf
        %10066 = vmax.xlane.f32.xlu0 %v10065
        %v10067 = vpop.xlane.xlu0 %10066
        %v10068 = vsel %vm2975, %v8932, -inf
        %10069 = vmax.xlane.f32.xlu0 %v10068
        %v10070 = vpop.xlane.xlu0 %10069
        %v10071 = vsel %vm2975, %v8937, -inf
        %10072 = vmax.xlane.f32.xlu0 %v10071
        %v10073 = vpop.xlane.xlu0 %10072
        %v10074 = vsel %vm2975, %v8942, -inf
        %10075 = vmax.xlane.f32.xlu0 %v10074
        %v10076 = vpop.xlane.xlu0 %10075
        %v10077 = vsel %vm2975, %v8947, -inf
        %10078 = vmax.xlane.f32.xlu0 %v10077
        %v10079 = vpop.xlane.xlu0 %10078
        %v10080 = vsel %vm2975, %v8952, -inf
        %10081 = vmax.xlane.f32.xlu0 %v10080
        %v10082 = vpop.xlane.xlu0 %10081
        %v10083 = vsel %vm2975, %v8957, -inf
        %10084 = vmax.xlane.f32.xlu0 %v10083
        %v10085 = vpop.xlane.xlu0 %10084
        %v10086 = vsel %vm2975, %v8962, -inf
        %10087 = vmax.xlane.f32.xlu0 %v10086
        %v10088 = vpop.xlane.xlu0 %10087
        %v10089 = vsel %vm2975, %v8967, -inf
        %10090 = vmax.xlane.f32.xlu0 %v10089
        %v10091 = vpop.xlane.xlu0 %10090
        %v10092 = vsel %vm2975, %v8972, -inf
        %10093 = vmax.xlane.f32.xlu0 %v10092
        %v10094 = vpop.xlane.xlu0 %10093
        %v10095 = vsel %vm2975, %v8977, -inf
        %10096 = vmax.xlane.f32.xlu0 %v10095
        %v10097 = vpop.xlane.xlu0 %10096
        %v10098 = vsel %vm2975, %v8982, -inf
        %10099 = vmax.xlane.f32.xlu0 %v10098
        %v10100 = vpop.xlane.xlu0 %10099
        %v10101 = vsel %vm2975, %v8987, -inf
        %10102 = vmax.xlane.f32.xlu0 %v10101
        %v10103 = vpop.xlane.xlu0 %10102
        %v10104 = vsel %vm2975, %v8992, -inf
        %10105 = vmax.xlane.f32.xlu0 %v10104
        %v10106 = vpop.xlane.xlu0 %10105
        %v10107 = vsel %vm2975, %v8997, -inf
        %10108 = vmax.xlane.f32.xlu0 %v10107
        %v10109 = vpop.xlane.xlu0 %10108
        %v10110 = vsel %vm2975, %v9002, -inf
        %10111 = vmax.xlane.f32.xlu0 %v10110
        %v10112 = vpop.xlane.xlu0 %10111
        %v10113 = vsel %vm2975, %v9007, -inf
        %10114 = vmax.xlane.f32.xlu0 %v10113
        %v10115 = vpop.xlane.xlu0 %10114
        %v10116 = vsel %vm2975, %v9012, -inf
        %10117 = vmax.xlane.f32.xlu0 %v10116
        %v10118 = vpop.xlane.xlu0 %10117
        %v10119 = vsel %vm2975, %v9017, -inf
        %10120 = vmax.xlane.f32.xlu0 %v10119
        %v10121 = vpop.xlane.xlu0 %10120
        %v10122 = vsel %vm2975, %v9022, -inf
        %10123 = vmax.xlane.f32.xlu0 %v10122
        %v10124 = vpop.xlane.xlu0 %10123
        %v10125 = vsel %vm2975, %v9027, -inf
        %10126 = vmax.xlane.f32.xlu0 %v10125
        %v10127 = vpop.xlane.xlu0 %10126
        %v10128 = vsel %vm2975, %v9032, -inf
        %10129 = vmax.xlane.f32.xlu0 %v10128
        %v10130 = vpop.xlane.xlu0 %10129
        %v10131 = vsel %vm2975, %v9037, -inf
        %10132 = vmax.xlane.f32.xlu0 %v10131
        %v10133 = vpop.xlane.xlu0 %10132
        %v10134 = vsel %vm2975, %v9042, -inf
        %10135 = vmax.xlane.f32.xlu0 %v10134
        %v10136 = vpop.xlane.xlu0 %10135
        %v10137 = vsel %vm2975, %v9047, -inf
        %10138 = vmax.xlane.f32.xlu0 %v10137
        %v10139 = vpop.xlane.xlu0 %10138
        %v10140 = vsel %vm2975, %v9052, -inf
        %10141 = vmax.xlane.f32.xlu0 %v10140
        %v10142 = vpop.xlane.xlu0 %10141
        %v10143 = vsel %vm2975, %v9057, -inf
        %10144 = vmax.xlane.f32.xlu0 %v10143
        %v10145 = vpop.xlane.xlu0 %10144
        %v10146 = vsel %vm2975, %v9062, -inf
        %10147 = vmax.xlane.f32.xlu0 %v10146
        %v10148 = vpop.xlane.xlu0 %10147
        %v10149 = vsel %vm2975, %v9067, -inf
        %10150 = vmax.xlane.f32.xlu0 %v10149
        %v10151 = vpop.xlane.xlu0 %10150
        %v10152 = vsel %vm2975, %v9072, -inf
        %10153 = vmax.xlane.f32.xlu0 %v10152
        %v10154 = vpop.xlane.xlu0 %10153
        %v10155 = vsel %vm2975, %v9077, -inf
        %10156 = vmax.xlane.f32.xlu0 %v10155
        %v10157 = vpop.xlane.xlu0 %10156
        %v10158 = vsel %vm2975, %v9082, -inf
        %10159 = vmax.xlane.f32.xlu0 %v10158
        %v10160 = vpop.xlane.xlu0 %10159
        %v10161 = vsel %vm2975, %v9087, -inf
        %10162 = vmax.xlane.f32.xlu0 %v10161
        %v10163 = vpop.xlane.xlu0 %10162
        %v10164 = vsel %vm2975, %v9092, -inf
        %10165 = vmax.xlane.f32.xlu0 %v10164
        %v10166 = vpop.xlane.xlu0 %10165
        %v10167 = vsel %vm2975, %v9097, -inf
        %10168 = vmax.xlane.f32.xlu0 %v10167
        %v10169 = vpop.xlane.xlu0 %10168
        %v10170 = vsel %vm2975, %v9102, -inf
        %10171 = vmax.xlane.f32.xlu0 %v10170
        %v10172 = vpop.xlane.xlu0 %10171
        %v10173 = vsel %vm2975, %v9107, -inf
        %10174 = vmax.xlane.f32.xlu0 %v10173
        %v10175 = vpop.xlane.xlu0 %10174
        %v10176 = vsel %vm2975, %v9112, -inf
        %10177 = vmax.xlane.f32.xlu0 %v10176
        %v10178 = vpop.xlane.xlu0 %10177
        %v10179 = vsel %vm2975, %v9117, -inf
        %10180 = vmax.xlane.f32.xlu0 %v10179
        %v10181 = vpop.xlane.xlu0 %10180
        %v10182 = vsel %vm2975, %v9122, -inf
        %10183 = vmax.xlane.f32.xlu0 %v10182
        %v10184 = vpop.xlane.xlu0 %10183
        %v10185 = vsel %vm2975, %v9127, -inf
        %10186 = vmax.xlane.f32.xlu0 %v10185
        %v10187 = vpop.xlane.xlu0 %10186
        %v10188 = vsel %vm2975, %v9132, -inf
        %10189 = vmax.xlane.f32.xlu0 %v10188
        %v10190 = vpop.xlane.xlu0 %10189
        %v10191 = vsel %vm2975, %v9137, -inf
        %10192 = vmax.xlane.f32.xlu0 %v10191
        %v10193 = vpop.xlane.xlu0 %10192
        %v10194 = vsel %vm2975, %v9142, -inf
        %10195 = vmax.xlane.f32.xlu0 %v10194
        %v10196 = vpop.xlane.xlu0 %10195
        %v10197 = vsel %vm2975, %v9147, -inf
        %10198 = vmax.xlane.f32.xlu0 %v10197
        %v10199 = vpop.xlane.xlu0 %10198
        %v10200 = vsel %vm2975, %v9152, -inf
        %10201 = vmax.xlane.f32.xlu0 %v10200
        %v10202 = vpop.xlane.xlu0 %10201
        %v10203 = vsel %vm2975, %v9157, -inf
        %10204 = vmax.xlane.f32.xlu0 %v10203
        %v10205 = vpop.xlane.xlu0 %10204
        %v10206 = vsel %vm2975, %v9162, -inf
        %10207 = vmax.xlane.f32.xlu0 %v10206
        %v10208 = vpop.xlane.xlu0 %10207
        %v10209 = vsel %vm2975, %v9167, -inf
        %10210 = vmax.xlane.f32.xlu0 %v10209
        %v10211 = vpop.xlane.xlu0 %10210
        %v10212 = vsel %vm2975, %v9172, -inf
        %10213 = vmax.xlane.f32.xlu0 %v10212
        %v10214 = vpop.xlane.xlu0 %10213
        %v10215 = vsel %vm2975, %v9177, -inf
        %10216 = vmax.xlane.f32.xlu0 %v10215
        %v10217 = vpop.xlane.xlu0 %10216
        %v10218 = vsel %vm2975, %v9182, -inf
        %10219 = vmax.xlane.f32.xlu0 %v10218
        %v10220 = vpop.xlane.xlu0 %10219
        %v10221 = vsel %vm2975, %v9187, -inf
        %10222 = vmax.xlane.f32.xlu0 %v10221
        %v10223 = vpop.xlane.xlu0 %10222
        %v10224 = vsel %vm2975, %v9192, -inf
        %10225 = vmax.xlane.f32.xlu0 %v10224
        %v10226 = vpop.xlane.xlu0 %10225
        %v10227 = vsel %vm2975, %v9197, -inf
        %10228 = vmax.xlane.f32.xlu0 %v10227
        %v10229 = vpop.xlane.xlu0 %10228
        %v10230 = vsel %vm2975, %v9202, -inf
        %10231 = vmax.xlane.f32.xlu0 %v10230
        %v10232 = vpop.xlane.xlu0 %10231
        %v10233 = vsel %vm2975, %v9207, -inf
        %10234 = vmax.xlane.f32.xlu0 %v10233
        %v10235 = vpop.xlane.xlu0 %10234
        %v10236 = vsel %vm2975, %v9212, -inf
        %10237 = vmax.xlane.f32.xlu0 %v10236
        %v10238 = vpop.xlane.xlu0 %10237
        %v10239 = vsel %vm2975, %v9217, -inf
        %10240 = vmax.xlane.f32.xlu0 %v10239
        %v10241 = vpop.xlane.xlu0 %10240
        %v10242 = vsel %vm2975, %v9222, -inf
        %10243 = vmax.xlane.f32.xlu0 %v10242
        %v10244 = vpop.xlane.xlu0 %10243
        %v10245 = vsel %vm2975, %v9227, -inf
        %10246 = vmax.xlane.f32.xlu0 %v10245
        %v10247 = vpop.xlane.xlu0 %10246
        %v10248 = vsel %vm2975, %v9232, -inf
        %10249 = vmax.xlane.f32.xlu0 %v10248
        %v10250 = vpop.xlane.xlu0 %10249
        %v10251 = vsel %vm2975, %v9237, -inf
        %10252 = vmax.xlane.f32.xlu0 %v10251
        %v10253 = vpop.xlane.xlu0 %10252
        %v10254 = vsel %vm2975, %v9242, -inf
        %10255 = vmax.xlane.f32.xlu0 %v10254
        %v10256 = vpop.xlane.xlu0 %10255
        %v10257 = vsel %vm2975, %v9247, -inf
        %10258 = vmax.xlane.f32.xlu0 %v10257
        %v10259 = vpop.xlane.xlu0 %10258
        %v10260 = vsel %vm2975, %v9252, -inf
        %10261 = vmax.xlane.f32.xlu0 %v10260
        %v10262 = vpop.xlane.xlu0 %10261
        %v10263 = vsel %vm2975, %v9257, -inf
        %10264 = vmax.xlane.f32.xlu0 %v10263
        %v10265 = vpop.xlane.xlu0 %10264
        %v10266 = vsel %vm2975, %v9262, -inf
        %10267 = vmax.xlane.f32.xlu0 %v10266
        %v10268 = vpop.xlane.xlu0 %10267
        %v10269 = vsel %vm2975, %v9267, -inf
        %10270 = vmax.xlane.f32.xlu0 %v10269
        %v10271 = vpop.xlane.xlu0 %10270
        %v10272 = vsel %vm2975, %v9272, -inf
        %10273 = vmax.xlane.f32.xlu0 %v10272
        %v10274 = vpop.xlane.xlu0 %10273
        %v10275 = vsel %vm2975, %v9277, -inf
        %10276 = vmax.xlane.f32.xlu0 %v10275
        %v10277 = vpop.xlane.xlu0 %10276
        %v10278 = vsel %vm2975, %v9282, -inf
        %10279 = vmax.xlane.f32.xlu0 %v10278
        %v10280 = vpop.xlane.xlu0 %10279
        %v10281 = vsel %vm2975, %v9287, -inf
        %10282 = vmax.xlane.f32.xlu0 %v10281
        %v10283 = vpop.xlane.xlu0 %10282
        %v10284 = vsel %vm2975, %v9292, -inf
        %10285 = vmax.xlane.f32.xlu0 %v10284
        %v10286 = vpop.xlane.xlu0 %10285
        %v10287 = vsel %vm2975, %v9297, -inf
        %10288 = vmax.xlane.f32.xlu0 %v10287
        %v10289 = vpop.xlane.xlu0 %10288
        %v10290 = vsel %vm2975, %v9302, -inf
        %10291 = vmax.xlane.f32.xlu0 %v10290
        %v10292 = vpop.xlane.xlu0 %10291
        %v10293 = vsel %vm2975, %v9307, -inf
        %10294 = vmax.xlane.f32.xlu0 %v10293
        %v10295 = vpop.xlane.xlu0 %10294
        %v10296 = vsel %vm2975, %v9312, -inf
        %10297 = vmax.xlane.f32.xlu0 %v10296
        %v10298 = vpop.xlane.xlu0 %10297
        %v10299 = vsel %vm2975, %v9317, -inf
        %10300 = vmax.xlane.f32.xlu0 %v10299
        %v10301 = vpop.xlane.xlu0 %10300
        %v10302 = vsel %vm2975, %v9322, -inf
        %10303 = vmax.xlane.f32.xlu0 %v10302
        %v10304 = vpop.xlane.xlu0 %10303
        %v10305 = vsel %vm2975, %v9327, -inf
        %10306 = vmax.xlane.f32.xlu0 %v10305
        %v10307 = vpop.xlane.xlu0 %10306
        %v10308 = vsel %vm2975, %v9332, -inf
        %10309 = vmax.xlane.f32.xlu0 %v10308
        %v10310 = vpop.xlane.xlu0 %10309
        %v10311 = vsel %vm2975, %v9337, -inf
        %10312 = vmax.xlane.f32.xlu0 %v10311
        %v10313 = vpop.xlane.xlu0 %10312
        %v10314 = vsel %vm2975, %v9342, -inf
        %10315 = vmax.xlane.f32.xlu0 %v10314
        %v10316 = vpop.xlane.xlu0 %10315
        %v10317 = vsel %vm2975, %v9347, -inf
        %10318 = vmax.xlane.f32.xlu0 %v10317
        %v10319 = vpop.xlane.xlu0 %10318
        %v10320 = vsel %vm2975, %v9352, -inf
        %10321 = vmax.xlane.f32.xlu0 %v10320
        %v10322 = vpop.xlane.xlu0 %10321
        %v10323 = vsel %vm2975, %v9357, -inf
        %10324 = vmax.xlane.f32.xlu0 %v10323
        %v10325 = vpop.xlane.xlu0 %10324
        %v10326 = vsel %vm2975, %v9362, -inf
        %10327 = vmax.xlane.f32.xlu0 %v10326
        %v10328 = vpop.xlane.xlu0 %10327
        %v10329 = vsel %vm2975, %v9367, -inf
        %10330 = vmax.xlane.f32.xlu0 %v10329
        %v10331 = vpop.xlane.xlu0 %10330
        %v10332 = vsel %vm2975, %v9372, -inf
        %10333 = vmax.xlane.f32.xlu0 %v10332
        %v10334 = vpop.xlane.xlu0 %10333
        %v10335 = vsel %vm2975, %v9377, -inf
        %10336 = vmax.xlane.f32.xlu0 %v10335
        %v10337 = vpop.xlane.xlu0 %10336
        %v10338 = vsel %vm2975, %v9382, -inf
        %10339 = vmax.xlane.f32.xlu0 %v10338
        %v10340 = vpop.xlane.xlu0 %10339
        %v10341 = vsel %vm2975, %v9387, -inf
        %10342 = vmax.xlane.f32.xlu0 %v10341
        %v10343 = vpop.xlane.xlu0 %10342
        %v10344 = vsel %vm2975, %v9392, -inf
        %10345 = vmax.xlane.f32.xlu0 %v10344
        %v10346 = vpop.xlane.xlu0 %10345
        %v10347 = vsel %vm2975, %v9397, -inf
        %10348 = vmax.xlane.f32.xlu0 %v10347
        %v10349 = vpop.xlane.xlu0 %10348
        %v10350 = vsel %vm2975, %v9402, -inf
        %10351 = vmax.xlane.f32.xlu0 %v10350
        %v10352 = vpop.xlane.xlu0 %10351
        %v10353 = vsel %vm2975, %v9407, -inf
        %10354 = vmax.xlane.f32.xlu0 %v10353
        %v10355 = vpop.xlane.xlu0 %10354
        %v10356 = vsel %vm2975, %v9412, -inf
        %10357 = vmax.xlane.f32.xlu0 %v10356
        %v10358 = vpop.xlane.xlu0 %10357
        %v10359 = vsel %vm2975, %v9417, -inf
        %10360 = vmax.xlane.f32.xlu0 %v10359
        %v10361 = vpop.xlane.xlu0 %10360
        %v10362 = vsel %vm2975, %v9422, -inf
        %10363 = vmax.xlane.f32.xlu0 %v10362
        %v10364 = vpop.xlane.xlu0 %10363
        %v10365 = vsel %vm2975, %v9427, -inf
        %10366 = vmax.xlane.f32.xlu0 %v10365
        %v10367 = vpop.xlane.xlu0 %10366
        %v10368 = vsel %vm2975, %v9432, -inf
        %10369 = vmax.xlane.f32.xlu0 %v10368
        %v10370 = vpop.xlane.xlu0 %10369
        %v10371 = vsel %vm2975, %v9437, -inf
        %10372 = vmax.xlane.f32.xlu0 %v10371
        %v10373 = vpop.xlane.xlu0 %10372
        %v10374 = vsel %vm2975, %v9442, -inf
        %10375 = vmax.xlane.f32.xlu0 %v10374
        %v10376 = vpop.xlane.xlu0 %10375
        %v10377 = vsel %vm2975, %v9447, -inf
        %10378 = vmax.xlane.f32.xlu0 %v10377
        %v10379 = vpop.xlane.xlu0 %10378
        %v10380 = vsel %vm2975, %v9452, -inf
        %10381 = vmax.xlane.f32.xlu0 %v10380
        %v10382 = vpop.xlane.xlu0 %10381
        %v10383 = vsel %vm2975, %v9457, -inf
        %10384 = vmax.xlane.f32.xlu0 %v10383
        %v10385 = vpop.xlane.xlu0 %10384
        %v10386 = vsel %vm2975, %v9462, -inf
        %10387 = vmax.xlane.f32.xlu0 %v10386
        %v10388 = vpop.xlane.xlu0 %10387
        %v10389 = vsel %vm2975, %v9467, -inf
        %10390 = vmax.xlane.f32.xlu0 %v10389
        %v10391 = vpop.xlane.xlu0 %10390
        %v10392 = vsel %vm2975, %v9472, -inf
        %10393 = vmax.xlane.f32.xlu0 %v10392
        %v10394 = vpop.xlane.xlu0 %10393
        %v10395 = vsel %vm2975, %v9477, -inf
        %10396 = vmax.xlane.f32.xlu0 %v10395
        %v10397 = vpop.xlane.xlu0 %10396
        %v10398 = vsel %vm2975, %v9482, -inf
        %10399 = vmax.xlane.f32.xlu0 %v10398
        %v10400 = vpop.xlane.xlu0 %10399
        %v10401 = vsel %vm2975, %v9487, -inf
        %10402 = vmax.xlane.f32.xlu0 %v10401
        %v10403 = vpop.xlane.xlu0 %10402
        %v10404 = vsel %vm2975, %v9492, -inf
        %10405 = vmax.xlane.f32.xlu0 %v10404
        %v10406 = vpop.xlane.xlu0 %10405
        %v10407 = vsel %vm2975, %v9497, -inf
        %10408 = vmax.xlane.f32.xlu0 %v10407
        %v10409 = vpop.xlane.xlu0 %10408
        %v10410 = vsel %vm2975, %v9502, -inf
        %10411 = vmax.xlane.f32.xlu0 %v10410
        %v10412 = vpop.xlane.xlu0 %10411
        %v10413 = vsel %vm2975, %v9507, -inf
        %10414 = vmax.xlane.f32.xlu0 %v10413
        %v10415 = vpop.xlane.xlu0 %10414
        %v10416 = vsel %vm2975, %v9512, -inf
        %10417 = vmax.xlane.f32.xlu0 %v10416
        %v10418 = vpop.xlane.xlu0 %10417
        %v10419 = vsel %vm2975, %v9517, -inf
        %10420 = vmax.xlane.f32.xlu0 %v10419
        %v10421 = vpop.xlane.xlu0 %10420
        %v10422 = vsel %vm2975, %v9522, -inf
        %10423 = vmax.xlane.f32.xlu0 %v10422
        %v10424 = vpop.xlane.xlu0 %10423
        %v10425 = vsel %vm2975, %v9527, -inf
        %10426 = vmax.xlane.f32.xlu0 %v10425
        %v10427 = vpop.xlane.xlu0 %10426
        %v10428 = vsel %vm2975, %v9532, -inf
        %10429 = vmax.xlane.f32.xlu0 %v10428
        %v10430 = vpop.xlane.xlu0 %10429
        %v10431 = vsel %vm2975, %v9537, -inf
        %10432 = vmax.xlane.f32.xlu0 %v10431
        %v10433 = vpop.xlane.xlu0 %10432
        %v10434 = vsel %vm2975, %v9542, -inf
        %10435 = vmax.xlane.f32.xlu0 %v10434
        %v10436 = vpop.xlane.xlu0 %10435
        %v10437 = vsel %vm2975, %v9547, -inf
        %10438 = vmax.xlane.f32.xlu0 %v10437
        %v10439 = vpop.xlane.xlu0 %10438
        %v10440 = vsel %vm2975, %v9552, -inf
        %10441 = vmax.xlane.f32.xlu0 %v10440
        %v10442 = vpop.xlane.xlu0 %10441
        %v10443 = vsel %vm2975, %v9557, -inf
        %10444 = vmax.xlane.f32.xlu0 %v10443
        %v10445 = vpop.xlane.xlu0 %10444
        %v10446 = vsel %vm2975, %v9562, -inf
        %10447 = vmax.xlane.f32.xlu0 %v10446
        %v10448 = vpop.xlane.xlu0 %10447
        %v10449 = vsel %vm2975, %v9567, -inf
        %10450 = vmax.xlane.f32.xlu0 %v10449
        %v10451 = vpop.xlane.xlu0 %10450
        %v10452 = vsel %vm2975, %v9572, -inf
        %10453 = vmax.xlane.f32.xlu0 %v10452
        %v10454 = vpop.xlane.xlu0 %10453
        %v10455 = vsel %vm2975, %v9577, -inf
        %10456 = vmax.xlane.f32.xlu0 %v10455
        %v10457 = vpop.xlane.xlu0 %10456
        %v10458 = vsel %vm2975, %v9582, -inf
        %10459 = vmax.xlane.f32.xlu0 %v10458
        %v10460 = vpop.xlane.xlu0 %10459
        %v10461 = vsel %vm2975, %v9587, -inf
        %10462 = vmax.xlane.f32.xlu0 %v10461
        %v10463 = vpop.xlane.xlu0 %10462
        %v10464 = vsel %vm2975, %v9592, -inf
        %10465 = vmax.xlane.f32.xlu0 %v10464
        %v10466 = vpop.xlane.xlu0 %10465
        %v10467 = vsel %vm2975, %v9597, -inf
        %10468 = vmax.xlane.f32.xlu0 %v10467
        %v10469 = vpop.xlane.xlu0 %10468
        %v10470 = vsel %vm2975, %v9602, -inf
        %10471 = vmax.xlane.f32.xlu0 %v10470
        %v10472 = vpop.xlane.xlu0 %10471
        %v10473 = vsel %vm2975, %v9607, -inf
        %10474 = vmax.xlane.f32.xlu0 %v10473
        %v10475 = vpop.xlane.xlu0 %10474
        %v10476 = vsel %vm2975, %v9612, -inf
        %10477 = vmax.xlane.f32.xlu0 %v10476
        %v10478 = vpop.xlane.xlu0 %10477
        %v10479 = vsel %vm2975, %v9617, -inf
        %10480 = vmax.xlane.f32.xlu0 %v10479
        %v10481 = vpop.xlane.xlu0 %10480
        %v10482 = vsel %vm2975, %v9622, -inf
        %10483 = vmax.xlane.f32.xlu0 %v10482
        %v10484 = vpop.xlane.xlu0 %10483
        %v10485 = vsel %vm2975, %v9627, -inf
        %10486 = vmax.xlane.f32.xlu0 %v10485
        %v10487 = vpop.xlane.xlu0 %10486
        %v10488 = vsel %vm2975, %v9632, -inf
        %10489 = vmax.xlane.f32.xlu0 %v10488
        %v10490 = vpop.xlane.xlu0 %10489
        %v10491 = vsel %vm2975, %v9637, -inf
        %10492 = vmax.xlane.f32.xlu0 %v10491
        %v10493 = vpop.xlane.xlu0 %10492
        %v10494 = vsel %vm2975, %v9642, -inf
        %10495 = vmax.xlane.f32.xlu0 %v10494
        %v10496 = vpop.xlane.xlu0 %10495
        %v10497 = vsel %vm2975, %v9647, -inf
        %10498 = vmax.xlane.f32.xlu0 %v10497
        %v10499 = vpop.xlane.xlu0 %10498
        %v10500 = vsel %vm2975, %v9652, -inf
        %10501 = vmax.xlane.f32.xlu0 %v10500
        %v10502 = vpop.xlane.xlu0 %10501
        %v10503 = vsel %vm2975, %v9657, -inf
        %10504 = vmax.xlane.f32.xlu0 %v10503
        %v10505 = vpop.xlane.xlu0 %10504
        %v10506 = vsel %vm2975, %v9662, -inf
        %10507 = vmax.xlane.f32.xlu0 %v10506
        %v10508 = vpop.xlane.xlu0 %10507
        %v10509 = vsel %vm2975, %v9667, -inf
        %10510 = vmax.xlane.f32.xlu0 %v10509
        %v10511 = vpop.xlane.xlu0 %10510
        %v10512 = vsel %vm2975, %v9672, -inf
        %10513 = vmax.xlane.f32.xlu0 %v10512
        %v10514 = vpop.xlane.xlu0 %10513
        %v10515 = vsel %vm2975, %v9677, -inf
        %10516 = vmax.xlane.f32.xlu0 %v10515
        %v10517 = vpop.xlane.xlu0 %10516
        %v10518 = vsel %vm2975, %v9682, -inf
        %10519 = vmax.xlane.f32.xlu0 %v10518
        %v10520 = vpop.xlane.xlu0 %10519
        %v10521 = vsel %vm2975, %v9687, -inf
        %10522 = vmax.xlane.f32.xlu0 %v10521
        %v10523 = vpop.xlane.xlu0 %10522
        %v10524 = vsel %vm2975, %v9692, -inf
        %10525 = vmax.xlane.f32.xlu0 %v10524
        %v10526 = vpop.xlane.xlu0 %10525
        %v10527 = vsel %vm2975, %v9697, -inf
        %10528 = vmax.xlane.f32.xlu0 %v10527
        %v10529 = vpop.xlane.xlu0 %10528
        %v10530 = vsel %vm2975, %v9702, -inf
        %10531 = vmax.xlane.f32.xlu0 %v10530
        %v10532 = vpop.xlane.xlu0 %10531
        %v10533 = vsel %vm2975, %v9707, -inf
        %10534 = vmax.xlane.f32.xlu0 %v10533
        %v10535 = vpop.xlane.xlu0 %10534
        %v10536 = vsel %vm2975, %v9712, -inf
        %10537 = vmax.xlane.f32.xlu0 %v10536
        %v10538 = vpop.xlane.xlu0 %10537
        %v10539 = vsel %vm2975, %v9717, -inf
        %10540 = vmax.xlane.f32.xlu0 %v10539
        %v10541 = vpop.xlane.xlu0 %10540
        %v10542 = vsel %vm2975, %v9722, -inf
        %10543 = vmax.xlane.f32.xlu0 %v10542
        %v10544 = vpop.xlane.xlu0 %10543
        %v10545 = vsel %vm2975, %v9727, -inf
        %10546 = vmax.xlane.f32.xlu0 %v10545
        %v10547 = vpop.xlane.xlu0 %10546
        %v10548 = vsel %vm2975, %v9732, -inf
        %10549 = vmax.xlane.f32.xlu0 %v10548
        %v10550 = vpop.xlane.xlu0 %10549
        %v10551 = vsel %vm2975, %v9737, -inf
        %10552 = vmax.xlane.f32.xlu0 %v10551
        %v10553 = vpop.xlane.xlu0 %10552
        %v10554 = vsel %vm2975, %v9742, -inf
        %10555 = vmax.xlane.f32.xlu0 %v10554
        %v10556 = vpop.xlane.xlu0 %10555
        %v10557 = vsel %vm2975, %v9747, -inf
        %10558 = vmax.xlane.f32.xlu0 %v10557
        %v10559 = vpop.xlane.xlu0 %10558
        %v10560 = vsel %vm2975, %v9752, -inf
        %10561 = vmax.xlane.f32.xlu0 %v10560
        %v10562 = vpop.xlane.xlu0 %10561
        %v10563 = vsel %vm2975, %v9757, -inf
        %10564 = vmax.xlane.f32.xlu0 %v10563
        %v10565 = vpop.xlane.xlu0 %10564
        %v10566 = vsel %vm2975, %v9762, -inf
        %10567 = vmax.xlane.f32.xlu0 %v10566
        %v10568 = vpop.xlane.xlu0 %10567
        %v10569 = vsel %vm2975, %v9767, -inf
        %10570 = vmax.xlane.f32.xlu0 %v10569
        %v10571 = vpop.xlane.xlu0 %10570
        %v10572 = vsel %vm2975, %v9772, -inf
        %10573 = vmax.xlane.f32.xlu0 %v10572
        %v10574 = vpop.xlane.xlu0 %10573
        %v10575 = vsel %vm2975, %v9777, -inf
        %10576 = vmax.xlane.f32.xlu0 %v10575
        %v10577 = vpop.xlane.xlu0 %10576
        %v10578 = vsel %vm2975, %v9782, -inf
        %10579 = vmax.xlane.f32.xlu0 %v10578
        %v10580 = vpop.xlane.xlu0 %10579
        %v10581 = vsel %vm2975, %v9787, -inf
        %10582 = vmax.xlane.f32.xlu0 %v10581
        %v10583 = vpop.xlane.xlu0 %10582
        %v10584 = vsel %vm2975, %v9792, -inf
        %10585 = vmax.xlane.f32.xlu0 %v10584
        %v10586 = vpop.xlane.xlu0 %10585
        %v10587 = vsel %vm2975, %v9797, -inf
        %10588 = vmax.xlane.f32.xlu0 %v10587
        %v10589 = vpop.xlane.xlu0 %10588
        %v10590 = vsel %vm2975, %v9802, -inf
        %10591 = vmax.xlane.f32.xlu0 %v10590
        %v10592 = vpop.xlane.xlu0 %10591
        %v10593 = vsel %vm2975, %v9807, -inf
        %10594 = vmax.xlane.f32.xlu0 %v10593
        %v10595 = vpop.xlane.xlu0 %10594
        %v10596 = vsel %vm2975, %v9812, -inf
        %10597 = vmax.xlane.f32.xlu0 %v10596
        %v10598 = vpop.xlane.xlu0 %10597
        %v10599 = vsel %vm2975, %v9817, -inf
        %10600 = vmax.xlane.f32.xlu0 %v10599
        %v10601 = vpop.xlane.xlu0 %10600
        %v10602 = vsel %vm2975, %v9822, -inf
        %10603 = vmax.xlane.f32.xlu0 %v10602
        %v10604 = vpop.xlane.xlu0 %10603
        %v10605 = vsel %vm2975, %v9827, -inf
        %10606 = vmax.xlane.f32.xlu0 %v10605
        %v10607 = vpop.xlane.xlu0 %10606
        %v10608 = vsel %vm2975, %v9832, -inf
        %10609 = vmax.xlane.f32.xlu0 %v10608
        %v10610 = vpop.xlane.xlu0 %10609
        %v10611 = vsel %vm2975, %v9837, -inf
        %10612 = vmax.xlane.f32.xlu0 %v10611
        %v10613 = vpop.xlane.xlu0 %10612
        %v10614 = vsel %vm2975, %v9842, -inf
        %10615 = vmax.xlane.f32.xlu0 %v10614
        %v10616 = vpop.xlane.xlu0 %10615
        %v10617 = vsel %vm2975, %v9847, -inf
        %10618 = vmax.xlane.f32.xlu0 %v10617
        %v10619 = vpop.xlane.xlu0 %10618
        %v10620 = vsel %vm2975, %v9852, -inf
        %10621 = vmax.xlane.f32.xlu0 %v10620
        %v10622 = vpop.xlane.xlu0 %10621
        %v10623 = vld [vmem:[%s5] sm:$0xff]
        %v10624 = vld [vmem:[%s5 + $0x8] sm:$0xff]
        %v10625 = vld [vmem:[%s5 + $0x10] sm:$0xff]
        %v10626 = vld [vmem:[%s5 + $0x18] sm:$0xff]
        %v10627 = vld [vmem:[%s5 + $0x20] sm:$0xff]
        %v10628 = vld [vmem:[%s5 + $0x28] sm:$0xff]
        %v10629 = vld [vmem:[%s5 + $0x30] sm:$0xff]
        %v10630 = vld [vmem:[%s5 + $0x38] sm:$0xff]
        %v10631 = vld [vmem:[%s326] sm:$0xff]
        %v10632 = vld [vmem:[%s326 + $0x8] sm:$0xff]
        %v10633 = vld [vmem:[%s326 + $0x10] sm:$0xff]
        %v10634 = vld [vmem:[%s326 + $0x18] sm:$0xff]
        %v10891 = vlaneseq
        %v10892 = vand.u32 %v10891, 127
        %v10893 = vlaneseq
        %v10894 = vshrl.u32 %v10893, 7
        %v10895 = vsub.s32 %v10892, %v10894
        %v10896 = vrot.slane %v9857, %v10895
        %v10897 = vadd.s32 %v10892, 4294967288
        %v10898 = vlaneseq
        %v10899 = vshrl.u32 %v10898, 7
        %v10900 = vsub.s32 %v10897, %v10899
        %v10901 = vrot.slane %v9860, %v10900
        %vm10902 = vcmask 130112
        %v10903 = vsel %vm10902, %v10901, %v10896
        %v10904 = vadd.s32 %v10892, 4294967280
        %v10905 = vlaneseq
        %v10906 = vshrl.u32 %v10905, 7
        %v10907 = vsub.s32 %v10904, %v10906
        %v10908 = vrot.slane %v9863, %v10907
        %vm10909 = vcmask 195712
        %v10910 = vsel %vm10909, %v10908, %v10903
        %v10911 = vadd.s32 %v10892, 4294967272
        %v10912 = vlaneseq
        %v10913 = vshrl.u32 %v10912, 7
        %v10914 = vsub.s32 %v10911, %v10913
        %v10915 = vrot.slane %v9866, %v10914
        %vm10916 = vcmask 261312
        %v10917 = vsel %vm10916, %v10915, %v10910
        %v10918 = vadd.s32 %v10892, 4294967264
        %v10919 = vlaneseq
        %v10920 = vshrl.u32 %v10919, 7
        %v10921 = vsub.s32 %v10918, %v10920
        %v10922 = vrot.slane %v9869, %v10921
        %vm10923 = vcmask 326912
        %v10924 = vsel %vm10923, %v10922, %v10917
        %v10925 = vadd.s32 %v10892, 4294967256
        %v10926 = vlaneseq
        %v10927 = vshrl.u32 %v10926, 7
        %v10928 = vsub.s32 %v10925, %v10927
        %v10929 = vrot.slane %v9872, %v10928
        %vm10930 = vcmask 392512
        %v10931 = vsel %vm10930, %v10929, %v10924
        %v10932 = vadd.s32 %v10892, 4294967248
        %v10933 = vlaneseq
        %v10934 = vshrl.u32 %v10933, 7
        %v10935 = vsub.s32 %v10932, %v10934
        %v10936 = vrot.slane %v9875, %v10935
        %vm10937 = vcmask 458112
        %v10938 = vsel %vm10937, %v10936, %v10931
        %v10939 = vadd.s32 %v10892, 4294967240
        %v10940 = vlaneseq
        %v10941 = vshrl.u32 %v10940, 7
        %v10942 = vsub.s32 %v10939, %v10941
        %v10943 = vrot.slane %v9878, %v10942
        %vm10944 = vcmask 523712
        %v10945 = vsel %vm10944, %v10943, %v10938
        %v10946 = vlaneseq
        %v10947 = vshrl.u32 %v10946, 7
        %v10948 = vsub.s32 %v10892, %v10947
        %v10949 = vrot.slane %v9881, %v10948
        %v10950 = vlaneseq
        %v10951 = vshrl.u32 %v10950, 7
        %v10952 = vsub.s32 %v10897, %v10951
        %v10953 = vrot.slane %v9884, %v10952
        %v10954 = vsel %vm10902, %v10953, %v10949
        %v10955 = vlaneseq
        %v10956 = vshrl.u32 %v10955, 7
        %v10957 = vsub.s32 %v10904, %v10956
        %v10958 = vrot.slane %v9887, %v10957
        %v10959 = vsel %vm10909, %v10958, %v10954
        %v10960 = vlaneseq
        %v10961 = vshrl.u32 %v10960, 7
        %v10962 = vsub.s32 %v10911, %v10961
        %v10963 = vrot.slane %v9890, %v10962
        %v10964 = vsel %vm10916, %v10963, %v10959
        %v10965 = vlaneseq
        %v10966 = vshrl.u32 %v10965, 7
        %v10967 = vsub.s32 %v10918, %v10966
        %v10968 = vrot.slane %v9893, %v10967
        %v10969 = vsel %vm10923, %v10968, %v10964
        %v10970 = vlaneseq
        %v10971 = vshrl.u32 %v10970, 7
        %v10972 = vsub.s32 %v10925, %v10971
        %v10973 = vrot.slane %v9896, %v10972
        %v10974 = vsel %vm10930, %v10973, %v10969
        %v10975 = vlaneseq
        %v10976 = vshrl.u32 %v10975, 7
        %v10977 = vsub.s32 %v10932, %v10976
        %v10978 = vrot.slane %v9899, %v10977
        %v10979 = vsel %vm10937, %v10978, %v10974
        %v10980 = vlaneseq
        %v10981 = vshrl.u32 %v10980, 7
        %v10982 = vsub.s32 %v10939, %v10981
        %v10983 = vrot.slane %v9902, %v10982
        %v10984 = vsel %vm10944, %v10983, %v10979
        %v10985 = vlaneseq
        %v10986 = vshrl.u32 %v10985, 7
        %v10987 = vsub.s32 %v10892, %v10986
        %v10988 = vrot.slane %v9905, %v10987
        %v10989 = vlaneseq
        %v10990 = vshrl.u32 %v10989, 7
        %v10991 = vsub.s32 %v10897, %v10990
        %v10992 = vrot.slane %v9908, %v10991
        %v10993 = vsel %vm10902, %v10992, %v10988
        %v10994 = vlaneseq
        %v10995 = vshrl.u32 %v10994, 7
        %v10996 = vsub.s32 %v10904, %v10995
        %v10997 = vrot.slane %v9911, %v10996
        %v10998 = vsel %vm10909, %v10997, %v10993
        %v10999 = vlaneseq
        %v11000 = vshrl.u32 %v10999, 7
        %v11001 = vsub.s32 %v10911, %v11000
        %v11002 = vrot.slane %v9914, %v11001
        %v11003 = vsel %vm10916, %v11002, %v10998
        %v11004 = vlaneseq
        %v11005 = vshrl.u32 %v11004, 7
        %v11006 = vsub.s32 %v10918, %v11005
        %v11007 = vrot.slane %v9917, %v11006
        %v11008 = vsel %vm10923, %v11007, %v11003
        %v11009 = vlaneseq
        %v11010 = vshrl.u32 %v11009, 7
        %v11011 = vsub.s32 %v10925, %v11010
        %v11012 = vrot.slane %v9920, %v11011
        %v11013 = vsel %vm10930, %v11012, %v11008
        %v11014 = vlaneseq
        %v11015 = vshrl.u32 %v11014, 7
        %v11016 = vsub.s32 %v10932, %v11015
        %v11017 = vrot.slane %v9923, %v11016
        %v11018 = vsel %vm10937, %v11017, %v11013
        %v11019 = vlaneseq
        %v11020 = vshrl.u32 %v11019, 7
        %v11021 = vsub.s32 %v10939, %v11020
        %v11022 = vrot.slane %v9926, %v11021
        %v11023 = vsel %vm10944, %v11022, %v11018
        %v11024 = vlaneseq
        %v11025 = vshrl.u32 %v11024, 7
        %v11026 = vsub.s32 %v10892, %v11025
        %v11027 = vrot.slane %v9929, %v11026
        %v11028 = vlaneseq
        %v11029 = vshrl.u32 %v11028, 7
        %v11030 = vsub.s32 %v10897, %v11029
        %v11031 = vrot.slane %v9932, %v11030
        %v11032 = vsel %vm10902, %v11031, %v11027
        %v11033 = vlaneseq
        %v11034 = vshrl.u32 %v11033, 7
        %v11035 = vsub.s32 %v10904, %v11034
        %v11036 = vrot.slane %v9935, %v11035
        %v11037 = vsel %vm10909, %v11036, %v11032
        %v11038 = vlaneseq
        %v11039 = vshrl.u32 %v11038, 7
        %v11040 = vsub.s32 %v10911, %v11039
        %v11041 = vrot.slane %v9938, %v11040
        %v11042 = vsel %vm10916, %v11041, %v11037
        %v11043 = vlaneseq
        %v11044 = vshrl.u32 %v11043, 7
        %v11045 = vsub.s32 %v10918, %v11044
        %v11046 = vrot.slane %v9941, %v11045
        %v11047 = vsel %vm10923, %v11046, %v11042
        %v11048 = vlaneseq
        %v11049 = vshrl.u32 %v11048, 7
        %v11050 = vsub.s32 %v10925, %v11049
        %v11051 = vrot.slane %v9944, %v11050
        %v11052 = vsel %vm10930, %v11051, %v11047
        %v11053 = vlaneseq
        %v11054 = vshrl.u32 %v11053, 7
        %v11055 = vsub.s32 %v10932, %v11054
        %v11056 = vrot.slane %v9947, %v11055
        %v11057 = vsel %vm10937, %v11056, %v11052
        %v11058 = vlaneseq
        %v11059 = vshrl.u32 %v11058, 7
        %v11060 = vsub.s32 %v10939, %v11059
        %v11061 = vrot.slane %v9950, %v11060
        %v11062 = vsel %vm10944, %v11061, %v11057
        %v11063 = vlaneseq
        %v11064 = vshrl.u32 %v11063, 7
        %v11065 = vsub.s32 %v10892, %v11064
        %v11066 = vrot.slane %v9953, %v11065
        %v11067 = vlaneseq
        %v11068 = vshrl.u32 %v11067, 7
        %v11069 = vsub.s32 %v10897, %v11068
        %v11070 = vrot.slane %v9956, %v11069
        %v11071 = vsel %vm10902, %v11070, %v11066
        %v11072 = vlaneseq
        %v11073 = vshrl.u32 %v11072, 7
        %v11074 = vsub.s32 %v10904, %v11073
        %v11075 = vrot.slane %v9959, %v11074
        %v11076 = vsel %vm10909, %v11075, %v11071
        %v11077 = vlaneseq
        %v11078 = vshrl.u32 %v11077, 7
        %v11079 = vsub.s32 %v10911, %v11078
        %v11080 = vrot.slane %v9962, %v11079
        %v11081 = vsel %vm10916, %v11080, %v11076
        %v11082 = vlaneseq
        %v11083 = vshrl.u32 %v11082, 7
        %v11084 = vsub.s32 %v10918, %v11083
        %v11085 = vrot.slane %v9965, %v11084
        %v11086 = vsel %vm10923, %v11085, %v11081
        %v11087 = vlaneseq
        %v11088 = vshrl.u32 %v11087, 7
        %v11089 = vsub.s32 %v10925, %v11088
        %v11090 = vrot.slane %v9968, %v11089
        %v11091 = vsel %vm10930, %v11090, %v11086
        %v11092 = vlaneseq
        %v11093 = vshrl.u32 %v11092, 7
        %v11094 = vsub.s32 %v10932, %v11093
        %v11095 = vrot.slane %v9971, %v11094
        %v11096 = vsel %vm10937, %v11095, %v11091
        %v11097 = vlaneseq
        %v11098 = vshrl.u32 %v11097, 7
        %v11099 = vsub.s32 %v10939, %v11098
        %v11100 = vrot.slane %v9974, %v11099
        %v11101 = vsel %vm10944, %v11100, %v11096
        %v11102 = vlaneseq
        %v11103 = vshrl.u32 %v11102, 7
        %v11104 = vsub.s32 %v10892, %v11103
        %v11105 = vrot.slane %v9977, %v11104
        %v11106 = vlaneseq
        %v11107 = vshrl.u32 %v11106, 7
        %v11108 = vsub.s32 %v10897, %v11107
        %v11109 = vrot.slane %v9980, %v11108
        %v11110 = vsel %vm10902, %v11109, %v11105
        %v11111 = vlaneseq
        %v11112 = vshrl.u32 %v11111, 7
        %v11113 = vsub.s32 %v10904, %v11112
        %v11114 = vrot.slane %v9983, %v11113
        %v11115 = vsel %vm10909, %v11114, %v11110
        %v11116 = vlaneseq
        %v11117 = vshrl.u32 %v11116, 7
        %v11118 = vsub.s32 %v10911, %v11117
        %v11119 = vrot.slane %v9986, %v11118
        %v11120 = vsel %vm10916, %v11119, %v11115
        %v11121 = vlaneseq
        %v11122 = vshrl.u32 %v11121, 7
        %v11123 = vsub.s32 %v10918, %v11122
        %v11124 = vrot.slane %v9989, %v11123
        %v11125 = vsel %vm10923, %v11124, %v11120
        %v11126 = vlaneseq
        %v11127 = vshrl.u32 %v11126, 7
        %v11128 = vsub.s32 %v10925, %v11127
        %v11129 = vrot.slane %v9992, %v11128
        %v11130 = vsel %vm10930, %v11129, %v11125
        %v11131 = vlaneseq
        %v11132 = vshrl.u32 %v11131, 7
        %v11133 = vsub.s32 %v10932, %v11132
        %v11134 = vrot.slane %v9995, %v11133
        %v11135 = vsel %vm10937, %v11134, %v11130
        %v11136 = vlaneseq
        %v11137 = vshrl.u32 %v11136, 7
        %v11138 = vsub.s32 %v10939, %v11137
        %v11139 = vrot.slane %v9998, %v11138
        %v11140 = vsel %vm10944, %v11139, %v11135
        %v11141 = vlaneseq
        %v11142 = vshrl.u32 %v11141, 7
        %v11143 = vsub.s32 %v10892, %v11142
        %v11144 = vrot.slane %v10001, %v11143
        %v11145 = vlaneseq
        %v11146 = vshrl.u32 %v11145, 7
        %v11147 = vsub.s32 %v10897, %v11146
        %v11148 = vrot.slane %v10004, %v11147
        %v11149 = vsel %vm10902, %v11148, %v11144
        %v11150 = vlaneseq
        %v11151 = vshrl.u32 %v11150, 7
        %v11152 = vsub.s32 %v10904, %v11151
        %v11153 = vrot.slane %v10007, %v11152
        %v11154 = vsel %vm10909, %v11153, %v11149
        %v11155 = vlaneseq
        %v11156 = vshrl.u32 %v11155, 7
        %v11157 = vsub.s32 %v10911, %v11156
        %v11158 = vrot.slane %v10010, %v11157
        %v11159 = vsel %vm10916, %v11158, %v11154
        %v11160 = vlaneseq
        %v11161 = vshrl.u32 %v11160, 7
        %v11162 = vsub.s32 %v10918, %v11161
        %v11163 = vrot.slane %v10013, %v11162
        %v11164 = vsel %vm10923, %v11163, %v11159
        %v11165 = vlaneseq
        %v11166 = vshrl.u32 %v11165, 7
        %v11167 = vsub.s32 %v10925, %v11166
        %v11168 = vrot.slane %v10016, %v11167
        %v11169 = vsel %vm10930, %v11168, %v11164
        %v11170 = vlaneseq
        %v11171 = vshrl.u32 %v11170, 7
        %v11172 = vsub.s32 %v10932, %v11171
        %v11173 = vrot.slane %v10019, %v11172
        %v11174 = vsel %vm10937, %v11173, %v11169
        %v11175 = vlaneseq
        %v11176 = vshrl.u32 %v11175, 7
        %v11177 = vsub.s32 %v10939, %v11176
        %v11178 = vrot.slane %v10022, %v11177
        %v11179 = vsel %vm10944, %v11178, %v11174
        %v11180 = vlaneseq
        %v11181 = vshrl.u32 %v11180, 7
        %v11182 = vsub.s32 %v10892, %v11181
        %v11183 = vrot.slane %v10025, %v11182
        %v11184 = vlaneseq
        %v11185 = vshrl.u32 %v11184, 7
        %v11186 = vsub.s32 %v10897, %v11185
        %v11187 = vrot.slane %v10028, %v11186
        %v11188 = vsel %vm10902, %v11187, %v11183
        %v11189 = vlaneseq
        %v11190 = vshrl.u32 %v11189, 7
        %v11191 = vsub.s32 %v10904, %v11190
        %v11192 = vrot.slane %v10031, %v11191
        %v11193 = vsel %vm10909, %v11192, %v11188
        %v11194 = vlaneseq
        %v11195 = vshrl.u32 %v11194, 7
        %v11196 = vsub.s32 %v10911, %v11195
        %v11197 = vrot.slane %v10034, %v11196
        %v11198 = vsel %vm10916, %v11197, %v11193
        %v11199 = vlaneseq
        %v11200 = vshrl.u32 %v11199, 7
        %v11201 = vsub.s32 %v10918, %v11200
        %v11202 = vrot.slane %v10037, %v11201
        %v11203 = vsel %vm10923, %v11202, %v11198
        %v11204 = vlaneseq
        %v11205 = vshrl.u32 %v11204, 7
        %v11206 = vsub.s32 %v10925, %v11205
        %v11207 = vrot.slane %v10040, %v11206
        %v11208 = vsel %vm10930, %v11207, %v11203
        %v11209 = vlaneseq
        %v11210 = vshrl.u32 %v11209, 7
        %v11211 = vsub.s32 %v10932, %v11210
        %v11212 = vrot.slane %v10043, %v11211
        %v11213 = vsel %vm10937, %v11212, %v11208
        %v11214 = vlaneseq
        %v11215 = vshrl.u32 %v11214, 7
        %v11216 = vsub.s32 %v10939, %v11215
        %v11217 = vrot.slane %v10046, %v11216
        %v11218 = vsel %vm10944, %v11217, %v11213
        %v11219 = vlaneseq
        %v11220 = vshrl.u32 %v11219, 7
        %v11221 = vsub.s32 %v10892, %v11220
        %v11222 = vrot.slane %v10049, %v11221
        %v11223 = vlaneseq
        %v11224 = vshrl.u32 %v11223, 7
        %v11225 = vsub.s32 %v10897, %v11224
        %v11226 = vrot.slane %v10052, %v11225
        %v11227 = vsel %vm10902, %v11226, %v11222
        %v11228 = vlaneseq
        %v11229 = vshrl.u32 %v11228, 7
        %v11230 = vsub.s32 %v10904, %v11229
        %v11231 = vrot.slane %v10055, %v11230
        %v11232 = vsel %vm10909, %v11231, %v11227
        %v11233 = vlaneseq
        %v11234 = vshrl.u32 %v11233, 7
        %v11235 = vsub.s32 %v10911, %v11234
        %v11236 = vrot.slane %v10058, %v11235
        %v11237 = vsel %vm10916, %v11236, %v11232
        %v11238 = vlaneseq
        %v11239 = vshrl.u32 %v11238, 7
        %v11240 = vsub.s32 %v10918, %v11239
        %v11241 = vrot.slane %v10061, %v11240
        %v11242 = vsel %vm10923, %v11241, %v11237
        %v11243 = vlaneseq
        %v11244 = vshrl.u32 %v11243, 7
        %v11245 = vsub.s32 %v10925, %v11244
        %v11246 = vrot.slane %v10064, %v11245
        %v11247 = vsel %vm10930, %v11246, %v11242
        %v11248 = vlaneseq
        %v11249 = vshrl.u32 %v11248, 7
        %v11250 = vsub.s32 %v10932, %v11249
        %v11251 = vrot.slane %v10067, %v11250
        %v11252 = vsel %vm10937, %v11251, %v11247
        %v11253 = vlaneseq
        %v11254 = vshrl.u32 %v11253, 7
        %v11255 = vsub.s32 %v10939, %v11254
        %v11256 = vrot.slane %v10070, %v11255
        %v11257 = vsel %vm10944, %v11256, %v11252
        %v11258 = vlaneseq
        %v11259 = vshrl.u32 %v11258, 7
        %v11260 = vsub.s32 %v10892, %v11259
        %v11261 = vrot.slane %v10073, %v11260
        %v11262 = vlaneseq
        %v11263 = vshrl.u32 %v11262, 7
        %v11264 = vsub.s32 %v10897, %v11263
        %v11265 = vrot.slane %v10076, %v11264
        %v11266 = vsel %vm10902, %v11265, %v11261
        %v11267 = vlaneseq
        %v11268 = vshrl.u32 %v11267, 7
        %v11269 = vsub.s32 %v10904, %v11268
        %v11270 = vrot.slane %v10079, %v11269
        %v11271 = vsel %vm10909, %v11270, %v11266
        %v11272 = vlaneseq
        %v11273 = vshrl.u32 %v11272, 7
        %v11274 = vsub.s32 %v10911, %v11273
        %v11275 = vrot.slane %v10082, %v11274
        %v11276 = vsel %vm10916, %v11275, %v11271
        %v11277 = vlaneseq
        %v11278 = vshrl.u32 %v11277, 7
        %v11279 = vsub.s32 %v10918, %v11278
        %v11280 = vrot.slane %v10085, %v11279
        %v11281 = vsel %vm10923, %v11280, %v11276
        %v11282 = vlaneseq
        %v11283 = vshrl.u32 %v11282, 7
        %v11284 = vsub.s32 %v10925, %v11283
        %v11285 = vrot.slane %v10088, %v11284
        %v11286 = vsel %vm10930, %v11285, %v11281
        %v11287 = vlaneseq
        %v11288 = vshrl.u32 %v11287, 7
        %v11289 = vsub.s32 %v10932, %v11288
        %v11290 = vrot.slane %v10091, %v11289
        %v11291 = vsel %vm10937, %v11290, %v11286
        %v11292 = vlaneseq
        %v11293 = vshrl.u32 %v11292, 7
        %v11294 = vsub.s32 %v10939, %v11293
        %v11295 = vrot.slane %v10094, %v11294
        %v11296 = vsel %vm10944, %v11295, %v11291
        %v11297 = vlaneseq
        %v11298 = vshrl.u32 %v11297, 7
        %v11299 = vsub.s32 %v10892, %v11298
        %v11300 = vrot.slane %v10097, %v11299
        %v11301 = vlaneseq
        %v11302 = vshrl.u32 %v11301, 7
        %v11303 = vsub.s32 %v10897, %v11302
        %v11304 = vrot.slane %v10100, %v11303
        %v11305 = vsel %vm10902, %v11304, %v11300
        %v11306 = vlaneseq
        %v11307 = vshrl.u32 %v11306, 7
        %v11308 = vsub.s32 %v10904, %v11307
        %v11309 = vrot.slane %v10103, %v11308
        %v11310 = vsel %vm10909, %v11309, %v11305
        %v11311 = vlaneseq
        %v11312 = vshrl.u32 %v11311, 7
        %v11313 = vsub.s32 %v10911, %v11312
        %v11314 = vrot.slane %v10106, %v11313
        %v11315 = vsel %vm10916, %v11314, %v11310
        %v11316 = vlaneseq
        %v11317 = vshrl.u32 %v11316, 7
        %v11318 = vsub.s32 %v10918, %v11317
        %v11319 = vrot.slane %v10109, %v11318
        %v11320 = vsel %vm10923, %v11319, %v11315
        %v11321 = vlaneseq
        %v11322 = vshrl.u32 %v11321, 7
        %v11323 = vsub.s32 %v10925, %v11322
        %v11324 = vrot.slane %v10112, %v11323
        %v11325 = vsel %vm10930, %v11324, %v11320
        %v11326 = vlaneseq
        %v11327 = vshrl.u32 %v11326, 7
        %v11328 = vsub.s32 %v10932, %v11327
        %v11329 = vrot.slane %v10115, %v11328
        %v11330 = vsel %vm10937, %v11329, %v11325
        %v11331 = vlaneseq
        %v11332 = vshrl.u32 %v11331, 7
        %v11333 = vsub.s32 %v10939, %v11332
        %v11334 = vrot.slane %v10118, %v11333
        %v11335 = vsel %vm10944, %v11334, %v11330
        %v11336 = vlaneseq
        %v11337 = vshrl.u32 %v11336, 7
        %v11338 = vsub.s32 %v10892, %v11337
        %v11339 = vrot.slane %v10121, %v11338
        %v11340 = vlaneseq
        %v11341 = vshrl.u32 %v11340, 7
        %v11342 = vsub.s32 %v10897, %v11341
        %v11343 = vrot.slane %v10124, %v11342
        %v11344 = vsel %vm10902, %v11343, %v11339
        %v11345 = vlaneseq
        %v11346 = vshrl.u32 %v11345, 7
        %v11347 = vsub.s32 %v10904, %v11346
        %v11348 = vrot.slane %v10127, %v11347
        %v11349 = vsel %vm10909, %v11348, %v11344
        %v11350 = vlaneseq
        %v11351 = vshrl.u32 %v11350, 7
        %v11352 = vsub.s32 %v10911, %v11351
        %v11353 = vrot.slane %v10130, %v11352
        %v11354 = vsel %vm10916, %v11353, %v11349
        %v11355 = vlaneseq
        %v11356 = vshrl.u32 %v11355, 7
        %v11357 = vsub.s32 %v10918, %v11356
        %v11358 = vrot.slane %v10133, %v11357
        %v11359 = vsel %vm10923, %v11358, %v11354
        %v11360 = vlaneseq
        %v11361 = vshrl.u32 %v11360, 7
        %v11362 = vsub.s32 %v10925, %v11361
        %v11363 = vrot.slane %v10136, %v11362
        %v11364 = vsel %vm10930, %v11363, %v11359
        %v11365 = vlaneseq
        %v11366 = vshrl.u32 %v11365, 7
        %v11367 = vsub.s32 %v10932, %v11366
        %v11368 = vrot.slane %v10139, %v11367
        %v11369 = vsel %vm10937, %v11368, %v11364
        %v11370 = vlaneseq
        %v11371 = vshrl.u32 %v11370, 7
        %v11372 = vsub.s32 %v10939, %v11371
        %v11373 = vrot.slane %v10142, %v11372
        %v11374 = vsel %vm10944, %v11373, %v11369
        %v11375 = vlaneseq
        %v11376 = vshrl.u32 %v11375, 7
        %v11377 = vsub.s32 %v10892, %v11376
        %v11378 = vrot.slane %v10145, %v11377
        %v11379 = vlaneseq
        %v11380 = vshrl.u32 %v11379, 7
        %v11381 = vsub.s32 %v10897, %v11380
        %v11382 = vrot.slane %v10148, %v11381
        %v11383 = vsel %vm10902, %v11382, %v11378
        %v11384 = vlaneseq
        %v11385 = vshrl.u32 %v11384, 7
        %v11386 = vsub.s32 %v10904, %v11385
        %v11387 = vrot.slane %v10151, %v11386
        %v11388 = vsel %vm10909, %v11387, %v11383
        %v11389 = vlaneseq
        %v11390 = vshrl.u32 %v11389, 7
        %v11391 = vsub.s32 %v10911, %v11390
        %v11392 = vrot.slane %v10154, %v11391
        %v11393 = vsel %vm10916, %v11392, %v11388
        %v11394 = vlaneseq
        %v11395 = vshrl.u32 %v11394, 7
        %v11396 = vsub.s32 %v10918, %v11395
        %v11397 = vrot.slane %v10157, %v11396
        %v11398 = vsel %vm10923, %v11397, %v11393
        %v11399 = vlaneseq
        %v11400 = vshrl.u32 %v11399, 7
        %v11401 = vsub.s32 %v10925, %v11400
        %v11402 = vrot.slane %v10160, %v11401
        %v11403 = vsel %vm10930, %v11402, %v11398
        %v11404 = vlaneseq
        %v11405 = vshrl.u32 %v11404, 7
        %v11406 = vsub.s32 %v10932, %v11405
        %v11407 = vrot.slane %v10163, %v11406
        %v11408 = vsel %vm10937, %v11407, %v11403
        %v11409 = vlaneseq
        %v11410 = vshrl.u32 %v11409, 7
        %v11411 = vsub.s32 %v10939, %v11410
        %v11412 = vrot.slane %v10166, %v11411
        %v11413 = vsel %vm10944, %v11412, %v11408
        %v11414 = vlaneseq
        %v11415 = vshrl.u32 %v11414, 7
        %v11416 = vsub.s32 %v10892, %v11415
        %v11417 = vrot.slane %v10169, %v11416
        %v11418 = vlaneseq
        %v11419 = vshrl.u32 %v11418, 7
        %v11420 = vsub.s32 %v10897, %v11419
        %v11421 = vrot.slane %v10172, %v11420
        %v11422 = vsel %vm10902, %v11421, %v11417
        %v11423 = vlaneseq
        %v11424 = vshrl.u32 %v11423, 7
        %v11425 = vsub.s32 %v10904, %v11424
        %v11426 = vrot.slane %v10175, %v11425
        %v11427 = vsel %vm10909, %v11426, %v11422
        %v11428 = vlaneseq
        %v11429 = vshrl.u32 %v11428, 7
        %v11430 = vsub.s32 %v10911, %v11429
        %v11431 = vrot.slane %v10178, %v11430
        %v11432 = vsel %vm10916, %v11431, %v11427
        %v11433 = vlaneseq
        %v11434 = vshrl.u32 %v11433, 7
        %v11435 = vsub.s32 %v10918, %v11434
        %v11436 = vrot.slane %v10181, %v11435
        %v11437 = vsel %vm10923, %v11436, %v11432
        %v11438 = vlaneseq
        %v11439 = vshrl.u32 %v11438, 7
        %v11440 = vsub.s32 %v10925, %v11439
        %v11441 = vrot.slane %v10184, %v11440
        %v11442 = vsel %vm10930, %v11441, %v11437
        %v11443 = vlaneseq
        %v11444 = vshrl.u32 %v11443, 7
        %v11445 = vsub.s32 %v10932, %v11444
        %v11446 = vrot.slane %v10187, %v11445
        %v11447 = vsel %vm10937, %v11446, %v11442
        %v11448 = vlaneseq
        %v11449 = vshrl.u32 %v11448, 7
        %v11450 = vsub.s32 %v10939, %v11449
        %v11451 = vrot.slane %v10190, %v11450
        %v11452 = vsel %vm10944, %v11451, %v11447
        %v11453 = vlaneseq
        %v11454 = vshrl.u32 %v11453, 7
        %v11455 = vsub.s32 %v10892, %v11454
        %v11456 = vrot.slane %v10193, %v11455
        %v11457 = vlaneseq
        %v11458 = vshrl.u32 %v11457, 7
        %v11459 = vsub.s32 %v10897, %v11458
        %v11460 = vrot.slane %v10196, %v11459
        %v11461 = vsel %vm10902, %v11460, %v11456
        %v11462 = vlaneseq
        %v11463 = vshrl.u32 %v11462, 7
        %v11464 = vsub.s32 %v10904, %v11463
        %v11465 = vrot.slane %v10199, %v11464
        %v11466 = vsel %vm10909, %v11465, %v11461
        %v11467 = vlaneseq
        %v11468 = vshrl.u32 %v11467, 7
        %v11469 = vsub.s32 %v10911, %v11468
        %v11470 = vrot.slane %v10202, %v11469
        %v11471 = vsel %vm10916, %v11470, %v11466
        %v11472 = vlaneseq
        %v11473 = vshrl.u32 %v11472, 7
        %v11474 = vsub.s32 %v10918, %v11473
        %v11475 = vrot.slane %v10205, %v11474
        %v11476 = vsel %vm10923, %v11475, %v11471
        %v11477 = vlaneseq
        %v11478 = vshrl.u32 %v11477, 7
        %v11479 = vsub.s32 %v10925, %v11478
        %v11480 = vrot.slane %v10208, %v11479
        %v11481 = vsel %vm10930, %v11480, %v11476
        %v11482 = vlaneseq
        %v11483 = vshrl.u32 %v11482, 7
        %v11484 = vsub.s32 %v10932, %v11483
        %v11485 = vrot.slane %v10211, %v11484
        %v11486 = vsel %vm10937, %v11485, %v11481
        %v11487 = vlaneseq
        %v11488 = vshrl.u32 %v11487, 7
        %v11489 = vsub.s32 %v10939, %v11488
        %v11490 = vrot.slane %v10214, %v11489
        %v11491 = vsel %vm10944, %v11490, %v11486
        %v11492 = vlaneseq
        %v11493 = vshrl.u32 %v11492, 7
        %v11494 = vsub.s32 %v10892, %v11493
        %v11495 = vrot.slane %v10217, %v11494
        %v11496 = vlaneseq
        %v11497 = vshrl.u32 %v11496, 7
        %v11498 = vsub.s32 %v10897, %v11497
        %v11499 = vrot.slane %v10220, %v11498
        %v11500 = vsel %vm10902, %v11499, %v11495
        %v11501 = vlaneseq
        %v11502 = vshrl.u32 %v11501, 7
        %v11503 = vsub.s32 %v10904, %v11502
        %v11504 = vrot.slane %v10223, %v11503
        %v11505 = vsel %vm10909, %v11504, %v11500
        %v11506 = vlaneseq
        %v11507 = vshrl.u32 %v11506, 7
        %v11508 = vsub.s32 %v10911, %v11507
        %v11509 = vrot.slane %v10226, %v11508
        %v11510 = vsel %vm10916, %v11509, %v11505
        %v11511 = vlaneseq
        %v11512 = vshrl.u32 %v11511, 7
        %v11513 = vsub.s32 %v10918, %v11512
        %v11514 = vrot.slane %v10229, %v11513
        %v11515 = vsel %vm10923, %v11514, %v11510
        %v11516 = vlaneseq
        %v11517 = vshrl.u32 %v11516, 7
        %v11518 = vsub.s32 %v10925, %v11517
        %v11519 = vrot.slane %v10232, %v11518
        %v11520 = vsel %vm10930, %v11519, %v11515
        %v11521 = vlaneseq
        %v11522 = vshrl.u32 %v11521, 7
        %v11523 = vsub.s32 %v10932, %v11522
        %v11524 = vrot.slane %v10235, %v11523
        %v11525 = vsel %vm10937, %v11524, %v11520
        %v11526 = vlaneseq
        %v11527 = vshrl.u32 %v11526, 7
        %v11528 = vsub.s32 %v10939, %v11527
        %v11529 = vrot.slane %v10238, %v11528
        %v11530 = vsel %vm10944, %v11529, %v11525
        %v11531 = vlaneseq
        %v11532 = vshrl.u32 %v11531, 7
        %v11533 = vsub.s32 %v10892, %v11532
        %v11534 = vrot.slane %v10241, %v11533
        %v11535 = vlaneseq
        %v11536 = vshrl.u32 %v11535, 7
        %v11537 = vsub.s32 %v10897, %v11536
        %v11538 = vrot.slane %v10244, %v11537
        %v11539 = vsel %vm10902, %v11538, %v11534
        %v11540 = vlaneseq
        %v11541 = vshrl.u32 %v11540, 7
        %v11542 = vsub.s32 %v10904, %v11541
        %v11543 = vrot.slane %v10247, %v11542
        %v11544 = vsel %vm10909, %v11543, %v11539
        %v11545 = vlaneseq
        %v11546 = vshrl.u32 %v11545, 7
        %v11547 = vsub.s32 %v10911, %v11546
        %v11548 = vrot.slane %v10250, %v11547
        %v11549 = vsel %vm10916, %v11548, %v11544
        %v11550 = vlaneseq
        %v11551 = vshrl.u32 %v11550, 7
        %v11552 = vsub.s32 %v10918, %v11551
        %v11553 = vrot.slane %v10253, %v11552
        %v11554 = vsel %vm10923, %v11553, %v11549
        %v11555 = vlaneseq
        %v11556 = vshrl.u32 %v11555, 7
        %v11557 = vsub.s32 %v10925, %v11556
        %v11558 = vrot.slane %v10256, %v11557
        %v11559 = vsel %vm10930, %v11558, %v11554
        %v11560 = vlaneseq
        %v11561 = vshrl.u32 %v11560, 7
        %v11562 = vsub.s32 %v10932, %v11561
        %v11563 = vrot.slane %v10259, %v11562
        %v11564 = vsel %vm10937, %v11563, %v11559
        %v11565 = vlaneseq
        %v11566 = vshrl.u32 %v11565, 7
        %v11567 = vsub.s32 %v10939, %v11566
        %v11568 = vrot.slane %v10262, %v11567
        %v11569 = vsel %vm10944, %v11568, %v11564
        %v11570 = vlaneseq
        %v11571 = vshrl.u32 %v11570, 7
        %v11572 = vsub.s32 %v10892, %v11571
        %v11573 = vrot.slane %v10265, %v11572
        %v11574 = vlaneseq
        %v11575 = vshrl.u32 %v11574, 7
        %v11576 = vsub.s32 %v10897, %v11575
        %v11577 = vrot.slane %v10268, %v11576
        %v11578 = vsel %vm10902, %v11577, %v11573
        %v11579 = vlaneseq
        %v11580 = vshrl.u32 %v11579, 7
        %v11581 = vsub.s32 %v10904, %v11580
        %v11582 = vrot.slane %v10271, %v11581
        %v11583 = vsel %vm10909, %v11582, %v11578
        %v11584 = vlaneseq
        %v11585 = vshrl.u32 %v11584, 7
        %v11586 = vsub.s32 %v10911, %v11585
        %v11587 = vrot.slane %v10274, %v11586
        %v11588 = vsel %vm10916, %v11587, %v11583
        %v11589 = vlaneseq
        %v11590 = vshrl.u32 %v11589, 7
        %v11591 = vsub.s32 %v10918, %v11590
        %v11592 = vrot.slane %v10277, %v11591
        %v11593 = vsel %vm10923, %v11592, %v11588
        %v11594 = vlaneseq
        %v11595 = vshrl.u32 %v11594, 7
        %v11596 = vsub.s32 %v10925, %v11595
        %v11597 = vrot.slane %v10280, %v11596
        %v11598 = vsel %vm10930, %v11597, %v11593
        %v11599 = vlaneseq
        %v11600 = vshrl.u32 %v11599, 7
        %v11601 = vsub.s32 %v10932, %v11600
        %v11602 = vrot.slane %v10283, %v11601
        %v11603 = vsel %vm10937, %v11602, %v11598
        %v11604 = vlaneseq
        %v11605 = vshrl.u32 %v11604, 7
        %v11606 = vsub.s32 %v10939, %v11605
        %v11607 = vrot.slane %v10286, %v11606
        %v11608 = vsel %vm10944, %v11607, %v11603
        %v11609 = vlaneseq
        %v11610 = vshrl.u32 %v11609, 7
        %v11611 = vsub.s32 %v10892, %v11610
        %v11612 = vrot.slane %v10289, %v11611
        %v11613 = vlaneseq
        %v11614 = vshrl.u32 %v11613, 7
        %v11615 = vsub.s32 %v10897, %v11614
        %v11616 = vrot.slane %v10292, %v11615
        %v11617 = vsel %vm10902, %v11616, %v11612
        %v11618 = vlaneseq
        %v11619 = vshrl.u32 %v11618, 7
        %v11620 = vsub.s32 %v10904, %v11619
        %v11621 = vrot.slane %v10295, %v11620
        %v11622 = vsel %vm10909, %v11621, %v11617
        %v11623 = vlaneseq
        %v11624 = vshrl.u32 %v11623, 7
        %v11625 = vsub.s32 %v10911, %v11624
        %v11626 = vrot.slane %v10298, %v11625
        %v11627 = vsel %vm10916, %v11626, %v11622
        %v11628 = vlaneseq
        %v11629 = vshrl.u32 %v11628, 7
        %v11630 = vsub.s32 %v10918, %v11629
        %v11631 = vrot.slane %v10301, %v11630
        %v11632 = vsel %vm10923, %v11631, %v11627
        %v11633 = vlaneseq
        %v11634 = vshrl.u32 %v11633, 7
        %v11635 = vsub.s32 %v10925, %v11634
        %v11636 = vrot.slane %v10304, %v11635
        %v11637 = vsel %vm10930, %v11636, %v11632
        %v11638 = vlaneseq
        %v11639 = vshrl.u32 %v11638, 7
        %v11640 = vsub.s32 %v10932, %v11639
        %v11641 = vrot.slane %v10307, %v11640
        %v11642 = vsel %vm10937, %v11641, %v11637
        %v11643 = vlaneseq
        %v11644 = vshrl.u32 %v11643, 7
        %v11645 = vsub.s32 %v10939, %v11644
        %v11646 = vrot.slane %v10310, %v11645
        %v11647 = vsel %vm10944, %v11646, %v11642
        %v11648 = vlaneseq
        %v11649 = vshrl.u32 %v11648, 7
        %v11650 = vsub.s32 %v10892, %v11649
        %v11651 = vrot.slane %v10313, %v11650
        %v11652 = vlaneseq
        %v11653 = vshrl.u32 %v11652, 7
        %v11654 = vsub.s32 %v10897, %v11653
        %v11655 = vrot.slane %v10316, %v11654
        %v11656 = vsel %vm10902, %v11655, %v11651
        %v11657 = vlaneseq
        %v11658 = vshrl.u32 %v11657, 7
        %v11659 = vsub.s32 %v10904, %v11658
        %v11660 = vrot.slane %v10319, %v11659
        %v11661 = vsel %vm10909, %v11660, %v11656
        %v11662 = vlaneseq
        %v11663 = vshrl.u32 %v11662, 7
        %v11664 = vsub.s32 %v10911, %v11663
        %v11665 = vrot.slane %v10322, %v11664
        %v11666 = vsel %vm10916, %v11665, %v11661
        %v11667 = vlaneseq
        %v11668 = vshrl.u32 %v11667, 7
        %v11669 = vsub.s32 %v10918, %v11668
        %v11670 = vrot.slane %v10325, %v11669
        %v11671 = vsel %vm10923, %v11670, %v11666
        %v11672 = vlaneseq
        %v11673 = vshrl.u32 %v11672, 7
        %v11674 = vsub.s32 %v10925, %v11673
        %v11675 = vrot.slane %v10328, %v11674
        %v11676 = vsel %vm10930, %v11675, %v11671
        %v11677 = vlaneseq
        %v11678 = vshrl.u32 %v11677, 7
        %v11679 = vsub.s32 %v10932, %v11678
        %v11680 = vrot.slane %v10331, %v11679
        %v11681 = vsel %vm10937, %v11680, %v11676
        %v11682 = vlaneseq
        %v11683 = vshrl.u32 %v11682, 7
        %v11684 = vsub.s32 %v10939, %v11683
        %v11685 = vrot.slane %v10334, %v11684
        %v11686 = vsel %vm10944, %v11685, %v11681
        %v11687 = vlaneseq
        %v11688 = vshrl.u32 %v11687, 7
        %v11689 = vsub.s32 %v10892, %v11688
        %v11690 = vrot.slane %v10337, %v11689
        %v11691 = vlaneseq
        %v11692 = vshrl.u32 %v11691, 7
        %v11693 = vsub.s32 %v10897, %v11692
        %v11694 = vrot.slane %v10340, %v11693
        %v11695 = vsel %vm10902, %v11694, %v11690
        %v11696 = vlaneseq
        %v11697 = vshrl.u32 %v11696, 7
        %v11698 = vsub.s32 %v10904, %v11697
        %v11699 = vrot.slane %v10343, %v11698
        %v11700 = vsel %vm10909, %v11699, %v11695
        %v11701 = vlaneseq
        %v11702 = vshrl.u32 %v11701, 7
        %v11703 = vsub.s32 %v10911, %v11702
        %v11704 = vrot.slane %v10346, %v11703
        %v11705 = vsel %vm10916, %v11704, %v11700
        %v11706 = vlaneseq
        %v11707 = vshrl.u32 %v11706, 7
        %v11708 = vsub.s32 %v10918, %v11707
        %v11709 = vrot.slane %v10349, %v11708
        %v11710 = vsel %vm10923, %v11709, %v11705
        %v11711 = vlaneseq
        %v11712 = vshrl.u32 %v11711, 7
        %v11713 = vsub.s32 %v10925, %v11712
        %v11714 = vrot.slane %v10352, %v11713
        %v11715 = vsel %vm10930, %v11714, %v11710
        %v11716 = vlaneseq
        %v11717 = vshrl.u32 %v11716, 7
        %v11718 = vsub.s32 %v10932, %v11717
        %v11719 = vrot.slane %v10355, %v11718
        %v11720 = vsel %vm10937, %v11719, %v11715
        %v11721 = vlaneseq
        %v11722 = vshrl.u32 %v11721, 7
        %v11723 = vsub.s32 %v10939, %v11722
        %v11724 = vrot.slane %v10358, %v11723
        %v11725 = vsel %vm10944, %v11724, %v11720
        %v11726 = vlaneseq
        %v11727 = vshrl.u32 %v11726, 7
        %v11728 = vsub.s32 %v10892, %v11727
        %v11729 = vrot.slane %v10361, %v11728
        %v11730 = vlaneseq
        %v11731 = vshrl.u32 %v11730, 7
        %v11732 = vsub.s32 %v10897, %v11731
        %v11733 = vrot.slane %v10364, %v11732
        %v11734 = vsel %vm10902, %v11733, %v11729
        %v11735 = vlaneseq
        %v11736 = vshrl.u32 %v11735, 7
        %v11737 = vsub.s32 %v10904, %v11736
        %v11738 = vrot.slane %v10367, %v11737
        %v11739 = vsel %vm10909, %v11738, %v11734
        %v11740 = vlaneseq
        %v11741 = vshrl.u32 %v11740, 7
        %v11742 = vsub.s32 %v10911, %v11741
        %v11743 = vrot.slane %v10370, %v11742
        %v11744 = vsel %vm10916, %v11743, %v11739
        %v11745 = vlaneseq
        %v11746 = vshrl.u32 %v11745, 7
        %v11747 = vsub.s32 %v10918, %v11746
        %v11748 = vrot.slane %v10373, %v11747
        %v11749 = vsel %vm10923, %v11748, %v11744
        %v11750 = vlaneseq
        %v11751 = vshrl.u32 %v11750, 7
        %v11752 = vsub.s32 %v10925, %v11751
        %v11753 = vrot.slane %v10376, %v11752
        %v11754 = vsel %vm10930, %v11753, %v11749
        %v11755 = vlaneseq
        %v11756 = vshrl.u32 %v11755, 7
        %v11757 = vsub.s32 %v10932, %v11756
        %v11758 = vrot.slane %v10379, %v11757
        %v11759 = vsel %vm10937, %v11758, %v11754
        %v11760 = vlaneseq
        %v11761 = vshrl.u32 %v11760, 7
        %v11762 = vsub.s32 %v10939, %v11761
        %v11763 = vrot.slane %v10382, %v11762
        %v11764 = vsel %vm10944, %v11763, %v11759
        %v11765 = vlaneseq
        %v11766 = vshrl.u32 %v11765, 7
        %v11767 = vsub.s32 %v10892, %v11766
        %v11768 = vrot.slane %v10385, %v11767
        %v11769 = vlaneseq
        %v11770 = vshrl.u32 %v11769, 7
        %v11771 = vsub.s32 %v10897, %v11770
        %v11772 = vrot.slane %v10388, %v11771
        %v11773 = vsel %vm10902, %v11772, %v11768
        %v11774 = vlaneseq
        %v11775 = vshrl.u32 %v11774, 7
        %v11776 = vsub.s32 %v10904, %v11775
        %v11777 = vrot.slane %v10391, %v11776
        %v11778 = vsel %vm10909, %v11777, %v11773
        %v11779 = vlaneseq
        %v11780 = vshrl.u32 %v11779, 7
        %v11781 = vsub.s32 %v10911, %v11780
        %v11782 = vrot.slane %v10394, %v11781
        %v11783 = vsel %vm10916, %v11782, %v11778
        %v11784 = vlaneseq
        %v11785 = vshrl.u32 %v11784, 7
        %v11786 = vsub.s32 %v10918, %v11785
        %v11787 = vrot.slane %v10397, %v11786
        %v11788 = vsel %vm10923, %v11787, %v11783
        %v11789 = vlaneseq
        %v11790 = vshrl.u32 %v11789, 7
        %v11791 = vsub.s32 %v10925, %v11790
        %v11792 = vrot.slane %v10400, %v11791
        %v11793 = vsel %vm10930, %v11792, %v11788
        %v11794 = vlaneseq
        %v11795 = vshrl.u32 %v11794, 7
        %v11796 = vsub.s32 %v10932, %v11795
        %v11797 = vrot.slane %v10403, %v11796
        %v11798 = vsel %vm10937, %v11797, %v11793
        %v11799 = vlaneseq
        %v11800 = vshrl.u32 %v11799, 7
        %v11801 = vsub.s32 %v10939, %v11800
        %v11802 = vrot.slane %v10406, %v11801
        %v11803 = vsel %vm10944, %v11802, %v11798
        %v11804 = vlaneseq
        %v11805 = vshrl.u32 %v11804, 7
        %v11806 = vsub.s32 %v10892, %v11805
        %v11807 = vrot.slane %v10409, %v11806
        %v11808 = vlaneseq
        %v11809 = vshrl.u32 %v11808, 7
        %v11810 = vsub.s32 %v10897, %v11809
        %v11811 = vrot.slane %v10412, %v11810
        %v11812 = vsel %vm10902, %v11811, %v11807
        %v11813 = vlaneseq
        %v11814 = vshrl.u32 %v11813, 7
        %v11815 = vsub.s32 %v10904, %v11814
        %v11816 = vrot.slane %v10415, %v11815
        %v11817 = vsel %vm10909, %v11816, %v11812
        %v11818 = vlaneseq
        %v11819 = vshrl.u32 %v11818, 7
        %v11820 = vsub.s32 %v10911, %v11819
        %v11821 = vrot.slane %v10418, %v11820
        %v11822 = vsel %vm10916, %v11821, %v11817
        %v11823 = vlaneseq
        %v11824 = vshrl.u32 %v11823, 7
        %v11825 = vsub.s32 %v10918, %v11824
        %v11826 = vrot.slane %v10421, %v11825
        %v11827 = vsel %vm10923, %v11826, %v11822
        %v11828 = vlaneseq
        %v11829 = vshrl.u32 %v11828, 7
        %v11830 = vsub.s32 %v10925, %v11829
        %v11831 = vrot.slane %v10424, %v11830
        %v11832 = vsel %vm10930, %v11831, %v11827
        %v11833 = vlaneseq
        %v11834 = vshrl.u32 %v11833, 7
        %v11835 = vsub.s32 %v10932, %v11834
        %v11836 = vrot.slane %v10427, %v11835
        %v11837 = vsel %vm10937, %v11836, %v11832
        %v11838 = vlaneseq
        %v11839 = vshrl.u32 %v11838, 7
        %v11840 = vsub.s32 %v10939, %v11839
        %v11841 = vrot.slane %v10430, %v11840
        %v11842 = vsel %vm10944, %v11841, %v11837
        %v11843 = vlaneseq
        %v11844 = vshrl.u32 %v11843, 7
        %v11845 = vsub.s32 %v10892, %v11844
        %v11846 = vrot.slane %v10433, %v11845
        %v11847 = vlaneseq
        %v11848 = vshrl.u32 %v11847, 7
        %v11849 = vsub.s32 %v10897, %v11848
        %v11850 = vrot.slane %v10436, %v11849
        %v11851 = vsel %vm10902, %v11850, %v11846
        %v11852 = vlaneseq
        %v11853 = vshrl.u32 %v11852, 7
        %v11854 = vsub.s32 %v10904, %v11853
        %v11855 = vrot.slane %v10439, %v11854
        %v11856 = vsel %vm10909, %v11855, %v11851
        %v11857 = vlaneseq
        %v11858 = vshrl.u32 %v11857, 7
        %v11859 = vsub.s32 %v10911, %v11858
        %v11860 = vrot.slane %v10442, %v11859
        %v11861 = vsel %vm10916, %v11860, %v11856
        %v11862 = vlaneseq
        %v11863 = vshrl.u32 %v11862, 7
        %v11864 = vsub.s32 %v10918, %v11863
        %v11865 = vrot.slane %v10445, %v11864
        %v11866 = vsel %vm10923, %v11865, %v11861
        %v11867 = vlaneseq
        %v11868 = vshrl.u32 %v11867, 7
        %v11869 = vsub.s32 %v10925, %v11868
        %v11870 = vrot.slane %v10448, %v11869
        %v11871 = vsel %vm10930, %v11870, %v11866
        %v11872 = vlaneseq
        %v11873 = vshrl.u32 %v11872, 7
        %v11874 = vsub.s32 %v10932, %v11873
        %v11875 = vrot.slane %v10451, %v11874
        %v11876 = vsel %vm10937, %v11875, %v11871
        %v11877 = vlaneseq
        %v11878 = vshrl.u32 %v11877, 7
        %v11879 = vsub.s32 %v10939, %v11878
        %v11880 = vrot.slane %v10454, %v11879
        %v11881 = vsel %vm10944, %v11880, %v11876
        %v11882 = vlaneseq
        %v11883 = vshrl.u32 %v11882, 7
        %v11884 = vsub.s32 %v10892, %v11883
        %v11885 = vrot.slane %v10457, %v11884
        %v11886 = vlaneseq
        %v11887 = vshrl.u32 %v11886, 7
        %v11888 = vsub.s32 %v10897, %v11887
        %v11889 = vrot.slane %v10460, %v11888
        %v11890 = vsel %vm10902, %v11889, %v11885
        %v11891 = vlaneseq
        %v11892 = vshrl.u32 %v11891, 7
        %v11893 = vsub.s32 %v10904, %v11892
        %v11894 = vrot.slane %v10463, %v11893
        %v11895 = vsel %vm10909, %v11894, %v11890
        %v11896 = vlaneseq
        %v11897 = vshrl.u32 %v11896, 7
        %v11898 = vsub.s32 %v10911, %v11897
        %v11899 = vrot.slane %v10466, %v11898
        %v11900 = vsel %vm10916, %v11899, %v11895
        %v11901 = vlaneseq
        %v11902 = vshrl.u32 %v11901, 7
        %v11903 = vsub.s32 %v10918, %v11902
        %v11904 = vrot.slane %v10469, %v11903
        %v11905 = vsel %vm10923, %v11904, %v11900
        %v11906 = vlaneseq
        %v11907 = vshrl.u32 %v11906, 7
        %v11908 = vsub.s32 %v10925, %v11907
        %v11909 = vrot.slane %v10472, %v11908
        %v11910 = vsel %vm10930, %v11909, %v11905
        %v11911 = vlaneseq
        %v11912 = vshrl.u32 %v11911, 7
        %v11913 = vsub.s32 %v10932, %v11912
        %v11914 = vrot.slane %v10475, %v11913
        %v11915 = vsel %vm10937, %v11914, %v11910
        %v11916 = vlaneseq
        %v11917 = vshrl.u32 %v11916, 7
        %v11918 = vsub.s32 %v10939, %v11917
        %v11919 = vrot.slane %v10478, %v11918
        %v11920 = vsel %vm10944, %v11919, %v11915
        %v11921 = vlaneseq
        %v11922 = vshrl.u32 %v11921, 7
        %v11923 = vsub.s32 %v10892, %v11922
        %v11924 = vrot.slane %v10481, %v11923
        %v11925 = vlaneseq
        %v11926 = vshrl.u32 %v11925, 7
        %v11927 = vsub.s32 %v10897, %v11926
        %v11928 = vrot.slane %v10484, %v11927
        %v11929 = vsel %vm10902, %v11928, %v11924
        %v11930 = vlaneseq
        %v11931 = vshrl.u32 %v11930, 7
        %v11932 = vsub.s32 %v10904, %v11931
        %v11933 = vrot.slane %v10487, %v11932
        %v11934 = vsel %vm10909, %v11933, %v11929
        %v11935 = vlaneseq
        %v11936 = vshrl.u32 %v11935, 7
        %v11937 = vsub.s32 %v10911, %v11936
        %v11938 = vrot.slane %v10490, %v11937
        %v11939 = vsel %vm10916, %v11938, %v11934
        %v11940 = vlaneseq
        %v11941 = vshrl.u32 %v11940, 7
        %v11942 = vsub.s32 %v10918, %v11941
        %v11943 = vrot.slane %v10493, %v11942
        %v11944 = vsel %vm10923, %v11943, %v11939
        %v11945 = vlaneseq
        %v11946 = vshrl.u32 %v11945, 7
        %v11947 = vsub.s32 %v10925, %v11946
        %v11948 = vrot.slane %v10496, %v11947
        %v11949 = vsel %vm10930, %v11948, %v11944
        %v11950 = vlaneseq
        %v11951 = vshrl.u32 %v11950, 7
        %v11952 = vsub.s32 %v10932, %v11951
        %v11953 = vrot.slane %v10499, %v11952
        %v11954 = vsel %vm10937, %v11953, %v11949
        %v11955 = vlaneseq
        %v11956 = vshrl.u32 %v11955, 7
        %v11957 = vsub.s32 %v10939, %v11956
        %v11958 = vrot.slane %v10502, %v11957
        %v11959 = vsel %vm10944, %v11958, %v11954
        %v11960 = vlaneseq
        %v11961 = vshrl.u32 %v11960, 7
        %v11962 = vsub.s32 %v10892, %v11961
        %v11963 = vrot.slane %v10505, %v11962
        %v11964 = vlaneseq
        %v11965 = vshrl.u32 %v11964, 7
        %v11966 = vsub.s32 %v10897, %v11965
        %v11967 = vrot.slane %v10508, %v11966
        %v11968 = vsel %vm10902, %v11967, %v11963
        %v11969 = vlaneseq
        %v11970 = vshrl.u32 %v11969, 7
        %v11971 = vsub.s32 %v10904, %v11970
        %v11972 = vrot.slane %v10511, %v11971
        %v11973 = vsel %vm10909, %v11972, %v11968
        %v11974 = vlaneseq
        %v11975 = vshrl.u32 %v11974, 7
        %v11976 = vsub.s32 %v10911, %v11975
        %v11977 = vrot.slane %v10514, %v11976
        %v11978 = vsel %vm10916, %v11977, %v11973
        %v11979 = vlaneseq
        %v11980 = vshrl.u32 %v11979, 7
        %v11981 = vsub.s32 %v10918, %v11980
        %v11982 = vrot.slane %v10517, %v11981
        %v11983 = vsel %vm10923, %v11982, %v11978
        %v11984 = vlaneseq
        %v11985 = vshrl.u32 %v11984, 7
        %v11986 = vsub.s32 %v10925, %v11985
        %v11987 = vrot.slane %v10520, %v11986
        %v11988 = vsel %vm10930, %v11987, %v11983
        %v11989 = vlaneseq
        %v11990 = vshrl.u32 %v11989, 7
        %v11991 = vsub.s32 %v10932, %v11990
        %v11992 = vrot.slane %v10523, %v11991
        %v11993 = vsel %vm10937, %v11992, %v11988
        %v11994 = vlaneseq
        %v11995 = vshrl.u32 %v11994, 7
        %v11996 = vsub.s32 %v10939, %v11995
        %v11997 = vrot.slane %v10526, %v11996
        %v11998 = vsel %vm10944, %v11997, %v11993
        %v11999 = vlaneseq
        %v12000 = vshrl.u32 %v11999, 7
        %v12001 = vsub.s32 %v10892, %v12000
        %v12002 = vrot.slane %v10529, %v12001
        %v12003 = vlaneseq
        %v12004 = vshrl.u32 %v12003, 7
        %v12005 = vsub.s32 %v10897, %v12004
        %v12006 = vrot.slane %v10532, %v12005
        %v12007 = vsel %vm10902, %v12006, %v12002
        %v12008 = vlaneseq
        %v12009 = vshrl.u32 %v12008, 7
        %v12010 = vsub.s32 %v10904, %v12009
        %v12011 = vrot.slane %v10535, %v12010
        %v12012 = vsel %vm10909, %v12011, %v12007
        %v12013 = vlaneseq
        %v12014 = vshrl.u32 %v12013, 7
        %v12015 = vsub.s32 %v10911, %v12014
        %v12016 = vrot.slane %v10538, %v12015
        %v12017 = vsel %vm10916, %v12016, %v12012
        %v12018 = vlaneseq
        %v12019 = vshrl.u32 %v12018, 7
        %v12020 = vsub.s32 %v10918, %v12019
        %v12021 = vrot.slane %v10541, %v12020
        %v12022 = vsel %vm10923, %v12021, %v12017
        %v12023 = vlaneseq
        %v12024 = vshrl.u32 %v12023, 7
        %v12025 = vsub.s32 %v10925, %v12024
        %v12026 = vrot.slane %v10544, %v12025
        %v12027 = vsel %vm10930, %v12026, %v12022
        %v12028 = vlaneseq
        %v12029 = vshrl.u32 %v12028, 7
        %v12030 = vsub.s32 %v10932, %v12029
        %v12031 = vrot.slane %v10547, %v12030
        %v12032 = vsel %vm10937, %v12031, %v12027
        %v12033 = vlaneseq
        %v12034 = vshrl.u32 %v12033, 7
        %v12035 = vsub.s32 %v10939, %v12034
        %v12036 = vrot.slane %v10550, %v12035
        %v12037 = vsel %vm10944, %v12036, %v12032
        %v12038 = vlaneseq
        %v12039 = vshrl.u32 %v12038, 7
        %v12040 = vsub.s32 %v10892, %v12039
        %v12041 = vrot.slane %v10553, %v12040
        %v12042 = vlaneseq
        %v12043 = vshrl.u32 %v12042, 7
        %v12044 = vsub.s32 %v10897, %v12043
        %v12045 = vrot.slane %v10556, %v12044
        %v12046 = vsel %vm10902, %v12045, %v12041
        %v12047 = vlaneseq
        %v12048 = vshrl.u32 %v12047, 7
        %v12049 = vsub.s32 %v10904, %v12048
        %v12050 = vrot.slane %v10559, %v12049
        %v12051 = vsel %vm10909, %v12050, %v12046
        %v12052 = vlaneseq
        %v12053 = vshrl.u32 %v12052, 7
        %v12054 = vsub.s32 %v10911, %v12053
        %v12055 = vrot.slane %v10562, %v12054
        %v12056 = vsel %vm10916, %v12055, %v12051
        %v12057 = vlaneseq
        %v12058 = vshrl.u32 %v12057, 7
        %v12059 = vsub.s32 %v10918, %v12058
        %v12060 = vrot.slane %v10565, %v12059
        %v12061 = vsel %vm10923, %v12060, %v12056
        %v12062 = vlaneseq
        %v12063 = vshrl.u32 %v12062, 7
        %v12064 = vsub.s32 %v10925, %v12063
        %v12065 = vrot.slane %v10568, %v12064
        %v12066 = vsel %vm10930, %v12065, %v12061
        %v12067 = vlaneseq
        %v12068 = vshrl.u32 %v12067, 7
        %v12069 = vsub.s32 %v10932, %v12068
        %v12070 = vrot.slane %v10571, %v12069
        %v12071 = vsel %vm10937, %v12070, %v12066
        %v12072 = vlaneseq
        %v12073 = vshrl.u32 %v12072, 7
        %v12074 = vsub.s32 %v10939, %v12073
        %v12075 = vrot.slane %v10574, %v12074
        %v12076 = vsel %vm10944, %v12075, %v12071
        %v12077 = vlaneseq
        %v12078 = vshrl.u32 %v12077, 7
        %v12079 = vsub.s32 %v10892, %v12078
        %v12080 = vrot.slane %v10577, %v12079
        %v12081 = vlaneseq
        %v12082 = vshrl.u32 %v12081, 7
        %v12083 = vsub.s32 %v10897, %v12082
        %v12084 = vrot.slane %v10580, %v12083
        %v12085 = vsel %vm10902, %v12084, %v12080
        %v12086 = vlaneseq
        %v12087 = vshrl.u32 %v12086, 7
        %v12088 = vsub.s32 %v10904, %v12087
        %v12089 = vrot.slane %v10583, %v12088
        %v12090 = vsel %vm10909, %v12089, %v12085
        %v12091 = vlaneseq
        %v12092 = vshrl.u32 %v12091, 7
        %v12093 = vsub.s32 %v10911, %v12092
        %v12094 = vrot.slane %v10586, %v12093
        %v12095 = vsel %vm10916, %v12094, %v12090
        %v12096 = vlaneseq
        %v12097 = vshrl.u32 %v12096, 7
        %v12098 = vsub.s32 %v10918, %v12097
        %v12099 = vrot.slane %v10589, %v12098
        %v12100 = vsel %vm10923, %v12099, %v12095
        %v12101 = vlaneseq
        %v12102 = vshrl.u32 %v12101, 7
        %v12103 = vsub.s32 %v10925, %v12102
        %v12104 = vrot.slane %v10592, %v12103
        %v12105 = vsel %vm10930, %v12104, %v12100
        %v12106 = vlaneseq
        %v12107 = vshrl.u32 %v12106, 7
        %v12108 = vsub.s32 %v10932, %v12107
        %v12109 = vrot.slane %v10595, %v12108
        %v12110 = vsel %vm10937, %v12109, %v12105
        %v12111 = vlaneseq
        %v12112 = vshrl.u32 %v12111, 7
        %v12113 = vsub.s32 %v10939, %v12112
        %v12114 = vrot.slane %v10598, %v12113
        %v12115 = vsel %vm10944, %v12114, %v12110
        %v12116 = vlaneseq
        %v12117 = vshrl.u32 %v12116, 7
        %v12118 = vsub.s32 %v10892, %v12117
        %v12119 = vrot.slane %v10601, %v12118
        %v12120 = vlaneseq
        %v12121 = vshrl.u32 %v12120, 7
        %v12122 = vsub.s32 %v10897, %v12121
        %v12123 = vrot.slane %v10604, %v12122
        %v12124 = vsel %vm10902, %v12123, %v12119
        %v12125 = vlaneseq
        %v12126 = vshrl.u32 %v12125, 7
        %v12127 = vsub.s32 %v10904, %v12126
        %v12128 = vrot.slane %v10607, %v12127
        %v12129 = vsel %vm10909, %v12128, %v12124
        %v12130 = vlaneseq
        %v12131 = vshrl.u32 %v12130, 7
        %v12132 = vsub.s32 %v10911, %v12131
        %v12133 = vrot.slane %v10610, %v12132
        %v12134 = vsel %vm10916, %v12133, %v12129
        %v12135 = vlaneseq
        %v12136 = vshrl.u32 %v12135, 7
        %v12137 = vsub.s32 %v10918, %v12136
        %v12138 = vrot.slane %v10613, %v12137
        %v12139 = vsel %vm10923, %v12138, %v12134
        %v12140 = vlaneseq
        %v12141 = vshrl.u32 %v12140, 7
        %v12142 = vsub.s32 %v10925, %v12141
        %v12143 = vrot.slane %v10616, %v12142
        %v12144 = vsel %vm10930, %v12143, %v12139
        %v12145 = vlaneseq
        %v12146 = vshrl.u32 %v12145, 7
        %v12147 = vsub.s32 %v10932, %v12146
        %v12148 = vrot.slane %v10619, %v12147
        %v12149 = vsel %vm10937, %v12148, %v12144
        %v12150 = vlaneseq
        %v12151 = vshrl.u32 %v12150, 7
        %v12152 = vsub.s32 %v10939, %v12151
        %v12153 = vrot.slane %v10622, %v12152
        %v12154 = vsel %vm10944, %v12153, %v12149
        %vm12155 = vcmask 1041409
        %v12156 = vsel %vm12155, %v10984, %v10945
        %vm12157 = vcmask 1042434
        %v12158 = vsel %vm12157, %v11023, %v12156
        %vm12159 = vcmask 1043459
        %v12160 = vsel %vm12159, %v11062, %v12158
        %vm12161 = vcmask 1044484
        %v12162 = vsel %vm12161, %v11101, %v12160
        %vm12163 = vcmask 1045509
        %v12164 = vsel %vm12163, %v11140, %v12162
        %vm12165 = vcmask 1046534
        %v12166 = vsel %vm12165, %v11179, %v12164
        %vm12167 = vcmask 1047559
        %v12168 = vsel %vm12167, %v11218, %v12166
        %v12169 = vsel %vm12155, %v11296, %v11257
        %v12170 = vsel %vm12157, %v11335, %v12169
        %v12171 = vsel %vm12159, %v11374, %v12170
        %v12172 = vsel %vm12161, %v11413, %v12171
        %v12173 = vsel %vm12163, %v11452, %v12172
        %v12174 = vsel %vm12165, %v11491, %v12173
        %v12175 = vsel %vm12167, %v11530, %v12174
        %v12176 = vsel %vm12155, %v11608, %v11569
        %v12177 = vsel %vm12157, %v11647, %v12176
        %v12178 = vsel %vm12159, %v11686, %v12177
        %v12179 = vsel %vm12161, %v11725, %v12178
        %v12180 = vsel %vm12163, %v11764, %v12179
        %v12181 = vsel %vm12165, %v11803, %v12180
        %v12182 = vsel %vm12167, %v11842, %v12181
        %v12183 = vsel %vm12155, %v11920, %v11881
        %v12184 = vsel %vm12157, %v11959, %v12183
        %v12185 = vsel %vm12159, %v11998, %v12184
        %v12186 = vsel %vm12161, %v12037, %v12185
        %v12187 = vsel %vm12163, %v12076, %v12186
        %v12188 = vsel %vm12165, %v12115, %v12187
        %v12189 = vsel %vm12167, %v12154, %v12188
        %v12190 = vsel %vm2975, %v12168, 0
        %v12192 = vsel %vm2975, %v12175, 0
        %v12194 = vsel %vm2975, %v12182, 0
        %v12196 = vsel %vm2975, %v12189, 0
        %12198 = vmatprep.subr.mxu0 0.0
        %12199 = vmatpush1.msra.mxu0 0.0
        %12200 = vmatprep.subr.mxu0 0.0
        %12201 = vmatpush1.msra.mxu0 0.0
        %12202 = vmatprep.subr.mxu0 0.0
        %12203 = vmatpush1.msra.mxu0 0.0
        %12204 = vmatprep.subr.mxu0 0.0
        %12205 = vmatpush1.msra.mxu0 0.0
        %12206 = vmatprep.subr.mxu0 0.0
        %12207 = vmatpush1.msra.mxu0 0.0
        %12208 = vmatprep.subr.mxu0 0.0
        %12209 = vmatpush1.msra.mxu0 0.0
        %12210 = vmatprep.subr.mxu0 0.0
        %12211 = vmatpush1.msra.mxu0 0.0
        %12212 = vmatprep.subr.mxu0 0.0
        %12213 = vmatpush1.msra.mxu0 0.0
        %12214 = vmatprep.subr.mxu0 0.0
        %12215 = vmatpush1.msra.mxu0 %v10630
        %12216 = vmatprep.subr.mxu0 0.0
        %12217 = vmatpush1.msra.mxu0 %v10629
        %12218 = vmatprep.subr.mxu0 0.0
        %12219 = vmatpush1.msra.mxu0 %v10628
        %12220 = vmatprep.subr.mxu0 0.0
        %12221 = vmatpush1.msra.mxu0 %v10627
        %12222 = vmatprep.subr.mxu0 0.0
        %12223 = vmatpush1.msra.mxu0 %v10626
        %12224 = vmatprep.subr.mxu0 0.0
        %12225 = vmatpush1.msra.mxu0 %v10625
        %12226 = vmatprep.subr.mxu0 0.0
        %12227 = vmatpush1.msra.mxu0 %v10624
        %12228 = vmatprep.subr.mxu0 0.0
        %12229 = vmatpush1.msra.mxu0 %v10623
        %12230 = vmatprep.subr.mxu0 0.0
        %12231 = vmatpush2.msra.mxu0 0.0
        %12232 = vmatprep.subr.mxu0 0.0
        %12233 = vmatpush2.msra.mxu0 0.0
        %12234 = vmatprep.subr.mxu0 0.0
        %12235 = vmatpush2.msra.mxu0 0.0
        %12236 = vmatprep.subr.mxu0 0.0
        %12237 = vmatpush2.msra.mxu0 0.0
        %12238 = vmatprep.subr.mxu0 0.0
        %12239 = vmatpush2.msra.mxu0 0.0
        %12240 = vmatprep.subr.mxu0 0.0
        %12241 = vmatpush2.msra.mxu0 0.0
        %12242 = vmatprep.subr.mxu0 0.0
        %12243 = vmatpush2.msra.mxu0 0.0
        %12244 = vmatprep.subr.mxu0 0.0
        %12245 = vmatpush2.msra.mxu0 0.0
        %12246 = vmatprep.subr.mxu0 0.0
        %12247 = vmatpush2.msra.mxu0 0.0
        %12248 = vmatprep.subr.mxu0 0.0
        %12249 = vmatpush2.msra.mxu0 0.0
        %12250 = vmatprep.subr.mxu0 0.0
        %12251 = vmatpush2.msra.mxu0 0.0
        %12252 = vmatprep.subr.mxu0 0.0
        %12253 = vmatpush2.msra.mxu0 0.0
        %12254 = vmatprep.subr.mxu0 0.0
        %12255 = vmatpush2.msra.mxu0 0.0
        %12256 = vmatprep.subr.mxu0 0.0
        %12257 = vmatpush2.msra.mxu0 0.0
        %12258 = vmatprep.subr.mxu0 0.0
        %12259 = vmatpush2.msra.mxu0 0.0
        %12260 = vmatprep.subr.mxu0 0.0
        %12261 = vmatpush2.msra.mxu0 0.0
        %12262 = vmatprep.mubr.f32.mxu0 0.0
        %12263 = vmatmul.mubr.f32.gmra.mxu0 %v12190
        %v12264 = vpop.f32.mrf.mxu0
        %v12265 = vadd.f32 %v10631, %v12264
        %v12266 = vpop.f32.mrf.mxu0
        %12267 = vmatprep.mubr.f32.mxu0 0.0
        %12268 = vmatmul.mubr.f32.gmra.mxu0 %v12192
        %v12269 = vpop.f32.mrf.mxu0
        %v12270 = vadd.f32 %v10632, %v12269
        %v12271 = vpop.f32.mrf.mxu0
        %12272 = vmatprep.mubr.f32.mxu0 0.0
        %12273 = vmatmul.mubr.f32.gmra.mxu0 %v12194
        %v12274 = vpop.f32.mrf.mxu0
        %v12275 = vadd.f32 %v10633, %v12274
        %v12276 = vpop.f32.mrf.mxu0
        %12277 = vmatprep.mubr.f32.mxu0 0.0
        %12278 = vmatmul.mubr.f32.gmra.mxu0 %v12196
        %v12279 = vpop.f32.mrf.mxu0
        %v12280 = vadd.f32 %v10634, %v12279
        %v12281 = vpop.f32.mrf.mxu0
        %12282 = vdwg.mxu0
        %v12283 = vmax.f32 %v12265, 0.0
        %v12284 = vmax.f32 %v12270, 0.0
        %v12285 = vmax.f32 %v12275, 0.0
        %v12286 = vmax.f32 %v12280, 0.0
        %v12287 = vld [vmem:[%s6] sm:$0xff]
        %v12288 = vld [vmem:[%s6 + $0x8] sm:$0xff]
        %v12289 = vld [vmem:[%s6 + $0x10] sm:$0xff]
        %v12290 = vld [vmem:[%s6 + $0x18] sm:$0xff]
        %v12291 = vld [vmem:[%s6 + $0x20] sm:$0xff]
        %v12292 = vld [vmem:[%s6 + $0x28] sm:$0xff]
        %v12293 = vld [vmem:[%s6 + $0x30] sm:$0xff]
        %v12294 = vld [vmem:[%s6 + $0x38] sm:$0xff]
        %v12295 = vld [vmem:[%s6 + $0x40] sm:$0xff]
        %v12296 = vld [vmem:[%s6 + $0x48] sm:$0xff]
        %v12297 = vld [vmem:[%s6 + $0x50] sm:$0xff]
        %v12298 = vld [vmem:[%s6 + $0x58] sm:$0xff]
        %v12299 = vld [vmem:[%s6 + $0x60] sm:$0xff]
        %v12300 = vld [vmem:[%s6 + $0x68] sm:$0xff]
        %v12301 = vld [vmem:[%s6 + $0x70] sm:$0xff]
        %v12302 = vld [vmem:[%s6 + $0x78] sm:$0xff]
        %v12303 = vld [vmem:[%s7] sm:$0x1]
        %v12305 = vlaneseq
        %v12306 = vshrl.u32 %v12305, 7
        %v12307 = vsub.s32 0, %v12306
        %v12308 = vrot.slane %v12303, %v12307
        %12310 = vmatprep.subr.mxu0 0.0
        %12311 = vmatpush1.msra.mxu0 %v12302
        %12312 = vmatprep.subr.mxu0 0.0
        %12313 = vmatpush1.msra.mxu0 %v12301
        %12314 = vmatprep.subr.mxu0 0.0
        %12315 = vmatpush1.msra.mxu0 %v12300
        %12316 = vmatprep.subr.mxu0 0.0
        %12317 = vmatpush1.msra.mxu0 %v12299
        %12318 = vmatprep.subr.mxu0 0.0
        %12319 = vmatpush1.msra.mxu0 %v12298
        %12320 = vmatprep.subr.mxu0 0.0
        %12321 = vmatpush1.msra.mxu0 %v12297
        %12322 = vmatprep.subr.mxu0 0.0
        %12323 = vmatpush1.msra.mxu0 %v12296
        %12324 = vmatprep.subr.mxu0 0.0
        %12325 = vmatpush1.msra.mxu0 %v12295
        %12326 = vmatprep.subr.mxu0 0.0
        %12327 = vmatpush1.msra.mxu0 %v12294
        %12328 = vmatprep.subr.mxu0 0.0
        %12329 = vmatpush1.msra.mxu0 %v12293
        %12330 = vmatprep.subr.mxu0 0.0
        %12331 = vmatpush1.msra.mxu0 %v12292
        %12332 = vmatprep.subr.mxu0 0.0
        %12333 = vmatpush1.msra.mxu0 %v12291
        %12334 = vmatprep.subr.mxu0 0.0
        %12335 = vmatpush1.msra.mxu0 %v12290
        %12336 = vmatprep.subr.mxu0 0.0
        %12337 = vmatpush1.msra.mxu0 %v12289
        %12338 = vmatprep.subr.mxu0 0.0
        %12339 = vmatpush1.msra.mxu0 %v12288
        %12340 = vmatprep.subr.mxu0 0.0
        %12341 = vmatpush1.msra.mxu0 %v12287
        %12342 = vmatprep.subr.mxu0 0.0
        %12343 = vmatpush2.msra.mxu0 0.0
        %12344 = vmatprep.subr.mxu0 0.0
        %12345 = vmatpush2.msra.mxu0 0.0
        %12346 = vmatprep.subr.mxu0 0.0
        %12347 = vmatpush2.msra.mxu0 0.0
        %12348 = vmatprep.subr.mxu0 0.0
        %12349 = vmatpush2.msra.mxu0 0.0
        %12350 = vmatprep.subr.mxu0 0.0
        %12351 = vmatpush2.msra.mxu0 0.0
        %12352 = vmatprep.subr.mxu0 0.0
        %12353 = vmatpush2.msra.mxu0 0.0
        %12354 = vmatprep.subr.mxu0 0.0
        %12355 = vmatpush2.msra.mxu0 0.0
        %12356 = vmatprep.subr.mxu0 0.0
        %12357 = vmatpush2.msra.mxu0 0.0
        %12358 = vmatprep.subr.mxu0 0.0
        %12359 = vmatpush2.msra.mxu0 0.0
        %12360 = vmatprep.subr.mxu0 0.0
        %12361 = vmatpush2.msra.mxu0 0.0
        %12362 = vmatprep.subr.mxu0 0.0
        %12363 = vmatpush2.msra.mxu0 0.0
        %12364 = vmatprep.subr.mxu0 0.0
        %12365 = vmatpush2.msra.mxu0 0.0
        %12366 = vmatprep.subr.mxu0 0.0
        %12367 = vmatpush2.msra.mxu0 0.0
        %12368 = vmatprep.subr.mxu0 0.0
        %12369 = vmatpush2.msra.mxu0 0.0
        %12370 = vmatprep.subr.mxu0 0.0
        %12371 = vmatpush2.msra.mxu0 0.0
        %12372 = vmatprep.subr.mxu0 0.0
        %12373 = vmatpush2.msra.mxu0 0.0
        %12374 = vmatprep.mubr.f32.mxu0 0.0
        %12375 = vmatmul.mubr.f32.gmra.mxu0 %v12283
        %v12376 = vpop.f32.mrf.mxu0
        %v12377 = vadd.f32 %v12308, %v12376
        %v12378 = vpop.f32.mrf.mxu0
        %12379 = vmatprep.mubr.f32.mxu0 0.0
        %12380 = vmatmul.mubr.f32.gmra.mxu0 %v12284
        %v12381 = vpop.f32.mrf.mxu0
        %v12382 = vadd.f32 %v12308, %v12381
        %v12383 = vpop.f32.mrf.mxu0
        %12384 = vmatprep.mubr.f32.mxu0 0.0
        %12385 = vmatmul.mubr.f32.gmra.mxu0 %v12285
        %v12386 = vpop.f32.mrf.mxu0
        %v12387 = vadd.f32 %v12308, %v12386
        %v12388 = vpop.f32.mrf.mxu0
        %12389 = vmatprep.mubr.f32.mxu0 0.0
        %12390 = vmatmul.mubr.f32.gmra.mxu0 %v12286
        %v12391 = vpop.f32.mrf.mxu0
        %v12392 = vadd.f32 %v12308, %v12391
        %v12393 = vpop.f32.mrf.mxu0
        %12394 = vdwg.mxu0
        %12395 = vst [vmem:[%s315] sm:$0xff] %v12377
        %12396 = vst [vmem:[%s315 + $0x8] sm:$0xff] %v12382
        %12397 = vst [vmem:[%s315 + $0x10] sm:$0xff] %v12387
        %12398 = vst [vmem:[%s315 + $0x18] sm:$0xff] %v12392
        %s12399 = sand.u32 %s208, 1
        %s12400 = scalar_lea.sflag [#allocation3], %s12399
        %s12401 = sand.u32 %s208, 1
        %s12402 = smul.addr %s12401, 32
        %s12403 = scalar_lea.vmem [#allocation2], %s12402
        // Predicated region
        $region53: #{tpu_custom_call.1} parent=51 // pred_check
          %p12404 = pneg %p218
        $region54: #{tpu_custom_call.1} parent=51 // pred_check_branch
          %12406 = sbr.rel (%p12404) target = $region56
        $region55: #{tpu_custom_call.1} parent=51 // pred_region
          %s12407 = smul.u32 4, %s22
          %s12409 = ssub.s32 512, 512
          %12410 = vsyncadd %s12400, %s12409
          %s12411 = smul.addr %s12407, 128
          %s12412 = scalar_lea.hbm %s8, %s12411
          %s12413 = sshll.u32 %s12403, 4
          %s12414 = int_to_ptr.vmem [resolvable:$true] %s12413
          %12419 = dma.vmem_to_hbm [thread:$0]  %s12414, 512, %s12412, %s12400, 128, 128, 8
        $region56: #{tpu_custom_call.1} parent=51 // pred_fallthru
          _
      $region52: #{tpu_custom_call.1} parent=5 // pred_fallthru
        _
      %p12420 = scmp.le.s32.totalorder 2, %s17
      // Predicated region
      $region57: #{tpu_custom_call.1} parent=5 // pred_check
        %p12421 = pneg %p12420
      $region58: #{tpu_custom_call.1} parent=5 // pred_check_branch
        %12423 = sbr.rel (%p12421) target = $region60
      $region59: #{tpu_custom_call.1} parent=5 // pred_region
        %s12424 = ssub.s32 %s17, 2
        // Predicated region
        $region61: #{tpu_custom_call.1} parent=59 // pred_check
          %p12425 = pneg %p224
        $region62: #{tpu_custom_call.1} parent=59 // pred_check_branch
          %12427 = sbr.rel (%p12425) target = $region64
        $region63: #{tpu_custom_call.1} parent=59 // pred_region
          %s12428 = sand.u32 %s209, 1
          %s12429 = scalar_lea.sflag [#allocation3], %s12428
          %s12430 = sand.u32 %s209, 1
          %s12431 = smul.addr %s12430, 32
          %s12432 = scalar_lea.vmem [#allocation2], %s12431
          %12433 = dma.done %s12429, 512
        $region64: #{tpu_custom_call.1} parent=59 // pred_fallthru
          _
      $region60: #{tpu_custom_call.1} parent=5 // pred_fallthru
        _
    $region6: #{tpu_custom_call.1} parent=1 // loop_footer
      %s21 = sadd.s32 1, %s17
    $region7: #{tpu_custom_call.1} parent=1 // loop_footer_branch
      %16 = sbr.rel target = $region3
    $region8: #{tpu_custom_call.1} parent=1 // loop_exit
      _
    %12434 = vsyncpa [#allocation3], 1
    %s12435 = scalar_lea.sflag [#allocation3], 1
    %12436 = vsyncpa %s12435, 1

</llo_original>
